<compile_context>
chip_gen: v5e
topology: v5e:2x2
jax: 0.10.0
libtpu: 0.0.40
codegen_flags: <defaults>
</compile_context>

<pallas_src>
import jax
import jax.numpy as jnp
from jax.experimental import pallas as pl
from jax.experimental.pallas import tpu as pltpu

LD = 11              # latent dim
HID = 1500           # real hidden width
HID_PAD = 1536       # padded hidden width (12 * 128): lane-dense and tileable
IMG = 28 * 28        # 784 real output pixels
IMG_PAD = 896        # 7 * 128: lane-dense output / w3 columns
EPS = 1e-5           # torch.nn.LayerNorm default eps
TN2 = 768            # hidden column/row tile width  -> grid of HID_PAD // TN2 = 2 steps
NJ = HID_PAD // TN2


def _norm_masked(h, mask, n):
    """LayerNorm (no affine; affine is folded into the next Linear) over the first
    `n` columns of a zero-padded last dim. Padded columns come out exactly 0."""
    h = jnp.where(mask, h, 0.0)
    mu = jnp.sum(h, axis=-1, keepdims=True) * (1.0 / n)
    c = jnp.where(mask, h - mu, 0.0)
    var = jnp.sum(c * c, axis=-1, keepdims=True) * (1.0 / n)
    return c * jax.lax.rsqrt(var + EPS)


def generator_kernel(x_ref, w1_ref, b1_ref, w2q_ref, s2_ref, b2_ref,
                     w3q_ref, s3_ref, b3_ref, w3cs_ref,
                     o_ref, h1n_ref, acc_ref, hsum_ref, hsq_ref):
    j = pl.program_id(0)
    nj = pl.num_programs(0)

    @pl.when(j == 0)
    def _():
        # Block 1: LayerNorm(11) -> Linear(11, 1500) -> Sigmoid, all f32 (tiny).
        x = x_ref[...]
        mu = jnp.mean(x, axis=-1, keepdims=True)
        var = jnp.mean(jnp.square(x - mu), axis=-1, keepdims=True)
        xn = (x - mu) * jax.lax.rsqrt(var + EPS)
        h1 = jax.nn.sigmoid(
            jnp.dot(xn, w1_ref[...], preferred_element_type=jnp.float32) + b1_ref[...])
        # LayerNorm(1500) feeding block 2 (affine folded into w2/b2); bf16 for the MXU,
        # padded columns exactly 0 so the (zero) padded rows of w2q stay inert.
        mask1 = jax.lax.broadcasted_iota(jnp.int32, (1, HID_PAD), 1) < HID
        h1n_ref[...] = _norm_masked(h1, mask1, HID).astype(jnp.bfloat16)
        # Block-3 accumulators.
        acc_ref[...] = jnp.zeros_like(acc_ref)
        hsum_ref[...] = jnp.zeros_like(hsum_ref)
        hsq_ref[...] = jnp.zeros_like(hsq_ref)

    # ---- Block 2, one TN2-wide column slab ----
    # h2[:, slab] = sigmoid( (h1n @ w2q[:, slab]) * s2[slab] + b2[slab] )
    # int8 -> f32 -> bf16 (integers <= 127 are exact in bf16); scales applied to the result.
    w2_bf = w2q_ref[...].astype(jnp.float32).astype(jnp.bfloat16)
    logits2 = jnp.dot(h1n_ref[...], w2_bf, preferred_element_type=jnp.float32)
    h2_slab = jax.nn.sigmoid(logits2 * s2_ref[...] + b2_ref[...])

    # LN(1500) statistics for block 3, masked to the real columns of this slab
    # (padded columns are sigmoid(0)=0.5 and must not enter the stats).
    col = j * TN2 + jax.lax.broadcasted_iota(jnp.int32, (1, TN2), 1)
    real = col < HID
    h2m = jnp.where(real, h2_slab, 0.0)
    hsum_ref[...] += jnp.sum(h2m, axis=-1, keepdims=True)
    hsq_ref[...] += jnp.sum(h2m * h2m, axis=-1, keepdims=True)

    # ---- Block 3, partial contraction ----
    # acc += h2_slab @ w3q[row-slab]; padded rows of w3q are exactly 0, so the 0.5s in the
    # padded h2 columns contribute nothing.
    w3_bf = w3q_ref[...].astype(jnp.float32).astype(jnp.bfloat16)
    acc_ref[...] += jnp.dot(h2_slab.astype(jnp.bfloat16), w3_bf,
                            preferred_element_type=jnp.float32)

    @pl.when(j == nj - 1)
    def _():
        # LN linearity: LN(h2) @ W3 + b3 = inv*(h2 @ W3) - inv*mu*colsum(W3) + b3,
        # with W3 = w3q * s3 (per-output-column scale) and LN affine already folded in.
        mu2 = hsum_ref[...] * (1.0 / HID)
        var2 = hsq_ref[...] * (1.0 / HID) - mu2 * mu2
        inv = jax.lax.rsqrt(var2 + EPS)
        logits3 = (inv * (acc_ref[...] * s3_ref[...])
                   - (inv * mu2) * w3cs_ref[...] + b3_ref[...])
        o_ref[...] = jax.nn.sigmoid(logits3).astype(o_ref.dtype)


def generator_forward(x, p):
    B = x.shape[0]
    Bp = ((B + 15) // 16) * 16          # multiple of 16 -> full bf16 sublane packing of the LHS
    xp = x if Bp == B else jnp.pad(x, ((0, Bp - B), (0, 0)))
    out = pl.pallas_call(
        generator_kernel,
        out_shape=jax.ShapeDtypeStruct((Bp, IMG_PAD), jnp.float32),
        grid_spec=pltpu.PrefetchScalarGridSpec(
            num_scalar_prefetch=0,
            grid=(NJ,),
            in_specs=[
                pl.BlockSpec((Bp, LD), lambda j: (0, 0)),           # x (f32, tiny)
                pl.BlockSpec((LD, HID_PAD), lambda j: (0, 0)),      # w1 (f32, ~67 KB)
                pl.BlockSpec((1, HID_PAD), lambda j: (0, 0)),       # b1 (f32)
                pl.BlockSpec((HID_PAD, TN2), lambda j: (0, j)),     # w2 column tiles (int8)
                pl.BlockSpec((1, TN2), lambda j: (0, j)),           # w2 per-column scales
                pl.BlockSpec((1, TN2), lambda j: (0, j)),           # b2 column tiles
                pl.BlockSpec((TN2, IMG_PAD), lambda j: (j, 0)),     # w3 row tiles (int8)
                pl.BlockSpec((1, IMG_PAD), lambda j: (0, 0)),       # w3 per-column scales
                pl.BlockSpec((1, IMG_PAD), lambda j: (0, 0)),       # b3
                pl.BlockSpec((1, IMG_PAD), lambda j: (0, 0)),       # colsum of dequantized w3
            ],
            out_specs=pl.BlockSpec((Bp, IMG_PAD), lambda j: (0, 0)),
            scratch_shapes=[
                pltpu.VMEM((Bp, HID_PAD), jnp.bfloat16),   # normalized h1 (persists over steps)
                pltpu.VMEM((Bp, IMG_PAD), jnp.float32),    # block-3 accumulator
                pltpu.VMEM((Bp, 1), jnp.float32),          # sum(h2) over real columns
                pltpu.VMEM((Bp, 1), jnp.float32),          # sum(h2^2) over real columns
            ]),
        compiler_params=pltpu.CompilerParams(
            dimension_semantics=("arbitrary",),
            vmem_limit_bytes=24 * 1024 * 1024),
    )(xp, p["w1"], p["b1"], p["w2q"], p["s2"], p["b2"],
      p["w3q"], p["s3"], p["b3"], p["w3cs"])
    return out[:B, :IMG]


# ----------------------------- parameters -----------------------------------
def init_raw_params(key):
    """Torch-equivalent parameters: LayerNorm gamma/beta + Linear (in,out) weights."""
    ks = jax.random.split(key, 3)

    def dense(k, fin, fout):
        kw, kb = jax.random.split(k)
        bound = 1.0 / jnp.sqrt(fin)
        w = jax.random.uniform(kw, (fin, fout), jnp.float32, -bound, bound)
        b = jax.random.uniform(kb, (1, fout), jnp.float32, -bound, bound)
        return w, b

    w1, b1 = dense(ks[0], LD, HID)
    w2, b2 = dense(ks[1], HID, HID)
    w3, b3 = dense(ks[2], HID, IMG)
    return dict(
        g1=jnp.ones((LD,), jnp.float32), be1=jnp.zeros((LD,), jnp.float32), w1=w1, b1=b1,
        g2=jnp.ones((HID,), jnp.float32), be2=jnp.zeros((HID,), jnp.float32), w2=w2, b2=b2,
        g3=jnp.ones((HID,), jnp.float32), be3=jnp.zeros((HID,), jnp.float32), w3=w3, b3=b3,
    )


def prepare_params(p):
    """Fold LN affine into the following Linear, quantize w2/w3 to int8 with per-output-column
    scales, zero-pad HID->HID_PAD and IMG->IMG_PAD, and precompute the w3 column sums used by
    the LN-linearity epilogue."""
    def fold(g, be, w, b):
        return g[:, None] * w, (be @ w + b.reshape(-1)).reshape(1, -1)

    def quant_cols(w):  # per-output-channel symmetric int8
        amax = jnp.max(jnp.abs(w), axis=0, keepdims=True)
        scale = jnp.maximum(amax, 1e-12) / 127.0
        q = jnp.clip(jnp.round(w / scale), -127.0, 127.0).astype(jnp.int8)
        return q, scale.astype(jnp.float32)

    w1, b1 = fold(p["g1"], p["be1"], p["w1"], p["b1"])
    w2, b2 = fold(p["g2"], p["be2"], p["w2"], p["b2"])
    w3, b3 = fold(p["g3"], p["be3"], p["w3"], p["b3"])

    w2q, s2 = quant_cols(w2)
    w3q, s3 = quant_cols(w3)

    w1p = jnp.zeros((LD, HID_PAD), jnp.float32).at[:, :HID].set(w1)
    b1p = jnp.zeros((1, HID_PAD), jnp.float32).at[:, :HID].set(b1)
    w2qp = jnp.zeros((HID_PAD, HID_PAD), jnp.int8).at[:HID, :HID].set(w2q)
    s2p = jnp.ones((1, HID_PAD), jnp.float32).at[:, :HID].set(s2)
    b2p = jnp.zeros((1, HID_PAD), jnp.float32).at[:, :HID].set(b2)
    w3qp = jnp.zeros((HID_PAD, IMG_PAD), jnp.int8).at[:HID, :IMG].set(w3q)
    s3p = jnp.ones((1, IMG_PAD), jnp.float32).at[:, :IMG].set(s3)
    b3p = jnp.zeros((1, IMG_PAD), jnp.float32).at[:, :IMG].set(b3)
    # Column sums of the dequantized (effective) w3: 1^T (w3q * s3). Padded rows are zero.
    w3cs = jnp.sum(w3qp.astype(jnp.float32), axis=0, keepdims=True) * s3p
    return dict(w1=w1p, b1=b1p, w2q=w2qp, s2=s2p, b2=b2p,
                w3q=w3qp, s3=s3p, b3=b3p, w3cs=w3cs)


# ----------------------------- references -----------------------------------
def _ln(h, g, be):
    mu = jnp.mean(h, axis=-1, keepdims=True)
    var = jnp.mean(jnp.square(h - mu), axis=-1, keepdims=True)
    return (h - mu) * jax.lax.rsqrt(var + EPS) * g + be


def generator_ref_f32(x, p):
    """Pure f32 reference matching the PyTorch module."""
    h = jax.nn.sigmoid(_ln(x, p["g1"], p["be1"]) @ p["w1"] + p["b1"])
    h = jax.nn.sigmoid(_ln(h, p["g2"], p["be2"]) @ p["w2"] + p["b2"])
    return jax.nn.sigmoid(_ln(h, p["g3"], p["be3"]) @ p["w3"] + p["b3"])


def generator_ref_matched(x, q):
    """Plain-JAX reference using the same folded / int8-quantized / bf16 math as the kernel."""
    def norm(h):
        mu = jnp.mean(h, axis=-1, keepdims=True)
        var = jnp.mean(jnp.square(h - mu), axis=-1, keepdims=True)
        return (h - mu) * jax.lax.rsqrt(var + EPS)

    xn = norm(x)
    h1 = jax.nn.sigmoid(xn @ q["w1"][:, :HID] + q["b1"][:, :HID])
    h1n = norm(h1).astype(jnp.bfloat16)

    w2_bf = q["w2q"][:HID, :HID].astype(jnp.float32).astype(jnp.bfloat16)
    h2 = jax.nn.sigmoid(jnp.dot(h1n, w2_bf, preferred_element_type=jnp.float32)
                        * q["s2"][:, :HID] + q["b2"][:, :HID])

    mu2 = jnp.mean(h2, axis=-1, keepdims=True)
    var2 = jnp.mean(h2 * h2, axis=-1, keepdims=True) - mu2 * mu2
    inv = jax.lax.rsqrt(var2 + EPS)
    w3_bf = q["w3q"][:HID, :IMG].astype(jnp.float32).astype(jnp.bfloat16)
    acc = jnp.dot(h2.astype(jnp.bfloat16), w3_bf, preferred_element_type=jnp.float32)
    logits3 = inv * (acc * q["s3"][:, :IMG]) - (inv * mu2) * q["w3cs"][:, :IMG] + q["b3"][:, :IMG]
    return jax.nn.sigmoid(logits3)


if __name__ == "__main__":
    key = jax.random.PRNGKey(0)
    kx, kp = jax.random.split(key)
    # The weight stream is only amortized by a larger batch WITHIN one pallas_call
    # (every call re-streams all weights).  B is kept small here; multiple of 16 so the
    # bf16 LHS packs full sublanes with no batch padding.
    B = 16
    x = jax.random.normal(kx, (B, LD), jnp.float32)

    raw = init_raw_params(kp)
    prep = prepare_params(raw)

    out = jax.block_until_ready(generator_forward(x, prep))
    assert out.shape == (B, IMG) and out.dtype == jnp.float32

    ref_q = jax.block_until_ready(generator_ref_matched(x, prep))
    ref_32 = jax.block_until_ready(generator_ref_f32(x, raw))
    err_q = float(jnp.max(jnp.abs(out - ref_q)))    # logic check vs matched int8/bf16 math
    err_32 = float(jnp.max(jnp.abs(out - ref_32)))  # drift vs full-f32 torch-equivalent math
    assert err_q < 2e-3, f"mismatch vs matched quantized reference: {err_q}"
    assert err_32 < 5e-2, f"mismatch vs f32 reference: {err_32}"

    print("KERNEL_OK")
</pallas_src>

<mosaic_0001>
module attributes {stable_mosaic.version = 11 : i64} {
  func.func @generator_kernel(%arg0: i32, %arg1: memref<16x11xf32, #tpu.memory_space<vmem>>, %arg2: memref<11x1536xf32, #tpu.memory_space<vmem>>, %arg3: memref<1x1536xf32, #tpu.memory_space<vmem>>, %arg4: memref<1536x768xi8, #tpu.memory_space<vmem>>, %arg5: memref<1x768xf32, #tpu.memory_space<vmem>>, %arg6: memref<1x768xf32, #tpu.memory_space<vmem>>, %arg7: memref<768x896xi8, #tpu.memory_space<vmem>>, %arg8: memref<1x896xf32, #tpu.memory_space<vmem>>, %arg9: memref<1x896xf32, #tpu.memory_space<vmem>>, %arg10: memref<1x896xf32, #tpu.memory_space<vmem>>, %arg11: memref<16x896xf32, #tpu.memory_space<vmem>>, %arg12: memref<16x1536xbf16, #tpu.memory_space<vmem>>, %arg13: memref<16x896xf32, #tpu.memory_space<vmem>>, %arg14: memref<16x1xf32, #tpu.memory_space<vmem>>, %arg15: memref<16x1xf32, #tpu.memory_space<vmem>>) attributes {dimension_semantics = [#tpu.dimension_semantics<arbitrary>], iteration_bounds = array<i64: 2>, scalar_prefetch = 0 : i64, scratch_operands = 4 : i64, tpu.core_type = #tpu.core_type<tc>, window_params = [{pipeline_mode = #tpu.pipeline_mode<synchronous>, transform_indices = @transform_0, window_bounds = array<i64: 16, 11>}, {pipeline_mode = #tpu.pipeline_mode<synchronous>, transform_indices = @transform_1, window_bounds = array<i64: 11, 1536>}, {pipeline_mode = #tpu.pipeline_mode<synchronous>, transform_indices = @transform_2, window_bounds = array<i64: 1, 1536>}, {transform_indices = @transform_3, window_bounds = array<i64: 1536, 768>}, {transform_indices = @transform_4, window_bounds = array<i64: 1, 768>}, {transform_indices = @transform_5, window_bounds = array<i64: 1, 768>}, {transform_indices = @transform_6, window_bounds = array<i64: 768, 896>}, {pipeline_mode = #tpu.pipeline_mode<synchronous>, transform_indices = @transform_7, window_bounds = array<i64: 1, 896>}, {pipeline_mode = #tpu.pipeline_mode<synchronous>, transform_indices = @transform_8, window_bounds = array<i64: 1, 896>}, {pipeline_mode = #tpu.pipeline_mode<synchronous>, transform_indices = @transform_9, window_bounds = array<i64: 1, 896>}, {pipeline_mode = #tpu.pipeline_mode<synchronous>, transform_indices = @transform_10, window_bounds = array<i64: 16, 896>}]} {
    %c0_i32 = arith.constant 0 : i32
    %0 = arith.cmpi eq, %arg0, %c0_i32 : i32
    %1 = arith.extui %0 : i1 to i32
    %c0_i32_0 = arith.constant 0 : i32
    %2 = arith.cmpi ne, %1, %c0_i32_0 : i32
    scf.if %2 {
      %c0_28 = arith.constant 0 : index
      %c0_29 = arith.constant 0 : index
      %51 = vector.load %arg1[%c0_28, %c0_29] : memref<16x11xf32, #tpu.memory_space<vmem>>, vector<16x11xf32>
      %cst_30 = arith.constant dense<0.000000e+00> : vector<16xf32>
      %52 = vector.multi_reduction <add>, %51, %cst_30 [1] : vector<16x11xf32> to vector<16xf32>
      %53 = vector.shape_cast %52 : vector<16xf32> to vector<16x1xf32>
      %cst_31 = arith.constant 1.100000e+01 : f32
      %54 = vector.broadcast %cst_31 : f32 to vector<16x1xf32>
      %55 = arith.divf %53, %54 : vector<16x1xf32>
      %56 = vector.broadcast %55 : vector<16x1xf32> to vector<16x11xf32>
      %57 = arith.subf %51, %56 : vector<16x11xf32>
      %58 = arith.mulf %57, %57 : vector<16x11xf32>
      %cst_32 = arith.constant dense<0.000000e+00> : vector<16xf32>
      %59 = vector.multi_reduction <add>, %58, %cst_32 [1] : vector<16x11xf32> to vector<16xf32>
      %60 = vector.shape_cast %59 : vector<16xf32> to vector<16x1xf32>
      %cst_33 = arith.constant 1.100000e+01 : f32
      %61 = vector.broadcast %cst_33 : f32 to vector<16x1xf32>
      %62 = arith.divf %60, %61 : vector<16x1xf32>
      %63 = vector.broadcast %55 : vector<16x1xf32> to vector<16x11xf32>
      %64 = arith.subf %51, %63 : vector<16x11xf32>
      %cst_34 = arith.constant 9.99999974E-6 : f32
      %65 = vector.broadcast %cst_34 : f32 to vector<16x1xf32>
      %66 = arith.addf %62, %65 : vector<16x1xf32>
      %67 = math.rsqrt %66 : vector<16x1xf32>
      %68 = vector.broadcast %67 : vector<16x1xf32> to vector<16x11xf32>
      %69 = arith.mulf %64, %68 : vector<16x11xf32>
      %c0_35 = arith.constant 0 : index
      %c0_36 = arith.constant 0 : index
      %70 = vector.load %arg2[%c0_35, %c0_36] : memref<11x1536xf32, #tpu.memory_space<vmem>>, vector<11x1536xf32>
      %cst_37 = arith.constant dense<0.000000e+00> : vector<16x1536xf32>
      %71 = tpu.matmul %69, %70, %cst_37 {dimension_numbers = #tpu.dot_dimension_numbers<[1], [0], [0], [1], [0, 0, 1, 1], [], []>} : vector<16x11xf32>, vector<11x1536xf32>, vector<16x1536xf32> -> vector<16x1536xf32>
      %c0_38 = arith.constant 0 : index
      %c0_39 = arith.constant 0 : index
      %72 = vector.load %arg3[%c0_38, %c0_39] : memref<1x1536xf32, #tpu.memory_space<vmem>>, vector<1x1536xf32>
      %73 = vector.broadcast %72 : vector<1x1536xf32> to vector<16x1536xf32>
      %74 = arith.addf %71, %73 : vector<16x1536xf32>
      %75 = arith.negf %74 : vector<16x1536xf32>
      %76 = math.exp %75 : vector<16x1536xf32>
      %cst_40 = arith.constant 1.000000e+00 : f32
      %77 = vector.broadcast %cst_40 : f32 to vector<16x1536xf32>
      %78 = arith.addf %77, %76 : vector<16x1536xf32>
      %79 = arith.divf %77, %78 : vector<16x1536xf32>
      %80 = tpu.iota {dimensions = array<i32: 1>} : vector<1x1536xi32>
      %c1500_i32_41 = arith.constant 1500 : i32
      %81 = vector.broadcast %c1500_i32_41 : i32 to vector<1x1536xi32>
      %82 = arith.cmpi slt, %80, %81 : vector<1x1536xi32>
      %cst_42 = arith.constant 0.000000e+00 : f32
      %83 = vector.shape_cast %82 : vector<1x1536xi1> to vector<1x1536xi1>
      %84 = vector.broadcast %83 : vector<1x1536xi1> to vector<16x1536xi1>
      %85 = vector.broadcast %cst_42 : f32 to vector<16x1536xf32>
      %86 = arith.select %84, %79, %85 : vector<16x1536xi1>, vector<16x1536xf32>
      %cst_43 = arith.constant dense<0.000000e+00> : vector<16xf32>
      %87 = vector.multi_reduction <add>, %86, %cst_43 [1] : vector<16x1536xf32> to vector<16xf32>
      %88 = vector.shape_cast %87 : vector<16xf32> to vector<16x1xf32>
      %cst_44 = arith.constant 6.66666659E-4 : f32
      %89 = vector.broadcast %cst_44 : f32 to vector<16x1xf32>
      %90 = arith.mulf %88, %89 : vector<16x1xf32>
      %91 = vector.broadcast %90 : vector<16x1xf32> to vector<16x1536xf32>
      %92 = arith.subf %86, %91 : vector<16x1536xf32>
      %cst_45 = arith.constant 0.000000e+00 : f32
      %93 = vector.shape_cast %82 : vector<1x1536xi1> to vector<1x1536xi1>
      %94 = vector.broadcast %93 : vector<1x1536xi1> to vector<16x1536xi1>
      %95 = vector.broadcast %cst_45 : f32 to vector<16x1536xf32>
      %96 = arith.select %94, %92, %95 : vector<16x1536xi1>, vector<16x1536xf32>
      %97 = arith.mulf %96, %96 : vector<16x1536xf32>
      %cst_46 = arith.constant dense<0.000000e+00> : vector<16xf32>
      %98 = vector.multi_reduction <add>, %97, %cst_46 [1] : vector<16x1536xf32> to vector<16xf32>
      %99 = vector.shape_cast %98 : vector<16xf32> to vector<16x1xf32>
      %cst_47 = arith.constant 6.66666659E-4 : f32
      %100 = vector.broadcast %cst_47 : f32 to vector<16x1xf32>
      %101 = arith.mulf %99, %100 : vector<16x1xf32>
      %cst_48 = arith.constant 9.99999974E-6 : f32
      %102 = vector.broadcast %cst_48 : f32 to vector<16x1xf32>
      %103 = arith.addf %101, %102 : vector<16x1xf32>
      %104 = math.rsqrt %103 : vector<16x1xf32>
      %105 = vector.broadcast %104 : vector<16x1xf32> to vector<16x1536xf32>
      %106 = arith.mulf %96, %105 : vector<16x1536xf32>
      %107 = arith.truncf %106 : vector<16x1536xf32> to vector<16x1536xbf16>
      %c0_49 = arith.constant 0 : index
      %c0_50 = arith.constant 0 : index
      %108 = vector.load %arg12[%c0_49, %c0_50] : memref<16x1536xbf16, #tpu.memory_space<vmem>>, vector<16x1536xbf16>
      tpu.vector_store %arg12[%c0_49, %c0_50], %107 {strides = array<i32>} : memref<16x1536xbf16, #tpu.memory_space<vmem>>, vector<16x1536xbf16>,
      %cst_51 = arith.constant 0.000000e+00 : f32
      %109 = vector.broadcast %cst_51 : f32 to vector<16x896xf32>
      %c0_52 = arith.constant 0 : index
      %c0_53 = arith.constant 0 : index
      %110 = vector.load %arg13[%c0_52, %c0_53] : memref<16x896xf32, #tpu.memory_space<vmem>>, vector<16x896xf32>
      tpu.vector_store %arg13[%c0_52, %c0_53], %109 {strides = array<i32>} : memref<16x896xf32, #tpu.memory_space<vmem>>, vector<16x896xf32>,
      %cst_54 = arith.constant 0.000000e+00 : f32
      %111 = vector.broadcast %cst_54 : f32 to vector<16x1xf32>
      %c0_55 = arith.constant 0 : index
      %c0_56 = arith.constant 0 : index
      %112 = vector.load %arg14[%c0_55, %c0_56] : memref<16x1xf32, #tpu.memory_space<vmem>>, vector<16x1xf32>
      tpu.vector_store %arg14[%c0_55, %c0_56], %111 {strides = array<i32>} : memref<16x1xf32, #tpu.memory_space<vmem>>, vector<16x1xf32>,
      %cst_57 = arith.constant 0.000000e+00 : f32
      %113 = vector.broadcast %cst_57 : f32 to vector<16x1xf32>
      %c0_58 = arith.constant 0 : index
      %c0_59 = arith.constant 0 : index
      %114 = vector.load %arg15[%c0_58, %c0_59] : memref<16x1xf32, #tpu.memory_space<vmem>>, vector<16x1xf32>
      tpu.vector_store %arg15[%c0_58, %c0_59], %113 {strides = array<i32>} : memref<16x1xf32, #tpu.memory_space<vmem>>, vector<16x1xf32>,
    } else {
    }
    %c0 = arith.constant 0 : index
    %c0_1 = arith.constant 0 : index
    %3 = vector.load %arg4[%c0, %c0_1] : memref<1536x768xi8, #tpu.memory_space<vmem>>, vector<1536x768xi8>
    %4 = arith.sitofp %3 : vector<1536x768xi8> to vector<1536x768xf32>
    %5 = arith.truncf %4 : vector<1536x768xf32> to vector<1536x768xbf16>
    %c0_2 = arith.constant 0 : index
    %c0_3 = arith.constant 0 : index
    %6 = vector.load %arg12[%c0_2, %c0_3] : memref<16x1536xbf16, #tpu.memory_space<vmem>>, vector<16x1536xbf16>
    %cst = arith.constant dense<0.000000e+00> : vector<16x768xf32>
    %7 = tpu.matmul %6, %5, %cst {dimension_numbers = #tpu.dot_dimension_numbers<[1], [0], [0], [1], [0, 0, 1, 1], [], []>} : vector<16x1536xbf16>, vector<1536x768xbf16>, vector<16x768xf32> -> vector<16x768xf32>
    %c0_4 = arith.constant 0 : index
    %c0_5 = arith.constant 0 : index
    %8 = vector.load %arg5[%c0_4, %c0_5] : memref<1x768xf32, #tpu.memory_space<vmem>>, vector<1x768xf32>
    %9 = vector.broadcast %8 : vector<1x768xf32> to vector<16x768xf32>
    %10 = arith.mulf %7, %9 : vector<16x768xf32>
    %c0_6 = arith.constant 0 : index
    %c0_7 = arith.constant 0 : index
    %11 = vector.load %arg6[%c0_6, %c0_7] : memref<1x768xf32, #tpu.memory_space<vmem>>, vector<1x768xf32>
    %12 = vector.broadcast %11 : vector<1x768xf32> to vector<16x768xf32>
    %13 = arith.addf %10, %12 : vector<16x768xf32>
    %14 = arith.negf %13 : vector<16x768xf32>
    %15 = math.exp %14 : vector<16x768xf32>
    %cst_8 = arith.constant 1.000000e+00 : f32
    %16 = vector.broadcast %cst_8 : f32 to vector<16x768xf32>
    %17 = arith.addf %16, %15 : vector<16x768xf32>
    %18 = arith.divf %16, %17 : vector<16x768xf32>
    %c768_i32 = arith.constant 768 : i32
    %19 = arith.muli %arg0, %c768_i32 : i32
    %20 = tpu.iota {dimensions = array<i32: 1>} : vector<1x768xi32>
    %21 = vector.broadcast %19 : i32 to vector<1x768xi32>
    %22 = arith.addi %21, %20 : vector<1x768xi32>
    %c1500_i32 = arith.constant 1500 : i32
    %23 = vector.broadcast %c1500_i32 : i32 to vector<1x768xi32>
    %24 = arith.cmpi slt, %22, %23 : vector<1x768xi32>
    %cst_9 = arith.constant 0.000000e+00 : f32
    %25 = vector.shape_cast %24 : vector<1x768xi1> to vector<1x768xi1>
    %26 = vector.broadcast %25 : vector<1x768xi1> to vector<16x768xi1>
    %27 = vector.broadcast %cst_9 : f32 to vector<16x768xf32>
    %28 = arith.select %26, %18, %27 : vector<16x768xi1>, vector<16x768xf32>
    %c0_10 = arith.constant 0 : index
    %c0_11 = arith.constant 0 : index
    %29 = vector.load %arg14[%c0_10, %c0_11] : memref<16x1xf32, #tpu.memory_space<vmem>>, vector<16x1xf32>
    %cst_12 = arith.constant dense<0.000000e+00> : vector<16xf32>
    %30 = vector.multi_reduction <add>, %28, %cst_12 [1] : vector<16x768xf32> to vector<16xf32>
    %31 = vector.shape_cast %30 : vector<16xf32> to vector<16x1xf32>
    %32 = arith.addf %29, %31 : vector<16x1xf32>
    %c0_13 = arith.constant 0 : index
    %c0_14 = arith.constant 0 : index
    %33 = vector.load %arg14[%c0_13, %c0_14] : memref<16x1xf32, #tpu.memory_space<vmem>>, vector<16x1xf32>
    tpu.vector_store %arg14[%c0_13, %c0_14], %32 {strides = array<i32>} : memref<16x1xf32, #tpu.memory_space<vmem>>, vector<16x1xf32>,
    %c0_15 = arith.constant 0 : index
    %c0_16 = arith.constant 0 : index
    %34 = vector.load %arg15[%c0_15, %c0_16] : memref<16x1xf32, #tpu.memory_space<vmem>>, vector<16x1xf32>
    %35 = arith.mulf %28, %28 : vector<16x768xf32>
    %cst_17 = arith.constant dense<0.000000e+00> : vector<16xf32>
    %36 = vector.multi_reduction <add>, %35, %cst_17 [1] : vector<16x768xf32> to vector<16xf32>
    %37 = vector.shape_cast %36 : vector<16xf32> to vector<16x1xf32>
    %38 = arith.addf %34, %37 : vector<16x1xf32>
    %c0_18 = arith.constant 0 : index
    %c0_19 = arith.constant 0 : index
    %39 = vector.load %arg15[%c0_18, %c0_19] : memref<16x1xf32, #tpu.memory_space<vmem>>, vector<16x1xf32>
    tpu.vector_store %arg15[%c0_18, %c0_19], %38 {strides = array<i32>} : memref<16x1xf32, #tpu.memory_space<vmem>>, vector<16x1xf32>,
    %c0_20 = arith.constant 0 : index
    %c0_21 = arith.constant 0 : index
    %40 = vector.load %arg7[%c0_20, %c0_21] : memref<768x896xi8, #tpu.memory_space<vmem>>, vector<768x896xi8>
    %41 = arith.sitofp %40 : vector<768x896xi8> to vector<768x896xf32>
    %42 = arith.truncf %41 : vector<768x896xf32> to vector<768x896xbf16>
    %c0_22 = arith.constant 0 : index
    %c0_23 = arith.constant 0 : index
    %43 = vector.load %arg13[%c0_22, %c0_23] : memref<16x896xf32, #tpu.memory_space<vmem>>, vector<16x896xf32>
    %44 = arith.truncf %18 : vector<16x768xf32> to vector<16x768xbf16>
    %cst_24 = arith.constant dense<0.000000e+00> : vector<16x896xf32>
    %45 = tpu.matmul %44, %42, %cst_24 {dimension_numbers = #tpu.dot_dimension_numbers<[1], [0], [0], [1], [0, 0, 1, 1], [], []>} : vector<16x768xbf16>, vector<768x896xbf16>, vector<16x896xf32> -> vector<16x896xf32>
    %46 = arith.addf %43, %45 : vector<16x896xf32>
    %c0_25 = arith.constant 0 : index
    %c0_26 = arith.constant 0 : index
    %47 = vector.load %arg13[%c0_25, %c0_26] : memref<16x896xf32, #tpu.memory_space<vmem>>, vector<16x896xf32>
    tpu.vector_store %arg13[%c0_25, %c0_26], %46 {strides = array<i32>} : memref<16x896xf32, #tpu.memory_space<vmem>>, vector<16x896xf32>,
    %c1_i32 = arith.constant 1 : i32
    %48 = arith.cmpi eq, %arg0, %c1_i32 : i32
    %49 = arith.extui %48 : i1 to i32
    %c0_i32_27 = arith.constant 0 : i32
    %50 = arith.cmpi ne, %49, %c0_i32_27 : i32
    scf.if %50 {
      %c0_28 = arith.constant 0 : index
      %c0_29 = arith.constant 0 : index
      %51 = vector.load %arg14[%c0_28, %c0_29] : memref<16x1xf32, #tpu.memory_space<vmem>>, vector<16x1xf32>
      %cst_30 = arith.constant 6.66666659E-4 : f32
      %52 = vector.broadcast %cst_30 : f32 to vector<16x1xf32>
      %53 = arith.mulf %51, %52 : vector<16x1xf32>
      %c0_31 = arith.constant 0 : index
      %c0_32 = arith.constant 0 : index
      %54 = vector.load %arg15[%c0_31, %c0_32] : memref<16x1xf32, #tpu.memory_space<vmem>>, vector<16x1xf32>
      %cst_33 = arith.constant 6.66666659E-4 : f32
      %55 = vector.broadcast %cst_33 : f32 to vector<16x1xf32>
      %56 = arith.mulf %54, %55 : vector<16x1xf32>
      %57 = arith.mulf %53, %53 : vector<16x1xf32>
      %58 = arith.subf %56, %57 : vector<16x1xf32>
      %cst_34 = arith.constant 9.99999974E-6 : f32
      %59 = vector.broadcast %cst_34 : f32 to vector<16x1xf32>
      %60 = arith.addf %58, %59 : vector<16x1xf32>
      %61 = math.rsqrt %60 : vector<16x1xf32>
      %c0_35 = arith.constant 0 : index
      %c0_36 = arith.constant 0 : index
      %62 = vector.load %arg13[%c0_35, %c0_36] : memref<16x896xf32, #tpu.memory_space<vmem>>, vector<16x896xf32>
      %c0_37 = arith.constant 0 : index
      %c0_38 = arith.constant 0 : index
      %63 = vector.load %arg8[%c0_37, %c0_38] : memref<1x896xf32, #tpu.memory_space<vmem>>, vector<1x896xf32>
      %64 = vector.broadcast %63 : vector<1x896xf32> to vector<16x896xf32>
      %65 = arith.mulf %62, %64 : vector<16x896xf32>
      %66 = vector.broadcast %61 : vector<16x1xf32> to vector<16x896xf32>
      %67 = arith.mulf %66, %65 : vector<16x896xf32>
      %68 = arith.mulf %61, %53 : vector<16x1xf32>
      %c0_39 = arith.constant 0 : index
      %c0_40 = arith.constant 0 : index
      %69 = vector.load %arg10[%c0_39, %c0_40] : memref<1x896xf32, #tpu.memory_space<vmem>>, vector<1x896xf32>
      %70 = vector.broadcast %68 : vector<16x1xf32> to vector<16x896xf32>
      %71 = vector.broadcast %69 : vector<1x896xf32> to vector<16x896xf32>
      %72 = arith.mulf %70, %71 : vector<16x896xf32>
      %73 = arith.subf %67, %72 : vector<16x896xf32>
      %c0_41 = arith.constant 0 : index
      %c0_42 = arith.constant 0 : index
      %74 = vector.load %arg9[%c0_41, %c0_42] : memref<1x896xf32, #tpu.memory_space<vmem>>, vector<1x896xf32>
      %75 = vector.broadcast %74 : vector<1x896xf32> to vector<16x896xf32>
      %76 = arith.addf %73, %75 : vector<16x896xf32>
      %77 = arith.negf %76 : vector<16x896xf32>
      %78 = math.exp %77 : vector<16x896xf32>
      %cst_43 = arith.constant 1.000000e+00 : f32
      %79 = vector.broadcast %cst_43 : f32 to vector<16x896xf32>
      %80 = arith.addf %79, %78 : vector<16x896xf32>
      %81 = arith.divf %79, %80 : vector<16x896xf32>
      %c0_44 = arith.constant 0 : index
      %c0_45 = arith.constant 0 : index
      %82 = vector.load %arg11[%c0_44, %c0_45] : memref<16x896xf32, #tpu.memory_space<vmem>>, vector<16x896xf32>
      tpu.vector_store %arg11[%c0_44, %c0_45], %81 {strides = array<i32>} : memref<16x896xf32, #tpu.memory_space<vmem>>, vector<16x896xf32>,
    } else {
    }
    return
  }
  func.func @transform_0(%arg0: i32) -> (i32, i32) {
    %c0_i32 = arith.constant 0 : i32
    %c0_i32_0 = arith.constant 0 : i32
    %c0_i32_1 = arith.constant 0 : i32
    return %c0_i32, %c0_i32_0 : i32, i32
  }
  func.func @transform_1(%arg0: i32) -> (i32, i32) {
    %c0_i32 = arith.constant 0 : i32
    %c0_i32_0 = arith.constant 0 : i32
    %c0_i32_1 = arith.constant 0 : i32
    return %c0_i32, %c0_i32_0 : i32, i32
  }
  func.func @transform_2(%arg0: i32) -> (i32, i32) {
    %c0_i32 = arith.constant 0 : i32
    %c0_i32_0 = arith.constant 0 : i32
    %c0_i32_1 = arith.constant 0 : i32
    return %c0_i32, %c0_i32_0 : i32, i32
  }
  func.func @transform_3(%arg0: i32) -> (i32, i32) {
    %c0_i32 = arith.constant 0 : i32
    %c0_i32_0 = arith.constant 0 : i32
    return %c0_i32, %arg0 : i32, i32
  }
  func.func @transform_4(%arg0: i32) -> (i32, i32) {
    %c0_i32 = arith.constant 0 : i32
    %c0_i32_0 = arith.constant 0 : i32
    return %c0_i32, %arg0 : i32, i32
  }
  func.func @transform_5(%arg0: i32) -> (i32, i32) {
    %c0_i32 = arith.constant 0 : i32
    %c0_i32_0 = arith.constant 0 : i32
    return %c0_i32, %arg0 : i32, i32
  }
  func.func @transform_6(%arg0: i32) -> (i32, i32) {
    %c0_i32 = arith.constant 0 : i32
    %c0_i32_0 = arith.constant 0 : i32
    return %arg0, %c0_i32 : i32, i32
  }
  func.func @transform_7(%arg0: i32) -> (i32, i32) {
    %c0_i32 = arith.constant 0 : i32
    %c0_i32_0 = arith.constant 0 : i32
    %c0_i32_1 = arith.constant 0 : i32
    return %c0_i32, %c0_i32_0 : i32, i32
  }
  func.func @transform_8(%arg0: i32) -> (i32, i32) {
    %c0_i32 = arith.constant 0 : i32
    %c0_i32_0 = arith.constant 0 : i32
    %c0_i32_1 = arith.constant 0 : i32
    return %c0_i32, %c0_i32_0 : i32, i32
  }
  func.func @transform_9(%arg0: i32) -> (i32, i32) {
    %c0_i32 = arith.constant 0 : i32
    %c0_i32_0 = arith.constant 0 : i32
    %c0_i32_1 = arith.constant 0 : i32
    return %c0_i32, %c0_i32_0 : i32, i32
  }
  func.func @transform_10(%arg0: i32) -> (i32, i32) {
    %c0_i32 = arith.constant 0 : i32
    %c0_i32_0 = arith.constant 0 : i32
    %c0_i32_1 = arith.constant 0 : i32
    return %c0_i32, %c0_i32_0 : i32, i32
  }
}

</mosaic_0001>

<llo_original>
// kernel: tpu_custom_call.1
$region0: #{tpu_custom_call.1}
  #allocation0 [shape = 'u32[]', space=smem, size = 0x4, offset = 0x4, fixed_abs, tag = 'smem constant byte address 0x4 - core index']
  #allocation1 [shape = 'u32[72,128]{1,0:T(1,128)}', space=vmem, size = 0x9000, scoped, tag = 'internal scratch']
  #allocation2 [shape = 'bf16[16,1536]{1,0:T(8,128)(2,1)}', space=vmem, size = 0xc000, scoped, tag = 'scratch operand']
  #allocation3 [shape = 'f32[16,896]{1,0:T(8,128)}', space=vmem, size = 0xe000, scoped, tag = 'scratch operand']
  #allocation4 [shape = 'f32[16,1]{1,0:T(8,128)}', space=vmem, size = 0x2000, scoped, tag = 'scratch operand']
  #allocation5 [shape = 'f32[16,1]{1,0:T(8,128)}', space=vmem, size = 0x2000, scoped, tag = 'scratch operand']
  %s0 = inlined_call_operand.hbm [shape: f32[16,11], index: 0, kind: input, shape index: {}]
  %s1 = inlined_call_operand.hbm [shape: f32[11,1536], index: 1, kind: input, shape index: {}]
  %s2 = inlined_call_operand.hbm [shape: f32[1,1536], index: 2, kind: input, shape index: {}]
  %s3 = inlined_call_operand.hbm [shape: s8[1536,1536], index: 3, kind: input, shape index: {}]
  %s4 = inlined_call_operand.hbm [shape: f32[1,1536], index: 4, kind: input, shape index: {}]
  %s5 = inlined_call_operand.hbm [shape: f32[1,1536], index: 5, kind: input, shape index: {}]
  %s6 = inlined_call_operand.hbm [shape: s8[1536,896], index: 6, kind: input, shape index: {}]
  %s7 = inlined_call_operand.hbm [shape: f32[1,896], index: 7, kind: input, shape index: {}]
  %s8 = inlined_call_operand.hbm [shape: f32[1,896], index: 8, kind: input, shape index: {}]
  %s9 = inlined_call_operand.hbm [shape: f32[1,896], index: 9, kind: input, shape index: {}]
  %s10 = inlined_call_operand.hbm [shape: f32[16,896], index: 10, kind: output, shape index: {}]
  %s11 = sld [smem:[#allocation0]]
  $region121: #{tpu_custom_call.1} parent=0
    _
  %s13 = ssub.s32 1, %s11
  %s14 = scalar_select 0, %s13, %s11
  $region1: #{tpu_custom_call.1} parent=0
    #allocation6 [shape = 'u8[8192]{0}', space=vmem, size = 0x2000, scoped, tag = 'input window, operand 0, single buffered']
    #allocation7 [shape = 's32[2]{0}', space=sflag, size = 0x8, scoped, tag = 'scoped memory for tpu_custom_call.1']
    #allocation8 [shape = 's32[2]{0}', space=sflag, size = 0x8, scoped, tag = 'scoped memory for tpu_custom_call.1']
    #allocation9 [shape = 'u8[98304]{0}', space=vmem, size = 0x18000, scoped, tag = 'input window, operand 1, single buffered']
    #allocation10 [shape = 's32[1]{0}', space=sflag, size = 0x4, scoped, tag = 'scoped memory for tpu_custom_call.1']
    #allocation11 [shape = 'u8[6144]{0}', space=vmem, size = 0x1800, scoped, tag = 'input window, operand 2, single buffered']
    #allocation12 [shape = 'u8[2359296]{0}', space=vmem, size = 0x240000, scoped, tag = 'input window, operand 3']
    #allocation13 [shape = 's32[2]{0}', space=sflag, size = 0x8, scoped, tag = 'scoped memory for tpu_custom_call.1']
    #allocation14 [shape = 'u8[6144]{0}', space=vmem, size = 0x1800, scoped, tag = 'input window, operand 4']
    #allocation15 [shape = 'u8[6144]{0}', space=vmem, size = 0x1800, scoped, tag = 'input window, operand 5']
    #allocation16 [shape = 's32[2]{0}', space=sflag, size = 0x8, scoped, tag = 'scoped memory for tpu_custom_call.1']
    #allocation17 [shape = 'u8[1376256]{0}', space=vmem, size = 0x150000, scoped, tag = 'input window, operand 6']
    #allocation18 [shape = 'u8[3584]{0}', space=vmem, size = 0x1000, scoped, tag = 'input window, operand 7, single buffered']
    #allocation19 [shape = 's32[1]{0}', space=sflag, size = 0x4, scoped, tag = 'scoped memory for tpu_custom_call.1']
    #allocation20 [shape = 'u8[3584]{0}', space=vmem, size = 0x1000, scoped, tag = 'input window, operand 8, single buffered']
    #allocation21 [shape = 'u8[3584]{0}', space=vmem, size = 0x1000, scoped, tag = 'input window, operand 9, single buffered']
    #allocation22 [shape = 's32[1]{0}', space=sflag, size = 0x4, scoped, tag = 'scoped memory for tpu_custom_call.1']
    #allocation23 [shape = 'u8[57344]{0}', space=vmem, size = 0xe000, scoped, tag = 'output window, operand 0, single buffered']
    %15 = vsyncpa [#allocation7], 0
    %16 = vsyncpa [#allocation10], 0
    %17 = vsyncpa [#allocation13], 0
    %s18 = scalar_lea.sflag [#allocation13], 1
    %19 = vsyncpa %s18, 0
    %20 = vsyncpa [#allocation16], 0
    %s21 = scalar_lea.sflag [#allocation16], 1
    %22 = vsyncpa %s21, 0
    %23 = vsyncpa [#allocation19], 0
    %24 = vsyncpa [#allocation22], 0
    %25 = vsyncpa [#allocation8], 0
    loop: start=0, step=1, limit=4
    $region2: #{tpu_custom_call.1} parent=1 // loop_pre_header
      _
    $region3: #{tpu_custom_call.1} parent=1 // loop_header
      %s27 = sphi 0, %s31
      %p28 = scmp.ge.s32.totalorder %s27, 4
      %s35 = sphi 0, %s35
      %s37 = sphi 0, %s35
      %s38 = sphi 0, %s37
      %s52 = sphi 0, %s38
      %s56 = sphi 0, %s56
      %s58 = sphi 0, %s56
      %s59 = sphi 0, %s58
      %s73 = sphi 0, %s59
      %s77 = sphi 0, %s77
      %s79 = sphi 0, %s77
      %s80 = sphi 0, %s79
      %s94 = sphi 0, %s80
      %s100 = sphi 0, %s102
      %s103 = sphi 0, %s100
      %s104 = sphi 0, %s103
      %s120 = sphi 0, %s104
      %s126 = sphi 0, %s128
      %s129 = sphi 0, %s126
      %s130 = sphi 0, %s129
      %s146 = sphi 0, %s130
      %s152 = sphi 0, %s154
      %s155 = sphi 0, %s152
      %s156 = sphi 0, %s155
      %s172 = sphi 0, %s156
      %s178 = sphi 0, %s180
      %s181 = sphi 0, %s178
      %s182 = sphi 0, %s181
      %s198 = sphi 0, %s182
      %s202 = sphi 0, %s202
      %s204 = sphi 0, %s202
      %s205 = sphi 0, %s204
      %s219 = sphi 0, %s205
      %s223 = sphi 0, %s223
      %s225 = sphi 0, %s223
      %s226 = sphi 0, %s225
      %s240 = sphi 0, %s226
      %s244 = sphi 0, %s244
      %s246 = sphi 0, %s244
      %s247 = sphi 0, %s246
      %s261 = sphi 0, %s247
      %s265 = sphi 0, %s265
      %s267 = sphi 0, %s265
      %s268 = sphi 0, %s267
      %s282 = sphi 0, %s268
    $region4: #{tpu_custom_call.1} parent=1 // loop_header_branch
      %30 = sbr.rel (%p28) target = $region8
    $region5: #{tpu_custom_call.1} parent=1 // loop_body
      %s32 = ssub.s32 %s27, 1
      %s33 = ssub.s32 %s27, 2
      %s34 = sadd.s32 %s27, 1
      %s36 = sadd.s32 %s35, 1
      %p39 = scmp.eq.s32.totalorder %s27, 1
      %p40 = scmp.ne.s32.totalorder %s35, %s37
      %p41 = scmp.eq.s32.totalorder %s27, 0
      %p42 = por %p40, %p41
      %p43 = scmp.ne.s32.totalorder %s35, %s37
      %p44 = scmp.eq.s32.totalorder %s32, 1
      %p45 = por %p43, %p44
      %p46 = scmp.ne.s32.totalorder %s37, %s38
      %p47 = scmp.eq.s32.totalorder %s32, 0
      %p48 = por %p46, %p47
      %p49 = scmp.ne.s32.totalorder %s37, %s38
      %p50 = scmp.eq.s32.totalorder %s33, 1
      %p51 = por %p49, %p50
      %p53 = scmp.ne.s32.totalorder %s38, %s52
      %p54 = scmp.eq.s32.totalorder %s33, 0
      %p55 = por %p53, %p54
      %s57 = sadd.s32 %s56, 1
      %p60 = scmp.eq.s32.totalorder %s27, 1
      %p61 = scmp.ne.s32.totalorder %s56, %s58
      %p62 = scmp.eq.s32.totalorder %s27, 0
      %p63 = por %p61, %p62
      %p64 = scmp.ne.s32.totalorder %s56, %s58
      %p65 = scmp.eq.s32.totalorder %s32, 1
      %p66 = por %p64, %p65
      %p67 = scmp.ne.s32.totalorder %s58, %s59
      %p68 = scmp.eq.s32.totalorder %s32, 0
      %p69 = por %p67, %p68
      %p70 = scmp.ne.s32.totalorder %s58, %s59
      %p71 = scmp.eq.s32.totalorder %s33, 1
      %p72 = por %p70, %p71
      %p74 = scmp.ne.s32.totalorder %s59, %s73
      %p75 = scmp.eq.s32.totalorder %s33, 0
      %p76 = por %p74, %p75
      %s78 = sadd.s32 %s77, 1
      %p81 = scmp.eq.s32.totalorder %s27, 1
      %p82 = scmp.ne.s32.totalorder %s77, %s79
      %p83 = scmp.eq.s32.totalorder %s27, 0
      %p84 = por %p82, %p83
      %p85 = scmp.ne.s32.totalorder %s77, %s79
      %p86 = scmp.eq.s32.totalorder %s32, 1
      %p87 = por %p85, %p86
      %p88 = scmp.ne.s32.totalorder %s79, %s80
      %p89 = scmp.eq.s32.totalorder %s32, 0
      %p90 = por %p88, %p89
      %p91 = scmp.ne.s32.totalorder %s79, %s80
      %p92 = scmp.eq.s32.totalorder %s33, 1
      %p93 = por %p91, %p92
      %p95 = scmp.ne.s32.totalorder %s80, %s94
      %p96 = scmp.eq.s32.totalorder %s33, 0
      %p97 = por %p95, %p96
      %s98 = ssub.s32 %s27, %s34
      %p99 = scmp.eq.s32.totalorder %s98, 0
      %s101 = sadd.s32 %s100, 1
      %s102 = scalar_select %p99, %s100, %s101
      %p105 = pneg %p99
      %p106 = scmp.eq.s32.totalorder %s27, 1
      %p107 = por %p105, %p106
      %p108 = scmp.ne.s32.totalorder %s100, %s103
      %p109 = scmp.eq.s32.totalorder %s27, 0
      %p110 = por %p108, %p109
      %p111 = scmp.ne.s32.totalorder %s100, %s103
      %p112 = scmp.eq.s32.totalorder %s32, 1
      %p113 = por %p111, %p112
      %p114 = scmp.ne.s32.totalorder %s103, %s104
      %p115 = scmp.eq.s32.totalorder %s32, 0
      %p116 = por %p114, %p115
      %p117 = scmp.ne.s32.totalorder %s103, %s104
      %p118 = scmp.eq.s32.totalorder %s33, 1
      %p119 = por %p117, %p118
      %p121 = scmp.ne.s32.totalorder %s104, %s120
      %p122 = scmp.eq.s32.totalorder %s33, 0
      %p123 = por %p121, %p122
      %s124 = ssub.s32 %s27, %s34
      %p125 = scmp.eq.s32.totalorder %s124, 0
      %s127 = sadd.s32 %s126, 1
      %s128 = scalar_select %p125, %s126, %s127
      %p131 = pneg %p125
      %p132 = scmp.eq.s32.totalorder %s27, 1
      %p133 = por %p131, %p132
      %p134 = scmp.ne.s32.totalorder %s126, %s129
      %p135 = scmp.eq.s32.totalorder %s27, 0
      %p136 = por %p134, %p135
      %p137 = scmp.ne.s32.totalorder %s126, %s129
      %p138 = scmp.eq.s32.totalorder %s32, 1
      %p139 = por %p137, %p138
      %p140 = scmp.ne.s32.totalorder %s129, %s130
      %p141 = scmp.eq.s32.totalorder %s32, 0
      %p142 = por %p140, %p141
      %p143 = scmp.ne.s32.totalorder %s129, %s130
      %p144 = scmp.eq.s32.totalorder %s33, 1
      %p145 = por %p143, %p144
      %p147 = scmp.ne.s32.totalorder %s130, %s146
      %p148 = scmp.eq.s32.totalorder %s33, 0
      %p149 = por %p147, %p148
      %s150 = ssub.s32 %s27, %s34
      %p151 = scmp.eq.s32.totalorder %s150, 0
      %s153 = sadd.s32 %s152, 1
      %s154 = scalar_select %p151, %s152, %s153
      %p157 = pneg %p151
      %p158 = scmp.eq.s32.totalorder %s27, 1
      %p159 = por %p157, %p158
      %p160 = scmp.ne.s32.totalorder %s152, %s155
      %p161 = scmp.eq.s32.totalorder %s27, 0
      %p162 = por %p160, %p161
      %p163 = scmp.ne.s32.totalorder %s152, %s155
      %p164 = scmp.eq.s32.totalorder %s32, 1
      %p165 = por %p163, %p164
      %p166 = scmp.ne.s32.totalorder %s155, %s156
      %p167 = scmp.eq.s32.totalorder %s32, 0
      %p168 = por %p166, %p167
      %p169 = scmp.ne.s32.totalorder %s155, %s156
      %p170 = scmp.eq.s32.totalorder %s33, 1
      %p171 = por %p169, %p170
      %p173 = scmp.ne.s32.totalorder %s156, %s172
      %p174 = scmp.eq.s32.totalorder %s33, 0
      %p175 = por %p173, %p174
      %s176 = ssub.s32 %s27, %s34
      %p177 = scmp.eq.s32.totalorder %s176, 0
      %s179 = sadd.s32 %s178, 1
      %s180 = scalar_select %p177, %s178, %s179
      %p183 = pneg %p177
      %p184 = scmp.eq.s32.totalorder %s27, 1
      %p185 = por %p183, %p184
      %p186 = scmp.ne.s32.totalorder %s178, %s181
      %p187 = scmp.eq.s32.totalorder %s27, 0
      %p188 = por %p186, %p187
      %p189 = scmp.ne.s32.totalorder %s178, %s181
      %p190 = scmp.eq.s32.totalorder %s32, 1
      %p191 = por %p189, %p190
      %p192 = scmp.ne.s32.totalorder %s181, %s182
      %p193 = scmp.eq.s32.totalorder %s32, 0
      %p194 = por %p192, %p193
      %p195 = scmp.ne.s32.totalorder %s181, %s182
      %p196 = scmp.eq.s32.totalorder %s33, 1
      %p197 = por %p195, %p196
      %p199 = scmp.ne.s32.totalorder %s182, %s198
      %p200 = scmp.eq.s32.totalorder %s33, 0
      %p201 = por %p199, %p200
      %s203 = sadd.s32 %s202, 1
      %p206 = scmp.eq.s32.totalorder %s27, 1
      %p207 = scmp.ne.s32.totalorder %s202, %s204
      %p208 = scmp.eq.s32.totalorder %s27, 0
      %p209 = por %p207, %p208
      %p210 = scmp.ne.s32.totalorder %s202, %s204
      %p211 = scmp.eq.s32.totalorder %s32, 1
      %p212 = por %p210, %p211
      %p213 = scmp.ne.s32.totalorder %s204, %s205
      %p214 = scmp.eq.s32.totalorder %s32, 0
      %p215 = por %p213, %p214
      %p216 = scmp.ne.s32.totalorder %s204, %s205
      %p217 = scmp.eq.s32.totalorder %s33, 1
      %p218 = por %p216, %p217
      %p220 = scmp.ne.s32.totalorder %s205, %s219
      %p221 = scmp.eq.s32.totalorder %s33, 0
      %p222 = por %p220, %p221
      %s224 = sadd.s32 %s223, 1
      %p227 = scmp.eq.s32.totalorder %s27, 1
      %p228 = scmp.ne.s32.totalorder %s223, %s225
      %p229 = scmp.eq.s32.totalorder %s27, 0
      %p230 = por %p228, %p229
      %p231 = scmp.ne.s32.totalorder %s223, %s225
      %p232 = scmp.eq.s32.totalorder %s32, 1
      %p233 = por %p231, %p232
      %p234 = scmp.ne.s32.totalorder %s225, %s226
      %p235 = scmp.eq.s32.totalorder %s32, 0
      %p236 = por %p234, %p235
      %p237 = scmp.ne.s32.totalorder %s225, %s226
      %p238 = scmp.eq.s32.totalorder %s33, 1
      %p239 = por %p237, %p238
      %p241 = scmp.ne.s32.totalorder %s226, %s240
      %p242 = scmp.eq.s32.totalorder %s33, 0
      %p243 = por %p241, %p242
      %s245 = sadd.s32 %s244, 1
      %p248 = scmp.eq.s32.totalorder %s27, 1
      %p249 = scmp.ne.s32.totalorder %s244, %s246
      %p250 = scmp.eq.s32.totalorder %s27, 0
      %p251 = por %p249, %p250
      %p252 = scmp.ne.s32.totalorder %s244, %s246
      %p253 = scmp.eq.s32.totalorder %s32, 1
      %p254 = por %p252, %p253
      %p255 = scmp.ne.s32.totalorder %s246, %s247
      %p256 = scmp.eq.s32.totalorder %s32, 0
      %p257 = por %p255, %p256
      %p258 = scmp.ne.s32.totalorder %s246, %s247
      %p259 = scmp.eq.s32.totalorder %s33, 1
      %p260 = por %p258, %p259
      %p262 = scmp.ne.s32.totalorder %s247, %s261
      %p263 = scmp.eq.s32.totalorder %s33, 0
      %p264 = por %p262, %p263
      %s266 = sadd.s32 %s265, 1
      %p269 = scmp.eq.s32.totalorder %s27, 1
      %p270 = scmp.ne.s32.totalorder %s265, %s267
      %p271 = scmp.eq.s32.totalorder %s27, 0
      %p272 = por %p270, %p271
      %p273 = scmp.ne.s32.totalorder %s265, %s267
      %p274 = scmp.eq.s32.totalorder %s32, 1
      %p275 = por %p273, %p274
      %p276 = scmp.ne.s32.totalorder %s267, %s268
      %p277 = scmp.eq.s32.totalorder %s32, 0
      %p278 = por %p276, %p277
      %p279 = scmp.ne.s32.totalorder %s267, %s268
      %p280 = scmp.eq.s32.totalorder %s33, 1
      %p281 = por %p279, %p280
      %p283 = scmp.ne.s32.totalorder %s268, %s282
      %p284 = scmp.eq.s32.totalorder %s33, 0
      %p285 = por %p283, %p284
      %p286 = scmp.le.s32.totalorder 1, %s27
      %p287 = scmp.lt.s32.totalorder %s27, 3
      %p288 = pnand %p286, %p287
      %p289 = pneg %p288
      // Predicated region
      $region9: #{tpu_custom_call.1} parent=5 // pred_check
        _
      $region10: #{tpu_custom_call.1} parent=5 // pred_check_branch
        %291 = sbr.rel (%p288) target = $region12
      $region11: #{tpu_custom_call.1} parent=5 // pred_region
        %s292 = ssub.s32 %s27, 1
        // Predicated region
        $region13: #{tpu_custom_call.1} parent=11 // pred_check
          %p293 = pneg %p48
        $region14: #{tpu_custom_call.1} parent=11 // pred_check_branch
          %295 = sbr.rel (%p293) target = $region16
        $region15: #{tpu_custom_call.1} parent=11 // pred_region
          %297 = vsyncadd [#allocation7], 0
          %s298 = sshll.u32 %s0, 4
          %s299 = int_to_ptr.hbm [resolvable:$true] %s298
          %s300 = sshll.u32 [#allocation6], 4
          %s301 = int_to_ptr.vmem [resolvable:$true] %s300
          %306 = dma.hbm_to_vmem [thread:$0]  %s299, 256, %s301, [#allocation7], 128, 128, 8
        $region16: #{tpu_custom_call.1} parent=11 // pred_fallthru
          _
        // Predicated region
        $region17: #{tpu_custom_call.1} parent=11 // pred_check
          %p307 = pneg %p69
        $region18: #{tpu_custom_call.1} parent=11 // pred_check_branch
          %309 = sbr.rel (%p307) target = $region20
        $region19: #{tpu_custom_call.1} parent=11 // pred_region
          %311 = vsyncadd [#allocation10], 0
          %s312 = sshll.u32 %s1, 4
          %s313 = int_to_ptr.hbm [resolvable:$true] %s312
          %s314 = sshll.u32 [#allocation9], 4
          %s315 = int_to_ptr.vmem [resolvable:$true] %s314
          %320 = dma.hbm_to_vmem [thread:$0]  %s313, 3072, %s315, [#allocation10], 1536, 1536, 96
        $region20: #{tpu_custom_call.1} parent=11 // pred_fallthru
          _
        // Predicated region
        $region21: #{tpu_custom_call.1} parent=11 // pred_check
          %p321 = pneg %p90
        $region22: #{tpu_custom_call.1} parent=11 // pred_check_branch
          %323 = sbr.rel (%p321) target = $region24
        $region23: #{tpu_custom_call.1} parent=11 // pred_region
          %325 = vsyncadd [#allocation10], 0
          %s327 = sshll.u32 %s2, 4
          %s328 = int_to_ptr.hbm [resolvable:$true] %s327
          %s329 = sshll.u32 [#allocation11], 4
          %s330 = int_to_ptr.vmem [resolvable:$true] %s329
          %332 = dma.hbm_to_vmem [thread:$0]  %s328, 192, %s330, [#allocation10]
        $region24: #{tpu_custom_call.1} parent=11 // pred_fallthru
          _
        // Predicated region
        $region25: #{tpu_custom_call.1} parent=11 // pred_check
          %p333 = pneg %p215
        $region26: #{tpu_custom_call.1} parent=11 // pred_check_branch
          %335 = sbr.rel (%p333) target = $region28
        $region27: #{tpu_custom_call.1} parent=11 // pred_region
          %337 = vsyncadd [#allocation19], 0
          %s339 = sshll.u32 %s7, 4
          %s340 = int_to_ptr.hbm [resolvable:$true] %s339
          %s341 = sshll.u32 [#allocation18], 4
          %s342 = int_to_ptr.vmem [resolvable:$true] %s341
          %344 = dma.hbm_to_vmem [thread:$0]  %s340, 112, %s342, [#allocation19]
        $region28: #{tpu_custom_call.1} parent=11 // pred_fallthru
          _
        // Predicated region
        $region29: #{tpu_custom_call.1} parent=11 // pred_check
          %p345 = pneg %p236
        $region30: #{tpu_custom_call.1} parent=11 // pred_check_branch
          %347 = sbr.rel (%p345) target = $region32
        $region31: #{tpu_custom_call.1} parent=11 // pred_region
          %349 = vsyncadd [#allocation19], 0
          %s351 = sshll.u32 %s8, 4
          %s352 = int_to_ptr.hbm [resolvable:$true] %s351
          %s353 = sshll.u32 [#allocation20], 4
          %s354 = int_to_ptr.vmem [resolvable:$true] %s353
          %356 = dma.hbm_to_vmem [thread:$0]  %s352, 112, %s354, [#allocation19]
        $region32: #{tpu_custom_call.1} parent=11 // pred_fallthru
          _
        // Predicated region
        $region33: #{tpu_custom_call.1} parent=11 // pred_check
          %p357 = pneg %p257
        $region34: #{tpu_custom_call.1} parent=11 // pred_check_branch
          %359 = sbr.rel (%p357) target = $region36
        $region35: #{tpu_custom_call.1} parent=11 // pred_region
          %361 = vsyncadd [#allocation22], 0
          %s363 = sshll.u32 %s9, 4
          %s364 = int_to_ptr.hbm [resolvable:$true] %s363
          %s365 = sshll.u32 [#allocation21], 4
          %s366 = int_to_ptr.vmem [resolvable:$true] %s365
          %368 = dma.hbm_to_vmem [thread:$0]  %s364, 112, %s366, [#allocation22]
        $region36: #{tpu_custom_call.1} parent=11 // pred_fallthru
          _
      $region12: #{tpu_custom_call.1} parent=5 // pred_fallthru
        _
      %p369 = scmp.lt.s32.totalorder %s27, 2
      // Predicated region
      $region37: #{tpu_custom_call.1} parent=5 // pred_check
        %p370 = pneg %p369
      $region38: #{tpu_custom_call.1} parent=5 // pred_check_branch
        %372 = sbr.rel (%p370) target = $region40
      $region39: #{tpu_custom_call.1} parent=5 // pred_region
        // Predicated region
        $region41: #{tpu_custom_call.1} parent=39 // pred_check
          %p373 = pneg %p110
        $region42: #{tpu_custom_call.1} parent=39 // pred_check_branch
          %375 = sbr.rel (%p373) target = $region44
        $region43: #{tpu_custom_call.1} parent=39 // pred_region
          %s376 = sand.u32 %s27, 1
          %s377 = scalar_lea.sflag [#allocation13], %s376
          %s378 = sand.u32 %s100, 1
          %s379 = smul.addr %s378, 2304
          %s380 = scalar_lea.vmem [#allocation12], %s379
          %s381 = smul.u32 6, %s27
          %383 = vsyncadd %s377, 0
          %s384 = smul.addr %s381, 8
          %s385 = scalar_lea.hbm %s3, %s384
          %s386 = sshll.u32 %s385, 4
          %s387 = int_to_ptr.hbm [resolvable:$true] %s386
          %s388 = sshll.u32 %s380, 4
          %s389 = int_to_ptr.vmem [resolvable:$true] %s388
          %394 = dma.hbm_to_vmem [thread:$0]  %s387, 36864, %s389, %s377, 1536, 768, 48
        $region44: #{tpu_custom_call.1} parent=39 // pred_fallthru
          _
        // Predicated region
        $region45: #{tpu_custom_call.1} parent=39 // pred_check
          %p395 = pneg %p136
        $region46: #{tpu_custom_call.1} parent=39 // pred_check_branch
          %397 = sbr.rel (%p395) target = $region48
        $region47: #{tpu_custom_call.1} parent=39 // pred_region
          %s398 = sand.u32 %s27, 1
          %s399 = scalar_lea.sflag [#allocation13], %s398
          %s400 = sand.u32 %s126, 1
          %s401 = smul.addr %s400, 6
          %s402 = scalar_lea.vmem [#allocation14], %s401
          %s403 = smul.u32 6, %s27
          %405 = vsyncadd %s399, 0
          %s406 = scalar_lea.hbm %s4, %s403
          %s408 = sshll.u32 %s406, 4
          %s409 = int_to_ptr.hbm [resolvable:$true] %s408
          %s410 = sshll.u32 %s402, 4
          %s411 = int_to_ptr.vmem [resolvable:$true] %s410
          %413 = dma.hbm_to_vmem [thread:$0]  %s409, 96, %s411, %s399
        $region48: #{tpu_custom_call.1} parent=39 // pred_fallthru
          _
        // Predicated region
        $region49: #{tpu_custom_call.1} parent=39 // pred_check
          %p414 = pneg %p162
        $region50: #{tpu_custom_call.1} parent=39 // pred_check_branch
          %416 = sbr.rel (%p414) target = $region52
        $region51: #{tpu_custom_call.1} parent=39 // pred_region
          %s417 = sand.u32 %s27, 1
          %s418 = scalar_lea.sflag [#allocation16], %s417
          %s419 = sand.u32 %s152, 1
          %s420 = smul.addr %s419, 6
          %s421 = scalar_lea.vmem [#allocation15], %s420
          %s422 = smul.u32 6, %s27
          %424 = vsyncadd %s418, 0
          %s425 = scalar_lea.hbm %s5, %s422
          %s427 = sshll.u32 %s425, 4
          %s428 = int_to_ptr.hbm [resolvable:$true] %s427
          %s429 = sshll.u32 %s421, 4
          %s430 = int_to_ptr.vmem [resolvable:$true] %s429
          %432 = dma.hbm_to_vmem [thread:$0]  %s428, 96, %s430, %s418
        $region52: #{tpu_custom_call.1} parent=39 // pred_fallthru
          _
        // Predicated region
        $region53: #{tpu_custom_call.1} parent=39 // pred_check
          %p433 = pneg %p188
        $region54: #{tpu_custom_call.1} parent=39 // pred_check_branch
          %435 = sbr.rel (%p433) target = $region56
        $region55: #{tpu_custom_call.1} parent=39 // pred_region
          %s436 = sand.u32 %s27, 1
          %s437 = scalar_lea.sflag [#allocation16], %s436
          %s438 = sand.u32 %s178, 1
          %s439 = smul.addr %s438, 1344
          %s440 = scalar_lea.vmem [#allocation17], %s439
          %s441 = smul.u32 24, %s27
          %443 = vsyncadd %s437, 0
          %s444 = smul.addr %s441, 7
          %s445 = smul.addr %s444, 8
          %s446 = scalar_lea.hbm %s6, %s445
          %s447 = sshll.u32 %s446, 4
          %s448 = int_to_ptr.hbm [resolvable:$true] %s447
          %s449 = sshll.u32 %s440, 4
          %s450 = int_to_ptr.vmem [resolvable:$true] %s449
          %455 = dma.hbm_to_vmem [thread:$0]  %s448, 21504, %s450, %s437, 896, 896, 56
        $region56: #{tpu_custom_call.1} parent=39 // pred_fallthru
          _
      $region40: #{tpu_custom_call.1} parent=5 // pred_fallthru
        _
      %p456 = scmp.le.s32.totalorder 1, %s27
      %p457 = scmp.lt.s32.totalorder %s27, 3
      %p458 = pnand %p456, %p457
      %p459 = pneg %p458
      // Predicated region
      $region57: #{tpu_custom_call.1} parent=5 // pred_check
        _
      $region58: #{tpu_custom_call.1} parent=5 // pred_check_branch
        %461 = sbr.rel (%p458) target = $region60
      $region59: #{tpu_custom_call.1} parent=5 // pred_region
        %s462 = ssub.s32 %s27, 1
        // Predicated region
        $region61: #{tpu_custom_call.1} parent=59 // pred_check
          %p463 = pneg %p48
        $region62: #{tpu_custom_call.1} parent=59 // pred_check_branch
          %465 = sbr.rel (%p463) target = $region64
        $region63: #{tpu_custom_call.1} parent=59 // pred_region
          %467 = dma.done [#allocation7], 256
        $region64: #{tpu_custom_call.1} parent=59 // pred_fallthru
          _
        // Predicated region
        $region65: #{tpu_custom_call.1} parent=59 // pred_check
          %p468 = pneg %p69
        $region66: #{tpu_custom_call.1} parent=59 // pred_check_branch
          %470 = sbr.rel (%p468) target = $region68
        $region67: #{tpu_custom_call.1} parent=59 // pred_region
          %472 = dma.done [#allocation10], 3072
        $region68: #{tpu_custom_call.1} parent=59 // pred_fallthru
          _
        // Predicated region
        $region69: #{tpu_custom_call.1} parent=59 // pred_check
          %p473 = pneg %p90
        $region70: #{tpu_custom_call.1} parent=59 // pred_check_branch
          %475 = sbr.rel (%p473) target = $region72
        $region71: #{tpu_custom_call.1} parent=59 // pred_region
          %477 = dma.done [#allocation10], 192
        $region72: #{tpu_custom_call.1} parent=59 // pred_fallthru
          _
        %s478 = sand.u32 %s32, 1
        %s479 = scalar_lea.sflag [#allocation13], %s478
        %s480 = sand.u32 %s103, 1
        %s481 = smul.addr %s480, 2304
        %s482 = scalar_lea.vmem [#allocation12], %s481
        // Predicated region
        $region73: #{tpu_custom_call.1} parent=59 // pred_check
          %p483 = pneg %p116
        $region74: #{tpu_custom_call.1} parent=59 // pred_check_branch
          %485 = sbr.rel (%p483) target = $region76
        $region75: #{tpu_custom_call.1} parent=59 // pred_region
          %487 = dma.done %s479, 36864
        $region76: #{tpu_custom_call.1} parent=59 // pred_fallthru
          _
        %s488 = sand.u32 %s32, 1
        %s489 = scalar_lea.sflag [#allocation13], %s488
        %s490 = sand.u32 %s129, 1
        %s491 = smul.addr %s490, 6
        %s492 = scalar_lea.vmem [#allocation14], %s491
        // Predicated region
        $region77: #{tpu_custom_call.1} parent=59 // pred_check
          %p493 = pneg %p142
        $region78: #{tpu_custom_call.1} parent=59 // pred_check_branch
          %495 = sbr.rel (%p493) target = $region80
        $region79: #{tpu_custom_call.1} parent=59 // pred_region
          %497 = dma.done %s489, 96
        $region80: #{tpu_custom_call.1} parent=59 // pred_fallthru
          _
        %s498 = sand.u32 %s32, 1
        %s499 = scalar_lea.sflag [#allocation16], %s498
        %s500 = sand.u32 %s155, 1
        %s501 = smul.addr %s500, 6
        %s502 = scalar_lea.vmem [#allocation15], %s501
        // Predicated region
        $region81: #{tpu_custom_call.1} parent=59 // pred_check
          %p503 = pneg %p168
        $region82: #{tpu_custom_call.1} parent=59 // pred_check_branch
          %505 = sbr.rel (%p503) target = $region84
        $region83: #{tpu_custom_call.1} parent=59 // pred_region
          %507 = dma.done %s499, 96
        $region84: #{tpu_custom_call.1} parent=59 // pred_fallthru
          _
        %s508 = sand.u32 %s32, 1
        %s509 = scalar_lea.sflag [#allocation16], %s508
        %s510 = sand.u32 %s181, 1
        %s511 = smul.addr %s510, 1344
        %s512 = scalar_lea.vmem [#allocation17], %s511
        // Predicated region
        $region85: #{tpu_custom_call.1} parent=59 // pred_check
          %p513 = pneg %p194
        $region86: #{tpu_custom_call.1} parent=59 // pred_check_branch
          %515 = sbr.rel (%p513) target = $region88
        $region87: #{tpu_custom_call.1} parent=59 // pred_region
          %517 = dma.done %s509, 21504
        $region88: #{tpu_custom_call.1} parent=59 // pred_fallthru
          _
        // Predicated region
        $region89: #{tpu_custom_call.1} parent=59 // pred_check
          %p518 = pneg %p215
        $region90: #{tpu_custom_call.1} parent=59 // pred_check_branch
          %520 = sbr.rel (%p518) target = $region92
        $region91: #{tpu_custom_call.1} parent=59 // pred_region
          %522 = dma.done [#allocation19], 112
        $region92: #{tpu_custom_call.1} parent=59 // pred_fallthru
          _
        // Predicated region
        $region93: #{tpu_custom_call.1} parent=59 // pred_check
          %p523 = pneg %p236
        $region94: #{tpu_custom_call.1} parent=59 // pred_check_branch
          %525 = sbr.rel (%p523) target = $region96
        $region95: #{tpu_custom_call.1} parent=59 // pred_region
          %527 = dma.done [#allocation19], 112
        $region96: #{tpu_custom_call.1} parent=59 // pred_fallthru
          _
        // Predicated region
        $region97: #{tpu_custom_call.1} parent=59 // pred_check
          %p528 = pneg %p257
        $region98: #{tpu_custom_call.1} parent=59 // pred_check_branch
          %530 = sbr.rel (%p528) target = $region100
        $region99: #{tpu_custom_call.1} parent=59 // pred_region
          %532 = dma.done [#allocation22], 112
        $region100: #{tpu_custom_call.1} parent=59 // pred_fallthru
          _
        %p533 = pneg %p48
        %p534 = pneg %p45
        %p535 = pneg %p69
        %p536 = pneg %p66
        %p537 = pneg %p90
        %p538 = pneg %p87
        %s539 = sand.u32 %s32, 1
        %s540 = scalar_lea.sflag [#allocation13], %s539
        %s541 = sand.u32 %s103, 1
        %s542 = smul.addr %s541, 2304
        %s543 = scalar_lea.vmem [#allocation12], %s542
        %p544 = pneg %p116
        %p545 = pneg %p113
        %s546 = sand.u32 %s32, 1
        %s547 = scalar_lea.sflag [#allocation13], %s546
        %s548 = sand.u32 %s129, 1
        %s549 = smul.addr %s548, 6
        %s550 = scalar_lea.vmem [#allocation14], %s549
        %p551 = pneg %p142
        %p552 = pneg %p139
        %s553 = sand.u32 %s32, 1
        %s554 = scalar_lea.sflag [#allocation16], %s553
        %s555 = sand.u32 %s155, 1
        %s556 = smul.addr %s555, 6
        %s557 = scalar_lea.vmem [#allocation15], %s556
        %p558 = pneg %p168
        %p559 = pneg %p165
        %s560 = sand.u32 %s32, 1
        %s561 = scalar_lea.sflag [#allocation16], %s560
        %s562 = sand.u32 %s181, 1
        %s563 = smul.addr %s562, 1344
        %s564 = scalar_lea.vmem [#allocation17], %s563
        %p565 = pneg %p194
        %p566 = pneg %p191
        %p567 = pneg %p215
        %p568 = pneg %p212
        %p569 = pneg %p236
        %p570 = pneg %p233
        %p571 = pneg %p257
        %p572 = pneg %p254
        %p573 = pneg %p278
        %p574 = pneg %p275
        %s575 = smul.u32 6, %s32
        %s576 = smul.u32 6, %s32
        %s577 = smul.u32 6, %s32
        %s578 = smul.u32 24, %s32
        %p579 = scmp.eq.s32.totalorder %s32, 0
        // Predicated region
        $region101: #{tpu_custom_call.1} parent=59 // pred_check
          %p580 = pneg %p579
        $region102: #{tpu_custom_call.1} parent=59 // pred_check_branch
          %582 = sbr.rel (%p580) target = $region104
        $region103: #{tpu_custom_call.1} parent=59 // pred_region
          %v583 = vld [vmem:[#allocation6] sm:$0xff]
          %v584 = vld [vmem:[#allocation6 + $0x8] sm:$0xff]
          %vm585 = vcmask 89088
          %v586 = vsel %vm585, %v583, 0.0
          %587 = vadd.xlane.f32.xlu0 %v586
          %v588 = vpop.xlane.xlu0 %587
          %v589 = vsel %vm585, %v584, 0.0
          %590 = vadd.xlane.f32.xlu0 %v589
          %v591 = vpop.xlane.xlu0 %590
          %v592 = vrcp.pop 11.0
          %v593 = vmul.f32 11.0, %v592
          %v594 = vsub.f32 1.0, %v593
          %v595 = vmul.f32 %v592, %v594
          %v596 = vadd.f32 %v592, %v595
          %vm597 = vweird.f32 %v592
          %v598 = vsel %vm597, %v592, %v596
          %v599 = vmul.f32 %v588, %v598
          %v600 = vmul.f32 %v591, %v598
          %v601 = vsub.f32 %v583, %v599
          %v602 = vsub.f32 %v584, %v600
          %v603 = vmul.f32 %v601, %v601
          %v604 = vmul.f32 %v602, %v602
          %v605 = vsel %vm585, %v603, 0.0
          %606 = vadd.xlane.f32.xlu0 %v605
          %v607 = vpop.xlane.xlu0 %606
          %v608 = vsel %vm585, %v604, 0.0
          %609 = vadd.xlane.f32.xlu0 %v608
          %v610 = vpop.xlane.xlu0 %609
          %v611 = vmul.f32 %v607, %v598
          %v612 = vmul.f32 %v610, %v598
          %v613 = vadd.f32 %v611, 1e-05
          %v614 = vadd.f32 %v612, 1e-05
          %v615 = vrsqrt.pop %v613
          %v616 = vmul.f32 %v615, %v613
          %v617 = vmul.f32 %v616, %v615
          %v618 = vmul.f32 0.5, %v617
          %v619 = vsub.f32 1.5, %v618
          %v620 = vmul.f32 %v615, %v619
          %vm621 = vweird.f32 %v613
          %vm622 = vweird.f32 %v615
          %vm623 = vmor %vm621, %vm622
          %v624 = vsel %vm623, %v615, %v620
          %v625 = vrsqrt.pop %v614
          %v626 = vmul.f32 %v625, %v614
          %v627 = vmul.f32 %v626, %v625
          %v628 = vmul.f32 0.5, %v627
          %v629 = vsub.f32 1.5, %v628
          %v630 = vmul.f32 %v625, %v629
          %vm631 = vweird.f32 %v614
          %vm632 = vweird.f32 %v625
          %vm633 = vmor %vm631, %vm632
          %v634 = vsel %vm633, %v625, %v630
          %v635 = vmul.f32 %v601, %v624
          %v636 = vmul.f32 %v602, %v634
          %v637 = vld [vmem:[#allocation9] sm:$0xff]
          %v638 = vld [vmem:[#allocation9 + $0x8] sm:$0xff]
          %v639 = vld [vmem:[#allocation9 + $0x10] sm:$0xff]
          %v640 = vld [vmem:[#allocation9 + $0x18] sm:$0xff]
          %v641 = vld [vmem:[#allocation9 + $0x20] sm:$0xff]
          %v642 = vld [vmem:[#allocation9 + $0x28] sm:$0xff]
          %v643 = vld [vmem:[#allocation9 + $0x30] sm:$0xff]
          %v644 = vld [vmem:[#allocation9 + $0x38] sm:$0xff]
          %v645 = vld [vmem:[#allocation9 + $0x40] sm:$0xff]
          %v646 = vld [vmem:[#allocation9 + $0x48] sm:$0xff]
          %v647 = vld [vmem:[#allocation9 + $0x50] sm:$0xff]
          %v648 = vld [vmem:[#allocation9 + $0x58] sm:$0xff]
          %v649 = vld [vmem:[#allocation9 + $0x60] sm:$0x7]
          %v650 = vld [vmem:[#allocation9 + $0x68] sm:$0x7]
          %v651 = vld [vmem:[#allocation9 + $0x70] sm:$0x7]
          %v652 = vld [vmem:[#allocation9 + $0x78] sm:$0x7]
          %v653 = vld [vmem:[#allocation9 + $0x80] sm:$0x7]
          %v654 = vld [vmem:[#allocation9 + $0x88] sm:$0x7]
          %v655 = vld [vmem:[#allocation9 + $0x90] sm:$0x7]
          %v656 = vld [vmem:[#allocation9 + $0x98] sm:$0x7]
          %v657 = vld [vmem:[#allocation9 + $0xa0] sm:$0x7]
          %v658 = vld [vmem:[#allocation9 + $0xa8] sm:$0x7]
          %v659 = vld [vmem:[#allocation9 + $0xb0] sm:$0x7]
          %v660 = vld [vmem:[#allocation9 + $0xb8] sm:$0x7]
          %v661 = vld [vmem:[#allocation11] sm:$0xff]
          %v662 = vld [vmem:[#allocation11 + $0x8] sm:$0xf]
          %v665 = vperm.slane %v661, 0
          %v666 = vperm.slane %v661, 1
          %v667 = vperm.slane %v661, 2
          %v668 = vperm.slane %v661, 3
          %v669 = vperm.slane %v661, 4
          %v670 = vperm.slane %v661, 5
          %v671 = vperm.slane %v661, 6
          %v672 = vperm.slane %v661, 7
          %v673 = vperm.slane %v662, 0
          %v674 = vperm.slane %v662, 1
          %v675 = vperm.slane %v662, 2
          %v676 = vperm.slane %v662, 3
          %v690 = vsel %vm585, %v635, 0
          %v693 = vsel %vm585, %v636, 0
          %vm695 = vcmask 1042432
          %v697 = vsel %vm695, %v649, 0
          %v700 = vsel %vm695, %v650, 0
          %v703 = vsel %vm695, %v651, 0
          %v706 = vsel %vm695, %v652, 0
          %v709 = vsel %vm695, %v653, 0
          %v712 = vsel %vm695, %v654, 0
          %v715 = vsel %vm695, %v655, 0
          %v718 = vsel %vm695, %v656, 0
          %v721 = vsel %vm695, %v657, 0
          %v724 = vsel %vm695, %v658, 0
          %v727 = vsel %vm695, %v659, 0
          %v730 = vsel %vm695, %v660, 0
          %732 = vmatpush.msra.mxu0 0.0
          %733 = vmatpush.msra.mxu0 0.0
          %734 = vmatpush.msra.mxu0 0.0
          %735 = vmatpush.msra.mxu0 0.0
          %736 = vmatpush.msra.mxu0 0.0
          %737 = vmatpush.msra.mxu0 0.0
          %738 = vmatpush.msra.mxu0 0.0
          %739 = vmatpush.msra.mxu0 0.0
          %740 = vmatpush.msra.mxu0 0.0
          %741 = vmatpush.msra.mxu0 0.0
          %742 = vmatpush.msra.mxu0 0.0
          %743 = vmatpush.msra.mxu0 0.0
          %744 = vmatpush.msra.mxu0 0.0
          %745 = vmatpush.msra.mxu0 0.0
          %746 = vmatpush.msra.mxu0 %v697
          %747 = vmatpush.msra.mxu0 %v637
          %748 = vmatmul.f32.gmra.mxu0 %v690
          %v749 = vpop.f32.mrf.mxu0
          %v750 = vadd.f32 %v665, %v749
          %751 = vmatmul.f32.gmra.mxu0 %v693
          %v752 = vpop.f32.mrf.mxu0
          %v753 = vadd.f32 %v665, %v752
          %754 = vdwg.mxu0
          %755 = vmatpush.msra.mxu0 0.0
          %756 = vmatpush.msra.mxu0 0.0
          %757 = vmatpush.msra.mxu0 0.0
          %758 = vmatpush.msra.mxu0 0.0
          %759 = vmatpush.msra.mxu0 0.0
          %760 = vmatpush.msra.mxu0 0.0
          %761 = vmatpush.msra.mxu0 0.0
          %762 = vmatpush.msra.mxu0 0.0
          %763 = vmatpush.msra.mxu0 0.0
          %764 = vmatpush.msra.mxu0 0.0
          %765 = vmatpush.msra.mxu0 0.0
          %766 = vmatpush.msra.mxu0 0.0
          %767 = vmatpush.msra.mxu0 0.0
          %768 = vmatpush.msra.mxu0 0.0
          %769 = vmatpush.msra.mxu0 %v700
          %770 = vmatpush.msra.mxu0 %v638
          %771 = vmatmul.f32.gmra.mxu0 %v690
          %v772 = vpop.f32.mrf.mxu0
          %v773 = vadd.f32 %v666, %v772
          %774 = vmatmul.f32.gmra.mxu0 %v693
          %v775 = vpop.f32.mrf.mxu0
          %v776 = vadd.f32 %v666, %v775
          %777 = vdwg.mxu0
          %778 = vmatpush.msra.mxu0 0.0
          %779 = vmatpush.msra.mxu0 0.0
          %780 = vmatpush.msra.mxu0 0.0
          %781 = vmatpush.msra.mxu0 0.0
          %782 = vmatpush.msra.mxu0 0.0
          %783 = vmatpush.msra.mxu0 0.0
          %784 = vmatpush.msra.mxu0 0.0
          %785 = vmatpush.msra.mxu0 0.0
          %786 = vmatpush.msra.mxu0 0.0
          %787 = vmatpush.msra.mxu0 0.0
          %788 = vmatpush.msra.mxu0 0.0
          %789 = vmatpush.msra.mxu0 0.0
          %790 = vmatpush.msra.mxu0 0.0
          %791 = vmatpush.msra.mxu0 0.0
          %792 = vmatpush.msra.mxu0 %v703
          %793 = vmatpush.msra.mxu0 %v639
          %794 = vmatmul.f32.gmra.mxu0 %v690
          %v795 = vpop.f32.mrf.mxu0
          %v796 = vadd.f32 %v667, %v795
          %797 = vmatmul.f32.gmra.mxu0 %v693
          %v798 = vpop.f32.mrf.mxu0
          %v799 = vadd.f32 %v667, %v798
          %800 = vdwg.mxu0
          %801 = vmatpush.msra.mxu0 0.0
          %802 = vmatpush.msra.mxu0 0.0
          %803 = vmatpush.msra.mxu0 0.0
          %804 = vmatpush.msra.mxu0 0.0
          %805 = vmatpush.msra.mxu0 0.0
          %806 = vmatpush.msra.mxu0 0.0
          %807 = vmatpush.msra.mxu0 0.0
          %808 = vmatpush.msra.mxu0 0.0
          %809 = vmatpush.msra.mxu0 0.0
          %810 = vmatpush.msra.mxu0 0.0
          %811 = vmatpush.msra.mxu0 0.0
          %812 = vmatpush.msra.mxu0 0.0
          %813 = vmatpush.msra.mxu0 0.0
          %814 = vmatpush.msra.mxu0 0.0
          %815 = vmatpush.msra.mxu0 %v706
          %816 = vmatpush.msra.mxu0 %v640
          %817 = vmatmul.f32.gmra.mxu0 %v690
          %v818 = vpop.f32.mrf.mxu0
          %v819 = vadd.f32 %v668, %v818
          %820 = vmatmul.f32.gmra.mxu0 %v693
          %v821 = vpop.f32.mrf.mxu0
          %v822 = vadd.f32 %v668, %v821
          %823 = vdwg.mxu0
          %824 = vmatpush.msra.mxu0 0.0
          %825 = vmatpush.msra.mxu0 0.0
          %826 = vmatpush.msra.mxu0 0.0
          %827 = vmatpush.msra.mxu0 0.0
          %828 = vmatpush.msra.mxu0 0.0
          %829 = vmatpush.msra.mxu0 0.0
          %830 = vmatpush.msra.mxu0 0.0
          %831 = vmatpush.msra.mxu0 0.0
          %832 = vmatpush.msra.mxu0 0.0
          %833 = vmatpush.msra.mxu0 0.0
          %834 = vmatpush.msra.mxu0 0.0
          %835 = vmatpush.msra.mxu0 0.0
          %836 = vmatpush.msra.mxu0 0.0
          %837 = vmatpush.msra.mxu0 0.0
          %838 = vmatpush.msra.mxu0 %v709
          %839 = vmatpush.msra.mxu0 %v641
          %840 = vmatmul.f32.gmra.mxu0 %v690
          %v841 = vpop.f32.mrf.mxu0
          %v842 = vadd.f32 %v669, %v841
          %843 = vmatmul.f32.gmra.mxu0 %v693
          %v844 = vpop.f32.mrf.mxu0
          %v845 = vadd.f32 %v669, %v844
          %846 = vdwg.mxu0
          %847 = vmatpush.msra.mxu0 0.0
          %848 = vmatpush.msra.mxu0 0.0
          %849 = vmatpush.msra.mxu0 0.0
          %850 = vmatpush.msra.mxu0 0.0
          %851 = vmatpush.msra.mxu0 0.0
          %852 = vmatpush.msra.mxu0 0.0
          %853 = vmatpush.msra.mxu0 0.0
          %854 = vmatpush.msra.mxu0 0.0
          %855 = vmatpush.msra.mxu0 0.0
          %856 = vmatpush.msra.mxu0 0.0
          %857 = vmatpush.msra.mxu0 0.0
          %858 = vmatpush.msra.mxu0 0.0
          %859 = vmatpush.msra.mxu0 0.0
          %860 = vmatpush.msra.mxu0 0.0
          %861 = vmatpush.msra.mxu0 %v712
          %862 = vmatpush.msra.mxu0 %v642
          %863 = vmatmul.f32.gmra.mxu0 %v690
          %v864 = vpop.f32.mrf.mxu0
          %v865 = vadd.f32 %v670, %v864
          %866 = vmatmul.f32.gmra.mxu0 %v693
          %v867 = vpop.f32.mrf.mxu0
          %v868 = vadd.f32 %v670, %v867
          %869 = vdwg.mxu0
          %870 = vmatpush.msra.mxu0 0.0
          %871 = vmatpush.msra.mxu0 0.0
          %872 = vmatpush.msra.mxu0 0.0
          %873 = vmatpush.msra.mxu0 0.0
          %874 = vmatpush.msra.mxu0 0.0
          %875 = vmatpush.msra.mxu0 0.0
          %876 = vmatpush.msra.mxu0 0.0
          %877 = vmatpush.msra.mxu0 0.0
          %878 = vmatpush.msra.mxu0 0.0
          %879 = vmatpush.msra.mxu0 0.0
          %880 = vmatpush.msra.mxu0 0.0
          %881 = vmatpush.msra.mxu0 0.0
          %882 = vmatpush.msra.mxu0 0.0
          %883 = vmatpush.msra.mxu0 0.0
          %884 = vmatpush.msra.mxu0 %v715
          %885 = vmatpush.msra.mxu0 %v643
          %886 = vmatmul.f32.gmra.mxu0 %v690
          %v887 = vpop.f32.mrf.mxu0
          %v888 = vadd.f32 %v671, %v887
          %889 = vmatmul.f32.gmra.mxu0 %v693
          %v890 = vpop.f32.mrf.mxu0
          %v891 = vadd.f32 %v671, %v890
          %892 = vdwg.mxu0
          %893 = vmatpush.msra.mxu0 0.0
          %894 = vmatpush.msra.mxu0 0.0
          %895 = vmatpush.msra.mxu0 0.0
          %896 = vmatpush.msra.mxu0 0.0
          %897 = vmatpush.msra.mxu0 0.0
          %898 = vmatpush.msra.mxu0 0.0
          %899 = vmatpush.msra.mxu0 0.0
          %900 = vmatpush.msra.mxu0 0.0
          %901 = vmatpush.msra.mxu0 0.0
          %902 = vmatpush.msra.mxu0 0.0
          %903 = vmatpush.msra.mxu0 0.0
          %904 = vmatpush.msra.mxu0 0.0
          %905 = vmatpush.msra.mxu0 0.0
          %906 = vmatpush.msra.mxu0 0.0
          %907 = vmatpush.msra.mxu0 %v718
          %908 = vmatpush.msra.mxu0 %v644
          %909 = vmatmul.f32.gmra.mxu0 %v690
          %v910 = vpop.f32.mrf.mxu0
          %v911 = vadd.f32 %v672, %v910
          %912 = vmatmul.f32.gmra.mxu0 %v693
          %v913 = vpop.f32.mrf.mxu0
          %v914 = vadd.f32 %v672, %v913
          %915 = vdwg.mxu0
          %916 = vmatpush.msra.mxu0 0.0
          %917 = vmatpush.msra.mxu0 0.0
          %918 = vmatpush.msra.mxu0 0.0
          %919 = vmatpush.msra.mxu0 0.0
          %920 = vmatpush.msra.mxu0 0.0
          %921 = vmatpush.msra.mxu0 0.0
          %922 = vmatpush.msra.mxu0 0.0
          %923 = vmatpush.msra.mxu0 0.0
          %924 = vmatpush.msra.mxu0 0.0
          %925 = vmatpush.msra.mxu0 0.0
          %926 = vmatpush.msra.mxu0 0.0
          %927 = vmatpush.msra.mxu0 0.0
          %928 = vmatpush.msra.mxu0 0.0
          %929 = vmatpush.msra.mxu0 0.0
          %930 = vmatpush.msra.mxu0 %v721
          %931 = vmatpush.msra.mxu0 %v645
          %932 = vmatmul.f32.gmra.mxu0 %v690
          %v933 = vpop.f32.mrf.mxu0
          %v934 = vadd.f32 %v673, %v933
          %935 = vmatmul.f32.gmra.mxu0 %v693
          %v936 = vpop.f32.mrf.mxu0
          %v937 = vadd.f32 %v673, %v936
          %938 = vdwg.mxu0
          %939 = vmatpush.msra.mxu0 0.0
          %940 = vmatpush.msra.mxu0 0.0
          %941 = vmatpush.msra.mxu0 0.0
          %942 = vmatpush.msra.mxu0 0.0
          %943 = vmatpush.msra.mxu0 0.0
          %944 = vmatpush.msra.mxu0 0.0
          %945 = vmatpush.msra.mxu0 0.0
          %946 = vmatpush.msra.mxu0 0.0
          %947 = vmatpush.msra.mxu0 0.0
          %948 = vmatpush.msra.mxu0 0.0
          %949 = vmatpush.msra.mxu0 0.0
          %950 = vmatpush.msra.mxu0 0.0
          %951 = vmatpush.msra.mxu0 0.0
          %952 = vmatpush.msra.mxu0 0.0
          %953 = vmatpush.msra.mxu0 %v724
          %954 = vmatpush.msra.mxu0 %v646
          %955 = vmatmul.f32.gmra.mxu0 %v690
          %v956 = vpop.f32.mrf.mxu0
          %v957 = vadd.f32 %v674, %v956
          %958 = vmatmul.f32.gmra.mxu0 %v693
          %v959 = vpop.f32.mrf.mxu0
          %v960 = vadd.f32 %v674, %v959
          %961 = vdwg.mxu0
          %962 = vmatpush.msra.mxu0 0.0
          %963 = vmatpush.msra.mxu0 0.0
          %964 = vmatpush.msra.mxu0 0.0
          %965 = vmatpush.msra.mxu0 0.0
          %966 = vmatpush.msra.mxu0 0.0
          %967 = vmatpush.msra.mxu0 0.0
          %968 = vmatpush.msra.mxu0 0.0
          %969 = vmatpush.msra.mxu0 0.0
          %970 = vmatpush.msra.mxu0 0.0
          %971 = vmatpush.msra.mxu0 0.0
          %972 = vmatpush.msra.mxu0 0.0
          %973 = vmatpush.msra.mxu0 0.0
          %974 = vmatpush.msra.mxu0 0.0
          %975 = vmatpush.msra.mxu0 0.0
          %976 = vmatpush.msra.mxu0 %v727
          %977 = vmatpush.msra.mxu0 %v647
          %978 = vmatmul.f32.gmra.mxu0 %v690
          %v979 = vpop.f32.mrf.mxu0
          %v980 = vadd.f32 %v675, %v979
          %981 = vmatmul.f32.gmra.mxu0 %v693
          %v982 = vpop.f32.mrf.mxu0
          %v983 = vadd.f32 %v675, %v982
          %984 = vdwg.mxu0
          %985 = vmatpush.msra.mxu0 0.0
          %986 = vmatpush.msra.mxu0 0.0
          %987 = vmatpush.msra.mxu0 0.0
          %988 = vmatpush.msra.mxu0 0.0
          %989 = vmatpush.msra.mxu0 0.0
          %990 = vmatpush.msra.mxu0 0.0
          %991 = vmatpush.msra.mxu0 0.0
          %992 = vmatpush.msra.mxu0 0.0
          %993 = vmatpush.msra.mxu0 0.0
          %994 = vmatpush.msra.mxu0 0.0
          %995 = vmatpush.msra.mxu0 0.0
          %996 = vmatpush.msra.mxu0 0.0
          %997 = vmatpush.msra.mxu0 0.0
          %998 = vmatpush.msra.mxu0 0.0
          %999 = vmatpush.msra.mxu0 %v730
          %1000 = vmatpush.msra.mxu0 %v648
          %1001 = vmatmul.f32.gmra.mxu0 %v690
          %v1002 = vpop.f32.mrf.mxu0
          %v1003 = vadd.f32 %v676, %v1002
          %1004 = vmatmul.f32.gmra.mxu0 %v693
          %v1005 = vpop.f32.mrf.mxu0
          %v1006 = vadd.f32 %v676, %v1005
          %1007 = vdwg.mxu0
          %v1008 = vxor.u32 %v750, 2147483648
          %v1009 = vxor.u32 %v773, 2147483648
          %v1010 = vxor.u32 %v796, 2147483648
          %v1011 = vxor.u32 %v819, 2147483648
          %v1012 = vxor.u32 %v842, 2147483648
          %v1013 = vxor.u32 %v865, 2147483648
          %v1014 = vxor.u32 %v888, 2147483648
          %v1015 = vxor.u32 %v911, 2147483648
          %v1016 = vxor.u32 %v934, 2147483648
          %v1017 = vxor.u32 %v957, 2147483648
          %v1018 = vxor.u32 %v980, 2147483648
          %v1019 = vxor.u32 %v1003, 2147483648
          %v1020 = vxor.u32 %v753, 2147483648
          %v1021 = vxor.u32 %v776, 2147483648
          %v1022 = vxor.u32 %v799, 2147483648
          %v1023 = vxor.u32 %v822, 2147483648
          %v1024 = vxor.u32 %v845, 2147483648
          %v1025 = vxor.u32 %v868, 2147483648
          %v1026 = vxor.u32 %v891, 2147483648
          %v1027 = vxor.u32 %v914, 2147483648
          %v1028 = vxor.u32 %v937, 2147483648
          %v1029 = vxor.u32 %v960, 2147483648
          %v1030 = vxor.u32 %v983, 2147483648
          %v1031 = vxor.u32 %v1006, 2147483648
          %v1032 = vmul.f32 %v1008, 1.442695
          %v1033 = vpow.pop %v1032
          %v1034 = vmul.f32 %v1009, 1.442695
          %v1035 = vpow.pop %v1034
          %v1036 = vmul.f32 %v1010, 1.442695
          %v1037 = vpow.pop %v1036
          %v1038 = vmul.f32 %v1011, 1.442695
          %v1039 = vpow.pop %v1038
          %v1040 = vmul.f32 %v1012, 1.442695
          %v1041 = vpow.pop %v1040
          %v1042 = vmul.f32 %v1013, 1.442695
          %v1043 = vpow.pop %v1042
          %v1044 = vmul.f32 %v1014, 1.442695
          %v1045 = vpow.pop %v1044
          %v1046 = vmul.f32 %v1015, 1.442695
          %v1047 = vpow.pop %v1046
          %v1048 = vmul.f32 %v1016, 1.442695
          %v1049 = vpow.pop %v1048
          %v1050 = vmul.f32 %v1017, 1.442695
          %v1051 = vpow.pop %v1050
          %v1052 = vmul.f32 %v1018, 1.442695
          %v1053 = vpow.pop %v1052
          %v1054 = vmul.f32 %v1019, 1.442695
          %v1055 = vpow.pop %v1054
          %v1056 = vmul.f32 %v1020, 1.442695
          %v1057 = vpow.pop %v1056
          %v1058 = vmul.f32 %v1021, 1.442695
          %v1059 = vpow.pop %v1058
          %v1060 = vmul.f32 %v1022, 1.442695
          %v1061 = vpow.pop %v1060
          %v1062 = vmul.f32 %v1023, 1.442695
          %v1063 = vpow.pop %v1062
          %v1064 = vmul.f32 %v1024, 1.442695
          %v1065 = vpow.pop %v1064
          %v1066 = vmul.f32 %v1025, 1.442695
          %v1067 = vpow.pop %v1066
          %v1068 = vmul.f32 %v1026, 1.442695
          %v1069 = vpow.pop %v1068
          %v1070 = vmul.f32 %v1027, 1.442695
          %v1071 = vpow.pop %v1070
          %v1072 = vmul.f32 %v1028, 1.442695
          %v1073 = vpow.pop %v1072
          %v1074 = vmul.f32 %v1029, 1.442695
          %v1075 = vpow.pop %v1074
          %v1076 = vmul.f32 %v1030, 1.442695
          %v1077 = vpow.pop %v1076
          %v1078 = vmul.f32 %v1031, 1.442695
          %v1079 = vpow.pop %v1078
          %v1080 = vadd.f32 %v1033, 1.0
          %v1081 = vadd.f32 %v1035, 1.0
          %v1082 = vadd.f32 %v1037, 1.0
          %v1083 = vadd.f32 %v1039, 1.0
          %v1084 = vadd.f32 %v1041, 1.0
          %v1085 = vadd.f32 %v1043, 1.0
          %v1086 = vadd.f32 %v1045, 1.0
          %v1087 = vadd.f32 %v1047, 1.0
          %v1088 = vadd.f32 %v1049, 1.0
          %v1089 = vadd.f32 %v1051, 1.0
          %v1090 = vadd.f32 %v1053, 1.0
          %v1091 = vadd.f32 %v1055, 1.0
          %v1092 = vadd.f32 %v1057, 1.0
          %v1093 = vadd.f32 %v1059, 1.0
          %v1094 = vadd.f32 %v1061, 1.0
          %v1095 = vadd.f32 %v1063, 1.0
          %v1096 = vadd.f32 %v1065, 1.0
          %v1097 = vadd.f32 %v1067, 1.0
          %v1098 = vadd.f32 %v1069, 1.0
          %v1099 = vadd.f32 %v1071, 1.0
          %v1100 = vadd.f32 %v1073, 1.0
          %v1101 = vadd.f32 %v1075, 1.0
          %v1102 = vadd.f32 %v1077, 1.0
          %v1103 = vadd.f32 %v1079, 1.0
          %v1104 = vrcp.pop %v1080
          %v1105 = vmul.f32 %v1080, %v1104
          %v1106 = vsub.f32 1.0, %v1105
          %v1107 = vmul.f32 %v1104, %v1106
          %v1108 = vadd.f32 %v1104, %v1107
          %vm1109 = vweird.f32 %v1080
          %vm1110 = vweird.f32 %v1104
          %vm1111 = vmor %vm1109, %vm1110
          %v1112 = vsel %vm1111, %v1104, %v1108
          %v1113 = vand.u32 2147483647, %v1080
          %vm1114 = vcmp.eq.f32.partialorder %v1113, 8.507059e+37
          %v1115 = vand.u32 %v1080, 2147483648
          %v1116 = vor.u32 1.1754944e-38, %v1115
          %v1117 = vsel %vm1114, %v1116, %v1112
          %v1118 = vmul.f32 1.0, %v1117
          %v1119 = vrcp.pop %v1081
          %v1120 = vmul.f32 %v1081, %v1119
          %v1121 = vsub.f32 1.0, %v1120
          %v1122 = vmul.f32 %v1119, %v1121
          %v1123 = vadd.f32 %v1119, %v1122
          %vm1124 = vweird.f32 %v1081
          %vm1125 = vweird.f32 %v1119
          %vm1126 = vmor %vm1124, %vm1125
          %v1127 = vsel %vm1126, %v1119, %v1123
          %v1128 = vand.u32 2147483647, %v1081
          %vm1129 = vcmp.eq.f32.partialorder %v1128, 8.507059e+37
          %v1130 = vand.u32 %v1081, 2147483648
          %v1131 = vor.u32 1.1754944e-38, %v1130
          %v1132 = vsel %vm1129, %v1131, %v1127
          %v1133 = vmul.f32 1.0, %v1132
          %v1134 = vrcp.pop %v1082
          %v1135 = vmul.f32 %v1082, %v1134
          %v1136 = vsub.f32 1.0, %v1135
          %v1137 = vmul.f32 %v1134, %v1136
          %v1138 = vadd.f32 %v1134, %v1137
          %vm1139 = vweird.f32 %v1082
          %vm1140 = vweird.f32 %v1134
          %vm1141 = vmor %vm1139, %vm1140
          %v1142 = vsel %vm1141, %v1134, %v1138
          %v1143 = vand.u32 2147483647, %v1082
          %vm1144 = vcmp.eq.f32.partialorder %v1143, 8.507059e+37
          %v1145 = vand.u32 %v1082, 2147483648
          %v1146 = vor.u32 1.1754944e-38, %v1145
          %v1147 = vsel %vm1144, %v1146, %v1142
          %v1148 = vmul.f32 1.0, %v1147
          %v1149 = vrcp.pop %v1083
          %v1150 = vmul.f32 %v1083, %v1149
          %v1151 = vsub.f32 1.0, %v1150
          %v1152 = vmul.f32 %v1149, %v1151
          %v1153 = vadd.f32 %v1149, %v1152
          %vm1154 = vweird.f32 %v1083
          %vm1155 = vweird.f32 %v1149
          %vm1156 = vmor %vm1154, %vm1155
          %v1157 = vsel %vm1156, %v1149, %v1153
          %v1158 = vand.u32 2147483647, %v1083
          %vm1159 = vcmp.eq.f32.partialorder %v1158, 8.507059e+37
          %v1160 = vand.u32 %v1083, 2147483648
          %v1161 = vor.u32 1.1754944e-38, %v1160
          %v1162 = vsel %vm1159, %v1161, %v1157
          %v1163 = vmul.f32 1.0, %v1162
          %v1164 = vrcp.pop %v1084
          %v1165 = vmul.f32 %v1084, %v1164
          %v1166 = vsub.f32 1.0, %v1165
          %v1167 = vmul.f32 %v1164, %v1166
          %v1168 = vadd.f32 %v1164, %v1167
          %vm1169 = vweird.f32 %v1084
          %vm1170 = vweird.f32 %v1164
          %vm1171 = vmor %vm1169, %vm1170
          %v1172 = vsel %vm1171, %v1164, %v1168
          %v1173 = vand.u32 2147483647, %v1084
          %vm1174 = vcmp.eq.f32.partialorder %v1173, 8.507059e+37
          %v1175 = vand.u32 %v1084, 2147483648
          %v1176 = vor.u32 1.1754944e-38, %v1175
          %v1177 = vsel %vm1174, %v1176, %v1172
          %v1178 = vmul.f32 1.0, %v1177
          %v1179 = vrcp.pop %v1085
          %v1180 = vmul.f32 %v1085, %v1179
          %v1181 = vsub.f32 1.0, %v1180
          %v1182 = vmul.f32 %v1179, %v1181
          %v1183 = vadd.f32 %v1179, %v1182
          %vm1184 = vweird.f32 %v1085
          %vm1185 = vweird.f32 %v1179
          %vm1186 = vmor %vm1184, %vm1185
          %v1187 = vsel %vm1186, %v1179, %v1183
          %v1188 = vand.u32 2147483647, %v1085
          %vm1189 = vcmp.eq.f32.partialorder %v1188, 8.507059e+37
          %v1190 = vand.u32 %v1085, 2147483648
          %v1191 = vor.u32 1.1754944e-38, %v1190
          %v1192 = vsel %vm1189, %v1191, %v1187
          %v1193 = vmul.f32 1.0, %v1192
          %v1194 = vrcp.pop %v1086
          %v1195 = vmul.f32 %v1086, %v1194
          %v1196 = vsub.f32 1.0, %v1195
          %v1197 = vmul.f32 %v1194, %v1196
          %v1198 = vadd.f32 %v1194, %v1197
          %vm1199 = vweird.f32 %v1086
          %vm1200 = vweird.f32 %v1194
          %vm1201 = vmor %vm1199, %vm1200
          %v1202 = vsel %vm1201, %v1194, %v1198
          %v1203 = vand.u32 2147483647, %v1086
          %vm1204 = vcmp.eq.f32.partialorder %v1203, 8.507059e+37
          %v1205 = vand.u32 %v1086, 2147483648
          %v1206 = vor.u32 1.1754944e-38, %v1205
          %v1207 = vsel %vm1204, %v1206, %v1202
          %v1208 = vmul.f32 1.0, %v1207
          %v1209 = vrcp.pop %v1087
          %v1210 = vmul.f32 %v1087, %v1209
          %v1211 = vsub.f32 1.0, %v1210
          %v1212 = vmul.f32 %v1209, %v1211
          %v1213 = vadd.f32 %v1209, %v1212
          %vm1214 = vweird.f32 %v1087
          %vm1215 = vweird.f32 %v1209
          %vm1216 = vmor %vm1214, %vm1215
          %v1217 = vsel %vm1216, %v1209, %v1213
          %v1218 = vand.u32 2147483647, %v1087
          %vm1219 = vcmp.eq.f32.partialorder %v1218, 8.507059e+37
          %v1220 = vand.u32 %v1087, 2147483648
          %v1221 = vor.u32 1.1754944e-38, %v1220
          %v1222 = vsel %vm1219, %v1221, %v1217
          %v1223 = vmul.f32 1.0, %v1222
          %v1224 = vrcp.pop %v1088
          %v1225 = vmul.f32 %v1088, %v1224
          %v1226 = vsub.f32 1.0, %v1225
          %v1227 = vmul.f32 %v1224, %v1226
          %v1228 = vadd.f32 %v1224, %v1227
          %vm1229 = vweird.f32 %v1088
          %vm1230 = vweird.f32 %v1224
          %vm1231 = vmor %vm1229, %vm1230
          %v1232 = vsel %vm1231, %v1224, %v1228
          %v1233 = vand.u32 2147483647, %v1088
          %vm1234 = vcmp.eq.f32.partialorder %v1233, 8.507059e+37
          %v1235 = vand.u32 %v1088, 2147483648
          %v1236 = vor.u32 1.1754944e-38, %v1235
          %v1237 = vsel %vm1234, %v1236, %v1232
          %v1238 = vmul.f32 1.0, %v1237
          %v1239 = vrcp.pop %v1089
          %v1240 = vmul.f32 %v1089, %v1239
          %v1241 = vsub.f32 1.0, %v1240
          %v1242 = vmul.f32 %v1239, %v1241
          %v1243 = vadd.f32 %v1239, %v1242
          %vm1244 = vweird.f32 %v1089
          %vm1245 = vweird.f32 %v1239
          %vm1246 = vmor %vm1244, %vm1245
          %v1247 = vsel %vm1246, %v1239, %v1243
          %v1248 = vand.u32 2147483647, %v1089
          %vm1249 = vcmp.eq.f32.partialorder %v1248, 8.507059e+37
          %v1250 = vand.u32 %v1089, 2147483648
          %v1251 = vor.u32 1.1754944e-38, %v1250
          %v1252 = vsel %vm1249, %v1251, %v1247
          %v1253 = vmul.f32 1.0, %v1252
          %v1254 = vrcp.pop %v1090
          %v1255 = vmul.f32 %v1090, %v1254
          %v1256 = vsub.f32 1.0, %v1255
          %v1257 = vmul.f32 %v1254, %v1256
          %v1258 = vadd.f32 %v1254, %v1257
          %vm1259 = vweird.f32 %v1090
          %vm1260 = vweird.f32 %v1254
          %vm1261 = vmor %vm1259, %vm1260
          %v1262 = vsel %vm1261, %v1254, %v1258
          %v1263 = vand.u32 2147483647, %v1090
          %vm1264 = vcmp.eq.f32.partialorder %v1263, 8.507059e+37
          %v1265 = vand.u32 %v1090, 2147483648
          %v1266 = vor.u32 1.1754944e-38, %v1265
          %v1267 = vsel %vm1264, %v1266, %v1262
          %v1268 = vmul.f32 1.0, %v1267
          %v1269 = vrcp.pop %v1091
          %v1270 = vmul.f32 %v1091, %v1269
          %v1271 = vsub.f32 1.0, %v1270
          %v1272 = vmul.f32 %v1269, %v1271
          %v1273 = vadd.f32 %v1269, %v1272
          %vm1274 = vweird.f32 %v1091
          %vm1275 = vweird.f32 %v1269
          %vm1276 = vmor %vm1274, %vm1275
          %v1277 = vsel %vm1276, %v1269, %v1273
          %v1278 = vand.u32 2147483647, %v1091
          %vm1279 = vcmp.eq.f32.partialorder %v1278, 8.507059e+37
          %v1280 = vand.u32 %v1091, 2147483648
          %v1281 = vor.u32 1.1754944e-38, %v1280
          %v1282 = vsel %vm1279, %v1281, %v1277
          %v1283 = vmul.f32 1.0, %v1282
          %v1284 = vrcp.pop %v1092
          %v1285 = vmul.f32 %v1092, %v1284
          %v1286 = vsub.f32 1.0, %v1285
          %v1287 = vmul.f32 %v1284, %v1286
          %v1288 = vadd.f32 %v1284, %v1287
          %vm1289 = vweird.f32 %v1092
          %vm1290 = vweird.f32 %v1284
          %vm1291 = vmor %vm1289, %vm1290
          %v1292 = vsel %vm1291, %v1284, %v1288
          %v1293 = vand.u32 2147483647, %v1092
          %vm1294 = vcmp.eq.f32.partialorder %v1293, 8.507059e+37
          %v1295 = vand.u32 %v1092, 2147483648
          %v1296 = vor.u32 1.1754944e-38, %v1295
          %v1297 = vsel %vm1294, %v1296, %v1292
          %v1298 = vmul.f32 1.0, %v1297
          %v1299 = vrcp.pop %v1093
          %v1300 = vmul.f32 %v1093, %v1299
          %v1301 = vsub.f32 1.0, %v1300
          %v1302 = vmul.f32 %v1299, %v1301
          %v1303 = vadd.f32 %v1299, %v1302
          %vm1304 = vweird.f32 %v1093
          %vm1305 = vweird.f32 %v1299
          %vm1306 = vmor %vm1304, %vm1305
          %v1307 = vsel %vm1306, %v1299, %v1303
          %v1308 = vand.u32 2147483647, %v1093
          %vm1309 = vcmp.eq.f32.partialorder %v1308, 8.507059e+37
          %v1310 = vand.u32 %v1093, 2147483648
          %v1311 = vor.u32 1.1754944e-38, %v1310
          %v1312 = vsel %vm1309, %v1311, %v1307
          %v1313 = vmul.f32 1.0, %v1312
          %v1314 = vrcp.pop %v1094
          %v1315 = vmul.f32 %v1094, %v1314
          %v1316 = vsub.f32 1.0, %v1315
          %v1317 = vmul.f32 %v1314, %v1316
          %v1318 = vadd.f32 %v1314, %v1317
          %vm1319 = vweird.f32 %v1094
          %vm1320 = vweird.f32 %v1314
          %vm1321 = vmor %vm1319, %vm1320
          %v1322 = vsel %vm1321, %v1314, %v1318
          %v1323 = vand.u32 2147483647, %v1094
          %vm1324 = vcmp.eq.f32.partialorder %v1323, 8.507059e+37
          %v1325 = vand.u32 %v1094, 2147483648
          %v1326 = vor.u32 1.1754944e-38, %v1325
          %v1327 = vsel %vm1324, %v1326, %v1322
          %v1328 = vmul.f32 1.0, %v1327
          %v1329 = vrcp.pop %v1095
          %v1330 = vmul.f32 %v1095, %v1329
          %v1331 = vsub.f32 1.0, %v1330
          %v1332 = vmul.f32 %v1329, %v1331
          %v1333 = vadd.f32 %v1329, %v1332
          %vm1334 = vweird.f32 %v1095
          %vm1335 = vweird.f32 %v1329
          %vm1336 = vmor %vm1334, %vm1335
          %v1337 = vsel %vm1336, %v1329, %v1333
          %v1338 = vand.u32 2147483647, %v1095
          %vm1339 = vcmp.eq.f32.partialorder %v1338, 8.507059e+37
          %v1340 = vand.u32 %v1095, 2147483648
          %v1341 = vor.u32 1.1754944e-38, %v1340
          %v1342 = vsel %vm1339, %v1341, %v1337
          %v1343 = vmul.f32 1.0, %v1342
          %v1344 = vrcp.pop %v1096
          %v1345 = vmul.f32 %v1096, %v1344
          %v1346 = vsub.f32 1.0, %v1345
          %v1347 = vmul.f32 %v1344, %v1346
          %v1348 = vadd.f32 %v1344, %v1347
          %vm1349 = vweird.f32 %v1096
          %vm1350 = vweird.f32 %v1344
          %vm1351 = vmor %vm1349, %vm1350
          %v1352 = vsel %vm1351, %v1344, %v1348
          %v1353 = vand.u32 2147483647, %v1096
          %vm1354 = vcmp.eq.f32.partialorder %v1353, 8.507059e+37
          %v1355 = vand.u32 %v1096, 2147483648
          %v1356 = vor.u32 1.1754944e-38, %v1355
          %v1357 = vsel %vm1354, %v1356, %v1352
          %v1358 = vmul.f32 1.0, %v1357
          %v1359 = vrcp.pop %v1097
          %v1360 = vmul.f32 %v1097, %v1359
          %v1361 = vsub.f32 1.0, %v1360
          %v1362 = vmul.f32 %v1359, %v1361
          %v1363 = vadd.f32 %v1359, %v1362
          %vm1364 = vweird.f32 %v1097
          %vm1365 = vweird.f32 %v1359
          %vm1366 = vmor %vm1364, %vm1365
          %v1367 = vsel %vm1366, %v1359, %v1363
          %v1368 = vand.u32 2147483647, %v1097
          %vm1369 = vcmp.eq.f32.partialorder %v1368, 8.507059e+37
          %v1370 = vand.u32 %v1097, 2147483648
          %v1371 = vor.u32 1.1754944e-38, %v1370
          %v1372 = vsel %vm1369, %v1371, %v1367
          %v1373 = vmul.f32 1.0, %v1372
          %v1374 = vrcp.pop %v1098
          %v1375 = vmul.f32 %v1098, %v1374
          %v1376 = vsub.f32 1.0, %v1375
          %v1377 = vmul.f32 %v1374, %v1376
          %v1378 = vadd.f32 %v1374, %v1377
          %vm1379 = vweird.f32 %v1098
          %vm1380 = vweird.f32 %v1374
          %vm1381 = vmor %vm1379, %vm1380
          %v1382 = vsel %vm1381, %v1374, %v1378
          %v1383 = vand.u32 2147483647, %v1098
          %vm1384 = vcmp.eq.f32.partialorder %v1383, 8.507059e+37
          %v1385 = vand.u32 %v1098, 2147483648
          %v1386 = vor.u32 1.1754944e-38, %v1385
          %v1387 = vsel %vm1384, %v1386, %v1382
          %v1388 = vmul.f32 1.0, %v1387
          %v1389 = vrcp.pop %v1099
          %v1390 = vmul.f32 %v1099, %v1389
          %v1391 = vsub.f32 1.0, %v1390
          %v1392 = vmul.f32 %v1389, %v1391
          %v1393 = vadd.f32 %v1389, %v1392
          %vm1394 = vweird.f32 %v1099
          %vm1395 = vweird.f32 %v1389
          %vm1396 = vmor %vm1394, %vm1395
          %v1397 = vsel %vm1396, %v1389, %v1393
          %v1398 = vand.u32 2147483647, %v1099
          %vm1399 = vcmp.eq.f32.partialorder %v1398, 8.507059e+37
          %v1400 = vand.u32 %v1099, 2147483648
          %v1401 = vor.u32 1.1754944e-38, %v1400
          %v1402 = vsel %vm1399, %v1401, %v1397
          %v1403 = vmul.f32 1.0, %v1402
          %v1404 = vrcp.pop %v1100
          %v1405 = vmul.f32 %v1100, %v1404
          %v1406 = vsub.f32 1.0, %v1405
          %v1407 = vmul.f32 %v1404, %v1406
          %v1408 = vadd.f32 %v1404, %v1407
          %vm1409 = vweird.f32 %v1100
          %vm1410 = vweird.f32 %v1404
          %vm1411 = vmor %vm1409, %vm1410
          %v1412 = vsel %vm1411, %v1404, %v1408
          %v1413 = vand.u32 2147483647, %v1100
          %vm1414 = vcmp.eq.f32.partialorder %v1413, 8.507059e+37
          %v1415 = vand.u32 %v1100, 2147483648
          %v1416 = vor.u32 1.1754944e-38, %v1415
          %v1417 = vsel %vm1414, %v1416, %v1412
          %v1418 = vmul.f32 1.0, %v1417
          %v1419 = vrcp.pop %v1101
          %v1420 = vmul.f32 %v1101, %v1419
          %v1421 = vsub.f32 1.0, %v1420
          %v1422 = vmul.f32 %v1419, %v1421
          %v1423 = vadd.f32 %v1419, %v1422
          %vm1424 = vweird.f32 %v1101
          %vm1425 = vweird.f32 %v1419
          %vm1426 = vmor %vm1424, %vm1425
          %v1427 = vsel %vm1426, %v1419, %v1423
          %v1428 = vand.u32 2147483647, %v1101
          %vm1429 = vcmp.eq.f32.partialorder %v1428, 8.507059e+37
          %v1430 = vand.u32 %v1101, 2147483648
          %v1431 = vor.u32 1.1754944e-38, %v1430
          %v1432 = vsel %vm1429, %v1431, %v1427
          %v1433 = vmul.f32 1.0, %v1432
          %v1434 = vrcp.pop %v1102
          %v1435 = vmul.f32 %v1102, %v1434
          %v1436 = vsub.f32 1.0, %v1435
          %v1437 = vmul.f32 %v1434, %v1436
          %v1438 = vadd.f32 %v1434, %v1437
          %vm1439 = vweird.f32 %v1102
          %vm1440 = vweird.f32 %v1434
          %vm1441 = vmor %vm1439, %vm1440
          %v1442 = vsel %vm1441, %v1434, %v1438
          %v1443 = vand.u32 2147483647, %v1102
          %vm1444 = vcmp.eq.f32.partialorder %v1443, 8.507059e+37
          %v1445 = vand.u32 %v1102, 2147483648
          %v1446 = vor.u32 1.1754944e-38, %v1445
          %v1447 = vsel %vm1444, %v1446, %v1442
          %v1448 = vmul.f32 1.0, %v1447
          %v1449 = vrcp.pop %v1103
          %v1450 = vmul.f32 %v1103, %v1449
          %v1451 = vsub.f32 1.0, %v1450
          %v1452 = vmul.f32 %v1449, %v1451
          %v1453 = vadd.f32 %v1449, %v1452
          %vm1454 = vweird.f32 %v1103
          %vm1455 = vweird.f32 %v1449
          %vm1456 = vmor %vm1454, %vm1455
          %v1457 = vsel %vm1456, %v1449, %v1453
          %v1458 = vand.u32 2147483647, %v1103
          %vm1459 = vcmp.eq.f32.partialorder %v1458, 8.507059e+37
          %v1460 = vand.u32 %v1103, 2147483648
          %v1461 = vor.u32 1.1754944e-38, %v1460
          %v1462 = vsel %vm1459, %v1461, %v1457
          %v1463 = vmul.f32 1.0, %v1462
          %v1464 = vlaneseq
          %v1465 = vand.u32 %v1464, 127
          %v1466 = vadd.s32 %v1465, 128
          %v1467 = vadd.s32 %v1465, 256
          %v1468 = vadd.s32 %v1465, 384
          %v1469 = vadd.s32 %v1465, 512
          %v1470 = vadd.s32 %v1465, 640
          %v1471 = vadd.s32 %v1465, 768
          %v1472 = vadd.s32 %v1465, 896
          %v1473 = vadd.s32 %v1465, 1024
          %v1474 = vadd.s32 %v1465, 1152
          %v1475 = vadd.s32 %v1465, 1280
          %v1476 = vadd.s32 %v1465, 1408
          %vm1477 = vcmp.lt.s32.totalorder %v1465, 1500
          %vm1478 = vcmp.lt.s32.totalorder %v1466, 1500
          %vm1479 = vcmp.lt.s32.totalorder %v1467, 1500
          %vm1480 = vcmp.lt.s32.totalorder %v1468, 1500
          %vm1481 = vcmp.lt.s32.totalorder %v1469, 1500
          %vm1482 = vcmp.lt.s32.totalorder %v1470, 1500
          %vm1483 = vcmp.lt.s32.totalorder %v1471, 1500
          %vm1484 = vcmp.lt.s32.totalorder %v1472, 1500
          %vm1485 = vcmp.lt.s32.totalorder %v1473, 1500
          %vm1486 = vcmp.lt.s32.totalorder %v1474, 1500
          %vm1487 = vcmp.lt.s32.totalorder %v1475, 1500
          %vm1488 = vcmp.lt.s32.totalorder %v1476, 1500
          %v1489 = vsel %vm1477, 1, 0
          %v1490 = vsel %vm1478, 1, 0
          %v1491 = vsel %vm1479, 1, 0
          %v1492 = vsel %vm1480, 1, 0
          %v1493 = vsel %vm1481, 1, 0
          %v1494 = vsel %vm1482, 1, 0
          %v1495 = vsel %vm1483, 1, 0
          %v1496 = vsel %vm1484, 1, 0
          %v1497 = vsel %vm1485, 1, 0
          %v1498 = vsel %vm1486, 1, 0
          %v1499 = vsel %vm1487, 1, 0
          %v1500 = vsel %vm1488, 1, 0
          %vm1501 = vcmp.eq.s32.totalorder %v1489, 1
          %vm1502 = vcmp.eq.s32.totalorder %v1490, 1
          %vm1503 = vcmp.eq.s32.totalorder %v1491, 1
          %vm1504 = vcmp.eq.s32.totalorder %v1492, 1
          %vm1505 = vcmp.eq.s32.totalorder %v1493, 1
          %vm1506 = vcmp.eq.s32.totalorder %v1494, 1
          %vm1507 = vcmp.eq.s32.totalorder %v1495, 1
          %vm1508 = vcmp.eq.s32.totalorder %v1496, 1
          %vm1509 = vcmp.eq.s32.totalorder %v1497, 1
          %vm1510 = vcmp.eq.s32.totalorder %v1498, 1
          %vm1511 = vcmp.eq.s32.totalorder %v1499, 1
          %vm1512 = vcmp.eq.s32.totalorder %v1500, 1
          %v1513 = vsel %vm1501, %v1118, 0.0
          %v1514 = vsel %vm1502, %v1133, 0.0
          %v1515 = vsel %vm1503, %v1148, 0.0
          %v1516 = vsel %vm1504, %v1163, 0.0
          %v1517 = vsel %vm1505, %v1178, 0.0
          %v1518 = vsel %vm1506, %v1193, 0.0
          %v1519 = vsel %vm1507, %v1208, 0.0
          %v1520 = vsel %vm1508, %v1223, 0.0
          %v1521 = vsel %vm1509, %v1238, 0.0
          %v1522 = vsel %vm1510, %v1253, 0.0
          %v1523 = vsel %vm1511, %v1268, 0.0
          %v1524 = vsel %vm1512, %v1283, 0.0
          %v1525 = vsel %vm1501, %v1298, 0.0
          %v1526 = vsel %vm1502, %v1313, 0.0
          %v1527 = vsel %vm1503, %v1328, 0.0
          %v1528 = vsel %vm1504, %v1343, 0.0
          %v1529 = vsel %vm1505, %v1358, 0.0
          %v1530 = vsel %vm1506, %v1373, 0.0
          %v1531 = vsel %vm1507, %v1388, 0.0
          %v1532 = vsel %vm1508, %v1403, 0.0
          %v1533 = vsel %vm1509, %v1418, 0.0
          %v1534 = vsel %vm1510, %v1433, 0.0
          %v1535 = vsel %vm1511, %v1448, 0.0
          %v1536 = vsel %vm1512, %v1463, 0.0
          %v1537 = vadd.f32 %v1513, %v1514
          %v1538 = vadd.f32 %v1537, %v1515
          %v1539 = vadd.f32 %v1538, %v1516
          %v1540 = vadd.f32 %v1539, %v1517
          %v1541 = vadd.f32 %v1540, %v1518
          %v1542 = vadd.f32 %v1541, %v1519
          %v1543 = vadd.f32 %v1542, %v1520
          %v1544 = vadd.f32 %v1543, %v1521
          %v1545 = vadd.f32 %v1544, %v1522
          %v1546 = vadd.f32 %v1545, %v1523
          %v1547 = vadd.f32 %v1546, %v1524
          %1548 = vadd.xlane.f32.xlu0 %v1547
          %v1549 = vpop.xlane.xlu0 %1548
          %v1550 = vadd.f32 %v1525, %v1526
          %v1551 = vadd.f32 %v1550, %v1527
          %v1552 = vadd.f32 %v1551, %v1528
          %v1553 = vadd.f32 %v1552, %v1529
          %v1554 = vadd.f32 %v1553, %v1530
          %v1555 = vadd.f32 %v1554, %v1531
          %v1556 = vadd.f32 %v1555, %v1532
          %v1557 = vadd.f32 %v1556, %v1533
          %v1558 = vadd.f32 %v1557, %v1534
          %v1559 = vadd.f32 %v1558, %v1535
          %v1560 = vadd.f32 %v1559, %v1536
          %1561 = vadd.xlane.f32.xlu0 %v1560
          %v1562 = vpop.xlane.xlu0 %1561
          %v1563 = vmul.f32 %v1549, 0.00066666666
          %v1564 = vmul.f32 %v1562, 0.00066666666
          %v1565 = vsub.f32 %v1513, %v1563
          %v1566 = vsub.f32 %v1514, %v1563
          %v1567 = vsub.f32 %v1515, %v1563
          %v1568 = vsub.f32 %v1516, %v1563
          %v1569 = vsub.f32 %v1517, %v1563
          %v1570 = vsub.f32 %v1518, %v1563
          %v1571 = vsub.f32 %v1519, %v1563
          %v1572 = vsub.f32 %v1520, %v1563
          %v1573 = vsub.f32 %v1521, %v1563
          %v1574 = vsub.f32 %v1522, %v1563
          %v1575 = vsub.f32 %v1523, %v1563
          %v1576 = vsub.f32 %v1524, %v1563
          %v1577 = vsub.f32 %v1525, %v1564
          %v1578 = vsub.f32 %v1526, %v1564
          %v1579 = vsub.f32 %v1527, %v1564
          %v1580 = vsub.f32 %v1528, %v1564
          %v1581 = vsub.f32 %v1529, %v1564
          %v1582 = vsub.f32 %v1530, %v1564
          %v1583 = vsub.f32 %v1531, %v1564
          %v1584 = vsub.f32 %v1532, %v1564
          %v1585 = vsub.f32 %v1533, %v1564
          %v1586 = vsub.f32 %v1534, %v1564
          %v1587 = vsub.f32 %v1535, %v1564
          %v1588 = vsub.f32 %v1536, %v1564
          %v1589 = vsel %vm1501, %v1565, 0.0
          %v1590 = vsel %vm1502, %v1566, 0.0
          %v1591 = vsel %vm1503, %v1567, 0.0
          %v1592 = vsel %vm1504, %v1568, 0.0
          %v1593 = vsel %vm1505, %v1569, 0.0
          %v1594 = vsel %vm1506, %v1570, 0.0
          %v1595 = vsel %vm1507, %v1571, 0.0
          %v1596 = vsel %vm1508, %v1572, 0.0
          %v1597 = vsel %vm1509, %v1573, 0.0
          %v1598 = vsel %vm1510, %v1574, 0.0
          %v1599 = vsel %vm1511, %v1575, 0.0
          %v1600 = vsel %vm1512, %v1576, 0.0
          %v1601 = vsel %vm1501, %v1577, 0.0
          %v1602 = vsel %vm1502, %v1578, 0.0
          %v1603 = vsel %vm1503, %v1579, 0.0
          %v1604 = vsel %vm1504, %v1580, 0.0
          %v1605 = vsel %vm1505, %v1581, 0.0
          %v1606 = vsel %vm1506, %v1582, 0.0
          %v1607 = vsel %vm1507, %v1583, 0.0
          %v1608 = vsel %vm1508, %v1584, 0.0
          %v1609 = vsel %vm1509, %v1585, 0.0
          %v1610 = vsel %vm1510, %v1586, 0.0
          %v1611 = vsel %vm1511, %v1587, 0.0
          %v1612 = vsel %vm1512, %v1588, 0.0
          %v1613 = vmul.f32 %v1589, %v1589
          %v1614 = vmul.f32 %v1590, %v1590
          %v1615 = vmul.f32 %v1591, %v1591
          %v1616 = vmul.f32 %v1592, %v1592
          %v1617 = vmul.f32 %v1593, %v1593
          %v1618 = vmul.f32 %v1594, %v1594
          %v1619 = vmul.f32 %v1595, %v1595
          %v1620 = vmul.f32 %v1596, %v1596
          %v1621 = vmul.f32 %v1597, %v1597
          %v1622 = vmul.f32 %v1598, %v1598
          %v1623 = vmul.f32 %v1599, %v1599
          %v1624 = vmul.f32 %v1600, %v1600
          %v1625 = vmul.f32 %v1601, %v1601
          %v1626 = vmul.f32 %v1602, %v1602
          %v1627 = vmul.f32 %v1603, %v1603
          %v1628 = vmul.f32 %v1604, %v1604
          %v1629 = vmul.f32 %v1605, %v1605
          %v1630 = vmul.f32 %v1606, %v1606
          %v1631 = vmul.f32 %v1607, %v1607
          %v1632 = vmul.f32 %v1608, %v1608
          %v1633 = vmul.f32 %v1609, %v1609
          %v1634 = vmul.f32 %v1610, %v1610
          %v1635 = vmul.f32 %v1611, %v1611
          %v1636 = vmul.f32 %v1612, %v1612
          %v1637 = vadd.f32 %v1613, %v1614
          %v1638 = vadd.f32 %v1637, %v1615
          %v1639 = vadd.f32 %v1638, %v1616
          %v1640 = vadd.f32 %v1639, %v1617
          %v1641 = vadd.f32 %v1640, %v1618
          %v1642 = vadd.f32 %v1641, %v1619
          %v1643 = vadd.f32 %v1642, %v1620
          %v1644 = vadd.f32 %v1643, %v1621
          %v1645 = vadd.f32 %v1644, %v1622
          %v1646 = vadd.f32 %v1645, %v1623
          %v1647 = vadd.f32 %v1646, %v1624
          %1648 = vadd.xlane.f32.xlu0 %v1647
          %v1649 = vpop.xlane.xlu0 %1648
          %v1650 = vadd.f32 %v1625, %v1626
          %v1651 = vadd.f32 %v1650, %v1627
          %v1652 = vadd.f32 %v1651, %v1628
          %v1653 = vadd.f32 %v1652, %v1629
          %v1654 = vadd.f32 %v1653, %v1630
          %v1655 = vadd.f32 %v1654, %v1631
          %v1656 = vadd.f32 %v1655, %v1632
          %v1657 = vadd.f32 %v1656, %v1633
          %v1658 = vadd.f32 %v1657, %v1634
          %v1659 = vadd.f32 %v1658, %v1635
          %v1660 = vadd.f32 %v1659, %v1636
          %1661 = vadd.xlane.f32.xlu0 %v1660
          %v1662 = vpop.xlane.xlu0 %1661
          %v1663 = vmul.f32 %v1649, 0.00066666666
          %v1664 = vmul.f32 %v1662, 0.00066666666
          %v1665 = vadd.f32 %v1663, 1e-05
          %v1666 = vadd.f32 %v1664, 1e-05
          %v1667 = vrsqrt.pop %v1665
          %v1668 = vmul.f32 %v1667, %v1665
          %v1669 = vmul.f32 %v1668, %v1667
          %v1670 = vmul.f32 0.5, %v1669
          %v1671 = vsub.f32 1.5, %v1670
          %v1672 = vmul.f32 %v1667, %v1671
          %vm1673 = vweird.f32 %v1665
          %vm1674 = vweird.f32 %v1667
          %vm1675 = vmor %vm1673, %vm1674
          %v1676 = vsel %vm1675, %v1667, %v1672
          %v1677 = vrsqrt.pop %v1666
          %v1678 = vmul.f32 %v1677, %v1666
          %v1679 = vmul.f32 %v1678, %v1677
          %v1680 = vmul.f32 0.5, %v1679
          %v1681 = vsub.f32 1.5, %v1680
          %v1682 = vmul.f32 %v1677, %v1681
          %vm1683 = vweird.f32 %v1666
          %vm1684 = vweird.f32 %v1677
          %vm1685 = vmor %vm1683, %vm1684
          %v1686 = vsel %vm1685, %v1677, %v1682
          %v1687 = vmul.f32 %v1589, %v1676
          %v1688 = vmul.f32 %v1590, %v1676
          %v1689 = vmul.f32 %v1591, %v1676
          %v1690 = vmul.f32 %v1592, %v1676
          %v1691 = vmul.f32 %v1593, %v1676
          %v1692 = vmul.f32 %v1594, %v1676
          %v1693 = vmul.f32 %v1595, %v1676
          %v1694 = vmul.f32 %v1596, %v1676
          %v1695 = vmul.f32 %v1597, %v1676
          %v1696 = vmul.f32 %v1598, %v1676
          %v1697 = vmul.f32 %v1599, %v1676
          %v1698 = vmul.f32 %v1600, %v1676
          %v1699 = vmul.f32 %v1601, %v1686
          %v1700 = vmul.f32 %v1602, %v1686
          %v1701 = vmul.f32 %v1603, %v1686
          %v1702 = vmul.f32 %v1604, %v1686
          %v1703 = vmul.f32 %v1605, %v1686
          %v1704 = vmul.f32 %v1606, %v1686
          %v1705 = vmul.f32 %v1607, %v1686
          %v1706 = vmul.f32 %v1608, %v1686
          %v1707 = vmul.f32 %v1609, %v1686
          %v1708 = vmul.f32 %v1610, %v1686
          %v1709 = vmul.f32 %v1611, %v1686
          %v1710 = vmul.f32 %v1612, %v1686
          %v1711 = vpack.c.bf16 %v1688, %v1687
          %v1712 = vpack.c.bf16 %v1690, %v1689
          %v1713 = vpack.c.bf16 %v1692, %v1691
          %v1714 = vpack.c.bf16 %v1694, %v1693
          %v1715 = vpack.c.bf16 %v1696, %v1695
          %v1716 = vpack.c.bf16 %v1698, %v1697
          %v1717 = vpack.c.bf16 %v1700, %v1699
          %v1718 = vpack.c.bf16 %v1702, %v1701
          %v1719 = vpack.c.bf16 %v1704, %v1703
          %v1720 = vpack.c.bf16 %v1706, %v1705
          %v1721 = vpack.c.bf16 %v1708, %v1707
          %v1722 = vpack.c.bf16 %v1710, %v1709
          %1723 = vst [vmem:[#allocation2] sm:$0xff] %v1711
          %1724 = vst [vmem:[#allocation2 + $0x8] sm:$0xff] %v1712
          %1725 = vst [vmem:[#allocation2 + $0x10] sm:$0xff] %v1713
          %1726 = vst [vmem:[#allocation2 + $0x18] sm:$0xff] %v1714
          %1727 = vst [vmem:[#allocation2 + $0x20] sm:$0xff] %v1715
          %1728 = vst [vmem:[#allocation2 + $0x28] sm:$0xff] %v1716
          %1729 = vst [vmem:[#allocation2 + $0x30] sm:$0xff] %v1717
          %1730 = vst [vmem:[#allocation2 + $0x38] sm:$0xff] %v1718
          %1731 = vst [vmem:[#allocation2 + $0x40] sm:$0xff] %v1719
          %1732 = vst [vmem:[#allocation2 + $0x48] sm:$0xff] %v1720
          %1733 = vst [vmem:[#allocation2 + $0x50] sm:$0xff] %v1721
          %1734 = vst [vmem:[#allocation2 + $0x58] sm:$0xff] %v1722
          %1735 = vst [vmem:[#allocation3] sm:$0xff] 0.0
          %1736 = vst [vmem:[#allocation3 + $0x8] sm:$0xff] 0.0
          %1737 = vst [vmem:[#allocation3 + $0x10] sm:$0xff] 0.0
          %1738 = vst [vmem:[#allocation3 + $0x18] sm:$0xff] 0.0
          %1739 = vst [vmem:[#allocation3 + $0x20] sm:$0xff] 0.0
          %1740 = vst [vmem:[#allocation3 + $0x28] sm:$0xff] 0.0
          %1741 = vst [vmem:[#allocation3 + $0x30] sm:$0xff] 0.0
          %1742 = vst [vmem:[#allocation3 + $0x38] sm:$0xff] 0.0
          %1743 = vst [vmem:[#allocation3 + $0x40] sm:$0xff] 0.0
          %1744 = vst [vmem:[#allocation3 + $0x48] sm:$0xff] 0.0
          %1745 = vst [vmem:[#allocation3 + $0x50] sm:$0xff] 0.0
          %1746 = vst [vmem:[#allocation3 + $0x58] sm:$0xff] 0.0
          %1747 = vst [vmem:[#allocation3 + $0x60] sm:$0xff] 0.0
          %1748 = vst [vmem:[#allocation3 + $0x68] sm:$0xff] 0.0
          %vm1749 = vcmask 7168
          %1750 = vst.msk [vmem:[#allocation4] sm:$0xff] %vm1749, 0.0
          %1751 = vst.msk [vmem:[#allocation4 + $0x8] sm:$0xff] %vm1749, 0.0
          %1752 = vst.msk [vmem:[#allocation5] sm:$0xff] %vm1749, 0.0
          %1753 = vst.msk [vmem:[#allocation5 + $0x8] sm:$0xff] %vm1749, 0.0
        $region104: #{tpu_custom_call.1} parent=59 // pred_fallthru
          _
        %v1754 = vld [vmem:[%s482] sm:$0xff]
        %v1755 = vld [vmem:[%s482 + $0x8] sm:$0xff]
        %v1756 = vld [vmem:[%s482 + $0x10] sm:$0xff]
        %v1757 = vld [vmem:[%s482 + $0x18] sm:$0xff]
        %v1758 = vld [vmem:[%s482 + $0x20] sm:$0xff]
        %v1759 = vld [vmem:[%s482 + $0x28] sm:$0xff]
        %v1760 = vld [vmem:[%s482 + $0x30] sm:$0xff]
        %v1761 = vld [vmem:[%s482 + $0x38] sm:$0xff]
        %v1762 = vld [vmem:[%s482 + $0x40] sm:$0xff]
        %v1763 = vld [vmem:[%s482 + $0x48] sm:$0xff]
        %v1764 = vld [vmem:[%s482 + $0x50] sm:$0xff]
        %v1765 = vld [vmem:[%s482 + $0x58] sm:$0xff]
        %v1766 = vld [vmem:[%s482 + $0x60] sm:$0xff]
        %v1767 = vld [vmem:[%s482 + $0x68] sm:$0xff]
        %v1768 = vld [vmem:[%s482 + $0x70] sm:$0xff]
        %v1769 = vld [vmem:[%s482 + $0x78] sm:$0xff]
        %v1770 = vld [vmem:[%s482 + $0x80] sm:$0xff]
        %v1771 = vld [vmem:[%s482 + $0x88] sm:$0xff]
        %v1772 = vld [vmem:[%s482 + $0x90] sm:$0xff]
        %v1773 = vld [vmem:[%s482 + $0x98] sm:$0xff]
        %v1774 = vld [vmem:[%s482 + $0xa0] sm:$0xff]
        %v1775 = vld [vmem:[%s482 + $0xa8] sm:$0xff]
        %v1776 = vld [vmem:[%s482 + $0xb0] sm:$0xff]
        %v1777 = vld [vmem:[%s482 + $0xb8] sm:$0xff]
        %v1778 = vld [vmem:[%s482 + $0xc0] sm:$0xff]
        %v1779 = vld [vmem:[%s482 + $0xc8] sm:$0xff]
        %v1780 = vld [vmem:[%s482 + $0xd0] sm:$0xff]
        %v1781 = vld [vmem:[%s482 + $0xd8] sm:$0xff]
        %v1782 = vld [vmem:[%s482 + $0xe0] sm:$0xff]
        %v1783 = vld [vmem:[%s482 + $0xe8] sm:$0xff]
        %v1784 = vld [vmem:[%s482 + $0xf0] sm:$0xff]
        %v1785 = vld [vmem:[%s482 + $0xf8] sm:$0xff]
        %v1786 = vld [vmem:[%s482 + $0x100] sm:$0xff]
        %v1787 = vld [vmem:[%s482 + $0x108] sm:$0xff]
        %v1788 = vld [vmem:[%s482 + $0x110] sm:$0xff]
        %v1789 = vld [vmem:[%s482 + $0x118] sm:$0xff]
        %v1790 = vld [vmem:[%s482 + $0x120] sm:$0xff]
        %v1791 = vld [vmem:[%s482 + $0x128] sm:$0xff]
        %v1792 = vld [vmem:[%s482 + $0x130] sm:$0xff]
        %v1793 = vld [vmem:[%s482 + $0x138] sm:$0xff]
        %v1794 = vld [vmem:[%s482 + $0x140] sm:$0xff]
        %v1795 = vld [vmem:[%s482 + $0x148] sm:$0xff]
        %v1796 = vld [vmem:[%s482 + $0x150] sm:$0xff]
        %v1797 = vld [vmem:[%s482 + $0x158] sm:$0xff]
        %v1798 = vld [vmem:[%s482 + $0x160] sm:$0xff]
        %v1799 = vld [vmem:[%s482 + $0x168] sm:$0xff]
        %v1800 = vld [vmem:[%s482 + $0x170] sm:$0xff]
        %v1801 = vld [vmem:[%s482 + $0x178] sm:$0xff]
        %v1802 = vld [vmem:[%s482 + $0x180] sm:$0xff]
        %v1803 = vld [vmem:[%s482 + $0x188] sm:$0xff]
        %v1804 = vld [vmem:[%s482 + $0x190] sm:$0xff]
        %v1805 = vld [vmem:[%s482 + $0x198] sm:$0xff]
        %v1806 = vld [vmem:[%s482 + $0x1a0] sm:$0xff]
        %v1807 = vld [vmem:[%s482 + $0x1a8] sm:$0xff]
        %v1808 = vld [vmem:[%s482 + $0x1b0] sm:$0xff]
        %v1809 = vld [vmem:[%s482 + $0x1b8] sm:$0xff]
        %v1810 = vld [vmem:[%s482 + $0x1c0] sm:$0xff]
        %v1811 = vld [vmem:[%s482 + $0x1c8] sm:$0xff]
        %v1812 = vld [vmem:[%s482 + $0x1d0] sm:$0xff]
        %v1813 = vld [vmem:[%s482 + $0x1d8] sm:$0xff]
        %v1814 = vld [vmem:[%s482 + $0x1e0] sm:$0xff]
        %v1815 = vld [vmem:[%s482 + $0x1e8] sm:$0xff]
        %v1816 = vld [vmem:[%s482 + $0x1f0] sm:$0xff]
        %v1817 = vld [vmem:[%s482 + $0x1f8] sm:$0xff]
        %v1818 = vld [vmem:[%s482 + $0x200] sm:$0xff]
        %v1819 = vld [vmem:[%s482 + $0x208] sm:$0xff]
        %v1820 = vld [vmem:[%s482 + $0x210] sm:$0xff]
        %v1821 = vld [vmem:[%s482 + $0x218] sm:$0xff]
        %v1822 = vld [vmem:[%s482 + $0x220] sm:$0xff]
        %v1823 = vld [vmem:[%s482 + $0x228] sm:$0xff]
        %v1824 = vld [vmem:[%s482 + $0x230] sm:$0xff]
        %v1825 = vld [vmem:[%s482 + $0x238] sm:$0xff]
        %v1826 = vld [vmem:[%s482 + $0x240] sm:$0xff]
        %v1827 = vld [vmem:[%s482 + $0x248] sm:$0xff]
        %v1828 = vld [vmem:[%s482 + $0x250] sm:$0xff]
        %v1829 = vld [vmem:[%s482 + $0x258] sm:$0xff]
        %v1830 = vld [vmem:[%s482 + $0x260] sm:$0xff]
        %v1831 = vld [vmem:[%s482 + $0x268] sm:$0xff]
        %v1832 = vld [vmem:[%s482 + $0x270] sm:$0xff]
        %v1833 = vld [vmem:[%s482 + $0x278] sm:$0xff]
        %v1834 = vld [vmem:[%s482 + $0x280] sm:$0xff]
        %v1835 = vld [vmem:[%s482 + $0x288] sm:$0xff]
        %v1836 = vld [vmem:[%s482 + $0x290] sm:$0xff]
        %v1837 = vld [vmem:[%s482 + $0x298] sm:$0xff]
        %v1838 = vld [vmem:[%s482 + $0x2a0] sm:$0xff]
        %v1839 = vld [vmem:[%s482 + $0x2a8] sm:$0xff]
        %v1840 = vld [vmem:[%s482 + $0x2b0] sm:$0xff]
        %v1841 = vld [vmem:[%s482 + $0x2b8] sm:$0xff]
        %v1842 = vld [vmem:[%s482 + $0x2c0] sm:$0xff]
        %v1843 = vld [vmem:[%s482 + $0x2c8] sm:$0xff]
        %v1844 = vld [vmem:[%s482 + $0x2d0] sm:$0xff]
        %v1845 = vld [vmem:[%s482 + $0x2d8] sm:$0xff]
        %v1846 = vld [vmem:[%s482 + $0x2e0] sm:$0xff]
        %v1847 = vld [vmem:[%s482 + $0x2e8] sm:$0xff]
        %v1848 = vld [vmem:[%s482 + $0x2f0] sm:$0xff]
        %v1849 = vld [vmem:[%s482 + $0x2f8] sm:$0xff]
        %v1850 = vld [vmem:[%s482 + $0x300] sm:$0xff]
        %v1851 = vld [vmem:[%s482 + $0x308] sm:$0xff]
        %v1852 = vld [vmem:[%s482 + $0x310] sm:$0xff]
        %v1853 = vld [vmem:[%s482 + $0x318] sm:$0xff]
        %v1854 = vld [vmem:[%s482 + $0x320] sm:$0xff]
        %v1855 = vld [vmem:[%s482 + $0x328] sm:$0xff]
        %v1856 = vld [vmem:[%s482 + $0x330] sm:$0xff]
        %v1857 = vld [vmem:[%s482 + $0x338] sm:$0xff]
        %v1858 = vld [vmem:[%s482 + $0x340] sm:$0xff]
        %v1859 = vld [vmem:[%s482 + $0x348] sm:$0xff]
        %v1860 = vld [vmem:[%s482 + $0x350] sm:$0xff]
        %v1861 = vld [vmem:[%s482 + $0x358] sm:$0xff]
        %v1862 = vld [vmem:[%s482 + $0x360] sm:$0xff]
        %v1863 = vld [vmem:[%s482 + $0x368] sm:$0xff]
        %v1864 = vld [vmem:[%s482 + $0x370] sm:$0xff]
        %v1865 = vld [vmem:[%s482 + $0x378] sm:$0xff]
        %v1866 = vld [vmem:[%s482 + $0x380] sm:$0xff]
        %v1867 = vld [vmem:[%s482 + $0x388] sm:$0xff]
        %v1868 = vld [vmem:[%s482 + $0x390] sm:$0xff]
        %v1869 = vld [vmem:[%s482 + $0x398] sm:$0xff]
        %v1870 = vld [vmem:[%s482 + $0x3a0] sm:$0xff]
        %v1871 = vld [vmem:[%s482 + $0x3a8] sm:$0xff]
        %v1872 = vld [vmem:[%s482 + $0x3b0] sm:$0xff]
        %v1873 = vld [vmem:[%s482 + $0x3b8] sm:$0xff]
        %v1874 = vld [vmem:[%s482 + $0x3c0] sm:$0xff]
        %v1875 = vld [vmem:[%s482 + $0x3c8] sm:$0xff]
        %v1876 = vld [vmem:[%s482 + $0x3d0] sm:$0xff]
        %v1877 = vld [vmem:[%s482 + $0x3d8] sm:$0xff]
        %v1878 = vld [vmem:[%s482 + $0x3e0] sm:$0xff]
        %v1879 = vld [vmem:[%s482 + $0x3e8] sm:$0xff]
        %v1880 = vld [vmem:[%s482 + $0x3f0] sm:$0xff]
        %v1881 = vld [vmem:[%s482 + $0x3f8] sm:$0xff]
        %v1882 = vld [vmem:[%s482 + $0x400] sm:$0xff]
        %v1883 = vld [vmem:[%s482 + $0x408] sm:$0xff]
        %v1884 = vld [vmem:[%s482 + $0x410] sm:$0xff]
        %v1885 = vld [vmem:[%s482 + $0x418] sm:$0xff]
        %v1886 = vld [vmem:[%s482 + $0x420] sm:$0xff]
        %v1887 = vld [vmem:[%s482 + $0x428] sm:$0xff]
        %v1888 = vld [vmem:[%s482 + $0x430] sm:$0xff]
        %v1889 = vld [vmem:[%s482 + $0x438] sm:$0xff]
        %v1890 = vld [vmem:[%s482 + $0x440] sm:$0xff]
        %v1891 = vld [vmem:[%s482 + $0x448] sm:$0xff]
        %v1892 = vld [vmem:[%s482 + $0x450] sm:$0xff]
        %v1893 = vld [vmem:[%s482 + $0x458] sm:$0xff]
        %v1894 = vld [vmem:[%s482 + $0x460] sm:$0xff]
        %v1895 = vld [vmem:[%s482 + $0x468] sm:$0xff]
        %v1896 = vld [vmem:[%s482 + $0x470] sm:$0xff]
        %v1897 = vld [vmem:[%s482 + $0x478] sm:$0xff]
        %v1898 = vld [vmem:[%s482 + $0x480] sm:$0xff]
        %v1899 = vld [vmem:[%s482 + $0x488] sm:$0xff]
        %v1900 = vld [vmem:[%s482 + $0x490] sm:$0xff]
        %v1901 = vld [vmem:[%s482 + $0x498] sm:$0xff]
        %v1902 = vld [vmem:[%s482 + $0x4a0] sm:$0xff]
        %v1903 = vld [vmem:[%s482 + $0x4a8] sm:$0xff]
        %v1904 = vld [vmem:[%s482 + $0x4b0] sm:$0xff]
        %v1905 = vld [vmem:[%s482 + $0x4b8] sm:$0xff]
        %v1906 = vld [vmem:[%s482 + $0x4c0] sm:$0xff]
        %v1907 = vld [vmem:[%s482 + $0x4c8] sm:$0xff]
        %v1908 = vld [vmem:[%s482 + $0x4d0] sm:$0xff]
        %v1909 = vld [vmem:[%s482 + $0x4d8] sm:$0xff]
        %v1910 = vld [vmem:[%s482 + $0x4e0] sm:$0xff]
        %v1911 = vld [vmem:[%s482 + $0x4e8] sm:$0xff]
        %v1912 = vld [vmem:[%s482 + $0x4f0] sm:$0xff]
        %v1913 = vld [vmem:[%s482 + $0x4f8] sm:$0xff]
        %v1914 = vld [vmem:[%s482 + $0x500] sm:$0xff]
        %v1915 = vld [vmem:[%s482 + $0x508] sm:$0xff]
        %v1916 = vld [vmem:[%s482 + $0x510] sm:$0xff]
        %v1917 = vld [vmem:[%s482 + $0x518] sm:$0xff]
        %v1918 = vld [vmem:[%s482 + $0x520] sm:$0xff]
        %v1919 = vld [vmem:[%s482 + $0x528] sm:$0xff]
        %v1920 = vld [vmem:[%s482 + $0x530] sm:$0xff]
        %v1921 = vld [vmem:[%s482 + $0x538] sm:$0xff]
        %v1922 = vld [vmem:[%s482 + $0x540] sm:$0xff]
        %v1923 = vld [vmem:[%s482 + $0x548] sm:$0xff]
        %v1924 = vld [vmem:[%s482 + $0x550] sm:$0xff]
        %v1925 = vld [vmem:[%s482 + $0x558] sm:$0xff]
        %v1926 = vld [vmem:[%s482 + $0x560] sm:$0xff]
        %v1927 = vld [vmem:[%s482 + $0x568] sm:$0xff]
        %v1928 = vld [vmem:[%s482 + $0x570] sm:$0xff]
        %v1929 = vld [vmem:[%s482 + $0x578] sm:$0xff]
        %v1930 = vld [vmem:[%s482 + $0x580] sm:$0xff]
        %v1931 = vld [vmem:[%s482 + $0x588] sm:$0xff]
        %v1932 = vld [vmem:[%s482 + $0x590] sm:$0xff]
        %v1933 = vld [vmem:[%s482 + $0x598] sm:$0xff]
        %v1934 = vld [vmem:[%s482 + $0x5a0] sm:$0xff]
        %v1935 = vld [vmem:[%s482 + $0x5a8] sm:$0xff]
        %v1936 = vld [vmem:[%s482 + $0x5b0] sm:$0xff]
        %v1937 = vld [vmem:[%s482 + $0x5b8] sm:$0xff]
        %v1938 = vld [vmem:[%s482 + $0x5c0] sm:$0xff]
        %v1939 = vld [vmem:[%s482 + $0x5c8] sm:$0xff]
        %v1940 = vld [vmem:[%s482 + $0x5d0] sm:$0xff]
        %v1941 = vld [vmem:[%s482 + $0x5d8] sm:$0xff]
        %v1942 = vld [vmem:[%s482 + $0x5e0] sm:$0xff]
        %v1943 = vld [vmem:[%s482 + $0x5e8] sm:$0xff]
        %v1944 = vld [vmem:[%s482 + $0x5f0] sm:$0xff]
        %v1945 = vld [vmem:[%s482 + $0x5f8] sm:$0xff]
        %v1946 = vld [vmem:[%s482 + $0x600] sm:$0xff]
        %v1947 = vld [vmem:[%s482 + $0x608] sm:$0xff]
        %v1948 = vld [vmem:[%s482 + $0x610] sm:$0xff]
        %v1949 = vld [vmem:[%s482 + $0x618] sm:$0xff]
        %v1950 = vld [vmem:[%s482 + $0x620] sm:$0xff]
        %v1951 = vld [vmem:[%s482 + $0x628] sm:$0xff]
        %v1952 = vld [vmem:[%s482 + $0x630] sm:$0xff]
        %v1953 = vld [vmem:[%s482 + $0x638] sm:$0xff]
        %v1954 = vld [vmem:[%s482 + $0x640] sm:$0xff]
        %v1955 = vld [vmem:[%s482 + $0x648] sm:$0xff]
        %v1956 = vld [vmem:[%s482 + $0x650] sm:$0xff]
        %v1957 = vld [vmem:[%s482 + $0x658] sm:$0xff]
        %v1958 = vld [vmem:[%s482 + $0x660] sm:$0xff]
        %v1959 = vld [vmem:[%s482 + $0x668] sm:$0xff]
        %v1960 = vld [vmem:[%s482 + $0x670] sm:$0xff]
        %v1961 = vld [vmem:[%s482 + $0x678] sm:$0xff]
        %v1962 = vld [vmem:[%s482 + $0x680] sm:$0xff]
        %v1963 = vld [vmem:[%s482 + $0x688] sm:$0xff]
        %v1964 = vld [vmem:[%s482 + $0x690] sm:$0xff]
        %v1965 = vld [vmem:[%s482 + $0x698] sm:$0xff]
        %v1966 = vld [vmem:[%s482 + $0x6a0] sm:$0xff]
        %v1967 = vld [vmem:[%s482 + $0x6a8] sm:$0xff]
        %v1968 = vld [vmem:[%s482 + $0x6b0] sm:$0xff]
        %v1969 = vld [vmem:[%s482 + $0x6b8] sm:$0xff]
        %v1970 = vld [vmem:[%s482 + $0x6c0] sm:$0xff]
        %v1971 = vld [vmem:[%s482 + $0x6c8] sm:$0xff]
        %v1972 = vld [vmem:[%s482 + $0x6d0] sm:$0xff]
        %v1973 = vld [vmem:[%s482 + $0x6d8] sm:$0xff]
        %v1974 = vld [vmem:[%s482 + $0x6e0] sm:$0xff]
        %v1975 = vld [vmem:[%s482 + $0x6e8] sm:$0xff]
        %v1976 = vld [vmem:[%s482 + $0x6f0] sm:$0xff]
        %v1977 = vld [vmem:[%s482 + $0x6f8] sm:$0xff]
        %v1978 = vld [vmem:[%s482 + $0x700] sm:$0xff]
        %v1979 = vld [vmem:[%s482 + $0x708] sm:$0xff]
        %v1980 = vld [vmem:[%s482 + $0x710] sm:$0xff]
        %v1981 = vld [vmem:[%s482 + $0x718] sm:$0xff]
        %v1982 = vld [vmem:[%s482 + $0x720] sm:$0xff]
        %v1983 = vld [vmem:[%s482 + $0x728] sm:$0xff]
        %v1984 = vld [vmem:[%s482 + $0x730] sm:$0xff]
        %v1985 = vld [vmem:[%s482 + $0x738] sm:$0xff]
        %v1986 = vld [vmem:[%s482 + $0x740] sm:$0xff]
        %v1987 = vld [vmem:[%s482 + $0x748] sm:$0xff]
        %v1988 = vld [vmem:[%s482 + $0x750] sm:$0xff]
        %v1989 = vld [vmem:[%s482 + $0x758] sm:$0xff]
        %v1990 = vld [vmem:[%s482 + $0x760] sm:$0xff]
        %v1991 = vld [vmem:[%s482 + $0x768] sm:$0xff]
        %v1992 = vld [vmem:[%s482 + $0x770] sm:$0xff]
        %v1993 = vld [vmem:[%s482 + $0x778] sm:$0xff]
        %v1994 = vld [vmem:[%s482 + $0x780] sm:$0xff]
        %v1995 = vld [vmem:[%s482 + $0x788] sm:$0xff]
        %v1996 = vld [vmem:[%s482 + $0x790] sm:$0xff]
        %v1997 = vld [vmem:[%s482 + $0x798] sm:$0xff]
        %v1998 = vld [vmem:[%s482 + $0x7a0] sm:$0xff]
        %v1999 = vld [vmem:[%s482 + $0x7a8] sm:$0xff]
        %v2000 = vld [vmem:[%s482 + $0x7b0] sm:$0xff]
        %v2001 = vld [vmem:[%s482 + $0x7b8] sm:$0xff]
        %v2002 = vld [vmem:[%s482 + $0x7c0] sm:$0xff]
        %v2003 = vld [vmem:[%s482 + $0x7c8] sm:$0xff]
        %v2004 = vld [vmem:[%s482 + $0x7d0] sm:$0xff]
        %v2005 = vld [vmem:[%s482 + $0x7d8] sm:$0xff]
        %v2006 = vld [vmem:[%s482 + $0x7e0] sm:$0xff]
        %v2007 = vld [vmem:[%s482 + $0x7e8] sm:$0xff]
        %v2008 = vld [vmem:[%s482 + $0x7f0] sm:$0xff]
        %v2009 = vld [vmem:[%s482 + $0x7f8] sm:$0xff]
        %v2010 = vld [vmem:[%s482 + $0x800] sm:$0xff]
        %v2011 = vld [vmem:[%s482 + $0x808] sm:$0xff]
        %v2012 = vld [vmem:[%s482 + $0x810] sm:$0xff]
        %v2013 = vld [vmem:[%s482 + $0x818] sm:$0xff]
        %v2014 = vld [vmem:[%s482 + $0x820] sm:$0xff]
        %v2015 = vld [vmem:[%s482 + $0x828] sm:$0xff]
        %v2016 = vld [vmem:[%s482 + $0x830] sm:$0xff]
        %v2017 = vld [vmem:[%s482 + $0x838] sm:$0xff]
        %v2018 = vld [vmem:[%s482 + $0x840] sm:$0xff]
        %v2019 = vld [vmem:[%s482 + $0x848] sm:$0xff]
        %v2020 = vld [vmem:[%s482 + $0x850] sm:$0xff]
        %v2021 = vld [vmem:[%s482 + $0x858] sm:$0xff]
        %v2022 = vld [vmem:[%s482 + $0x860] sm:$0xff]
        %v2023 = vld [vmem:[%s482 + $0x868] sm:$0xff]
        %v2024 = vld [vmem:[%s482 + $0x870] sm:$0xff]
        %v2025 = vld [vmem:[%s482 + $0x878] sm:$0xff]
        %v2026 = vld [vmem:[%s482 + $0x880] sm:$0xff]
        %v2027 = vld [vmem:[%s482 + $0x888] sm:$0xff]
        %v2028 = vld [vmem:[%s482 + $0x890] sm:$0xff]
        %v2029 = vld [vmem:[%s482 + $0x898] sm:$0xff]
        %v2030 = vld [vmem:[%s482 + $0x8a0] sm:$0xff]
        %v2031 = vld [vmem:[%s482 + $0x8a8] sm:$0xff]
        %v2032 = vld [vmem:[%s482 + $0x8b0] sm:$0xff]
        %v2033 = vld [vmem:[%s482 + $0x8b8] sm:$0xff]
        %v2034 = vld [vmem:[%s482 + $0x8c0] sm:$0xff]
        %v2035 = vld [vmem:[%s482 + $0x8c8] sm:$0xff]
        %v2036 = vld [vmem:[%s482 + $0x8d0] sm:$0xff]
        %v2037 = vld [vmem:[%s482 + $0x8d8] sm:$0xff]
        %v2038 = vld [vmem:[%s482 + $0x8e0] sm:$0xff]
        %v2039 = vld [vmem:[%s482 + $0x8e8] sm:$0xff]
        %v2040 = vld [vmem:[%s482 + $0x8f0] sm:$0xff]
        %v2041 = vld [vmem:[%s482 + $0x8f8] sm:$0xff]
        %v2042 = vunpack.c.0.s8 %v1754
        %v2043 = vunpack.c.0.s8 %v1755
        %v2044 = vunpack.c.0.s8 %v1756
        %v2045 = vunpack.c.0.s8 %v1757
        %v2046 = vunpack.c.0.s8 %v1758
        %v2047 = vunpack.c.0.s8 %v1759
        %v2048 = vunpack.c.1.s8 %v1754
        %v2049 = vunpack.c.1.s8 %v1755
        %v2050 = vunpack.c.1.s8 %v1756
        %v2051 = vunpack.c.1.s8 %v1757
        %v2052 = vunpack.c.1.s8 %v1758
        %v2053 = vunpack.c.1.s8 %v1759
        %v2054 = vunpack.c.2.s8 %v1754
        %v2055 = vunpack.c.2.s8 %v1755
        %v2056 = vunpack.c.2.s8 %v1756
        %v2057 = vunpack.c.2.s8 %v1757
        %v2058 = vunpack.c.2.s8 %v1758
        %v2059 = vunpack.c.2.s8 %v1759
        %v2060 = vunpack.c.3.s8 %v1754
        %v2061 = vunpack.c.3.s8 %v1755
        %v2062 = vunpack.c.3.s8 %v1756
        %v2063 = vunpack.c.3.s8 %v1757
        %v2064 = vunpack.c.3.s8 %v1758
        %v2065 = vunpack.c.3.s8 %v1759
        %v2066 = vunpack.c.0.s8 %v1760
        %v2067 = vunpack.c.0.s8 %v1761
        %v2068 = vunpack.c.0.s8 %v1762
        %v2069 = vunpack.c.0.s8 %v1763
        %v2070 = vunpack.c.0.s8 %v1764
        %v2071 = vunpack.c.0.s8 %v1765
        %v2072 = vunpack.c.1.s8 %v1760
        %v2073 = vunpack.c.1.s8 %v1761
        %v2074 = vunpack.c.1.s8 %v1762
        %v2075 = vunpack.c.1.s8 %v1763
        %v2076 = vunpack.c.1.s8 %v1764
        %v2077 = vunpack.c.1.s8 %v1765
        %v2078 = vunpack.c.2.s8 %v1760
        %v2079 = vunpack.c.2.s8 %v1761
        %v2080 = vunpack.c.2.s8 %v1762
        %v2081 = vunpack.c.2.s8 %v1763
        %v2082 = vunpack.c.2.s8 %v1764
        %v2083 = vunpack.c.2.s8 %v1765
        %v2084 = vunpack.c.3.s8 %v1760
        %v2085 = vunpack.c.3.s8 %v1761
        %v2086 = vunpack.c.3.s8 %v1762
        %v2087 = vunpack.c.3.s8 %v1763
        %v2088 = vunpack.c.3.s8 %v1764
        %v2089 = vunpack.c.3.s8 %v1765
        %v2090 = vunpack.c.0.s8 %v1766
        %v2091 = vunpack.c.0.s8 %v1767
        %v2092 = vunpack.c.0.s8 %v1768
        %v2093 = vunpack.c.0.s8 %v1769
        %v2094 = vunpack.c.0.s8 %v1770
        %v2095 = vunpack.c.0.s8 %v1771
        %v2096 = vunpack.c.1.s8 %v1766
        %v2097 = vunpack.c.1.s8 %v1767
        %v2098 = vunpack.c.1.s8 %v1768
        %v2099 = vunpack.c.1.s8 %v1769
        %v2100 = vunpack.c.1.s8 %v1770
        %v2101 = vunpack.c.1.s8 %v1771
        %v2102 = vunpack.c.2.s8 %v1766
        %v2103 = vunpack.c.2.s8 %v1767
        %v2104 = vunpack.c.2.s8 %v1768
        %v2105 = vunpack.c.2.s8 %v1769
        %v2106 = vunpack.c.2.s8 %v1770
        %v2107 = vunpack.c.2.s8 %v1771
        %v2108 = vunpack.c.3.s8 %v1766
        %v2109 = vunpack.c.3.s8 %v1767
        %v2110 = vunpack.c.3.s8 %v1768
        %v2111 = vunpack.c.3.s8 %v1769
        %v2112 = vunpack.c.3.s8 %v1770
        %v2113 = vunpack.c.3.s8 %v1771
        %v2114 = vunpack.c.0.s8 %v1772
        %v2115 = vunpack.c.0.s8 %v1773
        %v2116 = vunpack.c.0.s8 %v1774
        %v2117 = vunpack.c.0.s8 %v1775
        %v2118 = vunpack.c.0.s8 %v1776
        %v2119 = vunpack.c.0.s8 %v1777
        %v2120 = vunpack.c.1.s8 %v1772
        %v2121 = vunpack.c.1.s8 %v1773
        %v2122 = vunpack.c.1.s8 %v1774
        %v2123 = vunpack.c.1.s8 %v1775
        %v2124 = vunpack.c.1.s8 %v1776
        %v2125 = vunpack.c.1.s8 %v1777
        %v2126 = vunpack.c.2.s8 %v1772
        %v2127 = vunpack.c.2.s8 %v1773
        %v2128 = vunpack.c.2.s8 %v1774
        %v2129 = vunpack.c.2.s8 %v1775
        %v2130 = vunpack.c.2.s8 %v1776
        %v2131 = vunpack.c.2.s8 %v1777
        %v2132 = vunpack.c.3.s8 %v1772
        %v2133 = vunpack.c.3.s8 %v1773
        %v2134 = vunpack.c.3.s8 %v1774
        %v2135 = vunpack.c.3.s8 %v1775
        %v2136 = vunpack.c.3.s8 %v1776
        %v2137 = vunpack.c.3.s8 %v1777
        %v2138 = vunpack.c.0.s8 %v1778
        %v2139 = vunpack.c.0.s8 %v1779
        %v2140 = vunpack.c.0.s8 %v1780
        %v2141 = vunpack.c.0.s8 %v1781
        %v2142 = vunpack.c.0.s8 %v1782
        %v2143 = vunpack.c.0.s8 %v1783
        %v2144 = vunpack.c.1.s8 %v1778
        %v2145 = vunpack.c.1.s8 %v1779
        %v2146 = vunpack.c.1.s8 %v1780
        %v2147 = vunpack.c.1.s8 %v1781
        %v2148 = vunpack.c.1.s8 %v1782
        %v2149 = vunpack.c.1.s8 %v1783
        %v2150 = vunpack.c.2.s8 %v1778
        %v2151 = vunpack.c.2.s8 %v1779
        %v2152 = vunpack.c.2.s8 %v1780
        %v2153 = vunpack.c.2.s8 %v1781
        %v2154 = vunpack.c.2.s8 %v1782
        %v2155 = vunpack.c.2.s8 %v1783
        %v2156 = vunpack.c.3.s8 %v1778
        %v2157 = vunpack.c.3.s8 %v1779
        %v2158 = vunpack.c.3.s8 %v1780
        %v2159 = vunpack.c.3.s8 %v1781
        %v2160 = vunpack.c.3.s8 %v1782
        %v2161 = vunpack.c.3.s8 %v1783
        %v2162 = vunpack.c.0.s8 %v1784
        %v2163 = vunpack.c.0.s8 %v1785
        %v2164 = vunpack.c.0.s8 %v1786
        %v2165 = vunpack.c.0.s8 %v1787
        %v2166 = vunpack.c.0.s8 %v1788
        %v2167 = vunpack.c.0.s8 %v1789
        %v2168 = vunpack.c.1.s8 %v1784
        %v2169 = vunpack.c.1.s8 %v1785
        %v2170 = vunpack.c.1.s8 %v1786
        %v2171 = vunpack.c.1.s8 %v1787
        %v2172 = vunpack.c.1.s8 %v1788
        %v2173 = vunpack.c.1.s8 %v1789
        %v2174 = vunpack.c.2.s8 %v1784
        %v2175 = vunpack.c.2.s8 %v1785
        %v2176 = vunpack.c.2.s8 %v1786
        %v2177 = vunpack.c.2.s8 %v1787
        %v2178 = vunpack.c.2.s8 %v1788
        %v2179 = vunpack.c.2.s8 %v1789
        %v2180 = vunpack.c.3.s8 %v1784
        %v2181 = vunpack.c.3.s8 %v1785
        %v2182 = vunpack.c.3.s8 %v1786
        %v2183 = vunpack.c.3.s8 %v1787
        %v2184 = vunpack.c.3.s8 %v1788
        %v2185 = vunpack.c.3.s8 %v1789
        %v2186 = vunpack.c.0.s8 %v1790
        %v2187 = vunpack.c.0.s8 %v1791
        %v2188 = vunpack.c.0.s8 %v1792
        %v2189 = vunpack.c.0.s8 %v1793
        %v2190 = vunpack.c.0.s8 %v1794
        %v2191 = vunpack.c.0.s8 %v1795
        %v2192 = vunpack.c.1.s8 %v1790
        %v2193 = vunpack.c.1.s8 %v1791
        %v2194 = vunpack.c.1.s8 %v1792
        %v2195 = vunpack.c.1.s8 %v1793
        %v2196 = vunpack.c.1.s8 %v1794
        %v2197 = vunpack.c.1.s8 %v1795
        %v2198 = vunpack.c.2.s8 %v1790
        %v2199 = vunpack.c.2.s8 %v1791
        %v2200 = vunpack.c.2.s8 %v1792
        %v2201 = vunpack.c.2.s8 %v1793
        %v2202 = vunpack.c.2.s8 %v1794
        %v2203 = vunpack.c.2.s8 %v1795
        %v2204 = vunpack.c.3.s8 %v1790
        %v2205 = vunpack.c.3.s8 %v1791
        %v2206 = vunpack.c.3.s8 %v1792
        %v2207 = vunpack.c.3.s8 %v1793
        %v2208 = vunpack.c.3.s8 %v1794
        %v2209 = vunpack.c.3.s8 %v1795
        %v2210 = vunpack.c.0.s8 %v1796
        %v2211 = vunpack.c.0.s8 %v1797
        %v2212 = vunpack.c.0.s8 %v1798
        %v2213 = vunpack.c.0.s8 %v1799
        %v2214 = vunpack.c.0.s8 %v1800
        %v2215 = vunpack.c.0.s8 %v1801
        %v2216 = vunpack.c.1.s8 %v1796
        %v2217 = vunpack.c.1.s8 %v1797
        %v2218 = vunpack.c.1.s8 %v1798
        %v2219 = vunpack.c.1.s8 %v1799
        %v2220 = vunpack.c.1.s8 %v1800
        %v2221 = vunpack.c.1.s8 %v1801
        %v2222 = vunpack.c.2.s8 %v1796
        %v2223 = vunpack.c.2.s8 %v1797
        %v2224 = vunpack.c.2.s8 %v1798
        %v2225 = vunpack.c.2.s8 %v1799
        %v2226 = vunpack.c.2.s8 %v1800
        %v2227 = vunpack.c.2.s8 %v1801
        %v2228 = vunpack.c.3.s8 %v1796
        %v2229 = vunpack.c.3.s8 %v1797
        %v2230 = vunpack.c.3.s8 %v1798
        %v2231 = vunpack.c.3.s8 %v1799
        %v2232 = vunpack.c.3.s8 %v1800
        %v2233 = vunpack.c.3.s8 %v1801
        %v2234 = vunpack.c.0.s8 %v1802
        %v2235 = vunpack.c.0.s8 %v1803
        %v2236 = vunpack.c.0.s8 %v1804
        %v2237 = vunpack.c.0.s8 %v1805
        %v2238 = vunpack.c.0.s8 %v1806
        %v2239 = vunpack.c.0.s8 %v1807
        %v2240 = vunpack.c.1.s8 %v1802
        %v2241 = vunpack.c.1.s8 %v1803
        %v2242 = vunpack.c.1.s8 %v1804
        %v2243 = vunpack.c.1.s8 %v1805
        %v2244 = vunpack.c.1.s8 %v1806
        %v2245 = vunpack.c.1.s8 %v1807
        %v2246 = vunpack.c.2.s8 %v1802
        %v2247 = vunpack.c.2.s8 %v1803
        %v2248 = vunpack.c.2.s8 %v1804
        %v2249 = vunpack.c.2.s8 %v1805
        %v2250 = vunpack.c.2.s8 %v1806
        %v2251 = vunpack.c.2.s8 %v1807
        %v2252 = vunpack.c.3.s8 %v1802
        %v2253 = vunpack.c.3.s8 %v1803
        %v2254 = vunpack.c.3.s8 %v1804
        %v2255 = vunpack.c.3.s8 %v1805
        %v2256 = vunpack.c.3.s8 %v1806
        %v2257 = vunpack.c.3.s8 %v1807
        %v2258 = vunpack.c.0.s8 %v1808
        %v2259 = vunpack.c.0.s8 %v1809
        %v2260 = vunpack.c.0.s8 %v1810
        %v2261 = vunpack.c.0.s8 %v1811
        %v2262 = vunpack.c.0.s8 %v1812
        %v2263 = vunpack.c.0.s8 %v1813
        %v2264 = vunpack.c.1.s8 %v1808
        %v2265 = vunpack.c.1.s8 %v1809
        %v2266 = vunpack.c.1.s8 %v1810
        %v2267 = vunpack.c.1.s8 %v1811
        %v2268 = vunpack.c.1.s8 %v1812
        %v2269 = vunpack.c.1.s8 %v1813
        %v2270 = vunpack.c.2.s8 %v1808
        %v2271 = vunpack.c.2.s8 %v1809
        %v2272 = vunpack.c.2.s8 %v1810
        %v2273 = vunpack.c.2.s8 %v1811
        %v2274 = vunpack.c.2.s8 %v1812
        %v2275 = vunpack.c.2.s8 %v1813
        %v2276 = vunpack.c.3.s8 %v1808
        %v2277 = vunpack.c.3.s8 %v1809
        %v2278 = vunpack.c.3.s8 %v1810
        %v2279 = vunpack.c.3.s8 %v1811
        %v2280 = vunpack.c.3.s8 %v1812
        %v2281 = vunpack.c.3.s8 %v1813
        %v2282 = vunpack.c.0.s8 %v1814
        %v2283 = vunpack.c.0.s8 %v1815
        %v2284 = vunpack.c.0.s8 %v1816
        %v2285 = vunpack.c.0.s8 %v1817
        %v2286 = vunpack.c.0.s8 %v1818
        %v2287 = vunpack.c.0.s8 %v1819
        %v2288 = vunpack.c.1.s8 %v1814
        %v2289 = vunpack.c.1.s8 %v1815
        %v2290 = vunpack.c.1.s8 %v1816
        %v2291 = vunpack.c.1.s8 %v1817
        %v2292 = vunpack.c.1.s8 %v1818
        %v2293 = vunpack.c.1.s8 %v1819
        %v2294 = vunpack.c.2.s8 %v1814
        %v2295 = vunpack.c.2.s8 %v1815
        %v2296 = vunpack.c.2.s8 %v1816
        %v2297 = vunpack.c.2.s8 %v1817
        %v2298 = vunpack.c.2.s8 %v1818
        %v2299 = vunpack.c.2.s8 %v1819
        %v2300 = vunpack.c.3.s8 %v1814
        %v2301 = vunpack.c.3.s8 %v1815
        %v2302 = vunpack.c.3.s8 %v1816
        %v2303 = vunpack.c.3.s8 %v1817
        %v2304 = vunpack.c.3.s8 %v1818
        %v2305 = vunpack.c.3.s8 %v1819
        %v2306 = vunpack.c.0.s8 %v1820
        %v2307 = vunpack.c.0.s8 %v1821
        %v2308 = vunpack.c.0.s8 %v1822
        %v2309 = vunpack.c.0.s8 %v1823
        %v2310 = vunpack.c.0.s8 %v1824
        %v2311 = vunpack.c.0.s8 %v1825
        %v2312 = vunpack.c.1.s8 %v1820
        %v2313 = vunpack.c.1.s8 %v1821
        %v2314 = vunpack.c.1.s8 %v1822
        %v2315 = vunpack.c.1.s8 %v1823
        %v2316 = vunpack.c.1.s8 %v1824
        %v2317 = vunpack.c.1.s8 %v1825
        %v2318 = vunpack.c.2.s8 %v1820
        %v2319 = vunpack.c.2.s8 %v1821
        %v2320 = vunpack.c.2.s8 %v1822
        %v2321 = vunpack.c.2.s8 %v1823
        %v2322 = vunpack.c.2.s8 %v1824
        %v2323 = vunpack.c.2.s8 %v1825
        %v2324 = vunpack.c.3.s8 %v1820
        %v2325 = vunpack.c.3.s8 %v1821
        %v2326 = vunpack.c.3.s8 %v1822
        %v2327 = vunpack.c.3.s8 %v1823
        %v2328 = vunpack.c.3.s8 %v1824
        %v2329 = vunpack.c.3.s8 %v1825
        %v2330 = vunpack.c.0.s8 %v1826
        %v2331 = vunpack.c.0.s8 %v1827
        %v2332 = vunpack.c.0.s8 %v1828
        %v2333 = vunpack.c.0.s8 %v1829
        %v2334 = vunpack.c.0.s8 %v1830
        %v2335 = vunpack.c.0.s8 %v1831
        %v2336 = vunpack.c.1.s8 %v1826
        %v2337 = vunpack.c.1.s8 %v1827
        %v2338 = vunpack.c.1.s8 %v1828
        %v2339 = vunpack.c.1.s8 %v1829
        %v2340 = vunpack.c.1.s8 %v1830
        %v2341 = vunpack.c.1.s8 %v1831
        %v2342 = vunpack.c.2.s8 %v1826
        %v2343 = vunpack.c.2.s8 %v1827
        %v2344 = vunpack.c.2.s8 %v1828
        %v2345 = vunpack.c.2.s8 %v1829
        %v2346 = vunpack.c.2.s8 %v1830
        %v2347 = vunpack.c.2.s8 %v1831
        %v2348 = vunpack.c.3.s8 %v1826
        %v2349 = vunpack.c.3.s8 %v1827
        %v2350 = vunpack.c.3.s8 %v1828
        %v2351 = vunpack.c.3.s8 %v1829
        %v2352 = vunpack.c.3.s8 %v1830
        %v2353 = vunpack.c.3.s8 %v1831
        %v2354 = vunpack.c.0.s8 %v1832
        %v2355 = vunpack.c.0.s8 %v1833
        %v2356 = vunpack.c.0.s8 %v1834
        %v2357 = vunpack.c.0.s8 %v1835
        %v2358 = vunpack.c.0.s8 %v1836
        %v2359 = vunpack.c.0.s8 %v1837
        %v2360 = vunpack.c.1.s8 %v1832
        %v2361 = vunpack.c.1.s8 %v1833
        %v2362 = vunpack.c.1.s8 %v1834
        %v2363 = vunpack.c.1.s8 %v1835
        %v2364 = vunpack.c.1.s8 %v1836
        %v2365 = vunpack.c.1.s8 %v1837
        %v2366 = vunpack.c.2.s8 %v1832
        %v2367 = vunpack.c.2.s8 %v1833
        %v2368 = vunpack.c.2.s8 %v1834
        %v2369 = vunpack.c.2.s8 %v1835
        %v2370 = vunpack.c.2.s8 %v1836
        %v2371 = vunpack.c.2.s8 %v1837
        %v2372 = vunpack.c.3.s8 %v1832
        %v2373 = vunpack.c.3.s8 %v1833
        %v2374 = vunpack.c.3.s8 %v1834
        %v2375 = vunpack.c.3.s8 %v1835
        %v2376 = vunpack.c.3.s8 %v1836
        %v2377 = vunpack.c.3.s8 %v1837
        %v2378 = vunpack.c.0.s8 %v1838
        %v2379 = vunpack.c.0.s8 %v1839
        %v2380 = vunpack.c.0.s8 %v1840
        %v2381 = vunpack.c.0.s8 %v1841
        %v2382 = vunpack.c.0.s8 %v1842
        %v2383 = vunpack.c.0.s8 %v1843
        %v2384 = vunpack.c.1.s8 %v1838
        %v2385 = vunpack.c.1.s8 %v1839
        %v2386 = vunpack.c.1.s8 %v1840
        %v2387 = vunpack.c.1.s8 %v1841
        %v2388 = vunpack.c.1.s8 %v1842
        %v2389 = vunpack.c.1.s8 %v1843
        %v2390 = vunpack.c.2.s8 %v1838
        %v2391 = vunpack.c.2.s8 %v1839
        %v2392 = vunpack.c.2.s8 %v1840
        %v2393 = vunpack.c.2.s8 %v1841
        %v2394 = vunpack.c.2.s8 %v1842
        %v2395 = vunpack.c.2.s8 %v1843
        %v2396 = vunpack.c.3.s8 %v1838
        %v2397 = vunpack.c.3.s8 %v1839
        %v2398 = vunpack.c.3.s8 %v1840
        %v2399 = vunpack.c.3.s8 %v1841
        %v2400 = vunpack.c.3.s8 %v1842
        %v2401 = vunpack.c.3.s8 %v1843
        %v2402 = vunpack.c.0.s8 %v1844
        %v2403 = vunpack.c.0.s8 %v1845
        %v2404 = vunpack.c.0.s8 %v1846
        %v2405 = vunpack.c.0.s8 %v1847
        %v2406 = vunpack.c.0.s8 %v1848
        %v2407 = vunpack.c.0.s8 %v1849
        %v2408 = vunpack.c.1.s8 %v1844
        %v2409 = vunpack.c.1.s8 %v1845
        %v2410 = vunpack.c.1.s8 %v1846
        %v2411 = vunpack.c.1.s8 %v1847
        %v2412 = vunpack.c.1.s8 %v1848
        %v2413 = vunpack.c.1.s8 %v1849
        %v2414 = vunpack.c.2.s8 %v1844
        %v2415 = vunpack.c.2.s8 %v1845
        %v2416 = vunpack.c.2.s8 %v1846
        %v2417 = vunpack.c.2.s8 %v1847
        %v2418 = vunpack.c.2.s8 %v1848
        %v2419 = vunpack.c.2.s8 %v1849
        %v2420 = vunpack.c.3.s8 %v1844
        %v2421 = vunpack.c.3.s8 %v1845
        %v2422 = vunpack.c.3.s8 %v1846
        %v2423 = vunpack.c.3.s8 %v1847
        %v2424 = vunpack.c.3.s8 %v1848
        %v2425 = vunpack.c.3.s8 %v1849
        %v2426 = vunpack.c.0.s8 %v1850
        %v2427 = vunpack.c.0.s8 %v1851
        %v2428 = vunpack.c.0.s8 %v1852
        %v2429 = vunpack.c.0.s8 %v1853
        %v2430 = vunpack.c.0.s8 %v1854
        %v2431 = vunpack.c.0.s8 %v1855
        %v2432 = vunpack.c.1.s8 %v1850
        %v2433 = vunpack.c.1.s8 %v1851
        %v2434 = vunpack.c.1.s8 %v1852
        %v2435 = vunpack.c.1.s8 %v1853
        %v2436 = vunpack.c.1.s8 %v1854
        %v2437 = vunpack.c.1.s8 %v1855
        %v2438 = vunpack.c.2.s8 %v1850
        %v2439 = vunpack.c.2.s8 %v1851
        %v2440 = vunpack.c.2.s8 %v1852
        %v2441 = vunpack.c.2.s8 %v1853
        %v2442 = vunpack.c.2.s8 %v1854
        %v2443 = vunpack.c.2.s8 %v1855
        %v2444 = vunpack.c.3.s8 %v1850
        %v2445 = vunpack.c.3.s8 %v1851
        %v2446 = vunpack.c.3.s8 %v1852
        %v2447 = vunpack.c.3.s8 %v1853
        %v2448 = vunpack.c.3.s8 %v1854
        %v2449 = vunpack.c.3.s8 %v1855
        %v2450 = vunpack.c.0.s8 %v1856
        %v2451 = vunpack.c.0.s8 %v1857
        %v2452 = vunpack.c.0.s8 %v1858
        %v2453 = vunpack.c.0.s8 %v1859
        %v2454 = vunpack.c.0.s8 %v1860
        %v2455 = vunpack.c.0.s8 %v1861
        %v2456 = vunpack.c.1.s8 %v1856
        %v2457 = vunpack.c.1.s8 %v1857
        %v2458 = vunpack.c.1.s8 %v1858
        %v2459 = vunpack.c.1.s8 %v1859
        %v2460 = vunpack.c.1.s8 %v1860
        %v2461 = vunpack.c.1.s8 %v1861
        %v2462 = vunpack.c.2.s8 %v1856
        %v2463 = vunpack.c.2.s8 %v1857
        %v2464 = vunpack.c.2.s8 %v1858
        %v2465 = vunpack.c.2.s8 %v1859
        %v2466 = vunpack.c.2.s8 %v1860
        %v2467 = vunpack.c.2.s8 %v1861
        %v2468 = vunpack.c.3.s8 %v1856
        %v2469 = vunpack.c.3.s8 %v1857
        %v2470 = vunpack.c.3.s8 %v1858
        %v2471 = vunpack.c.3.s8 %v1859
        %v2472 = vunpack.c.3.s8 %v1860
        %v2473 = vunpack.c.3.s8 %v1861
        %v2474 = vunpack.c.0.s8 %v1862
        %v2475 = vunpack.c.0.s8 %v1863
        %v2476 = vunpack.c.0.s8 %v1864
        %v2477 = vunpack.c.0.s8 %v1865
        %v2478 = vunpack.c.0.s8 %v1866
        %v2479 = vunpack.c.0.s8 %v1867
        %v2480 = vunpack.c.1.s8 %v1862
        %v2481 = vunpack.c.1.s8 %v1863
        %v2482 = vunpack.c.1.s8 %v1864
        %v2483 = vunpack.c.1.s8 %v1865
        %v2484 = vunpack.c.1.s8 %v1866
        %v2485 = vunpack.c.1.s8 %v1867
        %v2486 = vunpack.c.2.s8 %v1862
        %v2487 = vunpack.c.2.s8 %v1863
        %v2488 = vunpack.c.2.s8 %v1864
        %v2489 = vunpack.c.2.s8 %v1865
        %v2490 = vunpack.c.2.s8 %v1866
        %v2491 = vunpack.c.2.s8 %v1867
        %v2492 = vunpack.c.3.s8 %v1862
        %v2493 = vunpack.c.3.s8 %v1863
        %v2494 = vunpack.c.3.s8 %v1864
        %v2495 = vunpack.c.3.s8 %v1865
        %v2496 = vunpack.c.3.s8 %v1866
        %v2497 = vunpack.c.3.s8 %v1867
        %v2498 = vunpack.c.0.s8 %v1868
        %v2499 = vunpack.c.0.s8 %v1869
        %v2500 = vunpack.c.0.s8 %v1870
        %v2501 = vunpack.c.0.s8 %v1871
        %v2502 = vunpack.c.0.s8 %v1872
        %v2503 = vunpack.c.0.s8 %v1873
        %v2504 = vunpack.c.1.s8 %v1868
        %v2505 = vunpack.c.1.s8 %v1869
        %v2506 = vunpack.c.1.s8 %v1870
        %v2507 = vunpack.c.1.s8 %v1871
        %v2508 = vunpack.c.1.s8 %v1872
        %v2509 = vunpack.c.1.s8 %v1873
        %v2510 = vunpack.c.2.s8 %v1868
        %v2511 = vunpack.c.2.s8 %v1869
        %v2512 = vunpack.c.2.s8 %v1870
        %v2513 = vunpack.c.2.s8 %v1871
        %v2514 = vunpack.c.2.s8 %v1872
        %v2515 = vunpack.c.2.s8 %v1873
        %v2516 = vunpack.c.3.s8 %v1868
        %v2517 = vunpack.c.3.s8 %v1869
        %v2518 = vunpack.c.3.s8 %v1870
        %v2519 = vunpack.c.3.s8 %v1871
        %v2520 = vunpack.c.3.s8 %v1872
        %v2521 = vunpack.c.3.s8 %v1873
        %v2522 = vunpack.c.0.s8 %v1874
        %v2523 = vunpack.c.0.s8 %v1875
        %v2524 = vunpack.c.0.s8 %v1876
        %v2525 = vunpack.c.0.s8 %v1877
        %v2526 = vunpack.c.0.s8 %v1878
        %v2527 = vunpack.c.0.s8 %v1879
        %v2528 = vunpack.c.1.s8 %v1874
        %v2529 = vunpack.c.1.s8 %v1875
        %v2530 = vunpack.c.1.s8 %v1876
        %v2531 = vunpack.c.1.s8 %v1877
        %v2532 = vunpack.c.1.s8 %v1878
        %v2533 = vunpack.c.1.s8 %v1879
        %v2534 = vunpack.c.2.s8 %v1874
        %v2535 = vunpack.c.2.s8 %v1875
        %v2536 = vunpack.c.2.s8 %v1876
        %v2537 = vunpack.c.2.s8 %v1877
        %v2538 = vunpack.c.2.s8 %v1878
        %v2539 = vunpack.c.2.s8 %v1879
        %v2540 = vunpack.c.3.s8 %v1874
        %v2541 = vunpack.c.3.s8 %v1875
        %v2542 = vunpack.c.3.s8 %v1876
        %v2543 = vunpack.c.3.s8 %v1877
        %v2544 = vunpack.c.3.s8 %v1878
        %v2545 = vunpack.c.3.s8 %v1879
        %v2546 = vunpack.c.0.s8 %v1880
        %v2547 = vunpack.c.0.s8 %v1881
        %v2548 = vunpack.c.0.s8 %v1882
        %v2549 = vunpack.c.0.s8 %v1883
        %v2550 = vunpack.c.0.s8 %v1884
        %v2551 = vunpack.c.0.s8 %v1885
        %v2552 = vunpack.c.1.s8 %v1880
        %v2553 = vunpack.c.1.s8 %v1881
        %v2554 = vunpack.c.1.s8 %v1882
        %v2555 = vunpack.c.1.s8 %v1883
        %v2556 = vunpack.c.1.s8 %v1884
        %v2557 = vunpack.c.1.s8 %v1885
        %v2558 = vunpack.c.2.s8 %v1880
        %v2559 = vunpack.c.2.s8 %v1881
        %v2560 = vunpack.c.2.s8 %v1882
        %v2561 = vunpack.c.2.s8 %v1883
        %v2562 = vunpack.c.2.s8 %v1884
        %v2563 = vunpack.c.2.s8 %v1885
        %v2564 = vunpack.c.3.s8 %v1880
        %v2565 = vunpack.c.3.s8 %v1881
        %v2566 = vunpack.c.3.s8 %v1882
        %v2567 = vunpack.c.3.s8 %v1883
        %v2568 = vunpack.c.3.s8 %v1884
        %v2569 = vunpack.c.3.s8 %v1885
        %v2570 = vunpack.c.0.s8 %v1886
        %v2571 = vunpack.c.0.s8 %v1887
        %v2572 = vunpack.c.0.s8 %v1888
        %v2573 = vunpack.c.0.s8 %v1889
        %v2574 = vunpack.c.0.s8 %v1890
        %v2575 = vunpack.c.0.s8 %v1891
        %v2576 = vunpack.c.1.s8 %v1886
        %v2577 = vunpack.c.1.s8 %v1887
        %v2578 = vunpack.c.1.s8 %v1888
        %v2579 = vunpack.c.1.s8 %v1889
        %v2580 = vunpack.c.1.s8 %v1890
        %v2581 = vunpack.c.1.s8 %v1891
        %v2582 = vunpack.c.2.s8 %v1886
        %v2583 = vunpack.c.2.s8 %v1887
        %v2584 = vunpack.c.2.s8 %v1888
        %v2585 = vunpack.c.2.s8 %v1889
        %v2586 = vunpack.c.2.s8 %v1890
        %v2587 = vunpack.c.2.s8 %v1891
        %v2588 = vunpack.c.3.s8 %v1886
        %v2589 = vunpack.c.3.s8 %v1887
        %v2590 = vunpack.c.3.s8 %v1888
        %v2591 = vunpack.c.3.s8 %v1889
        %v2592 = vunpack.c.3.s8 %v1890
        %v2593 = vunpack.c.3.s8 %v1891
        %v2594 = vunpack.c.0.s8 %v1892
        %v2595 = vunpack.c.0.s8 %v1893
        %v2596 = vunpack.c.0.s8 %v1894
        %v2597 = vunpack.c.0.s8 %v1895
        %v2598 = vunpack.c.0.s8 %v1896
        %v2599 = vunpack.c.0.s8 %v1897
        %v2600 = vunpack.c.1.s8 %v1892
        %v2601 = vunpack.c.1.s8 %v1893
        %v2602 = vunpack.c.1.s8 %v1894
        %v2603 = vunpack.c.1.s8 %v1895
        %v2604 = vunpack.c.1.s8 %v1896
        %v2605 = vunpack.c.1.s8 %v1897
        %v2606 = vunpack.c.2.s8 %v1892
        %v2607 = vunpack.c.2.s8 %v1893
        %v2608 = vunpack.c.2.s8 %v1894
        %v2609 = vunpack.c.2.s8 %v1895
        %v2610 = vunpack.c.2.s8 %v1896
        %v2611 = vunpack.c.2.s8 %v1897
        %v2612 = vunpack.c.3.s8 %v1892
        %v2613 = vunpack.c.3.s8 %v1893
        %v2614 = vunpack.c.3.s8 %v1894
        %v2615 = vunpack.c.3.s8 %v1895
        %v2616 = vunpack.c.3.s8 %v1896
        %v2617 = vunpack.c.3.s8 %v1897
        %v2618 = vunpack.c.0.s8 %v1898
        %v2619 = vunpack.c.0.s8 %v1899
        %v2620 = vunpack.c.0.s8 %v1900
        %v2621 = vunpack.c.0.s8 %v1901
        %v2622 = vunpack.c.0.s8 %v1902
        %v2623 = vunpack.c.0.s8 %v1903
        %v2624 = vunpack.c.1.s8 %v1898
        %v2625 = vunpack.c.1.s8 %v1899
        %v2626 = vunpack.c.1.s8 %v1900
        %v2627 = vunpack.c.1.s8 %v1901
        %v2628 = vunpack.c.1.s8 %v1902
        %v2629 = vunpack.c.1.s8 %v1903
        %v2630 = vunpack.c.2.s8 %v1898
        %v2631 = vunpack.c.2.s8 %v1899
        %v2632 = vunpack.c.2.s8 %v1900
        %v2633 = vunpack.c.2.s8 %v1901
        %v2634 = vunpack.c.2.s8 %v1902
        %v2635 = vunpack.c.2.s8 %v1903
        %v2636 = vunpack.c.3.s8 %v1898
        %v2637 = vunpack.c.3.s8 %v1899
        %v2638 = vunpack.c.3.s8 %v1900
        %v2639 = vunpack.c.3.s8 %v1901
        %v2640 = vunpack.c.3.s8 %v1902
        %v2641 = vunpack.c.3.s8 %v1903
        %v2642 = vunpack.c.0.s8 %v1904
        %v2643 = vunpack.c.0.s8 %v1905
        %v2644 = vunpack.c.0.s8 %v1906
        %v2645 = vunpack.c.0.s8 %v1907
        %v2646 = vunpack.c.0.s8 %v1908
        %v2647 = vunpack.c.0.s8 %v1909
        %v2648 = vunpack.c.1.s8 %v1904
        %v2649 = vunpack.c.1.s8 %v1905
        %v2650 = vunpack.c.1.s8 %v1906
        %v2651 = vunpack.c.1.s8 %v1907
        %v2652 = vunpack.c.1.s8 %v1908
        %v2653 = vunpack.c.1.s8 %v1909
        %v2654 = vunpack.c.2.s8 %v1904
        %v2655 = vunpack.c.2.s8 %v1905
        %v2656 = vunpack.c.2.s8 %v1906
        %v2657 = vunpack.c.2.s8 %v1907
        %v2658 = vunpack.c.2.s8 %v1908
        %v2659 = vunpack.c.2.s8 %v1909
        %v2660 = vunpack.c.3.s8 %v1904
        %v2661 = vunpack.c.3.s8 %v1905
        %v2662 = vunpack.c.3.s8 %v1906
        %v2663 = vunpack.c.3.s8 %v1907
        %v2664 = vunpack.c.3.s8 %v1908
        %v2665 = vunpack.c.3.s8 %v1909
        %v2666 = vunpack.c.0.s8 %v1910
        %v2667 = vunpack.c.0.s8 %v1911
        %v2668 = vunpack.c.0.s8 %v1912
        %v2669 = vunpack.c.0.s8 %v1913
        %v2670 = vunpack.c.0.s8 %v1914
        %v2671 = vunpack.c.0.s8 %v1915
        %v2672 = vunpack.c.1.s8 %v1910
        %v2673 = vunpack.c.1.s8 %v1911
        %v2674 = vunpack.c.1.s8 %v1912
        %v2675 = vunpack.c.1.s8 %v1913
        %v2676 = vunpack.c.1.s8 %v1914
        %v2677 = vunpack.c.1.s8 %v1915
        %v2678 = vunpack.c.2.s8 %v1910
        %v2679 = vunpack.c.2.s8 %v1911
        %v2680 = vunpack.c.2.s8 %v1912
        %v2681 = vunpack.c.2.s8 %v1913
        %v2682 = vunpack.c.2.s8 %v1914
        %v2683 = vunpack.c.2.s8 %v1915
        %v2684 = vunpack.c.3.s8 %v1910
        %v2685 = vunpack.c.3.s8 %v1911
        %v2686 = vunpack.c.3.s8 %v1912
        %v2687 = vunpack.c.3.s8 %v1913
        %v2688 = vunpack.c.3.s8 %v1914
        %v2689 = vunpack.c.3.s8 %v1915
        %v2690 = vunpack.c.0.s8 %v1916
        %v2691 = vunpack.c.0.s8 %v1917
        %v2692 = vunpack.c.0.s8 %v1918
        %v2693 = vunpack.c.0.s8 %v1919
        %v2694 = vunpack.c.0.s8 %v1920
        %v2695 = vunpack.c.0.s8 %v1921
        %v2696 = vunpack.c.1.s8 %v1916
        %v2697 = vunpack.c.1.s8 %v1917
        %v2698 = vunpack.c.1.s8 %v1918
        %v2699 = vunpack.c.1.s8 %v1919
        %v2700 = vunpack.c.1.s8 %v1920
        %v2701 = vunpack.c.1.s8 %v1921
        %v2702 = vunpack.c.2.s8 %v1916
        %v2703 = vunpack.c.2.s8 %v1917
        %v2704 = vunpack.c.2.s8 %v1918
        %v2705 = vunpack.c.2.s8 %v1919
        %v2706 = vunpack.c.2.s8 %v1920
        %v2707 = vunpack.c.2.s8 %v1921
        %v2708 = vunpack.c.3.s8 %v1916
        %v2709 = vunpack.c.3.s8 %v1917
        %v2710 = vunpack.c.3.s8 %v1918
        %v2711 = vunpack.c.3.s8 %v1919
        %v2712 = vunpack.c.3.s8 %v1920
        %v2713 = vunpack.c.3.s8 %v1921
        %v2714 = vunpack.c.0.s8 %v1922
        %v2715 = vunpack.c.0.s8 %v1923
        %v2716 = vunpack.c.0.s8 %v1924
        %v2717 = vunpack.c.0.s8 %v1925
        %v2718 = vunpack.c.0.s8 %v1926
        %v2719 = vunpack.c.0.s8 %v1927
        %v2720 = vunpack.c.1.s8 %v1922
        %v2721 = vunpack.c.1.s8 %v1923
        %v2722 = vunpack.c.1.s8 %v1924
        %v2723 = vunpack.c.1.s8 %v1925
        %v2724 = vunpack.c.1.s8 %v1926
        %v2725 = vunpack.c.1.s8 %v1927
        %v2726 = vunpack.c.2.s8 %v1922
        %v2727 = vunpack.c.2.s8 %v1923
        %v2728 = vunpack.c.2.s8 %v1924
        %v2729 = vunpack.c.2.s8 %v1925
        %v2730 = vunpack.c.2.s8 %v1926
        %v2731 = vunpack.c.2.s8 %v1927
        %v2732 = vunpack.c.3.s8 %v1922
        %v2733 = vunpack.c.3.s8 %v1923
        %v2734 = vunpack.c.3.s8 %v1924
        %v2735 = vunpack.c.3.s8 %v1925
        %v2736 = vunpack.c.3.s8 %v1926
        %v2737 = vunpack.c.3.s8 %v1927
        %v2738 = vunpack.c.0.s8 %v1928
        %v2739 = vunpack.c.0.s8 %v1929
        %v2740 = vunpack.c.0.s8 %v1930
        %v2741 = vunpack.c.0.s8 %v1931
        %v2742 = vunpack.c.0.s8 %v1932
        %v2743 = vunpack.c.0.s8 %v1933
        %v2744 = vunpack.c.1.s8 %v1928
        %v2745 = vunpack.c.1.s8 %v1929
        %v2746 = vunpack.c.1.s8 %v1930
        %v2747 = vunpack.c.1.s8 %v1931
        %v2748 = vunpack.c.1.s8 %v1932
        %v2749 = vunpack.c.1.s8 %v1933
        %v2750 = vunpack.c.2.s8 %v1928
        %v2751 = vunpack.c.2.s8 %v1929
        %v2752 = vunpack.c.2.s8 %v1930
        %v2753 = vunpack.c.2.s8 %v1931
        %v2754 = vunpack.c.2.s8 %v1932
        %v2755 = vunpack.c.2.s8 %v1933
        %v2756 = vunpack.c.3.s8 %v1928
        %v2757 = vunpack.c.3.s8 %v1929
        %v2758 = vunpack.c.3.s8 %v1930
        %v2759 = vunpack.c.3.s8 %v1931
        %v2760 = vunpack.c.3.s8 %v1932
        %v2761 = vunpack.c.3.s8 %v1933
        %v2762 = vunpack.c.0.s8 %v1934
        %v2763 = vunpack.c.0.s8 %v1935
        %v2764 = vunpack.c.0.s8 %v1936
        %v2765 = vunpack.c.0.s8 %v1937
        %v2766 = vunpack.c.0.s8 %v1938
        %v2767 = vunpack.c.0.s8 %v1939
        %v2768 = vunpack.c.1.s8 %v1934
        %v2769 = vunpack.c.1.s8 %v1935
        %v2770 = vunpack.c.1.s8 %v1936
        %v2771 = vunpack.c.1.s8 %v1937
        %v2772 = vunpack.c.1.s8 %v1938
        %v2773 = vunpack.c.1.s8 %v1939
        %v2774 = vunpack.c.2.s8 %v1934
        %v2775 = vunpack.c.2.s8 %v1935
        %v2776 = vunpack.c.2.s8 %v1936
        %v2777 = vunpack.c.2.s8 %v1937
        %v2778 = vunpack.c.2.s8 %v1938
        %v2779 = vunpack.c.2.s8 %v1939
        %v2780 = vunpack.c.3.s8 %v1934
        %v2781 = vunpack.c.3.s8 %v1935
        %v2782 = vunpack.c.3.s8 %v1936
        %v2783 = vunpack.c.3.s8 %v1937
        %v2784 = vunpack.c.3.s8 %v1938
        %v2785 = vunpack.c.3.s8 %v1939
        %v2786 = vunpack.c.0.s8 %v1940
        %v2787 = vunpack.c.0.s8 %v1941
        %v2788 = vunpack.c.0.s8 %v1942
        %v2789 = vunpack.c.0.s8 %v1943
        %v2790 = vunpack.c.0.s8 %v1944
        %v2791 = vunpack.c.0.s8 %v1945
        %v2792 = vunpack.c.1.s8 %v1940
        %v2793 = vunpack.c.1.s8 %v1941
        %v2794 = vunpack.c.1.s8 %v1942
        %v2795 = vunpack.c.1.s8 %v1943
        %v2796 = vunpack.c.1.s8 %v1944
        %v2797 = vunpack.c.1.s8 %v1945
        %v2798 = vunpack.c.2.s8 %v1940
        %v2799 = vunpack.c.2.s8 %v1941
        %v2800 = vunpack.c.2.s8 %v1942
        %v2801 = vunpack.c.2.s8 %v1943
        %v2802 = vunpack.c.2.s8 %v1944
        %v2803 = vunpack.c.2.s8 %v1945
        %v2804 = vunpack.c.3.s8 %v1940
        %v2805 = vunpack.c.3.s8 %v1941
        %v2806 = vunpack.c.3.s8 %v1942
        %v2807 = vunpack.c.3.s8 %v1943
        %v2808 = vunpack.c.3.s8 %v1944
        %v2809 = vunpack.c.3.s8 %v1945
        %v2810 = vunpack.c.0.s8 %v1946
        %v2811 = vunpack.c.0.s8 %v1947
        %v2812 = vunpack.c.0.s8 %v1948
        %v2813 = vunpack.c.0.s8 %v1949
        %v2814 = vunpack.c.0.s8 %v1950
        %v2815 = vunpack.c.0.s8 %v1951
        %v2816 = vunpack.c.1.s8 %v1946
        %v2817 = vunpack.c.1.s8 %v1947
        %v2818 = vunpack.c.1.s8 %v1948
        %v2819 = vunpack.c.1.s8 %v1949
        %v2820 = vunpack.c.1.s8 %v1950
        %v2821 = vunpack.c.1.s8 %v1951
        %v2822 = vunpack.c.2.s8 %v1946
        %v2823 = vunpack.c.2.s8 %v1947
        %v2824 = vunpack.c.2.s8 %v1948
        %v2825 = vunpack.c.2.s8 %v1949
        %v2826 = vunpack.c.2.s8 %v1950
        %v2827 = vunpack.c.2.s8 %v1951
        %v2828 = vunpack.c.3.s8 %v1946
        %v2829 = vunpack.c.3.s8 %v1947
        %v2830 = vunpack.c.3.s8 %v1948
        %v2831 = vunpack.c.3.s8 %v1949
        %v2832 = vunpack.c.3.s8 %v1950
        %v2833 = vunpack.c.3.s8 %v1951
        %v2834 = vunpack.c.0.s8 %v1952
        %v2835 = vunpack.c.0.s8 %v1953
        %v2836 = vunpack.c.0.s8 %v1954
        %v2837 = vunpack.c.0.s8 %v1955
        %v2838 = vunpack.c.0.s8 %v1956
        %v2839 = vunpack.c.0.s8 %v1957
        %v2840 = vunpack.c.1.s8 %v1952
        %v2841 = vunpack.c.1.s8 %v1953
        %v2842 = vunpack.c.1.s8 %v1954
        %v2843 = vunpack.c.1.s8 %v1955
        %v2844 = vunpack.c.1.s8 %v1956
        %v2845 = vunpack.c.1.s8 %v1957
        %v2846 = vunpack.c.2.s8 %v1952
        %v2847 = vunpack.c.2.s8 %v1953
        %v2848 = vunpack.c.2.s8 %v1954
        %v2849 = vunpack.c.2.s8 %v1955
        %v2850 = vunpack.c.2.s8 %v1956
        %v2851 = vunpack.c.2.s8 %v1957
        %v2852 = vunpack.c.3.s8 %v1952
        %v2853 = vunpack.c.3.s8 %v1953
        %v2854 = vunpack.c.3.s8 %v1954
        %v2855 = vunpack.c.3.s8 %v1955
        %v2856 = vunpack.c.3.s8 %v1956
        %v2857 = vunpack.c.3.s8 %v1957
        %v2858 = vunpack.c.0.s8 %v1958
        %v2859 = vunpack.c.0.s8 %v1959
        %v2860 = vunpack.c.0.s8 %v1960
        %v2861 = vunpack.c.0.s8 %v1961
        %v2862 = vunpack.c.0.s8 %v1962
        %v2863 = vunpack.c.0.s8 %v1963
        %v2864 = vunpack.c.1.s8 %v1958
        %v2865 = vunpack.c.1.s8 %v1959
        %v2866 = vunpack.c.1.s8 %v1960
        %v2867 = vunpack.c.1.s8 %v1961
        %v2868 = vunpack.c.1.s8 %v1962
        %v2869 = vunpack.c.1.s8 %v1963
        %v2870 = vunpack.c.2.s8 %v1958
        %v2871 = vunpack.c.2.s8 %v1959
        %v2872 = vunpack.c.2.s8 %v1960
        %v2873 = vunpack.c.2.s8 %v1961
        %v2874 = vunpack.c.2.s8 %v1962
        %v2875 = vunpack.c.2.s8 %v1963
        %v2876 = vunpack.c.3.s8 %v1958
        %v2877 = vunpack.c.3.s8 %v1959
        %v2878 = vunpack.c.3.s8 %v1960
        %v2879 = vunpack.c.3.s8 %v1961
        %v2880 = vunpack.c.3.s8 %v1962
        %v2881 = vunpack.c.3.s8 %v1963
        %v2882 = vunpack.c.0.s8 %v1964
        %v2883 = vunpack.c.0.s8 %v1965
        %v2884 = vunpack.c.0.s8 %v1966
        %v2885 = vunpack.c.0.s8 %v1967
        %v2886 = vunpack.c.0.s8 %v1968
        %v2887 = vunpack.c.0.s8 %v1969
        %v2888 = vunpack.c.1.s8 %v1964
        %v2889 = vunpack.c.1.s8 %v1965
        %v2890 = vunpack.c.1.s8 %v1966
        %v2891 = vunpack.c.1.s8 %v1967
        %v2892 = vunpack.c.1.s8 %v1968
        %v2893 = vunpack.c.1.s8 %v1969
        %v2894 = vunpack.c.2.s8 %v1964
        %v2895 = vunpack.c.2.s8 %v1965
        %v2896 = vunpack.c.2.s8 %v1966
        %v2897 = vunpack.c.2.s8 %v1967
        %v2898 = vunpack.c.2.s8 %v1968
        %v2899 = vunpack.c.2.s8 %v1969
        %v2900 = vunpack.c.3.s8 %v1964
        %v2901 = vunpack.c.3.s8 %v1965
        %v2902 = vunpack.c.3.s8 %v1966
        %v2903 = vunpack.c.3.s8 %v1967
        %v2904 = vunpack.c.3.s8 %v1968
        %v2905 = vunpack.c.3.s8 %v1969
        %v2906 = vunpack.c.0.s8 %v1970
        %v2907 = vunpack.c.0.s8 %v1971
        %v2908 = vunpack.c.0.s8 %v1972
        %v2909 = vunpack.c.0.s8 %v1973
        %v2910 = vunpack.c.0.s8 %v1974
        %v2911 = vunpack.c.0.s8 %v1975
        %v2912 = vunpack.c.1.s8 %v1970
        %v2913 = vunpack.c.1.s8 %v1971
        %v2914 = vunpack.c.1.s8 %v1972
        %v2915 = vunpack.c.1.s8 %v1973
        %v2916 = vunpack.c.1.s8 %v1974
        %v2917 = vunpack.c.1.s8 %v1975
        %v2918 = vunpack.c.2.s8 %v1970
        %v2919 = vunpack.c.2.s8 %v1971
        %v2920 = vunpack.c.2.s8 %v1972
        %v2921 = vunpack.c.2.s8 %v1973
        %v2922 = vunpack.c.2.s8 %v1974
        %v2923 = vunpack.c.2.s8 %v1975
        %v2924 = vunpack.c.3.s8 %v1970
        %v2925 = vunpack.c.3.s8 %v1971
        %v2926 = vunpack.c.3.s8 %v1972
        %v2927 = vunpack.c.3.s8 %v1973
        %v2928 = vunpack.c.3.s8 %v1974
        %v2929 = vunpack.c.3.s8 %v1975
        %v2930 = vunpack.c.0.s8 %v1976
        %v2931 = vunpack.c.0.s8 %v1977
        %v2932 = vunpack.c.0.s8 %v1978
        %v2933 = vunpack.c.0.s8 %v1979
        %v2934 = vunpack.c.0.s8 %v1980
        %v2935 = vunpack.c.0.s8 %v1981
        %v2936 = vunpack.c.1.s8 %v1976
        %v2937 = vunpack.c.1.s8 %v1977
        %v2938 = vunpack.c.1.s8 %v1978
        %v2939 = vunpack.c.1.s8 %v1979
        %v2940 = vunpack.c.1.s8 %v1980
        %v2941 = vunpack.c.1.s8 %v1981
        %v2942 = vunpack.c.2.s8 %v1976
        %v2943 = vunpack.c.2.s8 %v1977
        %v2944 = vunpack.c.2.s8 %v1978
        %v2945 = vunpack.c.2.s8 %v1979
        %v2946 = vunpack.c.2.s8 %v1980
        %v2947 = vunpack.c.2.s8 %v1981
        %v2948 = vunpack.c.3.s8 %v1976
        %v2949 = vunpack.c.3.s8 %v1977
        %v2950 = vunpack.c.3.s8 %v1978
        %v2951 = vunpack.c.3.s8 %v1979
        %v2952 = vunpack.c.3.s8 %v1980
        %v2953 = vunpack.c.3.s8 %v1981
        %v2954 = vunpack.c.0.s8 %v1982
        %v2955 = vunpack.c.0.s8 %v1983
        %v2956 = vunpack.c.0.s8 %v1984
        %v2957 = vunpack.c.0.s8 %v1985
        %v2958 = vunpack.c.0.s8 %v1986
        %v2959 = vunpack.c.0.s8 %v1987
        %v2960 = vunpack.c.1.s8 %v1982
        %v2961 = vunpack.c.1.s8 %v1983
        %v2962 = vunpack.c.1.s8 %v1984
        %v2963 = vunpack.c.1.s8 %v1985
        %v2964 = vunpack.c.1.s8 %v1986
        %v2965 = vunpack.c.1.s8 %v1987
        %v2966 = vunpack.c.2.s8 %v1982
        %v2967 = vunpack.c.2.s8 %v1983
        %v2968 = vunpack.c.2.s8 %v1984
        %v2969 = vunpack.c.2.s8 %v1985
        %v2970 = vunpack.c.2.s8 %v1986
        %v2971 = vunpack.c.2.s8 %v1987
        %v2972 = vunpack.c.3.s8 %v1982
        %v2973 = vunpack.c.3.s8 %v1983
        %v2974 = vunpack.c.3.s8 %v1984
        %v2975 = vunpack.c.3.s8 %v1985
        %v2976 = vunpack.c.3.s8 %v1986
        %v2977 = vunpack.c.3.s8 %v1987
        %v2978 = vunpack.c.0.s8 %v1988
        %v2979 = vunpack.c.0.s8 %v1989
        %v2980 = vunpack.c.0.s8 %v1990
        %v2981 = vunpack.c.0.s8 %v1991
        %v2982 = vunpack.c.0.s8 %v1992
        %v2983 = vunpack.c.0.s8 %v1993
        %v2984 = vunpack.c.1.s8 %v1988
        %v2985 = vunpack.c.1.s8 %v1989
        %v2986 = vunpack.c.1.s8 %v1990
        %v2987 = vunpack.c.1.s8 %v1991
        %v2988 = vunpack.c.1.s8 %v1992
        %v2989 = vunpack.c.1.s8 %v1993
        %v2990 = vunpack.c.2.s8 %v1988
        %v2991 = vunpack.c.2.s8 %v1989
        %v2992 = vunpack.c.2.s8 %v1990
        %v2993 = vunpack.c.2.s8 %v1991
        %v2994 = vunpack.c.2.s8 %v1992
        %v2995 = vunpack.c.2.s8 %v1993
        %v2996 = vunpack.c.3.s8 %v1988
        %v2997 = vunpack.c.3.s8 %v1989
        %v2998 = vunpack.c.3.s8 %v1990
        %v2999 = vunpack.c.3.s8 %v1991
        %v3000 = vunpack.c.3.s8 %v1992
        %v3001 = vunpack.c.3.s8 %v1993
        %v3002 = vunpack.c.0.s8 %v1994
        %v3003 = vunpack.c.0.s8 %v1995
        %v3004 = vunpack.c.0.s8 %v1996
        %v3005 = vunpack.c.0.s8 %v1997
        %v3006 = vunpack.c.0.s8 %v1998
        %v3007 = vunpack.c.0.s8 %v1999
        %v3008 = vunpack.c.1.s8 %v1994
        %v3009 = vunpack.c.1.s8 %v1995
        %v3010 = vunpack.c.1.s8 %v1996
        %v3011 = vunpack.c.1.s8 %v1997
        %v3012 = vunpack.c.1.s8 %v1998
        %v3013 = vunpack.c.1.s8 %v1999
        %v3014 = vunpack.c.2.s8 %v1994
        %v3015 = vunpack.c.2.s8 %v1995
        %v3016 = vunpack.c.2.s8 %v1996
        %v3017 = vunpack.c.2.s8 %v1997
        %v3018 = vunpack.c.2.s8 %v1998
        %v3019 = vunpack.c.2.s8 %v1999
        %v3020 = vunpack.c.3.s8 %v1994
        %v3021 = vunpack.c.3.s8 %v1995
        %v3022 = vunpack.c.3.s8 %v1996
        %v3023 = vunpack.c.3.s8 %v1997
        %v3024 = vunpack.c.3.s8 %v1998
        %v3025 = vunpack.c.3.s8 %v1999
        %v3026 = vunpack.c.0.s8 %v2000
        %v3027 = vunpack.c.0.s8 %v2001
        %v3028 = vunpack.c.0.s8 %v2002
        %v3029 = vunpack.c.0.s8 %v2003
        %v3030 = vunpack.c.0.s8 %v2004
        %v3031 = vunpack.c.0.s8 %v2005
        %v3032 = vunpack.c.1.s8 %v2000
        %v3033 = vunpack.c.1.s8 %v2001
        %v3034 = vunpack.c.1.s8 %v2002
        %v3035 = vunpack.c.1.s8 %v2003
        %v3036 = vunpack.c.1.s8 %v2004
        %v3037 = vunpack.c.1.s8 %v2005
        %v3038 = vunpack.c.2.s8 %v2000
        %v3039 = vunpack.c.2.s8 %v2001
        %v3040 = vunpack.c.2.s8 %v2002
        %v3041 = vunpack.c.2.s8 %v2003
        %v3042 = vunpack.c.2.s8 %v2004
        %v3043 = vunpack.c.2.s8 %v2005
        %v3044 = vunpack.c.3.s8 %v2000
        %v3045 = vunpack.c.3.s8 %v2001
        %v3046 = vunpack.c.3.s8 %v2002
        %v3047 = vunpack.c.3.s8 %v2003
        %v3048 = vunpack.c.3.s8 %v2004
        %v3049 = vunpack.c.3.s8 %v2005
        %v3050 = vunpack.c.0.s8 %v2006
        %v3051 = vunpack.c.0.s8 %v2007
        %v3052 = vunpack.c.0.s8 %v2008
        %v3053 = vunpack.c.0.s8 %v2009
        %v3054 = vunpack.c.0.s8 %v2010
        %v3055 = vunpack.c.0.s8 %v2011
        %v3056 = vunpack.c.1.s8 %v2006
        %v3057 = vunpack.c.1.s8 %v2007
        %v3058 = vunpack.c.1.s8 %v2008
        %v3059 = vunpack.c.1.s8 %v2009
        %v3060 = vunpack.c.1.s8 %v2010
        %v3061 = vunpack.c.1.s8 %v2011
        %v3062 = vunpack.c.2.s8 %v2006
        %v3063 = vunpack.c.2.s8 %v2007
        %v3064 = vunpack.c.2.s8 %v2008
        %v3065 = vunpack.c.2.s8 %v2009
        %v3066 = vunpack.c.2.s8 %v2010
        %v3067 = vunpack.c.2.s8 %v2011
        %v3068 = vunpack.c.3.s8 %v2006
        %v3069 = vunpack.c.3.s8 %v2007
        %v3070 = vunpack.c.3.s8 %v2008
        %v3071 = vunpack.c.3.s8 %v2009
        %v3072 = vunpack.c.3.s8 %v2010
        %v3073 = vunpack.c.3.s8 %v2011
        %v3074 = vunpack.c.0.s8 %v2012
        %v3075 = vunpack.c.0.s8 %v2013
        %v3076 = vunpack.c.0.s8 %v2014
        %v3077 = vunpack.c.0.s8 %v2015
        %v3078 = vunpack.c.0.s8 %v2016
        %v3079 = vunpack.c.0.s8 %v2017
        %v3080 = vunpack.c.1.s8 %v2012
        %v3081 = vunpack.c.1.s8 %v2013
        %v3082 = vunpack.c.1.s8 %v2014
        %v3083 = vunpack.c.1.s8 %v2015
        %v3084 = vunpack.c.1.s8 %v2016
        %v3085 = vunpack.c.1.s8 %v2017
        %v3086 = vunpack.c.2.s8 %v2012
        %v3087 = vunpack.c.2.s8 %v2013
        %v3088 = vunpack.c.2.s8 %v2014
        %v3089 = vunpack.c.2.s8 %v2015
        %v3090 = vunpack.c.2.s8 %v2016
        %v3091 = vunpack.c.2.s8 %v2017
        %v3092 = vunpack.c.3.s8 %v2012
        %v3093 = vunpack.c.3.s8 %v2013
        %v3094 = vunpack.c.3.s8 %v2014
        %v3095 = vunpack.c.3.s8 %v2015
        %v3096 = vunpack.c.3.s8 %v2016
        %v3097 = vunpack.c.3.s8 %v2017
        %v3098 = vunpack.c.0.s8 %v2018
        %v3099 = vunpack.c.0.s8 %v2019
        %v3100 = vunpack.c.0.s8 %v2020
        %v3101 = vunpack.c.0.s8 %v2021
        %v3102 = vunpack.c.0.s8 %v2022
        %v3103 = vunpack.c.0.s8 %v2023
        %v3104 = vunpack.c.1.s8 %v2018
        %v3105 = vunpack.c.1.s8 %v2019
        %v3106 = vunpack.c.1.s8 %v2020
        %v3107 = vunpack.c.1.s8 %v2021
        %v3108 = vunpack.c.1.s8 %v2022
        %v3109 = vunpack.c.1.s8 %v2023
        %v3110 = vunpack.c.2.s8 %v2018
        %v3111 = vunpack.c.2.s8 %v2019
        %v3112 = vunpack.c.2.s8 %v2020
        %v3113 = vunpack.c.2.s8 %v2021
        %v3114 = vunpack.c.2.s8 %v2022
        %v3115 = vunpack.c.2.s8 %v2023
        %v3116 = vunpack.c.3.s8 %v2018
        %v3117 = vunpack.c.3.s8 %v2019
        %v3118 = vunpack.c.3.s8 %v2020
        %v3119 = vunpack.c.3.s8 %v2021
        %v3120 = vunpack.c.3.s8 %v2022
        %v3121 = vunpack.c.3.s8 %v2023
        %v3122 = vunpack.c.0.s8 %v2024
        %v3123 = vunpack.c.0.s8 %v2025
        %v3124 = vunpack.c.0.s8 %v2026
        %v3125 = vunpack.c.0.s8 %v2027
        %v3126 = vunpack.c.0.s8 %v2028
        %v3127 = vunpack.c.0.s8 %v2029
        %v3128 = vunpack.c.1.s8 %v2024
        %v3129 = vunpack.c.1.s8 %v2025
        %v3130 = vunpack.c.1.s8 %v2026
        %v3131 = vunpack.c.1.s8 %v2027
        %v3132 = vunpack.c.1.s8 %v2028
        %v3133 = vunpack.c.1.s8 %v2029
        %v3134 = vunpack.c.2.s8 %v2024
        %v3135 = vunpack.c.2.s8 %v2025
        %v3136 = vunpack.c.2.s8 %v2026
        %v3137 = vunpack.c.2.s8 %v2027
        %v3138 = vunpack.c.2.s8 %v2028
        %v3139 = vunpack.c.2.s8 %v2029
        %v3140 = vunpack.c.3.s8 %v2024
        %v3141 = vunpack.c.3.s8 %v2025
        %v3142 = vunpack.c.3.s8 %v2026
        %v3143 = vunpack.c.3.s8 %v2027
        %v3144 = vunpack.c.3.s8 %v2028
        %v3145 = vunpack.c.3.s8 %v2029
        %v3146 = vunpack.c.0.s8 %v2030
        %v3147 = vunpack.c.0.s8 %v2031
        %v3148 = vunpack.c.0.s8 %v2032
        %v3149 = vunpack.c.0.s8 %v2033
        %v3150 = vunpack.c.0.s8 %v2034
        %v3151 = vunpack.c.0.s8 %v2035
        %v3152 = vunpack.c.1.s8 %v2030
        %v3153 = vunpack.c.1.s8 %v2031
        %v3154 = vunpack.c.1.s8 %v2032
        %v3155 = vunpack.c.1.s8 %v2033
        %v3156 = vunpack.c.1.s8 %v2034
        %v3157 = vunpack.c.1.s8 %v2035
        %v3158 = vunpack.c.2.s8 %v2030
        %v3159 = vunpack.c.2.s8 %v2031
        %v3160 = vunpack.c.2.s8 %v2032
        %v3161 = vunpack.c.2.s8 %v2033
        %v3162 = vunpack.c.2.s8 %v2034
        %v3163 = vunpack.c.2.s8 %v2035
        %v3164 = vunpack.c.3.s8 %v2030
        %v3165 = vunpack.c.3.s8 %v2031
        %v3166 = vunpack.c.3.s8 %v2032
        %v3167 = vunpack.c.3.s8 %v2033
        %v3168 = vunpack.c.3.s8 %v2034
        %v3169 = vunpack.c.3.s8 %v2035
        %v3170 = vunpack.c.0.s8 %v2036
        %v3171 = vunpack.c.0.s8 %v2037
        %v3172 = vunpack.c.0.s8 %v2038
        %v3173 = vunpack.c.0.s8 %v2039
        %v3174 = vunpack.c.0.s8 %v2040
        %v3175 = vunpack.c.0.s8 %v2041
        %v3176 = vunpack.c.1.s8 %v2036
        %v3177 = vunpack.c.1.s8 %v2037
        %v3178 = vunpack.c.1.s8 %v2038
        %v3179 = vunpack.c.1.s8 %v2039
        %v3180 = vunpack.c.1.s8 %v2040
        %v3181 = vunpack.c.1.s8 %v2041
        %v3182 = vunpack.c.2.s8 %v2036
        %v3183 = vunpack.c.2.s8 %v2037
        %v3184 = vunpack.c.2.s8 %v2038
        %v3185 = vunpack.c.2.s8 %v2039
        %v3186 = vunpack.c.2.s8 %v2040
        %v3187 = vunpack.c.2.s8 %v2041
        %v3188 = vunpack.c.3.s8 %v2036
        %v3189 = vunpack.c.3.s8 %v2037
        %v3190 = vunpack.c.3.s8 %v2038
        %v3191 = vunpack.c.3.s8 %v2039
        %v3192 = vunpack.c.3.s8 %v2040
        %v3193 = vunpack.c.3.s8 %v2041
        %v3194 = vcvt.s32.f32 %v2042
        %v3195 = vcvt.s32.f32 %v2043
        %v3196 = vcvt.s32.f32 %v2044
        %v3197 = vcvt.s32.f32 %v2045
        %v3198 = vcvt.s32.f32 %v2046
        %v3199 = vcvt.s32.f32 %v2047
        %v3200 = vcvt.s32.f32 %v2048
        %v3201 = vcvt.s32.f32 %v2049
        %v3202 = vcvt.s32.f32 %v2050
        %v3203 = vcvt.s32.f32 %v2051
        %v3204 = vcvt.s32.f32 %v2052
        %v3205 = vcvt.s32.f32 %v2053
        %v3206 = vcvt.s32.f32 %v2054
        %v3207 = vcvt.s32.f32 %v2055
        %v3208 = vcvt.s32.f32 %v2056
        %v3209 = vcvt.s32.f32 %v2057
        %v3210 = vcvt.s32.f32 %v2058
        %v3211 = vcvt.s32.f32 %v2059
        %v3212 = vcvt.s32.f32 %v2060
        %v3213 = vcvt.s32.f32 %v2061
        %v3214 = vcvt.s32.f32 %v2062
        %v3215 = vcvt.s32.f32 %v2063
        %v3216 = vcvt.s32.f32 %v2064
        %v3217 = vcvt.s32.f32 %v2065
        %v3218 = vcvt.s32.f32 %v2066
        %v3219 = vcvt.s32.f32 %v2067
        %v3220 = vcvt.s32.f32 %v2068
        %v3221 = vcvt.s32.f32 %v2069
        %v3222 = vcvt.s32.f32 %v2070
        %v3223 = vcvt.s32.f32 %v2071
        %v3224 = vcvt.s32.f32 %v2072
        %v3225 = vcvt.s32.f32 %v2073
        %v3226 = vcvt.s32.f32 %v2074
        %v3227 = vcvt.s32.f32 %v2075
        %v3228 = vcvt.s32.f32 %v2076
        %v3229 = vcvt.s32.f32 %v2077
        %v3230 = vcvt.s32.f32 %v2078
        %v3231 = vcvt.s32.f32 %v2079
        %v3232 = vcvt.s32.f32 %v2080
        %v3233 = vcvt.s32.f32 %v2081
        %v3234 = vcvt.s32.f32 %v2082
        %v3235 = vcvt.s32.f32 %v2083
        %v3236 = vcvt.s32.f32 %v2084
        %v3237 = vcvt.s32.f32 %v2085
        %v3238 = vcvt.s32.f32 %v2086
        %v3239 = vcvt.s32.f32 %v2087
        %v3240 = vcvt.s32.f32 %v2088
        %v3241 = vcvt.s32.f32 %v2089
        %v3242 = vcvt.s32.f32 %v2090
        %v3243 = vcvt.s32.f32 %v2091
        %v3244 = vcvt.s32.f32 %v2092
        %v3245 = vcvt.s32.f32 %v2093
        %v3246 = vcvt.s32.f32 %v2094
        %v3247 = vcvt.s32.f32 %v2095
        %v3248 = vcvt.s32.f32 %v2096
        %v3249 = vcvt.s32.f32 %v2097
        %v3250 = vcvt.s32.f32 %v2098
        %v3251 = vcvt.s32.f32 %v2099
        %v3252 = vcvt.s32.f32 %v2100
        %v3253 = vcvt.s32.f32 %v2101
        %v3254 = vcvt.s32.f32 %v2102
        %v3255 = vcvt.s32.f32 %v2103
        %v3256 = vcvt.s32.f32 %v2104
        %v3257 = vcvt.s32.f32 %v2105
        %v3258 = vcvt.s32.f32 %v2106
        %v3259 = vcvt.s32.f32 %v2107
        %v3260 = vcvt.s32.f32 %v2108
        %v3261 = vcvt.s32.f32 %v2109
        %v3262 = vcvt.s32.f32 %v2110
        %v3263 = vcvt.s32.f32 %v2111
        %v3264 = vcvt.s32.f32 %v2112
        %v3265 = vcvt.s32.f32 %v2113
        %v3266 = vcvt.s32.f32 %v2114
        %v3267 = vcvt.s32.f32 %v2115
        %v3268 = vcvt.s32.f32 %v2116
        %v3269 = vcvt.s32.f32 %v2117
        %v3270 = vcvt.s32.f32 %v2118
        %v3271 = vcvt.s32.f32 %v2119
        %v3272 = vcvt.s32.f32 %v2120
        %v3273 = vcvt.s32.f32 %v2121
        %v3274 = vcvt.s32.f32 %v2122
        %v3275 = vcvt.s32.f32 %v2123
        %v3276 = vcvt.s32.f32 %v2124
        %v3277 = vcvt.s32.f32 %v2125
        %v3278 = vcvt.s32.f32 %v2126
        %v3279 = vcvt.s32.f32 %v2127
        %v3280 = vcvt.s32.f32 %v2128
        %v3281 = vcvt.s32.f32 %v2129
        %v3282 = vcvt.s32.f32 %v2130
        %v3283 = vcvt.s32.f32 %v2131
        %v3284 = vcvt.s32.f32 %v2132
        %v3285 = vcvt.s32.f32 %v2133
        %v3286 = vcvt.s32.f32 %v2134
        %v3287 = vcvt.s32.f32 %v2135
        %v3288 = vcvt.s32.f32 %v2136
        %v3289 = vcvt.s32.f32 %v2137
        %v3290 = vcvt.s32.f32 %v2138
        %v3291 = vcvt.s32.f32 %v2139
        %v3292 = vcvt.s32.f32 %v2140
        %v3293 = vcvt.s32.f32 %v2141
        %v3294 = vcvt.s32.f32 %v2142
        %v3295 = vcvt.s32.f32 %v2143
        %v3296 = vcvt.s32.f32 %v2144
        %v3297 = vcvt.s32.f32 %v2145
        %v3298 = vcvt.s32.f32 %v2146
        %v3299 = vcvt.s32.f32 %v2147
        %v3300 = vcvt.s32.f32 %v2148
        %v3301 = vcvt.s32.f32 %v2149
        %v3302 = vcvt.s32.f32 %v2150
        %v3303 = vcvt.s32.f32 %v2151
        %v3304 = vcvt.s32.f32 %v2152
        %v3305 = vcvt.s32.f32 %v2153
        %v3306 = vcvt.s32.f32 %v2154
        %v3307 = vcvt.s32.f32 %v2155
        %v3308 = vcvt.s32.f32 %v2156
        %v3309 = vcvt.s32.f32 %v2157
        %v3310 = vcvt.s32.f32 %v2158
        %v3311 = vcvt.s32.f32 %v2159
        %v3312 = vcvt.s32.f32 %v2160
        %v3313 = vcvt.s32.f32 %v2161
        %v3314 = vcvt.s32.f32 %v2162
        %v3315 = vcvt.s32.f32 %v2163
        %v3316 = vcvt.s32.f32 %v2164
        %v3317 = vcvt.s32.f32 %v2165
        %v3318 = vcvt.s32.f32 %v2166
        %v3319 = vcvt.s32.f32 %v2167
        %v3320 = vcvt.s32.f32 %v2168
        %v3321 = vcvt.s32.f32 %v2169
        %v3322 = vcvt.s32.f32 %v2170
        %v3323 = vcvt.s32.f32 %v2171
        %v3324 = vcvt.s32.f32 %v2172
        %v3325 = vcvt.s32.f32 %v2173
        %v3326 = vcvt.s32.f32 %v2174
        %v3327 = vcvt.s32.f32 %v2175
        %v3328 = vcvt.s32.f32 %v2176
        %v3329 = vcvt.s32.f32 %v2177
        %v3330 = vcvt.s32.f32 %v2178
        %v3331 = vcvt.s32.f32 %v2179
        %v3332 = vcvt.s32.f32 %v2180
        %v3333 = vcvt.s32.f32 %v2181
        %v3334 = vcvt.s32.f32 %v2182
        %v3335 = vcvt.s32.f32 %v2183
        %v3336 = vcvt.s32.f32 %v2184
        %v3337 = vcvt.s32.f32 %v2185
        %v3338 = vcvt.s32.f32 %v2186
        %v3339 = vcvt.s32.f32 %v2187
        %v3340 = vcvt.s32.f32 %v2188
        %v3341 = vcvt.s32.f32 %v2189
        %v3342 = vcvt.s32.f32 %v2190
        %v3343 = vcvt.s32.f32 %v2191
        %v3344 = vcvt.s32.f32 %v2192
        %v3345 = vcvt.s32.f32 %v2193
        %v3346 = vcvt.s32.f32 %v2194
        %v3347 = vcvt.s32.f32 %v2195
        %v3348 = vcvt.s32.f32 %v2196
        %v3349 = vcvt.s32.f32 %v2197
        %v3350 = vcvt.s32.f32 %v2198
        %v3351 = vcvt.s32.f32 %v2199
        %v3352 = vcvt.s32.f32 %v2200
        %v3353 = vcvt.s32.f32 %v2201
        %v3354 = vcvt.s32.f32 %v2202
        %v3355 = vcvt.s32.f32 %v2203
        %v3356 = vcvt.s32.f32 %v2204
        %v3357 = vcvt.s32.f32 %v2205
        %v3358 = vcvt.s32.f32 %v2206
        %v3359 = vcvt.s32.f32 %v2207
        %v3360 = vcvt.s32.f32 %v2208
        %v3361 = vcvt.s32.f32 %v2209
        %v3362 = vcvt.s32.f32 %v2210
        %v3363 = vcvt.s32.f32 %v2211
        %v3364 = vcvt.s32.f32 %v2212
        %v3365 = vcvt.s32.f32 %v2213
        %v3366 = vcvt.s32.f32 %v2214
        %v3367 = vcvt.s32.f32 %v2215
        %v3368 = vcvt.s32.f32 %v2216
        %v3369 = vcvt.s32.f32 %v2217
        %v3370 = vcvt.s32.f32 %v2218
        %v3371 = vcvt.s32.f32 %v2219
        %v3372 = vcvt.s32.f32 %v2220
        %v3373 = vcvt.s32.f32 %v2221
        %v3374 = vcvt.s32.f32 %v2222
        %v3375 = vcvt.s32.f32 %v2223
        %v3376 = vcvt.s32.f32 %v2224
        %v3377 = vcvt.s32.f32 %v2225
        %v3378 = vcvt.s32.f32 %v2226
        %v3379 = vcvt.s32.f32 %v2227
        %v3380 = vcvt.s32.f32 %v2228
        %v3381 = vcvt.s32.f32 %v2229
        %v3382 = vcvt.s32.f32 %v2230
        %v3383 = vcvt.s32.f32 %v2231
        %v3384 = vcvt.s32.f32 %v2232
        %v3385 = vcvt.s32.f32 %v2233
        %v3386 = vcvt.s32.f32 %v2234
        %v3387 = vcvt.s32.f32 %v2235
        %v3388 = vcvt.s32.f32 %v2236
        %v3389 = vcvt.s32.f32 %v2237
        %v3390 = vcvt.s32.f32 %v2238
        %v3391 = vcvt.s32.f32 %v2239
        %v3392 = vcvt.s32.f32 %v2240
        %v3393 = vcvt.s32.f32 %v2241
        %v3394 = vcvt.s32.f32 %v2242
        %v3395 = vcvt.s32.f32 %v2243
        %v3396 = vcvt.s32.f32 %v2244
        %v3397 = vcvt.s32.f32 %v2245
        %v3398 = vcvt.s32.f32 %v2246
        %v3399 = vcvt.s32.f32 %v2247
        %v3400 = vcvt.s32.f32 %v2248
        %v3401 = vcvt.s32.f32 %v2249
        %v3402 = vcvt.s32.f32 %v2250
        %v3403 = vcvt.s32.f32 %v2251
        %v3404 = vcvt.s32.f32 %v2252
        %v3405 = vcvt.s32.f32 %v2253
        %v3406 = vcvt.s32.f32 %v2254
        %v3407 = vcvt.s32.f32 %v2255
        %v3408 = vcvt.s32.f32 %v2256
        %v3409 = vcvt.s32.f32 %v2257
        %v3410 = vcvt.s32.f32 %v2258
        %v3411 = vcvt.s32.f32 %v2259
        %v3412 = vcvt.s32.f32 %v2260
        %v3413 = vcvt.s32.f32 %v2261
        %v3414 = vcvt.s32.f32 %v2262
        %v3415 = vcvt.s32.f32 %v2263
        %v3416 = vcvt.s32.f32 %v2264
        %v3417 = vcvt.s32.f32 %v2265
        %v3418 = vcvt.s32.f32 %v2266
        %v3419 = vcvt.s32.f32 %v2267
        %v3420 = vcvt.s32.f32 %v2268
        %v3421 = vcvt.s32.f32 %v2269
        %v3422 = vcvt.s32.f32 %v2270
        %v3423 = vcvt.s32.f32 %v2271
        %v3424 = vcvt.s32.f32 %v2272
        %v3425 = vcvt.s32.f32 %v2273
        %v3426 = vcvt.s32.f32 %v2274
        %v3427 = vcvt.s32.f32 %v2275
        %v3428 = vcvt.s32.f32 %v2276
        %v3429 = vcvt.s32.f32 %v2277
        %v3430 = vcvt.s32.f32 %v2278
        %v3431 = vcvt.s32.f32 %v2279
        %v3432 = vcvt.s32.f32 %v2280
        %v3433 = vcvt.s32.f32 %v2281
        %v3434 = vcvt.s32.f32 %v2282
        %v3435 = vcvt.s32.f32 %v2283
        %v3436 = vcvt.s32.f32 %v2284
        %v3437 = vcvt.s32.f32 %v2285
        %v3438 = vcvt.s32.f32 %v2286
        %v3439 = vcvt.s32.f32 %v2287
        %v3440 = vcvt.s32.f32 %v2288
        %v3441 = vcvt.s32.f32 %v2289
        %v3442 = vcvt.s32.f32 %v2290
        %v3443 = vcvt.s32.f32 %v2291
        %v3444 = vcvt.s32.f32 %v2292
        %v3445 = vcvt.s32.f32 %v2293
        %v3446 = vcvt.s32.f32 %v2294
        %v3447 = vcvt.s32.f32 %v2295
        %v3448 = vcvt.s32.f32 %v2296
        %v3449 = vcvt.s32.f32 %v2297
        %v3450 = vcvt.s32.f32 %v2298
        %v3451 = vcvt.s32.f32 %v2299
        %v3452 = vcvt.s32.f32 %v2300
        %v3453 = vcvt.s32.f32 %v2301
        %v3454 = vcvt.s32.f32 %v2302
        %v3455 = vcvt.s32.f32 %v2303
        %v3456 = vcvt.s32.f32 %v2304
        %v3457 = vcvt.s32.f32 %v2305
        %v3458 = vcvt.s32.f32 %v2306
        %v3459 = vcvt.s32.f32 %v2307
        %v3460 = vcvt.s32.f32 %v2308
        %v3461 = vcvt.s32.f32 %v2309
        %v3462 = vcvt.s32.f32 %v2310
        %v3463 = vcvt.s32.f32 %v2311
        %v3464 = vcvt.s32.f32 %v2312
        %v3465 = vcvt.s32.f32 %v2313
        %v3466 = vcvt.s32.f32 %v2314
        %v3467 = vcvt.s32.f32 %v2315
        %v3468 = vcvt.s32.f32 %v2316
        %v3469 = vcvt.s32.f32 %v2317
        %v3470 = vcvt.s32.f32 %v2318
        %v3471 = vcvt.s32.f32 %v2319
        %v3472 = vcvt.s32.f32 %v2320
        %v3473 = vcvt.s32.f32 %v2321
        %v3474 = vcvt.s32.f32 %v2322
        %v3475 = vcvt.s32.f32 %v2323
        %v3476 = vcvt.s32.f32 %v2324
        %v3477 = vcvt.s32.f32 %v2325
        %v3478 = vcvt.s32.f32 %v2326
        %v3479 = vcvt.s32.f32 %v2327
        %v3480 = vcvt.s32.f32 %v2328
        %v3481 = vcvt.s32.f32 %v2329
        %v3482 = vcvt.s32.f32 %v2330
        %v3483 = vcvt.s32.f32 %v2331
        %v3484 = vcvt.s32.f32 %v2332
        %v3485 = vcvt.s32.f32 %v2333
        %v3486 = vcvt.s32.f32 %v2334
        %v3487 = vcvt.s32.f32 %v2335
        %v3488 = vcvt.s32.f32 %v2336
        %v3489 = vcvt.s32.f32 %v2337
        %v3490 = vcvt.s32.f32 %v2338
        %v3491 = vcvt.s32.f32 %v2339
        %v3492 = vcvt.s32.f32 %v2340
        %v3493 = vcvt.s32.f32 %v2341
        %v3494 = vcvt.s32.f32 %v2342
        %v3495 = vcvt.s32.f32 %v2343
        %v3496 = vcvt.s32.f32 %v2344
        %v3497 = vcvt.s32.f32 %v2345
        %v3498 = vcvt.s32.f32 %v2346
        %v3499 = vcvt.s32.f32 %v2347
        %v3500 = vcvt.s32.f32 %v2348
        %v3501 = vcvt.s32.f32 %v2349
        %v3502 = vcvt.s32.f32 %v2350
        %v3503 = vcvt.s32.f32 %v2351
        %v3504 = vcvt.s32.f32 %v2352
        %v3505 = vcvt.s32.f32 %v2353
        %v3506 = vcvt.s32.f32 %v2354
        %v3507 = vcvt.s32.f32 %v2355
        %v3508 = vcvt.s32.f32 %v2356
        %v3509 = vcvt.s32.f32 %v2357
        %v3510 = vcvt.s32.f32 %v2358
        %v3511 = vcvt.s32.f32 %v2359
        %v3512 = vcvt.s32.f32 %v2360
        %v3513 = vcvt.s32.f32 %v2361
        %v3514 = vcvt.s32.f32 %v2362
        %v3515 = vcvt.s32.f32 %v2363
        %v3516 = vcvt.s32.f32 %v2364
        %v3517 = vcvt.s32.f32 %v2365
        %v3518 = vcvt.s32.f32 %v2366
        %v3519 = vcvt.s32.f32 %v2367
        %v3520 = vcvt.s32.f32 %v2368
        %v3521 = vcvt.s32.f32 %v2369
        %v3522 = vcvt.s32.f32 %v2370
        %v3523 = vcvt.s32.f32 %v2371
        %v3524 = vcvt.s32.f32 %v2372
        %v3525 = vcvt.s32.f32 %v2373
        %v3526 = vcvt.s32.f32 %v2374
        %v3527 = vcvt.s32.f32 %v2375
        %v3528 = vcvt.s32.f32 %v2376
        %v3529 = vcvt.s32.f32 %v2377
        %v3530 = vcvt.s32.f32 %v2378
        %v3531 = vcvt.s32.f32 %v2379
        %v3532 = vcvt.s32.f32 %v2380
        %v3533 = vcvt.s32.f32 %v2381
        %v3534 = vcvt.s32.f32 %v2382
        %v3535 = vcvt.s32.f32 %v2383
        %v3536 = vcvt.s32.f32 %v2384
        %v3537 = vcvt.s32.f32 %v2385
        %v3538 = vcvt.s32.f32 %v2386
        %v3539 = vcvt.s32.f32 %v2387
        %v3540 = vcvt.s32.f32 %v2388
        %v3541 = vcvt.s32.f32 %v2389
        %v3542 = vcvt.s32.f32 %v2390
        %v3543 = vcvt.s32.f32 %v2391
        %v3544 = vcvt.s32.f32 %v2392
        %v3545 = vcvt.s32.f32 %v2393
        %v3546 = vcvt.s32.f32 %v2394
        %v3547 = vcvt.s32.f32 %v2395
        %v3548 = vcvt.s32.f32 %v2396
        %v3549 = vcvt.s32.f32 %v2397
        %v3550 = vcvt.s32.f32 %v2398
        %v3551 = vcvt.s32.f32 %v2399
        %v3552 = vcvt.s32.f32 %v2400
        %v3553 = vcvt.s32.f32 %v2401
        %v3554 = vcvt.s32.f32 %v2402
        %v3555 = vcvt.s32.f32 %v2403
        %v3556 = vcvt.s32.f32 %v2404
        %v3557 = vcvt.s32.f32 %v2405
        %v3558 = vcvt.s32.f32 %v2406
        %v3559 = vcvt.s32.f32 %v2407
        %v3560 = vcvt.s32.f32 %v2408
        %v3561 = vcvt.s32.f32 %v2409
        %v3562 = vcvt.s32.f32 %v2410
        %v3563 = vcvt.s32.f32 %v2411
        %v3564 = vcvt.s32.f32 %v2412
        %v3565 = vcvt.s32.f32 %v2413
        %v3566 = vcvt.s32.f32 %v2414
        %v3567 = vcvt.s32.f32 %v2415
        %v3568 = vcvt.s32.f32 %v2416
        %v3569 = vcvt.s32.f32 %v2417
        %v3570 = vcvt.s32.f32 %v2418
        %v3571 = vcvt.s32.f32 %v2419
        %v3572 = vcvt.s32.f32 %v2420
        %v3573 = vcvt.s32.f32 %v2421
        %v3574 = vcvt.s32.f32 %v2422
        %v3575 = vcvt.s32.f32 %v2423
        %v3576 = vcvt.s32.f32 %v2424
        %v3577 = vcvt.s32.f32 %v2425
        %v3578 = vcvt.s32.f32 %v2426
        %v3579 = vcvt.s32.f32 %v2427
        %v3580 = vcvt.s32.f32 %v2428
        %v3581 = vcvt.s32.f32 %v2429
        %v3582 = vcvt.s32.f32 %v2430
        %v3583 = vcvt.s32.f32 %v2431
        %v3584 = vcvt.s32.f32 %v2432
        %v3585 = vcvt.s32.f32 %v2433
        %v3586 = vcvt.s32.f32 %v2434
        %v3587 = vcvt.s32.f32 %v2435
        %v3588 = vcvt.s32.f32 %v2436
        %v3589 = vcvt.s32.f32 %v2437
        %v3590 = vcvt.s32.f32 %v2438
        %v3591 = vcvt.s32.f32 %v2439
        %v3592 = vcvt.s32.f32 %v2440
        %v3593 = vcvt.s32.f32 %v2441
        %v3594 = vcvt.s32.f32 %v2442
        %v3595 = vcvt.s32.f32 %v2443
        %v3596 = vcvt.s32.f32 %v2444
        %v3597 = vcvt.s32.f32 %v2445
        %v3598 = vcvt.s32.f32 %v2446
        %v3599 = vcvt.s32.f32 %v2447
        %v3600 = vcvt.s32.f32 %v2448
        %v3601 = vcvt.s32.f32 %v2449
        %v3602 = vcvt.s32.f32 %v2450
        %v3603 = vcvt.s32.f32 %v2451
        %v3604 = vcvt.s32.f32 %v2452
        %v3605 = vcvt.s32.f32 %v2453
        %v3606 = vcvt.s32.f32 %v2454
        %v3607 = vcvt.s32.f32 %v2455
        %v3608 = vcvt.s32.f32 %v2456
        %v3609 = vcvt.s32.f32 %v2457
        %v3610 = vcvt.s32.f32 %v2458
        %v3611 = vcvt.s32.f32 %v2459
        %v3612 = vcvt.s32.f32 %v2460
        %v3613 = vcvt.s32.f32 %v2461
        %v3614 = vcvt.s32.f32 %v2462
        %v3615 = vcvt.s32.f32 %v2463
        %v3616 = vcvt.s32.f32 %v2464
        %v3617 = vcvt.s32.f32 %v2465
        %v3618 = vcvt.s32.f32 %v2466
        %v3619 = vcvt.s32.f32 %v2467
        %v3620 = vcvt.s32.f32 %v2468
        %v3621 = vcvt.s32.f32 %v2469
        %v3622 = vcvt.s32.f32 %v2470
        %v3623 = vcvt.s32.f32 %v2471
        %v3624 = vcvt.s32.f32 %v2472
        %v3625 = vcvt.s32.f32 %v2473
        %v3626 = vcvt.s32.f32 %v2474
        %v3627 = vcvt.s32.f32 %v2475
        %v3628 = vcvt.s32.f32 %v2476
        %v3629 = vcvt.s32.f32 %v2477
        %v3630 = vcvt.s32.f32 %v2478
        %v3631 = vcvt.s32.f32 %v2479
        %v3632 = vcvt.s32.f32 %v2480
        %v3633 = vcvt.s32.f32 %v2481
        %v3634 = vcvt.s32.f32 %v2482
        %v3635 = vcvt.s32.f32 %v2483
        %v3636 = vcvt.s32.f32 %v2484
        %v3637 = vcvt.s32.f32 %v2485
        %v3638 = vcvt.s32.f32 %v2486
        %v3639 = vcvt.s32.f32 %v2487
        %v3640 = vcvt.s32.f32 %v2488
        %v3641 = vcvt.s32.f32 %v2489
        %v3642 = vcvt.s32.f32 %v2490
        %v3643 = vcvt.s32.f32 %v2491
        %v3644 = vcvt.s32.f32 %v2492
        %v3645 = vcvt.s32.f32 %v2493
        %v3646 = vcvt.s32.f32 %v2494
        %v3647 = vcvt.s32.f32 %v2495
        %v3648 = vcvt.s32.f32 %v2496
        %v3649 = vcvt.s32.f32 %v2497
        %v3650 = vcvt.s32.f32 %v2498
        %v3651 = vcvt.s32.f32 %v2499
        %v3652 = vcvt.s32.f32 %v2500
        %v3653 = vcvt.s32.f32 %v2501
        %v3654 = vcvt.s32.f32 %v2502
        %v3655 = vcvt.s32.f32 %v2503
        %v3656 = vcvt.s32.f32 %v2504
        %v3657 = vcvt.s32.f32 %v2505
        %v3658 = vcvt.s32.f32 %v2506
        %v3659 = vcvt.s32.f32 %v2507
        %v3660 = vcvt.s32.f32 %v2508
        %v3661 = vcvt.s32.f32 %v2509
        %v3662 = vcvt.s32.f32 %v2510
        %v3663 = vcvt.s32.f32 %v2511
        %v3664 = vcvt.s32.f32 %v2512
        %v3665 = vcvt.s32.f32 %v2513
        %v3666 = vcvt.s32.f32 %v2514
        %v3667 = vcvt.s32.f32 %v2515
        %v3668 = vcvt.s32.f32 %v2516
        %v3669 = vcvt.s32.f32 %v2517
        %v3670 = vcvt.s32.f32 %v2518
        %v3671 = vcvt.s32.f32 %v2519
        %v3672 = vcvt.s32.f32 %v2520
        %v3673 = vcvt.s32.f32 %v2521
        %v3674 = vcvt.s32.f32 %v2522
        %v3675 = vcvt.s32.f32 %v2523
        %v3676 = vcvt.s32.f32 %v2524
        %v3677 = vcvt.s32.f32 %v2525
        %v3678 = vcvt.s32.f32 %v2526
        %v3679 = vcvt.s32.f32 %v2527
        %v3680 = vcvt.s32.f32 %v2528
        %v3681 = vcvt.s32.f32 %v2529
        %v3682 = vcvt.s32.f32 %v2530
        %v3683 = vcvt.s32.f32 %v2531
        %v3684 = vcvt.s32.f32 %v2532
        %v3685 = vcvt.s32.f32 %v2533
        %v3686 = vcvt.s32.f32 %v2534
        %v3687 = vcvt.s32.f32 %v2535
        %v3688 = vcvt.s32.f32 %v2536
        %v3689 = vcvt.s32.f32 %v2537
        %v3690 = vcvt.s32.f32 %v2538
        %v3691 = vcvt.s32.f32 %v2539
        %v3692 = vcvt.s32.f32 %v2540
        %v3693 = vcvt.s32.f32 %v2541
        %v3694 = vcvt.s32.f32 %v2542
        %v3695 = vcvt.s32.f32 %v2543
        %v3696 = vcvt.s32.f32 %v2544
        %v3697 = vcvt.s32.f32 %v2545
        %v3698 = vcvt.s32.f32 %v2546
        %v3699 = vcvt.s32.f32 %v2547
        %v3700 = vcvt.s32.f32 %v2548
        %v3701 = vcvt.s32.f32 %v2549
        %v3702 = vcvt.s32.f32 %v2550
        %v3703 = vcvt.s32.f32 %v2551
        %v3704 = vcvt.s32.f32 %v2552
        %v3705 = vcvt.s32.f32 %v2553
        %v3706 = vcvt.s32.f32 %v2554
        %v3707 = vcvt.s32.f32 %v2555
        %v3708 = vcvt.s32.f32 %v2556
        %v3709 = vcvt.s32.f32 %v2557
        %v3710 = vcvt.s32.f32 %v2558
        %v3711 = vcvt.s32.f32 %v2559
        %v3712 = vcvt.s32.f32 %v2560
        %v3713 = vcvt.s32.f32 %v2561
        %v3714 = vcvt.s32.f32 %v2562
        %v3715 = vcvt.s32.f32 %v2563
        %v3716 = vcvt.s32.f32 %v2564
        %v3717 = vcvt.s32.f32 %v2565
        %v3718 = vcvt.s32.f32 %v2566
        %v3719 = vcvt.s32.f32 %v2567
        %v3720 = vcvt.s32.f32 %v2568
        %v3721 = vcvt.s32.f32 %v2569
        %v3722 = vcvt.s32.f32 %v2570
        %v3723 = vcvt.s32.f32 %v2571
        %v3724 = vcvt.s32.f32 %v2572
        %v3725 = vcvt.s32.f32 %v2573
        %v3726 = vcvt.s32.f32 %v2574
        %v3727 = vcvt.s32.f32 %v2575
        %v3728 = vcvt.s32.f32 %v2576
        %v3729 = vcvt.s32.f32 %v2577
        %v3730 = vcvt.s32.f32 %v2578
        %v3731 = vcvt.s32.f32 %v2579
        %v3732 = vcvt.s32.f32 %v2580
        %v3733 = vcvt.s32.f32 %v2581
        %v3734 = vcvt.s32.f32 %v2582
        %v3735 = vcvt.s32.f32 %v2583
        %v3736 = vcvt.s32.f32 %v2584
        %v3737 = vcvt.s32.f32 %v2585
        %v3738 = vcvt.s32.f32 %v2586
        %v3739 = vcvt.s32.f32 %v2587
        %v3740 = vcvt.s32.f32 %v2588
        %v3741 = vcvt.s32.f32 %v2589
        %v3742 = vcvt.s32.f32 %v2590
        %v3743 = vcvt.s32.f32 %v2591
        %v3744 = vcvt.s32.f32 %v2592
        %v3745 = vcvt.s32.f32 %v2593
        %v3746 = vcvt.s32.f32 %v2594
        %v3747 = vcvt.s32.f32 %v2595
        %v3748 = vcvt.s32.f32 %v2596
        %v3749 = vcvt.s32.f32 %v2597
        %v3750 = vcvt.s32.f32 %v2598
        %v3751 = vcvt.s32.f32 %v2599
        %v3752 = vcvt.s32.f32 %v2600
        %v3753 = vcvt.s32.f32 %v2601
        %v3754 = vcvt.s32.f32 %v2602
        %v3755 = vcvt.s32.f32 %v2603
        %v3756 = vcvt.s32.f32 %v2604
        %v3757 = vcvt.s32.f32 %v2605
        %v3758 = vcvt.s32.f32 %v2606
        %v3759 = vcvt.s32.f32 %v2607
        %v3760 = vcvt.s32.f32 %v2608
        %v3761 = vcvt.s32.f32 %v2609
        %v3762 = vcvt.s32.f32 %v2610
        %v3763 = vcvt.s32.f32 %v2611
        %v3764 = vcvt.s32.f32 %v2612
        %v3765 = vcvt.s32.f32 %v2613
        %v3766 = vcvt.s32.f32 %v2614
        %v3767 = vcvt.s32.f32 %v2615
        %v3768 = vcvt.s32.f32 %v2616
        %v3769 = vcvt.s32.f32 %v2617
        %v3770 = vcvt.s32.f32 %v2618
        %v3771 = vcvt.s32.f32 %v2619
        %v3772 = vcvt.s32.f32 %v2620
        %v3773 = vcvt.s32.f32 %v2621
        %v3774 = vcvt.s32.f32 %v2622
        %v3775 = vcvt.s32.f32 %v2623
        %v3776 = vcvt.s32.f32 %v2624
        %v3777 = vcvt.s32.f32 %v2625
        %v3778 = vcvt.s32.f32 %v2626
        %v3779 = vcvt.s32.f32 %v2627
        %v3780 = vcvt.s32.f32 %v2628
        %v3781 = vcvt.s32.f32 %v2629
        %v3782 = vcvt.s32.f32 %v2630
        %v3783 = vcvt.s32.f32 %v2631
        %v3784 = vcvt.s32.f32 %v2632
        %v3785 = vcvt.s32.f32 %v2633
        %v3786 = vcvt.s32.f32 %v2634
        %v3787 = vcvt.s32.f32 %v2635
        %v3788 = vcvt.s32.f32 %v2636
        %v3789 = vcvt.s32.f32 %v2637
        %v3790 = vcvt.s32.f32 %v2638
        %v3791 = vcvt.s32.f32 %v2639
        %v3792 = vcvt.s32.f32 %v2640
        %v3793 = vcvt.s32.f32 %v2641
        %v3794 = vcvt.s32.f32 %v2642
        %v3795 = vcvt.s32.f32 %v2643
        %v3796 = vcvt.s32.f32 %v2644
        %v3797 = vcvt.s32.f32 %v2645
        %v3798 = vcvt.s32.f32 %v2646
        %v3799 = vcvt.s32.f32 %v2647
        %v3800 = vcvt.s32.f32 %v2648
        %v3801 = vcvt.s32.f32 %v2649
        %v3802 = vcvt.s32.f32 %v2650
        %v3803 = vcvt.s32.f32 %v2651
        %v3804 = vcvt.s32.f32 %v2652
        %v3805 = vcvt.s32.f32 %v2653
        %v3806 = vcvt.s32.f32 %v2654
        %v3807 = vcvt.s32.f32 %v2655
        %v3808 = vcvt.s32.f32 %v2656
        %v3809 = vcvt.s32.f32 %v2657
        %v3810 = vcvt.s32.f32 %v2658
        %v3811 = vcvt.s32.f32 %v2659
        %v3812 = vcvt.s32.f32 %v2660
        %v3813 = vcvt.s32.f32 %v2661
        %v3814 = vcvt.s32.f32 %v2662
        %v3815 = vcvt.s32.f32 %v2663
        %v3816 = vcvt.s32.f32 %v2664
        %v3817 = vcvt.s32.f32 %v2665
        %v3818 = vcvt.s32.f32 %v2666
        %v3819 = vcvt.s32.f32 %v2667
        %v3820 = vcvt.s32.f32 %v2668
        %v3821 = vcvt.s32.f32 %v2669
        %v3822 = vcvt.s32.f32 %v2670
        %v3823 = vcvt.s32.f32 %v2671
        %v3824 = vcvt.s32.f32 %v2672
        %v3825 = vcvt.s32.f32 %v2673
        %v3826 = vcvt.s32.f32 %v2674
        %v3827 = vcvt.s32.f32 %v2675
        %v3828 = vcvt.s32.f32 %v2676
        %v3829 = vcvt.s32.f32 %v2677
        %v3830 = vcvt.s32.f32 %v2678
        %v3831 = vcvt.s32.f32 %v2679
        %v3832 = vcvt.s32.f32 %v2680
        %v3833 = vcvt.s32.f32 %v2681
        %v3834 = vcvt.s32.f32 %v2682
        %v3835 = vcvt.s32.f32 %v2683
        %v3836 = vcvt.s32.f32 %v2684
        %v3837 = vcvt.s32.f32 %v2685
        %v3838 = vcvt.s32.f32 %v2686
        %v3839 = vcvt.s32.f32 %v2687
        %v3840 = vcvt.s32.f32 %v2688
        %v3841 = vcvt.s32.f32 %v2689
        %v3842 = vcvt.s32.f32 %v2690
        %v3843 = vcvt.s32.f32 %v2691
        %v3844 = vcvt.s32.f32 %v2692
        %v3845 = vcvt.s32.f32 %v2693
        %v3846 = vcvt.s32.f32 %v2694
        %v3847 = vcvt.s32.f32 %v2695
        %v3848 = vcvt.s32.f32 %v2696
        %v3849 = vcvt.s32.f32 %v2697
        %v3850 = vcvt.s32.f32 %v2698
        %v3851 = vcvt.s32.f32 %v2699
        %v3852 = vcvt.s32.f32 %v2700
        %v3853 = vcvt.s32.f32 %v2701
        %v3854 = vcvt.s32.f32 %v2702
        %v3855 = vcvt.s32.f32 %v2703
        %v3856 = vcvt.s32.f32 %v2704
        %v3857 = vcvt.s32.f32 %v2705
        %v3858 = vcvt.s32.f32 %v2706
        %v3859 = vcvt.s32.f32 %v2707
        %v3860 = vcvt.s32.f32 %v2708
        %v3861 = vcvt.s32.f32 %v2709
        %v3862 = vcvt.s32.f32 %v2710
        %v3863 = vcvt.s32.f32 %v2711
        %v3864 = vcvt.s32.f32 %v2712
        %v3865 = vcvt.s32.f32 %v2713
        %v3866 = vcvt.s32.f32 %v2714
        %v3867 = vcvt.s32.f32 %v2715
        %v3868 = vcvt.s32.f32 %v2716
        %v3869 = vcvt.s32.f32 %v2717
        %v3870 = vcvt.s32.f32 %v2718
        %v3871 = vcvt.s32.f32 %v2719
        %v3872 = vcvt.s32.f32 %v2720
        %v3873 = vcvt.s32.f32 %v2721
        %v3874 = vcvt.s32.f32 %v2722
        %v3875 = vcvt.s32.f32 %v2723
        %v3876 = vcvt.s32.f32 %v2724
        %v3877 = vcvt.s32.f32 %v2725
        %v3878 = vcvt.s32.f32 %v2726
        %v3879 = vcvt.s32.f32 %v2727
        %v3880 = vcvt.s32.f32 %v2728
        %v3881 = vcvt.s32.f32 %v2729
        %v3882 = vcvt.s32.f32 %v2730
        %v3883 = vcvt.s32.f32 %v2731
        %v3884 = vcvt.s32.f32 %v2732
        %v3885 = vcvt.s32.f32 %v2733
        %v3886 = vcvt.s32.f32 %v2734
        %v3887 = vcvt.s32.f32 %v2735
        %v3888 = vcvt.s32.f32 %v2736
        %v3889 = vcvt.s32.f32 %v2737
        %v3890 = vcvt.s32.f32 %v2738
        %v3891 = vcvt.s32.f32 %v2739
        %v3892 = vcvt.s32.f32 %v2740
        %v3893 = vcvt.s32.f32 %v2741
        %v3894 = vcvt.s32.f32 %v2742
        %v3895 = vcvt.s32.f32 %v2743
        %v3896 = vcvt.s32.f32 %v2744
        %v3897 = vcvt.s32.f32 %v2745
        %v3898 = vcvt.s32.f32 %v2746
        %v3899 = vcvt.s32.f32 %v2747
        %v3900 = vcvt.s32.f32 %v2748
        %v3901 = vcvt.s32.f32 %v2749
        %v3902 = vcvt.s32.f32 %v2750
        %v3903 = vcvt.s32.f32 %v2751
        %v3904 = vcvt.s32.f32 %v2752
        %v3905 = vcvt.s32.f32 %v2753
        %v3906 = vcvt.s32.f32 %v2754
        %v3907 = vcvt.s32.f32 %v2755
        %v3908 = vcvt.s32.f32 %v2756
        %v3909 = vcvt.s32.f32 %v2757
        %v3910 = vcvt.s32.f32 %v2758
        %v3911 = vcvt.s32.f32 %v2759
        %v3912 = vcvt.s32.f32 %v2760
        %v3913 = vcvt.s32.f32 %v2761
        %v3914 = vcvt.s32.f32 %v2762
        %v3915 = vcvt.s32.f32 %v2763
        %v3916 = vcvt.s32.f32 %v2764
        %v3917 = vcvt.s32.f32 %v2765
        %v3918 = vcvt.s32.f32 %v2766
        %v3919 = vcvt.s32.f32 %v2767
        %v3920 = vcvt.s32.f32 %v2768
        %v3921 = vcvt.s32.f32 %v2769
        %v3922 = vcvt.s32.f32 %v2770
        %v3923 = vcvt.s32.f32 %v2771
        %v3924 = vcvt.s32.f32 %v2772
        %v3925 = vcvt.s32.f32 %v2773
        %v3926 = vcvt.s32.f32 %v2774
        %v3927 = vcvt.s32.f32 %v2775
        %v3928 = vcvt.s32.f32 %v2776
        %v3929 = vcvt.s32.f32 %v2777
        %v3930 = vcvt.s32.f32 %v2778
        %v3931 = vcvt.s32.f32 %v2779
        %v3932 = vcvt.s32.f32 %v2780
        %v3933 = vcvt.s32.f32 %v2781
        %v3934 = vcvt.s32.f32 %v2782
        %v3935 = vcvt.s32.f32 %v2783
        %v3936 = vcvt.s32.f32 %v2784
        %v3937 = vcvt.s32.f32 %v2785
        %v3938 = vcvt.s32.f32 %v2786
        %v3939 = vcvt.s32.f32 %v2787
        %v3940 = vcvt.s32.f32 %v2788
        %v3941 = vcvt.s32.f32 %v2789
        %v3942 = vcvt.s32.f32 %v2790
        %v3943 = vcvt.s32.f32 %v2791
        %v3944 = vcvt.s32.f32 %v2792
        %v3945 = vcvt.s32.f32 %v2793
        %v3946 = vcvt.s32.f32 %v2794
        %v3947 = vcvt.s32.f32 %v2795
        %v3948 = vcvt.s32.f32 %v2796
        %v3949 = vcvt.s32.f32 %v2797
        %v3950 = vcvt.s32.f32 %v2798
        %v3951 = vcvt.s32.f32 %v2799
        %v3952 = vcvt.s32.f32 %v2800
        %v3953 = vcvt.s32.f32 %v2801
        %v3954 = vcvt.s32.f32 %v2802
        %v3955 = vcvt.s32.f32 %v2803
        %v3956 = vcvt.s32.f32 %v2804
        %v3957 = vcvt.s32.f32 %v2805
        %v3958 = vcvt.s32.f32 %v2806
        %v3959 = vcvt.s32.f32 %v2807
        %v3960 = vcvt.s32.f32 %v2808
        %v3961 = vcvt.s32.f32 %v2809
        %v3962 = vcvt.s32.f32 %v2810
        %v3963 = vcvt.s32.f32 %v2811
        %v3964 = vcvt.s32.f32 %v2812
        %v3965 = vcvt.s32.f32 %v2813
        %v3966 = vcvt.s32.f32 %v2814
        %v3967 = vcvt.s32.f32 %v2815
        %v3968 = vcvt.s32.f32 %v2816
        %v3969 = vcvt.s32.f32 %v2817
        %v3970 = vcvt.s32.f32 %v2818
        %v3971 = vcvt.s32.f32 %v2819
        %v3972 = vcvt.s32.f32 %v2820
        %v3973 = vcvt.s32.f32 %v2821
        %v3974 = vcvt.s32.f32 %v2822
        %v3975 = vcvt.s32.f32 %v2823
        %v3976 = vcvt.s32.f32 %v2824
        %v3977 = vcvt.s32.f32 %v2825
        %v3978 = vcvt.s32.f32 %v2826
        %v3979 = vcvt.s32.f32 %v2827
        %v3980 = vcvt.s32.f32 %v2828
        %v3981 = vcvt.s32.f32 %v2829
        %v3982 = vcvt.s32.f32 %v2830
        %v3983 = vcvt.s32.f32 %v2831
        %v3984 = vcvt.s32.f32 %v2832
        %v3985 = vcvt.s32.f32 %v2833
        %v3986 = vcvt.s32.f32 %v2834
        %v3987 = vcvt.s32.f32 %v2835
        %v3988 = vcvt.s32.f32 %v2836
        %v3989 = vcvt.s32.f32 %v2837
        %v3990 = vcvt.s32.f32 %v2838
        %v3991 = vcvt.s32.f32 %v2839
        %v3992 = vcvt.s32.f32 %v2840
        %v3993 = vcvt.s32.f32 %v2841
        %v3994 = vcvt.s32.f32 %v2842
        %v3995 = vcvt.s32.f32 %v2843
        %v3996 = vcvt.s32.f32 %v2844
        %v3997 = vcvt.s32.f32 %v2845
        %v3998 = vcvt.s32.f32 %v2846
        %v3999 = vcvt.s32.f32 %v2847
        %v4000 = vcvt.s32.f32 %v2848
        %v4001 = vcvt.s32.f32 %v2849
        %v4002 = vcvt.s32.f32 %v2850
        %v4003 = vcvt.s32.f32 %v2851
        %v4004 = vcvt.s32.f32 %v2852
        %v4005 = vcvt.s32.f32 %v2853
        %v4006 = vcvt.s32.f32 %v2854
        %v4007 = vcvt.s32.f32 %v2855
        %v4008 = vcvt.s32.f32 %v2856
        %v4009 = vcvt.s32.f32 %v2857
        %v4010 = vcvt.s32.f32 %v2858
        %v4011 = vcvt.s32.f32 %v2859
        %v4012 = vcvt.s32.f32 %v2860
        %v4013 = vcvt.s32.f32 %v2861
        %v4014 = vcvt.s32.f32 %v2862
        %v4015 = vcvt.s32.f32 %v2863
        %v4016 = vcvt.s32.f32 %v2864
        %v4017 = vcvt.s32.f32 %v2865
        %v4018 = vcvt.s32.f32 %v2866
        %v4019 = vcvt.s32.f32 %v2867
        %v4020 = vcvt.s32.f32 %v2868
        %v4021 = vcvt.s32.f32 %v2869
        %v4022 = vcvt.s32.f32 %v2870
        %v4023 = vcvt.s32.f32 %v2871
        %v4024 = vcvt.s32.f32 %v2872
        %v4025 = vcvt.s32.f32 %v2873
        %v4026 = vcvt.s32.f32 %v2874
        %v4027 = vcvt.s32.f32 %v2875
        %v4028 = vcvt.s32.f32 %v2876
        %v4029 = vcvt.s32.f32 %v2877
        %v4030 = vcvt.s32.f32 %v2878
        %v4031 = vcvt.s32.f32 %v2879
        %v4032 = vcvt.s32.f32 %v2880
        %v4033 = vcvt.s32.f32 %v2881
        %v4034 = vcvt.s32.f32 %v2882
        %v4035 = vcvt.s32.f32 %v2883
        %v4036 = vcvt.s32.f32 %v2884
        %v4037 = vcvt.s32.f32 %v2885
        %v4038 = vcvt.s32.f32 %v2886
        %v4039 = vcvt.s32.f32 %v2887
        %v4040 = vcvt.s32.f32 %v2888
        %v4041 = vcvt.s32.f32 %v2889
        %v4042 = vcvt.s32.f32 %v2890
        %v4043 = vcvt.s32.f32 %v2891
        %v4044 = vcvt.s32.f32 %v2892
        %v4045 = vcvt.s32.f32 %v2893
        %v4046 = vcvt.s32.f32 %v2894
        %v4047 = vcvt.s32.f32 %v2895
        %v4048 = vcvt.s32.f32 %v2896
        %v4049 = vcvt.s32.f32 %v2897
        %v4050 = vcvt.s32.f32 %v2898
        %v4051 = vcvt.s32.f32 %v2899
        %v4052 = vcvt.s32.f32 %v2900
        %v4053 = vcvt.s32.f32 %v2901
        %v4054 = vcvt.s32.f32 %v2902
        %v4055 = vcvt.s32.f32 %v2903
        %v4056 = vcvt.s32.f32 %v2904
        %v4057 = vcvt.s32.f32 %v2905
        %v4058 = vcvt.s32.f32 %v2906
        %v4059 = vcvt.s32.f32 %v2907
        %v4060 = vcvt.s32.f32 %v2908
        %v4061 = vcvt.s32.f32 %v2909
        %v4062 = vcvt.s32.f32 %v2910
        %v4063 = vcvt.s32.f32 %v2911
        %v4064 = vcvt.s32.f32 %v2912
        %v4065 = vcvt.s32.f32 %v2913
        %v4066 = vcvt.s32.f32 %v2914
        %v4067 = vcvt.s32.f32 %v2915
        %v4068 = vcvt.s32.f32 %v2916
        %v4069 = vcvt.s32.f32 %v2917
        %v4070 = vcvt.s32.f32 %v2918
        %v4071 = vcvt.s32.f32 %v2919
        %v4072 = vcvt.s32.f32 %v2920
        %v4073 = vcvt.s32.f32 %v2921
        %v4074 = vcvt.s32.f32 %v2922
        %v4075 = vcvt.s32.f32 %v2923
        %v4076 = vcvt.s32.f32 %v2924
        %v4077 = vcvt.s32.f32 %v2925
        %v4078 = vcvt.s32.f32 %v2926
        %v4079 = vcvt.s32.f32 %v2927
        %v4080 = vcvt.s32.f32 %v2928
        %v4081 = vcvt.s32.f32 %v2929
        %v4082 = vcvt.s32.f32 %v2930
        %v4083 = vcvt.s32.f32 %v2931
        %v4084 = vcvt.s32.f32 %v2932
        %v4085 = vcvt.s32.f32 %v2933
        %v4086 = vcvt.s32.f32 %v2934
        %v4087 = vcvt.s32.f32 %v2935
        %v4088 = vcvt.s32.f32 %v2936
        %v4089 = vcvt.s32.f32 %v2937
        %v4090 = vcvt.s32.f32 %v2938
        %v4091 = vcvt.s32.f32 %v2939
        %v4092 = vcvt.s32.f32 %v2940
        %v4093 = vcvt.s32.f32 %v2941
        %v4094 = vcvt.s32.f32 %v2942
        %v4095 = vcvt.s32.f32 %v2943
        %v4096 = vcvt.s32.f32 %v2944
        %v4097 = vcvt.s32.f32 %v2945
        %v4098 = vcvt.s32.f32 %v2946
        %v4099 = vcvt.s32.f32 %v2947
        %v4100 = vcvt.s32.f32 %v2948
        %v4101 = vcvt.s32.f32 %v2949
        %v4102 = vcvt.s32.f32 %v2950
        %v4103 = vcvt.s32.f32 %v2951
        %v4104 = vcvt.s32.f32 %v2952
        %v4105 = vcvt.s32.f32 %v2953
        %v4106 = vcvt.s32.f32 %v2954
        %v4107 = vcvt.s32.f32 %v2955
        %v4108 = vcvt.s32.f32 %v2956
        %v4109 = vcvt.s32.f32 %v2957
        %v4110 = vcvt.s32.f32 %v2958
        %v4111 = vcvt.s32.f32 %v2959
        %v4112 = vcvt.s32.f32 %v2960
        %v4113 = vcvt.s32.f32 %v2961
        %v4114 = vcvt.s32.f32 %v2962
        %v4115 = vcvt.s32.f32 %v2963
        %v4116 = vcvt.s32.f32 %v2964
        %v4117 = vcvt.s32.f32 %v2965
        %v4118 = vcvt.s32.f32 %v2966
        %v4119 = vcvt.s32.f32 %v2967
        %v4120 = vcvt.s32.f32 %v2968
        %v4121 = vcvt.s32.f32 %v2969
        %v4122 = vcvt.s32.f32 %v2970
        %v4123 = vcvt.s32.f32 %v2971
        %v4124 = vcvt.s32.f32 %v2972
        %v4125 = vcvt.s32.f32 %v2973
        %v4126 = vcvt.s32.f32 %v2974
        %v4127 = vcvt.s32.f32 %v2975
        %v4128 = vcvt.s32.f32 %v2976
        %v4129 = vcvt.s32.f32 %v2977
        %v4130 = vcvt.s32.f32 %v2978
        %v4131 = vcvt.s32.f32 %v2979
        %v4132 = vcvt.s32.f32 %v2980
        %v4133 = vcvt.s32.f32 %v2981
        %v4134 = vcvt.s32.f32 %v2982
        %v4135 = vcvt.s32.f32 %v2983
        %v4136 = vcvt.s32.f32 %v2984
        %v4137 = vcvt.s32.f32 %v2985
        %v4138 = vcvt.s32.f32 %v2986
        %v4139 = vcvt.s32.f32 %v2987
        %v4140 = vcvt.s32.f32 %v2988
        %v4141 = vcvt.s32.f32 %v2989
        %v4142 = vcvt.s32.f32 %v2990
        %v4143 = vcvt.s32.f32 %v2991
        %v4144 = vcvt.s32.f32 %v2992
        %v4145 = vcvt.s32.f32 %v2993
        %v4146 = vcvt.s32.f32 %v2994
        %v4147 = vcvt.s32.f32 %v2995
        %v4148 = vcvt.s32.f32 %v2996
        %v4149 = vcvt.s32.f32 %v2997
        %v4150 = vcvt.s32.f32 %v2998
        %v4151 = vcvt.s32.f32 %v2999
        %v4152 = vcvt.s32.f32 %v3000
        %v4153 = vcvt.s32.f32 %v3001
        %v4154 = vcvt.s32.f32 %v3002
        %v4155 = vcvt.s32.f32 %v3003
        %v4156 = vcvt.s32.f32 %v3004
        %v4157 = vcvt.s32.f32 %v3005
        %v4158 = vcvt.s32.f32 %v3006
        %v4159 = vcvt.s32.f32 %v3007
        %v4160 = vcvt.s32.f32 %v3008
        %v4161 = vcvt.s32.f32 %v3009
        %v4162 = vcvt.s32.f32 %v3010
        %v4163 = vcvt.s32.f32 %v3011
        %v4164 = vcvt.s32.f32 %v3012
        %v4165 = vcvt.s32.f32 %v3013
        %v4166 = vcvt.s32.f32 %v3014
        %v4167 = vcvt.s32.f32 %v3015
        %v4168 = vcvt.s32.f32 %v3016
        %v4169 = vcvt.s32.f32 %v3017
        %v4170 = vcvt.s32.f32 %v3018
        %v4171 = vcvt.s32.f32 %v3019
        %v4172 = vcvt.s32.f32 %v3020
        %v4173 = vcvt.s32.f32 %v3021
        %v4174 = vcvt.s32.f32 %v3022
        %v4175 = vcvt.s32.f32 %v3023
        %v4176 = vcvt.s32.f32 %v3024
        %v4177 = vcvt.s32.f32 %v3025
        %v4178 = vcvt.s32.f32 %v3026
        %v4179 = vcvt.s32.f32 %v3027
        %v4180 = vcvt.s32.f32 %v3028
        %v4181 = vcvt.s32.f32 %v3029
        %v4182 = vcvt.s32.f32 %v3030
        %v4183 = vcvt.s32.f32 %v3031
        %v4184 = vcvt.s32.f32 %v3032
        %v4185 = vcvt.s32.f32 %v3033
        %v4186 = vcvt.s32.f32 %v3034
        %v4187 = vcvt.s32.f32 %v3035
        %v4188 = vcvt.s32.f32 %v3036
        %v4189 = vcvt.s32.f32 %v3037
        %v4190 = vcvt.s32.f32 %v3038
        %v4191 = vcvt.s32.f32 %v3039
        %v4192 = vcvt.s32.f32 %v3040
        %v4193 = vcvt.s32.f32 %v3041
        %v4194 = vcvt.s32.f32 %v3042
        %v4195 = vcvt.s32.f32 %v3043
        %v4196 = vcvt.s32.f32 %v3044
        %v4197 = vcvt.s32.f32 %v3045
        %v4198 = vcvt.s32.f32 %v3046
        %v4199 = vcvt.s32.f32 %v3047
        %v4200 = vcvt.s32.f32 %v3048
        %v4201 = vcvt.s32.f32 %v3049
        %v4202 = vcvt.s32.f32 %v3050
        %v4203 = vcvt.s32.f32 %v3051
        %v4204 = vcvt.s32.f32 %v3052
        %v4205 = vcvt.s32.f32 %v3053
        %v4206 = vcvt.s32.f32 %v3054
        %v4207 = vcvt.s32.f32 %v3055
        %v4208 = vcvt.s32.f32 %v3056
        %v4209 = vcvt.s32.f32 %v3057
        %v4210 = vcvt.s32.f32 %v3058
        %v4211 = vcvt.s32.f32 %v3059
        %v4212 = vcvt.s32.f32 %v3060
        %v4213 = vcvt.s32.f32 %v3061
        %v4214 = vcvt.s32.f32 %v3062
        %v4215 = vcvt.s32.f32 %v3063
        %v4216 = vcvt.s32.f32 %v3064
        %v4217 = vcvt.s32.f32 %v3065
        %v4218 = vcvt.s32.f32 %v3066
        %v4219 = vcvt.s32.f32 %v3067
        %v4220 = vcvt.s32.f32 %v3068
        %v4221 = vcvt.s32.f32 %v3069
        %v4222 = vcvt.s32.f32 %v3070
        %v4223 = vcvt.s32.f32 %v3071
        %v4224 = vcvt.s32.f32 %v3072
        %v4225 = vcvt.s32.f32 %v3073
        %v4226 = vcvt.s32.f32 %v3074
        %v4227 = vcvt.s32.f32 %v3075
        %v4228 = vcvt.s32.f32 %v3076
        %v4229 = vcvt.s32.f32 %v3077
        %v4230 = vcvt.s32.f32 %v3078
        %v4231 = vcvt.s32.f32 %v3079
        %v4232 = vcvt.s32.f32 %v3080
        %v4233 = vcvt.s32.f32 %v3081
        %v4234 = vcvt.s32.f32 %v3082
        %v4235 = vcvt.s32.f32 %v3083
        %v4236 = vcvt.s32.f32 %v3084
        %v4237 = vcvt.s32.f32 %v3085
        %v4238 = vcvt.s32.f32 %v3086
        %v4239 = vcvt.s32.f32 %v3087
        %v4240 = vcvt.s32.f32 %v3088
        %v4241 = vcvt.s32.f32 %v3089
        %v4242 = vcvt.s32.f32 %v3090
        %v4243 = vcvt.s32.f32 %v3091
        %v4244 = vcvt.s32.f32 %v3092
        %v4245 = vcvt.s32.f32 %v3093
        %v4246 = vcvt.s32.f32 %v3094
        %v4247 = vcvt.s32.f32 %v3095
        %v4248 = vcvt.s32.f32 %v3096
        %v4249 = vcvt.s32.f32 %v3097
        %v4250 = vcvt.s32.f32 %v3098
        %v4251 = vcvt.s32.f32 %v3099
        %v4252 = vcvt.s32.f32 %v3100
        %v4253 = vcvt.s32.f32 %v3101
        %v4254 = vcvt.s32.f32 %v3102
        %v4255 = vcvt.s32.f32 %v3103
        %v4256 = vcvt.s32.f32 %v3104
        %v4257 = vcvt.s32.f32 %v3105
        %v4258 = vcvt.s32.f32 %v3106
        %v4259 = vcvt.s32.f32 %v3107
        %v4260 = vcvt.s32.f32 %v3108
        %v4261 = vcvt.s32.f32 %v3109
        %v4262 = vcvt.s32.f32 %v3110
        %v4263 = vcvt.s32.f32 %v3111
        %v4264 = vcvt.s32.f32 %v3112
        %v4265 = vcvt.s32.f32 %v3113
        %v4266 = vcvt.s32.f32 %v3114
        %v4267 = vcvt.s32.f32 %v3115
        %v4268 = vcvt.s32.f32 %v3116
        %v4269 = vcvt.s32.f32 %v3117
        %v4270 = vcvt.s32.f32 %v3118
        %v4271 = vcvt.s32.f32 %v3119
        %v4272 = vcvt.s32.f32 %v3120
        %v4273 = vcvt.s32.f32 %v3121
        %v4274 = vcvt.s32.f32 %v3122
        %v4275 = vcvt.s32.f32 %v3123
        %v4276 = vcvt.s32.f32 %v3124
        %v4277 = vcvt.s32.f32 %v3125
        %v4278 = vcvt.s32.f32 %v3126
        %v4279 = vcvt.s32.f32 %v3127
        %v4280 = vcvt.s32.f32 %v3128
        %v4281 = vcvt.s32.f32 %v3129
        %v4282 = vcvt.s32.f32 %v3130
        %v4283 = vcvt.s32.f32 %v3131
        %v4284 = vcvt.s32.f32 %v3132
        %v4285 = vcvt.s32.f32 %v3133
        %v4286 = vcvt.s32.f32 %v3134
        %v4287 = vcvt.s32.f32 %v3135
        %v4288 = vcvt.s32.f32 %v3136
        %v4289 = vcvt.s32.f32 %v3137
        %v4290 = vcvt.s32.f32 %v3138
        %v4291 = vcvt.s32.f32 %v3139
        %v4292 = vcvt.s32.f32 %v3140
        %v4293 = vcvt.s32.f32 %v3141
        %v4294 = vcvt.s32.f32 %v3142
        %v4295 = vcvt.s32.f32 %v3143
        %v4296 = vcvt.s32.f32 %v3144
        %v4297 = vcvt.s32.f32 %v3145
        %v4298 = vcvt.s32.f32 %v3146
        %v4299 = vcvt.s32.f32 %v3147
        %v4300 = vcvt.s32.f32 %v3148
        %v4301 = vcvt.s32.f32 %v3149
        %v4302 = vcvt.s32.f32 %v3150
        %v4303 = vcvt.s32.f32 %v3151
        %v4304 = vcvt.s32.f32 %v3152
        %v4305 = vcvt.s32.f32 %v3153
        %v4306 = vcvt.s32.f32 %v3154
        %v4307 = vcvt.s32.f32 %v3155
        %v4308 = vcvt.s32.f32 %v3156
        %v4309 = vcvt.s32.f32 %v3157
        %v4310 = vcvt.s32.f32 %v3158
        %v4311 = vcvt.s32.f32 %v3159
        %v4312 = vcvt.s32.f32 %v3160
        %v4313 = vcvt.s32.f32 %v3161
        %v4314 = vcvt.s32.f32 %v3162
        %v4315 = vcvt.s32.f32 %v3163
        %v4316 = vcvt.s32.f32 %v3164
        %v4317 = vcvt.s32.f32 %v3165
        %v4318 = vcvt.s32.f32 %v3166
        %v4319 = vcvt.s32.f32 %v3167
        %v4320 = vcvt.s32.f32 %v3168
        %v4321 = vcvt.s32.f32 %v3169
        %v4322 = vcvt.s32.f32 %v3170
        %v4323 = vcvt.s32.f32 %v3171
        %v4324 = vcvt.s32.f32 %v3172
        %v4325 = vcvt.s32.f32 %v3173
        %v4326 = vcvt.s32.f32 %v3174
        %v4327 = vcvt.s32.f32 %v3175
        %v4328 = vcvt.s32.f32 %v3176
        %v4329 = vcvt.s32.f32 %v3177
        %v4330 = vcvt.s32.f32 %v3178
        %v4331 = vcvt.s32.f32 %v3179
        %v4332 = vcvt.s32.f32 %v3180
        %v4333 = vcvt.s32.f32 %v3181
        %v4334 = vcvt.s32.f32 %v3182
        %v4335 = vcvt.s32.f32 %v3183
        %v4336 = vcvt.s32.f32 %v3184
        %v4337 = vcvt.s32.f32 %v3185
        %v4338 = vcvt.s32.f32 %v3186
        %v4339 = vcvt.s32.f32 %v3187
        %v4340 = vcvt.s32.f32 %v3188
        %v4341 = vcvt.s32.f32 %v3189
        %v4342 = vcvt.s32.f32 %v3190
        %v4343 = vcvt.s32.f32 %v3191
        %v4344 = vcvt.s32.f32 %v3192
        %v4345 = vcvt.s32.f32 %v3193
        %v4346 = vpack.c.bf16 %v3200, %v3194
        %v4347 = vpack.c.bf16 %v3201, %v3195
        %v4348 = vpack.c.bf16 %v3202, %v3196
        %v4349 = vpack.c.bf16 %v3203, %v3197
        %v4350 = vpack.c.bf16 %v3204, %v3198
        %v4351 = vpack.c.bf16 %v3205, %v3199
        %v4352 = vpack.c.bf16 %v3212, %v3206
        %v4353 = vpack.c.bf16 %v3213, %v3207
        %v4354 = vpack.c.bf16 %v3214, %v3208
        %v4355 = vpack.c.bf16 %v3215, %v3209
        %v4356 = vpack.c.bf16 %v3216, %v3210
        %v4357 = vpack.c.bf16 %v3217, %v3211
        %v4358 = vpack.c.bf16 %v3224, %v3218
        %v4359 = vpack.c.bf16 %v3225, %v3219
        %v4360 = vpack.c.bf16 %v3226, %v3220
        %v4361 = vpack.c.bf16 %v3227, %v3221
        %v4362 = vpack.c.bf16 %v3228, %v3222
        %v4363 = vpack.c.bf16 %v3229, %v3223
        %v4364 = vpack.c.bf16 %v3236, %v3230
        %v4365 = vpack.c.bf16 %v3237, %v3231
        %v4366 = vpack.c.bf16 %v3238, %v3232
        %v4367 = vpack.c.bf16 %v3239, %v3233
        %v4368 = vpack.c.bf16 %v3240, %v3234
        %v4369 = vpack.c.bf16 %v3241, %v3235
        %v4370 = vpack.c.bf16 %v3248, %v3242
        %v4371 = vpack.c.bf16 %v3249, %v3243
        %v4372 = vpack.c.bf16 %v3250, %v3244
        %v4373 = vpack.c.bf16 %v3251, %v3245
        %v4374 = vpack.c.bf16 %v3252, %v3246
        %v4375 = vpack.c.bf16 %v3253, %v3247
        %v4376 = vpack.c.bf16 %v3260, %v3254
        %v4377 = vpack.c.bf16 %v3261, %v3255
        %v4378 = vpack.c.bf16 %v3262, %v3256
        %v4379 = vpack.c.bf16 %v3263, %v3257
        %v4380 = vpack.c.bf16 %v3264, %v3258
        %v4381 = vpack.c.bf16 %v3265, %v3259
        %v4382 = vpack.c.bf16 %v3272, %v3266
        %v4383 = vpack.c.bf16 %v3273, %v3267
        %v4384 = vpack.c.bf16 %v3274, %v3268
        %v4385 = vpack.c.bf16 %v3275, %v3269
        %v4386 = vpack.c.bf16 %v3276, %v3270
        %v4387 = vpack.c.bf16 %v3277, %v3271
        %v4388 = vpack.c.bf16 %v3284, %v3278
        %v4389 = vpack.c.bf16 %v3285, %v3279
        %v4390 = vpack.c.bf16 %v3286, %v3280
        %v4391 = vpack.c.bf16 %v3287, %v3281
        %v4392 = vpack.c.bf16 %v3288, %v3282
        %v4393 = vpack.c.bf16 %v3289, %v3283
        %v4394 = vpack.c.bf16 %v3296, %v3290
        %v4395 = vpack.c.bf16 %v3297, %v3291
        %v4396 = vpack.c.bf16 %v3298, %v3292
        %v4397 = vpack.c.bf16 %v3299, %v3293
        %v4398 = vpack.c.bf16 %v3300, %v3294
        %v4399 = vpack.c.bf16 %v3301, %v3295
        %v4400 = vpack.c.bf16 %v3308, %v3302
        %v4401 = vpack.c.bf16 %v3309, %v3303
        %v4402 = vpack.c.bf16 %v3310, %v3304
        %v4403 = vpack.c.bf16 %v3311, %v3305
        %v4404 = vpack.c.bf16 %v3312, %v3306
        %v4405 = vpack.c.bf16 %v3313, %v3307
        %v4406 = vpack.c.bf16 %v3320, %v3314
        %v4407 = vpack.c.bf16 %v3321, %v3315
        %v4408 = vpack.c.bf16 %v3322, %v3316
        %v4409 = vpack.c.bf16 %v3323, %v3317
        %v4410 = vpack.c.bf16 %v3324, %v3318
        %v4411 = vpack.c.bf16 %v3325, %v3319
        %v4412 = vpack.c.bf16 %v3332, %v3326
        %v4413 = vpack.c.bf16 %v3333, %v3327
        %v4414 = vpack.c.bf16 %v3334, %v3328
        %v4415 = vpack.c.bf16 %v3335, %v3329
        %v4416 = vpack.c.bf16 %v3336, %v3330
        %v4417 = vpack.c.bf16 %v3337, %v3331
        %v4418 = vpack.c.bf16 %v3344, %v3338
        %v4419 = vpack.c.bf16 %v3345, %v3339
        %v4420 = vpack.c.bf16 %v3346, %v3340
        %v4421 = vpack.c.bf16 %v3347, %v3341
        %v4422 = vpack.c.bf16 %v3348, %v3342
        %v4423 = vpack.c.bf16 %v3349, %v3343
        %v4424 = vpack.c.bf16 %v3356, %v3350
        %v4425 = vpack.c.bf16 %v3357, %v3351
        %v4426 = vpack.c.bf16 %v3358, %v3352
        %v4427 = vpack.c.bf16 %v3359, %v3353
        %v4428 = vpack.c.bf16 %v3360, %v3354
        %v4429 = vpack.c.bf16 %v3361, %v3355
        %v4430 = vpack.c.bf16 %v3368, %v3362
        %v4431 = vpack.c.bf16 %v3369, %v3363
        %v4432 = vpack.c.bf16 %v3370, %v3364
        %v4433 = vpack.c.bf16 %v3371, %v3365
        %v4434 = vpack.c.bf16 %v3372, %v3366
        %v4435 = vpack.c.bf16 %v3373, %v3367
        %v4436 = vpack.c.bf16 %v3380, %v3374
        %v4437 = vpack.c.bf16 %v3381, %v3375
        %v4438 = vpack.c.bf16 %v3382, %v3376
        %v4439 = vpack.c.bf16 %v3383, %v3377
        %v4440 = vpack.c.bf16 %v3384, %v3378
        %v4441 = vpack.c.bf16 %v3385, %v3379
        %v4442 = vpack.c.bf16 %v3392, %v3386
        %v4443 = vpack.c.bf16 %v3393, %v3387
        %v4444 = vpack.c.bf16 %v3394, %v3388
        %v4445 = vpack.c.bf16 %v3395, %v3389
        %v4446 = vpack.c.bf16 %v3396, %v3390
        %v4447 = vpack.c.bf16 %v3397, %v3391
        %v4448 = vpack.c.bf16 %v3404, %v3398
        %v4449 = vpack.c.bf16 %v3405, %v3399
        %v4450 = vpack.c.bf16 %v3406, %v3400
        %v4451 = vpack.c.bf16 %v3407, %v3401
        %v4452 = vpack.c.bf16 %v3408, %v3402
        %v4453 = vpack.c.bf16 %v3409, %v3403
        %v4454 = vpack.c.bf16 %v3416, %v3410
        %v4455 = vpack.c.bf16 %v3417, %v3411
        %v4456 = vpack.c.bf16 %v3418, %v3412
        %v4457 = vpack.c.bf16 %v3419, %v3413
        %v4458 = vpack.c.bf16 %v3420, %v3414
        %v4459 = vpack.c.bf16 %v3421, %v3415
        %v4460 = vpack.c.bf16 %v3428, %v3422
        %v4461 = vpack.c.bf16 %v3429, %v3423
        %v4462 = vpack.c.bf16 %v3430, %v3424
        %v4463 = vpack.c.bf16 %v3431, %v3425
        %v4464 = vpack.c.bf16 %v3432, %v3426
        %v4465 = vpack.c.bf16 %v3433, %v3427
        %v4466 = vpack.c.bf16 %v3440, %v3434
        %v4467 = vpack.c.bf16 %v3441, %v3435
        %v4468 = vpack.c.bf16 %v3442, %v3436
        %v4469 = vpack.c.bf16 %v3443, %v3437
        %v4470 = vpack.c.bf16 %v3444, %v3438
        %v4471 = vpack.c.bf16 %v3445, %v3439
        %v4472 = vpack.c.bf16 %v3452, %v3446
        %v4473 = vpack.c.bf16 %v3453, %v3447
        %v4474 = vpack.c.bf16 %v3454, %v3448
        %v4475 = vpack.c.bf16 %v3455, %v3449
        %v4476 = vpack.c.bf16 %v3456, %v3450
        %v4477 = vpack.c.bf16 %v3457, %v3451
        %v4478 = vpack.c.bf16 %v3464, %v3458
        %v4479 = vpack.c.bf16 %v3465, %v3459
        %v4480 = vpack.c.bf16 %v3466, %v3460
        %v4481 = vpack.c.bf16 %v3467, %v3461
        %v4482 = vpack.c.bf16 %v3468, %v3462
        %v4483 = vpack.c.bf16 %v3469, %v3463
        %v4484 = vpack.c.bf16 %v3476, %v3470
        %v4485 = vpack.c.bf16 %v3477, %v3471
        %v4486 = vpack.c.bf16 %v3478, %v3472
        %v4487 = vpack.c.bf16 %v3479, %v3473
        %v4488 = vpack.c.bf16 %v3480, %v3474
        %v4489 = vpack.c.bf16 %v3481, %v3475
        %v4490 = vpack.c.bf16 %v3488, %v3482
        %v4491 = vpack.c.bf16 %v3489, %v3483
        %v4492 = vpack.c.bf16 %v3490, %v3484
        %v4493 = vpack.c.bf16 %v3491, %v3485
        %v4494 = vpack.c.bf16 %v3492, %v3486
        %v4495 = vpack.c.bf16 %v3493, %v3487
        %v4496 = vpack.c.bf16 %v3500, %v3494
        %v4497 = vpack.c.bf16 %v3501, %v3495
        %v4498 = vpack.c.bf16 %v3502, %v3496
        %v4499 = vpack.c.bf16 %v3503, %v3497
        %v4500 = vpack.c.bf16 %v3504, %v3498
        %v4501 = vpack.c.bf16 %v3505, %v3499
        %v4502 = vpack.c.bf16 %v3512, %v3506
        %v4503 = vpack.c.bf16 %v3513, %v3507
        %v4504 = vpack.c.bf16 %v3514, %v3508
        %v4505 = vpack.c.bf16 %v3515, %v3509
        %v4506 = vpack.c.bf16 %v3516, %v3510
        %v4507 = vpack.c.bf16 %v3517, %v3511
        %v4508 = vpack.c.bf16 %v3524, %v3518
        %v4509 = vpack.c.bf16 %v3525, %v3519
        %v4510 = vpack.c.bf16 %v3526, %v3520
        %v4511 = vpack.c.bf16 %v3527, %v3521
        %v4512 = vpack.c.bf16 %v3528, %v3522
        %v4513 = vpack.c.bf16 %v3529, %v3523
        %v4514 = vpack.c.bf16 %v3536, %v3530
        %v4515 = vpack.c.bf16 %v3537, %v3531
        %v4516 = vpack.c.bf16 %v3538, %v3532
        %v4517 = vpack.c.bf16 %v3539, %v3533
        %v4518 = vpack.c.bf16 %v3540, %v3534
        %v4519 = vpack.c.bf16 %v3541, %v3535
        %v4520 = vpack.c.bf16 %v3548, %v3542
        %v4521 = vpack.c.bf16 %v3549, %v3543
        %v4522 = vpack.c.bf16 %v3550, %v3544
        %v4523 = vpack.c.bf16 %v3551, %v3545
        %v4524 = vpack.c.bf16 %v3552, %v3546
        %v4525 = vpack.c.bf16 %v3553, %v3547
        %v4526 = vpack.c.bf16 %v3560, %v3554
        %v4527 = vpack.c.bf16 %v3561, %v3555
        %v4528 = vpack.c.bf16 %v3562, %v3556
        %v4529 = vpack.c.bf16 %v3563, %v3557
        %v4530 = vpack.c.bf16 %v3564, %v3558
        %v4531 = vpack.c.bf16 %v3565, %v3559
        %v4532 = vpack.c.bf16 %v3572, %v3566
        %v4533 = vpack.c.bf16 %v3573, %v3567
        %v4534 = vpack.c.bf16 %v3574, %v3568
        %v4535 = vpack.c.bf16 %v3575, %v3569
        %v4536 = vpack.c.bf16 %v3576, %v3570
        %v4537 = vpack.c.bf16 %v3577, %v3571
        %v4538 = vpack.c.bf16 %v3584, %v3578
        %v4539 = vpack.c.bf16 %v3585, %v3579
        %v4540 = vpack.c.bf16 %v3586, %v3580
        %v4541 = vpack.c.bf16 %v3587, %v3581
        %v4542 = vpack.c.bf16 %v3588, %v3582
        %v4543 = vpack.c.bf16 %v3589, %v3583
        %v4544 = vpack.c.bf16 %v3596, %v3590
        %v4545 = vpack.c.bf16 %v3597, %v3591
        %v4546 = vpack.c.bf16 %v3598, %v3592
        %v4547 = vpack.c.bf16 %v3599, %v3593
        %v4548 = vpack.c.bf16 %v3600, %v3594
        %v4549 = vpack.c.bf16 %v3601, %v3595
        %v4550 = vpack.c.bf16 %v3608, %v3602
        %v4551 = vpack.c.bf16 %v3609, %v3603
        %v4552 = vpack.c.bf16 %v3610, %v3604
        %v4553 = vpack.c.bf16 %v3611, %v3605
        %v4554 = vpack.c.bf16 %v3612, %v3606
        %v4555 = vpack.c.bf16 %v3613, %v3607
        %v4556 = vpack.c.bf16 %v3620, %v3614
        %v4557 = vpack.c.bf16 %v3621, %v3615
        %v4558 = vpack.c.bf16 %v3622, %v3616
        %v4559 = vpack.c.bf16 %v3623, %v3617
        %v4560 = vpack.c.bf16 %v3624, %v3618
        %v4561 = vpack.c.bf16 %v3625, %v3619
        %v4562 = vpack.c.bf16 %v3632, %v3626
        %v4563 = vpack.c.bf16 %v3633, %v3627
        %v4564 = vpack.c.bf16 %v3634, %v3628
        %v4565 = vpack.c.bf16 %v3635, %v3629
        %v4566 = vpack.c.bf16 %v3636, %v3630
        %v4567 = vpack.c.bf16 %v3637, %v3631
        %v4568 = vpack.c.bf16 %v3644, %v3638
        %v4569 = vpack.c.bf16 %v3645, %v3639
        %v4570 = vpack.c.bf16 %v3646, %v3640
        %v4571 = vpack.c.bf16 %v3647, %v3641
        %v4572 = vpack.c.bf16 %v3648, %v3642
        %v4573 = vpack.c.bf16 %v3649, %v3643
        %v4574 = vpack.c.bf16 %v3656, %v3650
        %v4575 = vpack.c.bf16 %v3657, %v3651
        %v4576 = vpack.c.bf16 %v3658, %v3652
        %v4577 = vpack.c.bf16 %v3659, %v3653
        %v4578 = vpack.c.bf16 %v3660, %v3654
        %v4579 = vpack.c.bf16 %v3661, %v3655
        %v4580 = vpack.c.bf16 %v3668, %v3662
        %v4581 = vpack.c.bf16 %v3669, %v3663
        %v4582 = vpack.c.bf16 %v3670, %v3664
        %v4583 = vpack.c.bf16 %v3671, %v3665
        %v4584 = vpack.c.bf16 %v3672, %v3666
        %v4585 = vpack.c.bf16 %v3673, %v3667
        %v4586 = vpack.c.bf16 %v3680, %v3674
        %v4587 = vpack.c.bf16 %v3681, %v3675
        %v4588 = vpack.c.bf16 %v3682, %v3676
        %v4589 = vpack.c.bf16 %v3683, %v3677
        %v4590 = vpack.c.bf16 %v3684, %v3678
        %v4591 = vpack.c.bf16 %v3685, %v3679
        %v4592 = vpack.c.bf16 %v3692, %v3686
        %v4593 = vpack.c.bf16 %v3693, %v3687
        %v4594 = vpack.c.bf16 %v3694, %v3688
        %v4595 = vpack.c.bf16 %v3695, %v3689
        %v4596 = vpack.c.bf16 %v3696, %v3690
        %v4597 = vpack.c.bf16 %v3697, %v3691
        %v4598 = vpack.c.bf16 %v3704, %v3698
        %v4599 = vpack.c.bf16 %v3705, %v3699
        %v4600 = vpack.c.bf16 %v3706, %v3700
        %v4601 = vpack.c.bf16 %v3707, %v3701
        %v4602 = vpack.c.bf16 %v3708, %v3702
        %v4603 = vpack.c.bf16 %v3709, %v3703
        %v4604 = vpack.c.bf16 %v3716, %v3710
        %v4605 = vpack.c.bf16 %v3717, %v3711
        %v4606 = vpack.c.bf16 %v3718, %v3712
        %v4607 = vpack.c.bf16 %v3719, %v3713
        %v4608 = vpack.c.bf16 %v3720, %v3714
        %v4609 = vpack.c.bf16 %v3721, %v3715
        %v4610 = vpack.c.bf16 %v3728, %v3722
        %v4611 = vpack.c.bf16 %v3729, %v3723
        %v4612 = vpack.c.bf16 %v3730, %v3724
        %v4613 = vpack.c.bf16 %v3731, %v3725
        %v4614 = vpack.c.bf16 %v3732, %v3726
        %v4615 = vpack.c.bf16 %v3733, %v3727
        %v4616 = vpack.c.bf16 %v3740, %v3734
        %v4617 = vpack.c.bf16 %v3741, %v3735
        %v4618 = vpack.c.bf16 %v3742, %v3736
        %v4619 = vpack.c.bf16 %v3743, %v3737
        %v4620 = vpack.c.bf16 %v3744, %v3738
        %v4621 = vpack.c.bf16 %v3745, %v3739
        %v4622 = vpack.c.bf16 %v3752, %v3746
        %v4623 = vpack.c.bf16 %v3753, %v3747
        %v4624 = vpack.c.bf16 %v3754, %v3748
        %v4625 = vpack.c.bf16 %v3755, %v3749
        %v4626 = vpack.c.bf16 %v3756, %v3750
        %v4627 = vpack.c.bf16 %v3757, %v3751
        %v4628 = vpack.c.bf16 %v3764, %v3758
        %v4629 = vpack.c.bf16 %v3765, %v3759
        %v4630 = vpack.c.bf16 %v3766, %v3760
        %v4631 = vpack.c.bf16 %v3767, %v3761
        %v4632 = vpack.c.bf16 %v3768, %v3762
        %v4633 = vpack.c.bf16 %v3769, %v3763
        %v4634 = vpack.c.bf16 %v3776, %v3770
        %v4635 = vpack.c.bf16 %v3777, %v3771
        %v4636 = vpack.c.bf16 %v3778, %v3772
        %v4637 = vpack.c.bf16 %v3779, %v3773
        %v4638 = vpack.c.bf16 %v3780, %v3774
        %v4639 = vpack.c.bf16 %v3781, %v3775
        %v4640 = vpack.c.bf16 %v3788, %v3782
        %v4641 = vpack.c.bf16 %v3789, %v3783
        %v4642 = vpack.c.bf16 %v3790, %v3784
        %v4643 = vpack.c.bf16 %v3791, %v3785
        %v4644 = vpack.c.bf16 %v3792, %v3786
        %v4645 = vpack.c.bf16 %v3793, %v3787
        %v4646 = vpack.c.bf16 %v3800, %v3794
        %v4647 = vpack.c.bf16 %v3801, %v3795
        %v4648 = vpack.c.bf16 %v3802, %v3796
        %v4649 = vpack.c.bf16 %v3803, %v3797
        %v4650 = vpack.c.bf16 %v3804, %v3798
        %v4651 = vpack.c.bf16 %v3805, %v3799
        %v4652 = vpack.c.bf16 %v3812, %v3806
        %v4653 = vpack.c.bf16 %v3813, %v3807
        %v4654 = vpack.c.bf16 %v3814, %v3808
        %v4655 = vpack.c.bf16 %v3815, %v3809
        %v4656 = vpack.c.bf16 %v3816, %v3810
        %v4657 = vpack.c.bf16 %v3817, %v3811
        %v4658 = vpack.c.bf16 %v3824, %v3818
        %v4659 = vpack.c.bf16 %v3825, %v3819
        %v4660 = vpack.c.bf16 %v3826, %v3820
        %v4661 = vpack.c.bf16 %v3827, %v3821
        %v4662 = vpack.c.bf16 %v3828, %v3822
        %v4663 = vpack.c.bf16 %v3829, %v3823
        %v4664 = vpack.c.bf16 %v3836, %v3830
        %v4665 = vpack.c.bf16 %v3837, %v3831
        %v4666 = vpack.c.bf16 %v3838, %v3832
        %v4667 = vpack.c.bf16 %v3839, %v3833
        %v4668 = vpack.c.bf16 %v3840, %v3834
        %v4669 = vpack.c.bf16 %v3841, %v3835
        %v4670 = vpack.c.bf16 %v3848, %v3842
        %v4671 = vpack.c.bf16 %v3849, %v3843
        %v4672 = vpack.c.bf16 %v3850, %v3844
        %v4673 = vpack.c.bf16 %v3851, %v3845
        %v4674 = vpack.c.bf16 %v3852, %v3846
        %v4675 = vpack.c.bf16 %v3853, %v3847
        %v4676 = vpack.c.bf16 %v3860, %v3854
        %v4677 = vpack.c.bf16 %v3861, %v3855
        %v4678 = vpack.c.bf16 %v3862, %v3856
        %v4679 = vpack.c.bf16 %v3863, %v3857
        %v4680 = vpack.c.bf16 %v3864, %v3858
        %v4681 = vpack.c.bf16 %v3865, %v3859
        %v4682 = vpack.c.bf16 %v3872, %v3866
        %v4683 = vpack.c.bf16 %v3873, %v3867
        %v4684 = vpack.c.bf16 %v3874, %v3868
        %v4685 = vpack.c.bf16 %v3875, %v3869
        %v4686 = vpack.c.bf16 %v3876, %v3870
        %v4687 = vpack.c.bf16 %v3877, %v3871
        %v4688 = vpack.c.bf16 %v3884, %v3878
        %v4689 = vpack.c.bf16 %v3885, %v3879
        %v4690 = vpack.c.bf16 %v3886, %v3880
        %v4691 = vpack.c.bf16 %v3887, %v3881
        %v4692 = vpack.c.bf16 %v3888, %v3882
        %v4693 = vpack.c.bf16 %v3889, %v3883
        %v4694 = vpack.c.bf16 %v3896, %v3890
        %v4695 = vpack.c.bf16 %v3897, %v3891
        %v4696 = vpack.c.bf16 %v3898, %v3892
        %v4697 = vpack.c.bf16 %v3899, %v3893
        %v4698 = vpack.c.bf16 %v3900, %v3894
        %v4699 = vpack.c.bf16 %v3901, %v3895
        %v4700 = vpack.c.bf16 %v3908, %v3902
        %v4701 = vpack.c.bf16 %v3909, %v3903
        %v4702 = vpack.c.bf16 %v3910, %v3904
        %v4703 = vpack.c.bf16 %v3911, %v3905
        %v4704 = vpack.c.bf16 %v3912, %v3906
        %v4705 = vpack.c.bf16 %v3913, %v3907
        %v4706 = vpack.c.bf16 %v3920, %v3914
        %v4707 = vpack.c.bf16 %v3921, %v3915
        %v4708 = vpack.c.bf16 %v3922, %v3916
        %v4709 = vpack.c.bf16 %v3923, %v3917
        %v4710 = vpack.c.bf16 %v3924, %v3918
        %v4711 = vpack.c.bf16 %v3925, %v3919
        %v4712 = vpack.c.bf16 %v3932, %v3926
        %v4713 = vpack.c.bf16 %v3933, %v3927
        %v4714 = vpack.c.bf16 %v3934, %v3928
        %v4715 = vpack.c.bf16 %v3935, %v3929
        %v4716 = vpack.c.bf16 %v3936, %v3930
        %v4717 = vpack.c.bf16 %v3937, %v3931
        %v4718 = vpack.c.bf16 %v3944, %v3938
        %v4719 = vpack.c.bf16 %v3945, %v3939
        %v4720 = vpack.c.bf16 %v3946, %v3940
        %v4721 = vpack.c.bf16 %v3947, %v3941
        %v4722 = vpack.c.bf16 %v3948, %v3942
        %v4723 = vpack.c.bf16 %v3949, %v3943
        %v4724 = vpack.c.bf16 %v3956, %v3950
        %v4725 = vpack.c.bf16 %v3957, %v3951
        %v4726 = vpack.c.bf16 %v3958, %v3952
        %v4727 = vpack.c.bf16 %v3959, %v3953
        %v4728 = vpack.c.bf16 %v3960, %v3954
        %v4729 = vpack.c.bf16 %v3961, %v3955
        %v4730 = vpack.c.bf16 %v3968, %v3962
        %v4731 = vpack.c.bf16 %v3969, %v3963
        %v4732 = vpack.c.bf16 %v3970, %v3964
        %v4733 = vpack.c.bf16 %v3971, %v3965
        %v4734 = vpack.c.bf16 %v3972, %v3966
        %v4735 = vpack.c.bf16 %v3973, %v3967
        %v4736 = vpack.c.bf16 %v3980, %v3974
        %v4737 = vpack.c.bf16 %v3981, %v3975
        %v4738 = vpack.c.bf16 %v3982, %v3976
        %v4739 = vpack.c.bf16 %v3983, %v3977
        %v4740 = vpack.c.bf16 %v3984, %v3978
        %v4741 = vpack.c.bf16 %v3985, %v3979
        %v4742 = vpack.c.bf16 %v3992, %v3986
        %v4743 = vpack.c.bf16 %v3993, %v3987
        %v4744 = vpack.c.bf16 %v3994, %v3988
        %v4745 = vpack.c.bf16 %v3995, %v3989
        %v4746 = vpack.c.bf16 %v3996, %v3990
        %v4747 = vpack.c.bf16 %v3997, %v3991
        %v4748 = vpack.c.bf16 %v4004, %v3998
        %v4749 = vpack.c.bf16 %v4005, %v3999
        %v4750 = vpack.c.bf16 %v4006, %v4000
        %v4751 = vpack.c.bf16 %v4007, %v4001
        %v4752 = vpack.c.bf16 %v4008, %v4002
        %v4753 = vpack.c.bf16 %v4009, %v4003
        %v4754 = vpack.c.bf16 %v4016, %v4010
        %v4755 = vpack.c.bf16 %v4017, %v4011
        %v4756 = vpack.c.bf16 %v4018, %v4012
        %v4757 = vpack.c.bf16 %v4019, %v4013
        %v4758 = vpack.c.bf16 %v4020, %v4014
        %v4759 = vpack.c.bf16 %v4021, %v4015
        %v4760 = vpack.c.bf16 %v4028, %v4022
        %v4761 = vpack.c.bf16 %v4029, %v4023
        %v4762 = vpack.c.bf16 %v4030, %v4024
        %v4763 = vpack.c.bf16 %v4031, %v4025
        %v4764 = vpack.c.bf16 %v4032, %v4026
        %v4765 = vpack.c.bf16 %v4033, %v4027
        %v4766 = vpack.c.bf16 %v4040, %v4034
        %v4767 = vpack.c.bf16 %v4041, %v4035
        %v4768 = vpack.c.bf16 %v4042, %v4036
        %v4769 = vpack.c.bf16 %v4043, %v4037
        %v4770 = vpack.c.bf16 %v4044, %v4038
        %v4771 = vpack.c.bf16 %v4045, %v4039
        %v4772 = vpack.c.bf16 %v4052, %v4046
        %v4773 = vpack.c.bf16 %v4053, %v4047
        %v4774 = vpack.c.bf16 %v4054, %v4048
        %v4775 = vpack.c.bf16 %v4055, %v4049
        %v4776 = vpack.c.bf16 %v4056, %v4050
        %v4777 = vpack.c.bf16 %v4057, %v4051
        %v4778 = vpack.c.bf16 %v4064, %v4058
        %v4779 = vpack.c.bf16 %v4065, %v4059
        %v4780 = vpack.c.bf16 %v4066, %v4060
        %v4781 = vpack.c.bf16 %v4067, %v4061
        %v4782 = vpack.c.bf16 %v4068, %v4062
        %v4783 = vpack.c.bf16 %v4069, %v4063
        %v4784 = vpack.c.bf16 %v4076, %v4070
        %v4785 = vpack.c.bf16 %v4077, %v4071
        %v4786 = vpack.c.bf16 %v4078, %v4072
        %v4787 = vpack.c.bf16 %v4079, %v4073
        %v4788 = vpack.c.bf16 %v4080, %v4074
        %v4789 = vpack.c.bf16 %v4081, %v4075
        %v4790 = vpack.c.bf16 %v4088, %v4082
        %v4791 = vpack.c.bf16 %v4089, %v4083
        %v4792 = vpack.c.bf16 %v4090, %v4084
        %v4793 = vpack.c.bf16 %v4091, %v4085
        %v4794 = vpack.c.bf16 %v4092, %v4086
        %v4795 = vpack.c.bf16 %v4093, %v4087
        %v4796 = vpack.c.bf16 %v4100, %v4094
        %v4797 = vpack.c.bf16 %v4101, %v4095
        %v4798 = vpack.c.bf16 %v4102, %v4096
        %v4799 = vpack.c.bf16 %v4103, %v4097
        %v4800 = vpack.c.bf16 %v4104, %v4098
        %v4801 = vpack.c.bf16 %v4105, %v4099
        %v4802 = vpack.c.bf16 %v4112, %v4106
        %v4803 = vpack.c.bf16 %v4113, %v4107
        %v4804 = vpack.c.bf16 %v4114, %v4108
        %v4805 = vpack.c.bf16 %v4115, %v4109
        %v4806 = vpack.c.bf16 %v4116, %v4110
        %v4807 = vpack.c.bf16 %v4117, %v4111
        %v4808 = vpack.c.bf16 %v4124, %v4118
        %v4809 = vpack.c.bf16 %v4125, %v4119
        %v4810 = vpack.c.bf16 %v4126, %v4120
        %v4811 = vpack.c.bf16 %v4127, %v4121
        %v4812 = vpack.c.bf16 %v4128, %v4122
        %v4813 = vpack.c.bf16 %v4129, %v4123
        %v4814 = vpack.c.bf16 %v4136, %v4130
        %v4815 = vpack.c.bf16 %v4137, %v4131
        %v4816 = vpack.c.bf16 %v4138, %v4132
        %v4817 = vpack.c.bf16 %v4139, %v4133
        %v4818 = vpack.c.bf16 %v4140, %v4134
        %v4819 = vpack.c.bf16 %v4141, %v4135
        %v4820 = vpack.c.bf16 %v4148, %v4142
        %v4821 = vpack.c.bf16 %v4149, %v4143
        %v4822 = vpack.c.bf16 %v4150, %v4144
        %v4823 = vpack.c.bf16 %v4151, %v4145
        %v4824 = vpack.c.bf16 %v4152, %v4146
        %v4825 = vpack.c.bf16 %v4153, %v4147
        %v4826 = vpack.c.bf16 %v4160, %v4154
        %v4827 = vpack.c.bf16 %v4161, %v4155
        %v4828 = vpack.c.bf16 %v4162, %v4156
        %v4829 = vpack.c.bf16 %v4163, %v4157
        %v4830 = vpack.c.bf16 %v4164, %v4158
        %v4831 = vpack.c.bf16 %v4165, %v4159
        %v4832 = vpack.c.bf16 %v4172, %v4166
        %v4833 = vpack.c.bf16 %v4173, %v4167
        %v4834 = vpack.c.bf16 %v4174, %v4168
        %v4835 = vpack.c.bf16 %v4175, %v4169
        %v4836 = vpack.c.bf16 %v4176, %v4170
        %v4837 = vpack.c.bf16 %v4177, %v4171
        %v4838 = vpack.c.bf16 %v4184, %v4178
        %v4839 = vpack.c.bf16 %v4185, %v4179
        %v4840 = vpack.c.bf16 %v4186, %v4180
        %v4841 = vpack.c.bf16 %v4187, %v4181
        %v4842 = vpack.c.bf16 %v4188, %v4182
        %v4843 = vpack.c.bf16 %v4189, %v4183
        %v4844 = vpack.c.bf16 %v4196, %v4190
        %v4845 = vpack.c.bf16 %v4197, %v4191
        %v4846 = vpack.c.bf16 %v4198, %v4192
        %v4847 = vpack.c.bf16 %v4199, %v4193
        %v4848 = vpack.c.bf16 %v4200, %v4194
        %v4849 = vpack.c.bf16 %v4201, %v4195
        %v4850 = vpack.c.bf16 %v4208, %v4202
        %v4851 = vpack.c.bf16 %v4209, %v4203
        %v4852 = vpack.c.bf16 %v4210, %v4204
        %v4853 = vpack.c.bf16 %v4211, %v4205
        %v4854 = vpack.c.bf16 %v4212, %v4206
        %v4855 = vpack.c.bf16 %v4213, %v4207
        %v4856 = vpack.c.bf16 %v4220, %v4214
        %v4857 = vpack.c.bf16 %v4221, %v4215
        %v4858 = vpack.c.bf16 %v4222, %v4216
        %v4859 = vpack.c.bf16 %v4223, %v4217
        %v4860 = vpack.c.bf16 %v4224, %v4218
        %v4861 = vpack.c.bf16 %v4225, %v4219
        %v4862 = vpack.c.bf16 %v4232, %v4226
        %v4863 = vpack.c.bf16 %v4233, %v4227
        %v4864 = vpack.c.bf16 %v4234, %v4228
        %v4865 = vpack.c.bf16 %v4235, %v4229
        %v4866 = vpack.c.bf16 %v4236, %v4230
        %v4867 = vpack.c.bf16 %v4237, %v4231
        %v4868 = vpack.c.bf16 %v4244, %v4238
        %v4869 = vpack.c.bf16 %v4245, %v4239
        %v4870 = vpack.c.bf16 %v4246, %v4240
        %v4871 = vpack.c.bf16 %v4247, %v4241
        %v4872 = vpack.c.bf16 %v4248, %v4242
        %v4873 = vpack.c.bf16 %v4249, %v4243
        %v4874 = vpack.c.bf16 %v4256, %v4250
        %v4875 = vpack.c.bf16 %v4257, %v4251
        %v4876 = vpack.c.bf16 %v4258, %v4252
        %v4877 = vpack.c.bf16 %v4259, %v4253
        %v4878 = vpack.c.bf16 %v4260, %v4254
        %v4879 = vpack.c.bf16 %v4261, %v4255
        %v4880 = vpack.c.bf16 %v4268, %v4262
        %v4881 = vpack.c.bf16 %v4269, %v4263
        %v4882 = vpack.c.bf16 %v4270, %v4264
        %v4883 = vpack.c.bf16 %v4271, %v4265
        %v4884 = vpack.c.bf16 %v4272, %v4266
        %v4885 = vpack.c.bf16 %v4273, %v4267
        %v4886 = vpack.c.bf16 %v4280, %v4274
        %v4887 = vpack.c.bf16 %v4281, %v4275
        %v4888 = vpack.c.bf16 %v4282, %v4276
        %v4889 = vpack.c.bf16 %v4283, %v4277
        %v4890 = vpack.c.bf16 %v4284, %v4278
        %v4891 = vpack.c.bf16 %v4285, %v4279
        %v4892 = vpack.c.bf16 %v4292, %v4286
        %v4893 = vpack.c.bf16 %v4293, %v4287
        %v4894 = vpack.c.bf16 %v4294, %v4288
        %v4895 = vpack.c.bf16 %v4295, %v4289
        %v4896 = vpack.c.bf16 %v4296, %v4290
        %v4897 = vpack.c.bf16 %v4297, %v4291
        %v4898 = vpack.c.bf16 %v4304, %v4298
        %v4899 = vpack.c.bf16 %v4305, %v4299
        %v4900 = vpack.c.bf16 %v4306, %v4300
        %v4901 = vpack.c.bf16 %v4307, %v4301
        %v4902 = vpack.c.bf16 %v4308, %v4302
        %v4903 = vpack.c.bf16 %v4309, %v4303
        %v4904 = vpack.c.bf16 %v4316, %v4310
        %v4905 = vpack.c.bf16 %v4317, %v4311
        %v4906 = vpack.c.bf16 %v4318, %v4312
        %v4907 = vpack.c.bf16 %v4319, %v4313
        %v4908 = vpack.c.bf16 %v4320, %v4314
        %v4909 = vpack.c.bf16 %v4321, %v4315
        %v4910 = vpack.c.bf16 %v4328, %v4322
        %v4911 = vpack.c.bf16 %v4329, %v4323
        %v4912 = vpack.c.bf16 %v4330, %v4324
        %v4913 = vpack.c.bf16 %v4331, %v4325
        %v4914 = vpack.c.bf16 %v4332, %v4326
        %v4915 = vpack.c.bf16 %v4333, %v4327
        %v4916 = vpack.c.bf16 %v4340, %v4334
        %v4917 = vpack.c.bf16 %v4341, %v4335
        %v4918 = vpack.c.bf16 %v4342, %v4336
        %v4919 = vpack.c.bf16 %v4343, %v4337
        %v4920 = vpack.c.bf16 %v4344, %v4338
        %v4921 = vpack.c.bf16 %v4345, %v4339
        %v4922 = vld [vmem:[#allocation2] sm:$0xff]
        %v4923 = vld [vmem:[#allocation2 + $0x8] sm:$0xff]
        %v4924 = vld [vmem:[#allocation2 + $0x10] sm:$0xff]
        %v4925 = vld [vmem:[#allocation2 + $0x18] sm:$0xff]
        %v4926 = vld [vmem:[#allocation2 + $0x20] sm:$0xff]
        %v4927 = vld [vmem:[#allocation2 + $0x28] sm:$0xff]
        %v4928 = vld [vmem:[#allocation2 + $0x30] sm:$0xff]
        %v4929 = vld [vmem:[#allocation2 + $0x38] sm:$0xff]
        %v4930 = vld [vmem:[#allocation2 + $0x40] sm:$0xff]
        %v4931 = vld [vmem:[#allocation2 + $0x48] sm:$0xff]
        %v4932 = vld [vmem:[#allocation2 + $0x50] sm:$0xff]
        %v4933 = vld [vmem:[#allocation2 + $0x58] sm:$0xff]
        %v4946 = vunpack.c.l.b16 %v4922
        %v4947 = vunpack.c.h.b16 %v4922
        %v4948 = vunpack.c.l.b16 %v4923
        %v4949 = vunpack.c.h.b16 %v4923
        %v4950 = vunpack.c.l.b16 %v4924
        %v4951 = vunpack.c.h.b16 %v4924
        %v4952 = vunpack.c.l.b16 %v4925
        %v4953 = vunpack.c.h.b16 %v4925
        %v4954 = vunpack.c.l.b16 %v4926
        %v4955 = vunpack.c.h.b16 %v4926
        %v4956 = vunpack.c.l.b16 %v4927
        %v4957 = vunpack.c.h.b16 %v4927
        %v4958 = vunpack.c.l.b16 %v4928
        %v4959 = vunpack.c.h.b16 %v4928
        %v4960 = vunpack.c.l.b16 %v4929
        %v4961 = vunpack.c.h.b16 %v4929
        %v4962 = vunpack.c.l.b16 %v4930
        %v4963 = vunpack.c.h.b16 %v4930
        %v4964 = vunpack.c.l.b16 %v4931
        %v4965 = vunpack.c.h.b16 %v4931
        %v4966 = vunpack.c.l.b16 %v4932
        %v4967 = vunpack.c.h.b16 %v4932
        %v4968 = vunpack.c.l.b16 %v4933
        %v4969 = vunpack.c.h.b16 %v4933
        %v4970 = vpack.c.b16 %v4958, %v4946
        %v4971 = vpack.c.b16 %v4959, %v4947
        %v4972 = vpack.c.b16 %v4960, %v4948
        %v4973 = vpack.c.b16 %v4961, %v4949
        %v4974 = vpack.c.b16 %v4962, %v4950
        %v4975 = vpack.c.b16 %v4963, %v4951
        %v4976 = vpack.c.b16 %v4964, %v4952
        %v4977 = vpack.c.b16 %v4965, %v4953
        %v4978 = vpack.c.b16 %v4966, %v4954
        %v4979 = vpack.c.b16 %v4967, %v4955
        %v4980 = vpack.c.b16 %v4968, %v4956
        %v4981 = vpack.c.b16 %v4969, %v4957
        %4994 = vmatpush.bf16.msra.mxu0 %v4388
        %4995 = vmatpush.bf16.msra.mxu0 %v4382
        %4996 = vmatpush.bf16.msra.mxu0 %v4376
        %4997 = vmatpush.bf16.msra.mxu0 %v4370
        %4998 = vmatpush.bf16.msra.mxu0 %v4364
        %4999 = vmatpush.bf16.msra.mxu0 %v4358
        %5000 = vmatpush.bf16.msra.mxu0 %v4352
        %5001 = vmatpush.bf16.msra.mxu0 %v4346
        %5002 = vmatmul.bf16.gmra.mxu0 %v4970
        %v5003 = vpop.f32.mrf.mxu0
        %v5004 = vadd.f32 0.0, %v5003
        %v5005 = vpop.f32.mrf.mxu0
        %v5006 = vadd.f32 0.0, %v5005
        %5007 = vdwg.mxu0
        %5008 = vmatpush.bf16.msra.mxu0 %v4436
        %5009 = vmatpush.bf16.msra.mxu0 %v4430
        %5010 = vmatpush.bf16.msra.mxu0 %v4424
        %5011 = vmatpush.bf16.msra.mxu0 %v4418
        %5012 = vmatpush.bf16.msra.mxu0 %v4412
        %5013 = vmatpush.bf16.msra.mxu0 %v4406
        %5014 = vmatpush.bf16.msra.mxu0 %v4400
        %5015 = vmatpush.bf16.msra.mxu0 %v4394
        %5016 = vmatmul.bf16.gmra.mxu0 %v4971
        %v5017 = vpop.f32.mrf.mxu0
        %v5018 = vadd.f32 %v5004, %v5017
        %v5019 = vpop.f32.mrf.mxu0
        %v5020 = vadd.f32 %v5006, %v5019
        %5021 = vdwg.mxu0
        %5022 = vmatpush.bf16.msra.mxu0 %v4484
        %5023 = vmatpush.bf16.msra.mxu0 %v4478
        %5024 = vmatpush.bf16.msra.mxu0 %v4472
        %5025 = vmatpush.bf16.msra.mxu0 %v4466
        %5026 = vmatpush.bf16.msra.mxu0 %v4460
        %5027 = vmatpush.bf16.msra.mxu0 %v4454
        %5028 = vmatpush.bf16.msra.mxu0 %v4448
        %5029 = vmatpush.bf16.msra.mxu0 %v4442
        %5030 = vmatmul.bf16.gmra.mxu0 %v4972
        %v5031 = vpop.f32.mrf.mxu0
        %v5032 = vadd.f32 %v5018, %v5031
        %v5033 = vpop.f32.mrf.mxu0
        %v5034 = vadd.f32 %v5020, %v5033
        %5035 = vdwg.mxu0
        %5036 = vmatpush.bf16.msra.mxu0 %v4532
        %5037 = vmatpush.bf16.msra.mxu0 %v4526
        %5038 = vmatpush.bf16.msra.mxu0 %v4520
        %5039 = vmatpush.bf16.msra.mxu0 %v4514
        %5040 = vmatpush.bf16.msra.mxu0 %v4508
        %5041 = vmatpush.bf16.msra.mxu0 %v4502
        %5042 = vmatpush.bf16.msra.mxu0 %v4496
        %5043 = vmatpush.bf16.msra.mxu0 %v4490
        %5044 = vmatmul.bf16.gmra.mxu0 %v4973
        %v5045 = vpop.f32.mrf.mxu0
        %v5046 = vadd.f32 %v5032, %v5045
        %v5047 = vpop.f32.mrf.mxu0
        %v5048 = vadd.f32 %v5034, %v5047
        %5049 = vdwg.mxu0
        %5050 = vmatpush.bf16.msra.mxu0 %v4580
        %5051 = vmatpush.bf16.msra.mxu0 %v4574
        %5052 = vmatpush.bf16.msra.mxu0 %v4568
        %5053 = vmatpush.bf16.msra.mxu0 %v4562
        %5054 = vmatpush.bf16.msra.mxu0 %v4556
        %5055 = vmatpush.bf16.msra.mxu0 %v4550
        %5056 = vmatpush.bf16.msra.mxu0 %v4544
        %5057 = vmatpush.bf16.msra.mxu0 %v4538
        %5058 = vmatmul.bf16.gmra.mxu0 %v4974
        %v5059 = vpop.f32.mrf.mxu0
        %v5060 = vadd.f32 %v5046, %v5059
        %v5061 = vpop.f32.mrf.mxu0
        %v5062 = vadd.f32 %v5048, %v5061
        %5063 = vdwg.mxu0
        %5064 = vmatpush.bf16.msra.mxu0 %v4628
        %5065 = vmatpush.bf16.msra.mxu0 %v4622
        %5066 = vmatpush.bf16.msra.mxu0 %v4616
        %5067 = vmatpush.bf16.msra.mxu0 %v4610
        %5068 = vmatpush.bf16.msra.mxu0 %v4604
        %5069 = vmatpush.bf16.msra.mxu0 %v4598
        %5070 = vmatpush.bf16.msra.mxu0 %v4592
        %5071 = vmatpush.bf16.msra.mxu0 %v4586
        %5072 = vmatmul.bf16.gmra.mxu0 %v4975
        %v5073 = vpop.f32.mrf.mxu0
        %v5074 = vadd.f32 %v5060, %v5073
        %v5075 = vpop.f32.mrf.mxu0
        %v5076 = vadd.f32 %v5062, %v5075
        %5077 = vdwg.mxu0
        %5078 = vmatpush.bf16.msra.mxu0 %v4676
        %5079 = vmatpush.bf16.msra.mxu0 %v4670
        %5080 = vmatpush.bf16.msra.mxu0 %v4664
        %5081 = vmatpush.bf16.msra.mxu0 %v4658
        %5082 = vmatpush.bf16.msra.mxu0 %v4652
        %5083 = vmatpush.bf16.msra.mxu0 %v4646
        %5084 = vmatpush.bf16.msra.mxu0 %v4640
        %5085 = vmatpush.bf16.msra.mxu0 %v4634
        %5086 = vmatmul.bf16.gmra.mxu0 %v4976
        %v5087 = vpop.f32.mrf.mxu0
        %v5088 = vadd.f32 %v5074, %v5087
        %v5089 = vpop.f32.mrf.mxu0
        %v5090 = vadd.f32 %v5076, %v5089
        %5091 = vdwg.mxu0
        %5092 = vmatpush.bf16.msra.mxu0 %v4724
        %5093 = vmatpush.bf16.msra.mxu0 %v4718
        %5094 = vmatpush.bf16.msra.mxu0 %v4712
        %5095 = vmatpush.bf16.msra.mxu0 %v4706
        %5096 = vmatpush.bf16.msra.mxu0 %v4700
        %5097 = vmatpush.bf16.msra.mxu0 %v4694
        %5098 = vmatpush.bf16.msra.mxu0 %v4688
        %5099 = vmatpush.bf16.msra.mxu0 %v4682
        %5100 = vmatmul.bf16.gmra.mxu0 %v4977
        %v5101 = vpop.f32.mrf.mxu0
        %v5102 = vadd.f32 %v5088, %v5101
        %v5103 = vpop.f32.mrf.mxu0
        %v5104 = vadd.f32 %v5090, %v5103
        %5105 = vdwg.mxu0
        %5106 = vmatpush.bf16.msra.mxu0 %v4772
        %5107 = vmatpush.bf16.msra.mxu0 %v4766
        %5108 = vmatpush.bf16.msra.mxu0 %v4760
        %5109 = vmatpush.bf16.msra.mxu0 %v4754
        %5110 = vmatpush.bf16.msra.mxu0 %v4748
        %5111 = vmatpush.bf16.msra.mxu0 %v4742
        %5112 = vmatpush.bf16.msra.mxu0 %v4736
        %5113 = vmatpush.bf16.msra.mxu0 %v4730
        %5114 = vmatmul.bf16.gmra.mxu0 %v4978
        %v5115 = vpop.f32.mrf.mxu0
        %v5116 = vadd.f32 %v5102, %v5115
        %v5117 = vpop.f32.mrf.mxu0
        %v5118 = vadd.f32 %v5104, %v5117
        %5119 = vdwg.mxu0
        %5120 = vmatpush.bf16.msra.mxu0 %v4820
        %5121 = vmatpush.bf16.msra.mxu0 %v4814
        %5122 = vmatpush.bf16.msra.mxu0 %v4808
        %5123 = vmatpush.bf16.msra.mxu0 %v4802
        %5124 = vmatpush.bf16.msra.mxu0 %v4796
        %5125 = vmatpush.bf16.msra.mxu0 %v4790
        %5126 = vmatpush.bf16.msra.mxu0 %v4784
        %5127 = vmatpush.bf16.msra.mxu0 %v4778
        %5128 = vmatmul.bf16.gmra.mxu0 %v4979
        %v5129 = vpop.f32.mrf.mxu0
        %v5130 = vadd.f32 %v5116, %v5129
        %v5131 = vpop.f32.mrf.mxu0
        %v5132 = vadd.f32 %v5118, %v5131
        %5133 = vdwg.mxu0
        %5134 = vmatpush.bf16.msra.mxu0 %v4868
        %5135 = vmatpush.bf16.msra.mxu0 %v4862
        %5136 = vmatpush.bf16.msra.mxu0 %v4856
        %5137 = vmatpush.bf16.msra.mxu0 %v4850
        %5138 = vmatpush.bf16.msra.mxu0 %v4844
        %5139 = vmatpush.bf16.msra.mxu0 %v4838
        %5140 = vmatpush.bf16.msra.mxu0 %v4832
        %5141 = vmatpush.bf16.msra.mxu0 %v4826
        %5142 = vmatmul.bf16.gmra.mxu0 %v4980
        %v5143 = vpop.f32.mrf.mxu0
        %v5144 = vadd.f32 %v5130, %v5143
        %v5145 = vpop.f32.mrf.mxu0
        %v5146 = vadd.f32 %v5132, %v5145
        %5147 = vdwg.mxu0
        %5148 = vmatpush.bf16.msra.mxu0 %v4916
        %5149 = vmatpush.bf16.msra.mxu0 %v4910
        %5150 = vmatpush.bf16.msra.mxu0 %v4904
        %5151 = vmatpush.bf16.msra.mxu0 %v4898
        %5152 = vmatpush.bf16.msra.mxu0 %v4892
        %5153 = vmatpush.bf16.msra.mxu0 %v4886
        %5154 = vmatpush.bf16.msra.mxu0 %v4880
        %5155 = vmatpush.bf16.msra.mxu0 %v4874
        %5156 = vmatmul.bf16.gmra.mxu0 %v4981
        %v5157 = vpop.f32.mrf.mxu0
        %v5158 = vadd.f32 %v5144, %v5157
        %v5159 = vpop.f32.mrf.mxu0
        %v5160 = vadd.f32 %v5146, %v5159
        %5161 = vdwg.mxu0
        %5162 = vmatpush.bf16.msra.mxu0 %v4389
        %5163 = vmatpush.bf16.msra.mxu0 %v4383
        %5164 = vmatpush.bf16.msra.mxu0 %v4377
        %5165 = vmatpush.bf16.msra.mxu0 %v4371
        %5166 = vmatpush.bf16.msra.mxu0 %v4365
        %5167 = vmatpush.bf16.msra.mxu0 %v4359
        %5168 = vmatpush.bf16.msra.mxu0 %v4353
        %5169 = vmatpush.bf16.msra.mxu0 %v4347
        %5170 = vmatmul.bf16.gmra.mxu0 %v4970
        %v5171 = vpop.f32.mrf.mxu0
        %v5172 = vadd.f32 0.0, %v5171
        %v5173 = vpop.f32.mrf.mxu0
        %v5174 = vadd.f32 0.0, %v5173
        %5175 = vdwg.mxu0
        %5176 = vmatpush.bf16.msra.mxu0 %v4437
        %5177 = vmatpush.bf16.msra.mxu0 %v4431
        %5178 = vmatpush.bf16.msra.mxu0 %v4425
        %5179 = vmatpush.bf16.msra.mxu0 %v4419
        %5180 = vmatpush.bf16.msra.mxu0 %v4413
        %5181 = vmatpush.bf16.msra.mxu0 %v4407
        %5182 = vmatpush.bf16.msra.mxu0 %v4401
        %5183 = vmatpush.bf16.msra.mxu0 %v4395
        %5184 = vmatmul.bf16.gmra.mxu0 %v4971
        %v5185 = vpop.f32.mrf.mxu0
        %v5186 = vadd.f32 %v5172, %v5185
        %v5187 = vpop.f32.mrf.mxu0
        %v5188 = vadd.f32 %v5174, %v5187
        %5189 = vdwg.mxu0
        %5190 = vmatpush.bf16.msra.mxu0 %v4485
        %5191 = vmatpush.bf16.msra.mxu0 %v4479
        %5192 = vmatpush.bf16.msra.mxu0 %v4473
        %5193 = vmatpush.bf16.msra.mxu0 %v4467
        %5194 = vmatpush.bf16.msra.mxu0 %v4461
        %5195 = vmatpush.bf16.msra.mxu0 %v4455
        %5196 = vmatpush.bf16.msra.mxu0 %v4449
        %5197 = vmatpush.bf16.msra.mxu0 %v4443
        %5198 = vmatmul.bf16.gmra.mxu0 %v4972
        %v5199 = vpop.f32.mrf.mxu0
        %v5200 = vadd.f32 %v5186, %v5199
        %v5201 = vpop.f32.mrf.mxu0
        %v5202 = vadd.f32 %v5188, %v5201
        %5203 = vdwg.mxu0
        %5204 = vmatpush.bf16.msra.mxu0 %v4533
        %5205 = vmatpush.bf16.msra.mxu0 %v4527
        %5206 = vmatpush.bf16.msra.mxu0 %v4521
        %5207 = vmatpush.bf16.msra.mxu0 %v4515
        %5208 = vmatpush.bf16.msra.mxu0 %v4509
        %5209 = vmatpush.bf16.msra.mxu0 %v4503
        %5210 = vmatpush.bf16.msra.mxu0 %v4497
        %5211 = vmatpush.bf16.msra.mxu0 %v4491
        %5212 = vmatmul.bf16.gmra.mxu0 %v4973
        %v5213 = vpop.f32.mrf.mxu0
        %v5214 = vadd.f32 %v5200, %v5213
        %v5215 = vpop.f32.mrf.mxu0
        %v5216 = vadd.f32 %v5202, %v5215
        %5217 = vdwg.mxu0
        %5218 = vmatpush.bf16.msra.mxu0 %v4581
        %5219 = vmatpush.bf16.msra.mxu0 %v4575
        %5220 = vmatpush.bf16.msra.mxu0 %v4569
        %5221 = vmatpush.bf16.msra.mxu0 %v4563
        %5222 = vmatpush.bf16.msra.mxu0 %v4557
        %5223 = vmatpush.bf16.msra.mxu0 %v4551
        %5224 = vmatpush.bf16.msra.mxu0 %v4545
        %5225 = vmatpush.bf16.msra.mxu0 %v4539
        %5226 = vmatmul.bf16.gmra.mxu0 %v4974
        %v5227 = vpop.f32.mrf.mxu0
        %v5228 = vadd.f32 %v5214, %v5227
        %v5229 = vpop.f32.mrf.mxu0
        %v5230 = vadd.f32 %v5216, %v5229
        %5231 = vdwg.mxu0
        %5232 = vmatpush.bf16.msra.mxu0 %v4629
        %5233 = vmatpush.bf16.msra.mxu0 %v4623
        %5234 = vmatpush.bf16.msra.mxu0 %v4617
        %5235 = vmatpush.bf16.msra.mxu0 %v4611
        %5236 = vmatpush.bf16.msra.mxu0 %v4605
        %5237 = vmatpush.bf16.msra.mxu0 %v4599
        %5238 = vmatpush.bf16.msra.mxu0 %v4593
        %5239 = vmatpush.bf16.msra.mxu0 %v4587
        %5240 = vmatmul.bf16.gmra.mxu0 %v4975
        %v5241 = vpop.f32.mrf.mxu0
        %v5242 = vadd.f32 %v5228, %v5241
        %v5243 = vpop.f32.mrf.mxu0
        %v5244 = vadd.f32 %v5230, %v5243
        %5245 = vdwg.mxu0
        %5246 = vmatpush.bf16.msra.mxu0 %v4677
        %5247 = vmatpush.bf16.msra.mxu0 %v4671
        %5248 = vmatpush.bf16.msra.mxu0 %v4665
        %5249 = vmatpush.bf16.msra.mxu0 %v4659
        %5250 = vmatpush.bf16.msra.mxu0 %v4653
        %5251 = vmatpush.bf16.msra.mxu0 %v4647
        %5252 = vmatpush.bf16.msra.mxu0 %v4641
        %5253 = vmatpush.bf16.msra.mxu0 %v4635
        %5254 = vmatmul.bf16.gmra.mxu0 %v4976
        %v5255 = vpop.f32.mrf.mxu0
        %v5256 = vadd.f32 %v5242, %v5255
        %v5257 = vpop.f32.mrf.mxu0
        %v5258 = vadd.f32 %v5244, %v5257
        %5259 = vdwg.mxu0
        %5260 = vmatpush.bf16.msra.mxu0 %v4725
        %5261 = vmatpush.bf16.msra.mxu0 %v4719
        %5262 = vmatpush.bf16.msra.mxu0 %v4713
        %5263 = vmatpush.bf16.msra.mxu0 %v4707
        %5264 = vmatpush.bf16.msra.mxu0 %v4701
        %5265 = vmatpush.bf16.msra.mxu0 %v4695
        %5266 = vmatpush.bf16.msra.mxu0 %v4689
        %5267 = vmatpush.bf16.msra.mxu0 %v4683
        %5268 = vmatmul.bf16.gmra.mxu0 %v4977
        %v5269 = vpop.f32.mrf.mxu0
        %v5270 = vadd.f32 %v5256, %v5269
        %v5271 = vpop.f32.mrf.mxu0
        %v5272 = vadd.f32 %v5258, %v5271
        %5273 = vdwg.mxu0
        %5274 = vmatpush.bf16.msra.mxu0 %v4773
        %5275 = vmatpush.bf16.msra.mxu0 %v4767
        %5276 = vmatpush.bf16.msra.mxu0 %v4761
        %5277 = vmatpush.bf16.msra.mxu0 %v4755
        %5278 = vmatpush.bf16.msra.mxu0 %v4749
        %5279 = vmatpush.bf16.msra.mxu0 %v4743
        %5280 = vmatpush.bf16.msra.mxu0 %v4737
        %5281 = vmatpush.bf16.msra.mxu0 %v4731
        %5282 = vmatmul.bf16.gmra.mxu0 %v4978
        %v5283 = vpop.f32.mrf.mxu0
        %v5284 = vadd.f32 %v5270, %v5283
        %v5285 = vpop.f32.mrf.mxu0
        %v5286 = vadd.f32 %v5272, %v5285
        %5287 = vdwg.mxu0
        %5288 = vmatpush.bf16.msra.mxu0 %v4821
        %5289 = vmatpush.bf16.msra.mxu0 %v4815
        %5290 = vmatpush.bf16.msra.mxu0 %v4809
        %5291 = vmatpush.bf16.msra.mxu0 %v4803
        %5292 = vmatpush.bf16.msra.mxu0 %v4797
        %5293 = vmatpush.bf16.msra.mxu0 %v4791
        %5294 = vmatpush.bf16.msra.mxu0 %v4785
        %5295 = vmatpush.bf16.msra.mxu0 %v4779
        %5296 = vmatmul.bf16.gmra.mxu0 %v4979
        %v5297 = vpop.f32.mrf.mxu0
        %v5298 = vadd.f32 %v5284, %v5297
        %v5299 = vpop.f32.mrf.mxu0
        %v5300 = vadd.f32 %v5286, %v5299
        %5301 = vdwg.mxu0
        %5302 = vmatpush.bf16.msra.mxu0 %v4869
        %5303 = vmatpush.bf16.msra.mxu0 %v4863
        %5304 = vmatpush.bf16.msra.mxu0 %v4857
        %5305 = vmatpush.bf16.msra.mxu0 %v4851
        %5306 = vmatpush.bf16.msra.mxu0 %v4845
        %5307 = vmatpush.bf16.msra.mxu0 %v4839
        %5308 = vmatpush.bf16.msra.mxu0 %v4833
        %5309 = vmatpush.bf16.msra.mxu0 %v4827
        %5310 = vmatmul.bf16.gmra.mxu0 %v4980
        %v5311 = vpop.f32.mrf.mxu0
        %v5312 = vadd.f32 %v5298, %v5311
        %v5313 = vpop.f32.mrf.mxu0
        %v5314 = vadd.f32 %v5300, %v5313
        %5315 = vdwg.mxu0
        %5316 = vmatpush.bf16.msra.mxu0 %v4917
        %5317 = vmatpush.bf16.msra.mxu0 %v4911
        %5318 = vmatpush.bf16.msra.mxu0 %v4905
        %5319 = vmatpush.bf16.msra.mxu0 %v4899
        %5320 = vmatpush.bf16.msra.mxu0 %v4893
        %5321 = vmatpush.bf16.msra.mxu0 %v4887
        %5322 = vmatpush.bf16.msra.mxu0 %v4881
        %5323 = vmatpush.bf16.msra.mxu0 %v4875
        %5324 = vmatmul.bf16.gmra.mxu0 %v4981
        %v5325 = vpop.f32.mrf.mxu0
        %v5326 = vadd.f32 %v5312, %v5325
        %v5327 = vpop.f32.mrf.mxu0
        %v5328 = vadd.f32 %v5314, %v5327
        %5329 = vdwg.mxu0
        %5330 = vmatpush.bf16.msra.mxu0 %v4390
        %5331 = vmatpush.bf16.msra.mxu0 %v4384
        %5332 = vmatpush.bf16.msra.mxu0 %v4378
        %5333 = vmatpush.bf16.msra.mxu0 %v4372
        %5334 = vmatpush.bf16.msra.mxu0 %v4366
        %5335 = vmatpush.bf16.msra.mxu0 %v4360
        %5336 = vmatpush.bf16.msra.mxu0 %v4354
        %5337 = vmatpush.bf16.msra.mxu0 %v4348
        %5338 = vmatmul.bf16.gmra.mxu0 %v4970
        %v5339 = vpop.f32.mrf.mxu0
        %v5340 = vadd.f32 0.0, %v5339
        %v5341 = vpop.f32.mrf.mxu0
        %v5342 = vadd.f32 0.0, %v5341
        %5343 = vdwg.mxu0
        %5344 = vmatpush.bf16.msra.mxu0 %v4438
        %5345 = vmatpush.bf16.msra.mxu0 %v4432
        %5346 = vmatpush.bf16.msra.mxu0 %v4426
        %5347 = vmatpush.bf16.msra.mxu0 %v4420
        %5348 = vmatpush.bf16.msra.mxu0 %v4414
        %5349 = vmatpush.bf16.msra.mxu0 %v4408
        %5350 = vmatpush.bf16.msra.mxu0 %v4402
        %5351 = vmatpush.bf16.msra.mxu0 %v4396
        %5352 = vmatmul.bf16.gmra.mxu0 %v4971
        %v5353 = vpop.f32.mrf.mxu0
        %v5354 = vadd.f32 %v5340, %v5353
        %v5355 = vpop.f32.mrf.mxu0
        %v5356 = vadd.f32 %v5342, %v5355
        %5357 = vdwg.mxu0
        %5358 = vmatpush.bf16.msra.mxu0 %v4486
        %5359 = vmatpush.bf16.msra.mxu0 %v4480
        %5360 = vmatpush.bf16.msra.mxu0 %v4474
        %5361 = vmatpush.bf16.msra.mxu0 %v4468
        %5362 = vmatpush.bf16.msra.mxu0 %v4462
        %5363 = vmatpush.bf16.msra.mxu0 %v4456
        %5364 = vmatpush.bf16.msra.mxu0 %v4450
        %5365 = vmatpush.bf16.msra.mxu0 %v4444
        %5366 = vmatmul.bf16.gmra.mxu0 %v4972
        %v5367 = vpop.f32.mrf.mxu0
        %v5368 = vadd.f32 %v5354, %v5367
        %v5369 = vpop.f32.mrf.mxu0
        %v5370 = vadd.f32 %v5356, %v5369
        %5371 = vdwg.mxu0
        %5372 = vmatpush.bf16.msra.mxu0 %v4534
        %5373 = vmatpush.bf16.msra.mxu0 %v4528
        %5374 = vmatpush.bf16.msra.mxu0 %v4522
        %5375 = vmatpush.bf16.msra.mxu0 %v4516
        %5376 = vmatpush.bf16.msra.mxu0 %v4510
        %5377 = vmatpush.bf16.msra.mxu0 %v4504
        %5378 = vmatpush.bf16.msra.mxu0 %v4498
        %5379 = vmatpush.bf16.msra.mxu0 %v4492
        %5380 = vmatmul.bf16.gmra.mxu0 %v4973
        %v5381 = vpop.f32.mrf.mxu0
        %v5382 = vadd.f32 %v5368, %v5381
        %v5383 = vpop.f32.mrf.mxu0
        %v5384 = vadd.f32 %v5370, %v5383
        %5385 = vdwg.mxu0
        %5386 = vmatpush.bf16.msra.mxu0 %v4582
        %5387 = vmatpush.bf16.msra.mxu0 %v4576
        %5388 = vmatpush.bf16.msra.mxu0 %v4570
        %5389 = vmatpush.bf16.msra.mxu0 %v4564
        %5390 = vmatpush.bf16.msra.mxu0 %v4558
        %5391 = vmatpush.bf16.msra.mxu0 %v4552
        %5392 = vmatpush.bf16.msra.mxu0 %v4546
        %5393 = vmatpush.bf16.msra.mxu0 %v4540
        %5394 = vmatmul.bf16.gmra.mxu0 %v4974
        %v5395 = vpop.f32.mrf.mxu0
        %v5396 = vadd.f32 %v5382, %v5395
        %v5397 = vpop.f32.mrf.mxu0
        %v5398 = vadd.f32 %v5384, %v5397
        %5399 = vdwg.mxu0
        %5400 = vmatpush.bf16.msra.mxu0 %v4630
        %5401 = vmatpush.bf16.msra.mxu0 %v4624
        %5402 = vmatpush.bf16.msra.mxu0 %v4618
        %5403 = vmatpush.bf16.msra.mxu0 %v4612
        %5404 = vmatpush.bf16.msra.mxu0 %v4606
        %5405 = vmatpush.bf16.msra.mxu0 %v4600
        %5406 = vmatpush.bf16.msra.mxu0 %v4594
        %5407 = vmatpush.bf16.msra.mxu0 %v4588
        %5408 = vmatmul.bf16.gmra.mxu0 %v4975
        %v5409 = vpop.f32.mrf.mxu0
        %v5410 = vadd.f32 %v5396, %v5409
        %v5411 = vpop.f32.mrf.mxu0
        %v5412 = vadd.f32 %v5398, %v5411
        %5413 = vdwg.mxu0
        %5414 = vmatpush.bf16.msra.mxu0 %v4678
        %5415 = vmatpush.bf16.msra.mxu0 %v4672
        %5416 = vmatpush.bf16.msra.mxu0 %v4666
        %5417 = vmatpush.bf16.msra.mxu0 %v4660
        %5418 = vmatpush.bf16.msra.mxu0 %v4654
        %5419 = vmatpush.bf16.msra.mxu0 %v4648
        %5420 = vmatpush.bf16.msra.mxu0 %v4642
        %5421 = vmatpush.bf16.msra.mxu0 %v4636
        %5422 = vmatmul.bf16.gmra.mxu0 %v4976
        %v5423 = vpop.f32.mrf.mxu0
        %v5424 = vadd.f32 %v5410, %v5423
        %v5425 = vpop.f32.mrf.mxu0
        %v5426 = vadd.f32 %v5412, %v5425
        %5427 = vdwg.mxu0
        %5428 = vmatpush.bf16.msra.mxu0 %v4726
        %5429 = vmatpush.bf16.msra.mxu0 %v4720
        %5430 = vmatpush.bf16.msra.mxu0 %v4714
        %5431 = vmatpush.bf16.msra.mxu0 %v4708
        %5432 = vmatpush.bf16.msra.mxu0 %v4702
        %5433 = vmatpush.bf16.msra.mxu0 %v4696
        %5434 = vmatpush.bf16.msra.mxu0 %v4690
        %5435 = vmatpush.bf16.msra.mxu0 %v4684
        %5436 = vmatmul.bf16.gmra.mxu0 %v4977
        %v5437 = vpop.f32.mrf.mxu0
        %v5438 = vadd.f32 %v5424, %v5437
        %v5439 = vpop.f32.mrf.mxu0
        %v5440 = vadd.f32 %v5426, %v5439
        %5441 = vdwg.mxu0
        %5442 = vmatpush.bf16.msra.mxu0 %v4774
        %5443 = vmatpush.bf16.msra.mxu0 %v4768
        %5444 = vmatpush.bf16.msra.mxu0 %v4762
        %5445 = vmatpush.bf16.msra.mxu0 %v4756
        %5446 = vmatpush.bf16.msra.mxu0 %v4750
        %5447 = vmatpush.bf16.msra.mxu0 %v4744
        %5448 = vmatpush.bf16.msra.mxu0 %v4738
        %5449 = vmatpush.bf16.msra.mxu0 %v4732
        %5450 = vmatmul.bf16.gmra.mxu0 %v4978
        %v5451 = vpop.f32.mrf.mxu0
        %v5452 = vadd.f32 %v5438, %v5451
        %v5453 = vpop.f32.mrf.mxu0
        %v5454 = vadd.f32 %v5440, %v5453
        %5455 = vdwg.mxu0
        %5456 = vmatpush.bf16.msra.mxu0 %v4822
        %5457 = vmatpush.bf16.msra.mxu0 %v4816
        %5458 = vmatpush.bf16.msra.mxu0 %v4810
        %5459 = vmatpush.bf16.msra.mxu0 %v4804
        %5460 = vmatpush.bf16.msra.mxu0 %v4798
        %5461 = vmatpush.bf16.msra.mxu0 %v4792
        %5462 = vmatpush.bf16.msra.mxu0 %v4786
        %5463 = vmatpush.bf16.msra.mxu0 %v4780
        %5464 = vmatmul.bf16.gmra.mxu0 %v4979
        %v5465 = vpop.f32.mrf.mxu0
        %v5466 = vadd.f32 %v5452, %v5465
        %v5467 = vpop.f32.mrf.mxu0
        %v5468 = vadd.f32 %v5454, %v5467
        %5469 = vdwg.mxu0
        %5470 = vmatpush.bf16.msra.mxu0 %v4870
        %5471 = vmatpush.bf16.msra.mxu0 %v4864
        %5472 = vmatpush.bf16.msra.mxu0 %v4858
        %5473 = vmatpush.bf16.msra.mxu0 %v4852
        %5474 = vmatpush.bf16.msra.mxu0 %v4846
        %5475 = vmatpush.bf16.msra.mxu0 %v4840
        %5476 = vmatpush.bf16.msra.mxu0 %v4834
        %5477 = vmatpush.bf16.msra.mxu0 %v4828
        %5478 = vmatmul.bf16.gmra.mxu0 %v4980
        %v5479 = vpop.f32.mrf.mxu0
        %v5480 = vadd.f32 %v5466, %v5479
        %v5481 = vpop.f32.mrf.mxu0
        %v5482 = vadd.f32 %v5468, %v5481
        %5483 = vdwg.mxu0
        %5484 = vmatpush.bf16.msra.mxu0 %v4918
        %5485 = vmatpush.bf16.msra.mxu0 %v4912
        %5486 = vmatpush.bf16.msra.mxu0 %v4906
        %5487 = vmatpush.bf16.msra.mxu0 %v4900
        %5488 = vmatpush.bf16.msra.mxu0 %v4894
        %5489 = vmatpush.bf16.msra.mxu0 %v4888
        %5490 = vmatpush.bf16.msra.mxu0 %v4882
        %5491 = vmatpush.bf16.msra.mxu0 %v4876
        %5492 = vmatmul.bf16.gmra.mxu0 %v4981
        %v5493 = vpop.f32.mrf.mxu0
        %v5494 = vadd.f32 %v5480, %v5493
        %v5495 = vpop.f32.mrf.mxu0
        %v5496 = vadd.f32 %v5482, %v5495
        %5497 = vdwg.mxu0
        %5498 = vmatpush.bf16.msra.mxu0 %v4391
        %5499 = vmatpush.bf16.msra.mxu0 %v4385
        %5500 = vmatpush.bf16.msra.mxu0 %v4379
        %5501 = vmatpush.bf16.msra.mxu0 %v4373
        %5502 = vmatpush.bf16.msra.mxu0 %v4367
        %5503 = vmatpush.bf16.msra.mxu0 %v4361
        %5504 = vmatpush.bf16.msra.mxu0 %v4355
        %5505 = vmatpush.bf16.msra.mxu0 %v4349
        %5506 = vmatmul.bf16.gmra.mxu0 %v4970
        %v5507 = vpop.f32.mrf.mxu0
        %v5508 = vadd.f32 0.0, %v5507
        %v5509 = vpop.f32.mrf.mxu0
        %v5510 = vadd.f32 0.0, %v5509
        %5511 = vdwg.mxu0
        %5512 = vmatpush.bf16.msra.mxu0 %v4439
        %5513 = vmatpush.bf16.msra.mxu0 %v4433
        %5514 = vmatpush.bf16.msra.mxu0 %v4427
        %5515 = vmatpush.bf16.msra.mxu0 %v4421
        %5516 = vmatpush.bf16.msra.mxu0 %v4415
        %5517 = vmatpush.bf16.msra.mxu0 %v4409
        %5518 = vmatpush.bf16.msra.mxu0 %v4403
        %5519 = vmatpush.bf16.msra.mxu0 %v4397
        %5520 = vmatmul.bf16.gmra.mxu0 %v4971
        %v5521 = vpop.f32.mrf.mxu0
        %v5522 = vadd.f32 %v5508, %v5521
        %v5523 = vpop.f32.mrf.mxu0
        %v5524 = vadd.f32 %v5510, %v5523
        %5525 = vdwg.mxu0
        %5526 = vmatpush.bf16.msra.mxu0 %v4487
        %5527 = vmatpush.bf16.msra.mxu0 %v4481
        %5528 = vmatpush.bf16.msra.mxu0 %v4475
        %5529 = vmatpush.bf16.msra.mxu0 %v4469
        %5530 = vmatpush.bf16.msra.mxu0 %v4463
        %5531 = vmatpush.bf16.msra.mxu0 %v4457
        %5532 = vmatpush.bf16.msra.mxu0 %v4451
        %5533 = vmatpush.bf16.msra.mxu0 %v4445
        %5534 = vmatmul.bf16.gmra.mxu0 %v4972
        %v5535 = vpop.f32.mrf.mxu0
        %v5536 = vadd.f32 %v5522, %v5535
        %v5537 = vpop.f32.mrf.mxu0
        %v5538 = vadd.f32 %v5524, %v5537
        %5539 = vdwg.mxu0
        %5540 = vmatpush.bf16.msra.mxu0 %v4535
        %5541 = vmatpush.bf16.msra.mxu0 %v4529
        %5542 = vmatpush.bf16.msra.mxu0 %v4523
        %5543 = vmatpush.bf16.msra.mxu0 %v4517
        %5544 = vmatpush.bf16.msra.mxu0 %v4511
        %5545 = vmatpush.bf16.msra.mxu0 %v4505
        %5546 = vmatpush.bf16.msra.mxu0 %v4499
        %5547 = vmatpush.bf16.msra.mxu0 %v4493
        %5548 = vmatmul.bf16.gmra.mxu0 %v4973
        %v5549 = vpop.f32.mrf.mxu0
        %v5550 = vadd.f32 %v5536, %v5549
        %v5551 = vpop.f32.mrf.mxu0
        %v5552 = vadd.f32 %v5538, %v5551
        %5553 = vdwg.mxu0
        %5554 = vmatpush.bf16.msra.mxu0 %v4583
        %5555 = vmatpush.bf16.msra.mxu0 %v4577
        %5556 = vmatpush.bf16.msra.mxu0 %v4571
        %5557 = vmatpush.bf16.msra.mxu0 %v4565
        %5558 = vmatpush.bf16.msra.mxu0 %v4559
        %5559 = vmatpush.bf16.msra.mxu0 %v4553
        %5560 = vmatpush.bf16.msra.mxu0 %v4547
        %5561 = vmatpush.bf16.msra.mxu0 %v4541
        %5562 = vmatmul.bf16.gmra.mxu0 %v4974
        %v5563 = vpop.f32.mrf.mxu0
        %v5564 = vadd.f32 %v5550, %v5563
        %v5565 = vpop.f32.mrf.mxu0
        %v5566 = vadd.f32 %v5552, %v5565
        %5567 = vdwg.mxu0
        %5568 = vmatpush.bf16.msra.mxu0 %v4631
        %5569 = vmatpush.bf16.msra.mxu0 %v4625
        %5570 = vmatpush.bf16.msra.mxu0 %v4619
        %5571 = vmatpush.bf16.msra.mxu0 %v4613
        %5572 = vmatpush.bf16.msra.mxu0 %v4607
        %5573 = vmatpush.bf16.msra.mxu0 %v4601
        %5574 = vmatpush.bf16.msra.mxu0 %v4595
        %5575 = vmatpush.bf16.msra.mxu0 %v4589
        %5576 = vmatmul.bf16.gmra.mxu0 %v4975
        %v5577 = vpop.f32.mrf.mxu0
        %v5578 = vadd.f32 %v5564, %v5577
        %v5579 = vpop.f32.mrf.mxu0
        %v5580 = vadd.f32 %v5566, %v5579
        %5581 = vdwg.mxu0
        %5582 = vmatpush.bf16.msra.mxu0 %v4679
        %5583 = vmatpush.bf16.msra.mxu0 %v4673
        %5584 = vmatpush.bf16.msra.mxu0 %v4667
        %5585 = vmatpush.bf16.msra.mxu0 %v4661
        %5586 = vmatpush.bf16.msra.mxu0 %v4655
        %5587 = vmatpush.bf16.msra.mxu0 %v4649
        %5588 = vmatpush.bf16.msra.mxu0 %v4643
        %5589 = vmatpush.bf16.msra.mxu0 %v4637
        %5590 = vmatmul.bf16.gmra.mxu0 %v4976
        %v5591 = vpop.f32.mrf.mxu0
        %v5592 = vadd.f32 %v5578, %v5591
        %v5593 = vpop.f32.mrf.mxu0
        %v5594 = vadd.f32 %v5580, %v5593
        %5595 = vdwg.mxu0
        %5596 = vmatpush.bf16.msra.mxu0 %v4727
        %5597 = vmatpush.bf16.msra.mxu0 %v4721
        %5598 = vmatpush.bf16.msra.mxu0 %v4715
        %5599 = vmatpush.bf16.msra.mxu0 %v4709
        %5600 = vmatpush.bf16.msra.mxu0 %v4703
        %5601 = vmatpush.bf16.msra.mxu0 %v4697
        %5602 = vmatpush.bf16.msra.mxu0 %v4691
        %5603 = vmatpush.bf16.msra.mxu0 %v4685
        %5604 = vmatmul.bf16.gmra.mxu0 %v4977
        %v5605 = vpop.f32.mrf.mxu0
        %v5606 = vadd.f32 %v5592, %v5605
        %v5607 = vpop.f32.mrf.mxu0
        %v5608 = vadd.f32 %v5594, %v5607
        %5609 = vdwg.mxu0
        %5610 = vmatpush.bf16.msra.mxu0 %v4775
        %5611 = vmatpush.bf16.msra.mxu0 %v4769
        %5612 = vmatpush.bf16.msra.mxu0 %v4763
        %5613 = vmatpush.bf16.msra.mxu0 %v4757
        %5614 = vmatpush.bf16.msra.mxu0 %v4751
        %5615 = vmatpush.bf16.msra.mxu0 %v4745
        %5616 = vmatpush.bf16.msra.mxu0 %v4739
        %5617 = vmatpush.bf16.msra.mxu0 %v4733
        %5618 = vmatmul.bf16.gmra.mxu0 %v4978
        %v5619 = vpop.f32.mrf.mxu0
        %v5620 = vadd.f32 %v5606, %v5619
        %v5621 = vpop.f32.mrf.mxu0
        %v5622 = vadd.f32 %v5608, %v5621
        %5623 = vdwg.mxu0
        %5624 = vmatpush.bf16.msra.mxu0 %v4823
        %5625 = vmatpush.bf16.msra.mxu0 %v4817
        %5626 = vmatpush.bf16.msra.mxu0 %v4811
        %5627 = vmatpush.bf16.msra.mxu0 %v4805
        %5628 = vmatpush.bf16.msra.mxu0 %v4799
        %5629 = vmatpush.bf16.msra.mxu0 %v4793
        %5630 = vmatpush.bf16.msra.mxu0 %v4787
        %5631 = vmatpush.bf16.msra.mxu0 %v4781
        %5632 = vmatmul.bf16.gmra.mxu0 %v4979
        %v5633 = vpop.f32.mrf.mxu0
        %v5634 = vadd.f32 %v5620, %v5633
        %v5635 = vpop.f32.mrf.mxu0
        %v5636 = vadd.f32 %v5622, %v5635
        %5637 = vdwg.mxu0
        %5638 = vmatpush.bf16.msra.mxu0 %v4871
        %5639 = vmatpush.bf16.msra.mxu0 %v4865
        %5640 = vmatpush.bf16.msra.mxu0 %v4859
        %5641 = vmatpush.bf16.msra.mxu0 %v4853
        %5642 = vmatpush.bf16.msra.mxu0 %v4847
        %5643 = vmatpush.bf16.msra.mxu0 %v4841
        %5644 = vmatpush.bf16.msra.mxu0 %v4835
        %5645 = vmatpush.bf16.msra.mxu0 %v4829
        %5646 = vmatmul.bf16.gmra.mxu0 %v4980
        %v5647 = vpop.f32.mrf.mxu0
        %v5648 = vadd.f32 %v5634, %v5647
        %v5649 = vpop.f32.mrf.mxu0
        %v5650 = vadd.f32 %v5636, %v5649
        %5651 = vdwg.mxu0
        %5652 = vmatpush.bf16.msra.mxu0 %v4919
        %5653 = vmatpush.bf16.msra.mxu0 %v4913
        %5654 = vmatpush.bf16.msra.mxu0 %v4907
        %5655 = vmatpush.bf16.msra.mxu0 %v4901
        %5656 = vmatpush.bf16.msra.mxu0 %v4895
        %5657 = vmatpush.bf16.msra.mxu0 %v4889
        %5658 = vmatpush.bf16.msra.mxu0 %v4883
        %5659 = vmatpush.bf16.msra.mxu0 %v4877
        %5660 = vmatmul.bf16.gmra.mxu0 %v4981
        %v5661 = vpop.f32.mrf.mxu0
        %v5662 = vadd.f32 %v5648, %v5661
        %v5663 = vpop.f32.mrf.mxu0
        %v5664 = vadd.f32 %v5650, %v5663
        %5665 = vdwg.mxu0
        %5666 = vmatpush.bf16.msra.mxu0 %v4392
        %5667 = vmatpush.bf16.msra.mxu0 %v4386
        %5668 = vmatpush.bf16.msra.mxu0 %v4380
        %5669 = vmatpush.bf16.msra.mxu0 %v4374
        %5670 = vmatpush.bf16.msra.mxu0 %v4368
        %5671 = vmatpush.bf16.msra.mxu0 %v4362
        %5672 = vmatpush.bf16.msra.mxu0 %v4356
        %5673 = vmatpush.bf16.msra.mxu0 %v4350
        %5674 = vmatmul.bf16.gmra.mxu0 %v4970
        %v5675 = vpop.f32.mrf.mxu0
        %v5676 = vadd.f32 0.0, %v5675
        %v5677 = vpop.f32.mrf.mxu0
        %v5678 = vadd.f32 0.0, %v5677
        %5679 = vdwg.mxu0
        %5680 = vmatpush.bf16.msra.mxu0 %v4440
        %5681 = vmatpush.bf16.msra.mxu0 %v4434
        %5682 = vmatpush.bf16.msra.mxu0 %v4428
        %5683 = vmatpush.bf16.msra.mxu0 %v4422
        %5684 = vmatpush.bf16.msra.mxu0 %v4416
        %5685 = vmatpush.bf16.msra.mxu0 %v4410
        %5686 = vmatpush.bf16.msra.mxu0 %v4404
        %5687 = vmatpush.bf16.msra.mxu0 %v4398
        %5688 = vmatmul.bf16.gmra.mxu0 %v4971
        %v5689 = vpop.f32.mrf.mxu0
        %v5690 = vadd.f32 %v5676, %v5689
        %v5691 = vpop.f32.mrf.mxu0
        %v5692 = vadd.f32 %v5678, %v5691
        %5693 = vdwg.mxu0
        %5694 = vmatpush.bf16.msra.mxu0 %v4488
        %5695 = vmatpush.bf16.msra.mxu0 %v4482
        %5696 = vmatpush.bf16.msra.mxu0 %v4476
        %5697 = vmatpush.bf16.msra.mxu0 %v4470
        %5698 = vmatpush.bf16.msra.mxu0 %v4464
        %5699 = vmatpush.bf16.msra.mxu0 %v4458
        %5700 = vmatpush.bf16.msra.mxu0 %v4452
        %5701 = vmatpush.bf16.msra.mxu0 %v4446
        %5702 = vmatmul.bf16.gmra.mxu0 %v4972
        %v5703 = vpop.f32.mrf.mxu0
        %v5704 = vadd.f32 %v5690, %v5703
        %v5705 = vpop.f32.mrf.mxu0
        %v5706 = vadd.f32 %v5692, %v5705
        %5707 = vdwg.mxu0
        %5708 = vmatpush.bf16.msra.mxu0 %v4536
        %5709 = vmatpush.bf16.msra.mxu0 %v4530
        %5710 = vmatpush.bf16.msra.mxu0 %v4524
        %5711 = vmatpush.bf16.msra.mxu0 %v4518
        %5712 = vmatpush.bf16.msra.mxu0 %v4512
        %5713 = vmatpush.bf16.msra.mxu0 %v4506
        %5714 = vmatpush.bf16.msra.mxu0 %v4500
        %5715 = vmatpush.bf16.msra.mxu0 %v4494
        %5716 = vmatmul.bf16.gmra.mxu0 %v4973
        %v5717 = vpop.f32.mrf.mxu0
        %v5718 = vadd.f32 %v5704, %v5717
        %v5719 = vpop.f32.mrf.mxu0
        %v5720 = vadd.f32 %v5706, %v5719
        %5721 = vdwg.mxu0
        %5722 = vmatpush.bf16.msra.mxu0 %v4584
        %5723 = vmatpush.bf16.msra.mxu0 %v4578
        %5724 = vmatpush.bf16.msra.mxu0 %v4572
        %5725 = vmatpush.bf16.msra.mxu0 %v4566
        %5726 = vmatpush.bf16.msra.mxu0 %v4560
        %5727 = vmatpush.bf16.msra.mxu0 %v4554
        %5728 = vmatpush.bf16.msra.mxu0 %v4548
        %5729 = vmatpush.bf16.msra.mxu0 %v4542
        %5730 = vmatmul.bf16.gmra.mxu0 %v4974
        %v5731 = vpop.f32.mrf.mxu0
        %v5732 = vadd.f32 %v5718, %v5731
        %v5733 = vpop.f32.mrf.mxu0
        %v5734 = vadd.f32 %v5720, %v5733
        %5735 = vdwg.mxu0
        %5736 = vmatpush.bf16.msra.mxu0 %v4632
        %5737 = vmatpush.bf16.msra.mxu0 %v4626
        %5738 = vmatpush.bf16.msra.mxu0 %v4620
        %5739 = vmatpush.bf16.msra.mxu0 %v4614
        %5740 = vmatpush.bf16.msra.mxu0 %v4608
        %5741 = vmatpush.bf16.msra.mxu0 %v4602
        %5742 = vmatpush.bf16.msra.mxu0 %v4596
        %5743 = vmatpush.bf16.msra.mxu0 %v4590
        %5744 = vmatmul.bf16.gmra.mxu0 %v4975
        %v5745 = vpop.f32.mrf.mxu0
        %v5746 = vadd.f32 %v5732, %v5745
        %v5747 = vpop.f32.mrf.mxu0
        %v5748 = vadd.f32 %v5734, %v5747
        %5749 = vdwg.mxu0
        %5750 = vmatpush.bf16.msra.mxu0 %v4680
        %5751 = vmatpush.bf16.msra.mxu0 %v4674
        %5752 = vmatpush.bf16.msra.mxu0 %v4668
        %5753 = vmatpush.bf16.msra.mxu0 %v4662
        %5754 = vmatpush.bf16.msra.mxu0 %v4656
        %5755 = vmatpush.bf16.msra.mxu0 %v4650
        %5756 = vmatpush.bf16.msra.mxu0 %v4644
        %5757 = vmatpush.bf16.msra.mxu0 %v4638
        %5758 = vmatmul.bf16.gmra.mxu0 %v4976
        %v5759 = vpop.f32.mrf.mxu0
        %v5760 = vadd.f32 %v5746, %v5759
        %v5761 = vpop.f32.mrf.mxu0
        %v5762 = vadd.f32 %v5748, %v5761
        %5763 = vdwg.mxu0
        %5764 = vmatpush.bf16.msra.mxu0 %v4728
        %5765 = vmatpush.bf16.msra.mxu0 %v4722
        %5766 = vmatpush.bf16.msra.mxu0 %v4716
        %5767 = vmatpush.bf16.msra.mxu0 %v4710
        %5768 = vmatpush.bf16.msra.mxu0 %v4704
        %5769 = vmatpush.bf16.msra.mxu0 %v4698
        %5770 = vmatpush.bf16.msra.mxu0 %v4692
        %5771 = vmatpush.bf16.msra.mxu0 %v4686
        %5772 = vmatmul.bf16.gmra.mxu0 %v4977
        %v5773 = vpop.f32.mrf.mxu0
        %v5774 = vadd.f32 %v5760, %v5773
        %v5775 = vpop.f32.mrf.mxu0
        %v5776 = vadd.f32 %v5762, %v5775
        %5777 = vdwg.mxu0
        %5778 = vmatpush.bf16.msra.mxu0 %v4776
        %5779 = vmatpush.bf16.msra.mxu0 %v4770
        %5780 = vmatpush.bf16.msra.mxu0 %v4764
        %5781 = vmatpush.bf16.msra.mxu0 %v4758
        %5782 = vmatpush.bf16.msra.mxu0 %v4752
        %5783 = vmatpush.bf16.msra.mxu0 %v4746
        %5784 = vmatpush.bf16.msra.mxu0 %v4740
        %5785 = vmatpush.bf16.msra.mxu0 %v4734
        %5786 = vmatmul.bf16.gmra.mxu0 %v4978
        %v5787 = vpop.f32.mrf.mxu0
        %v5788 = vadd.f32 %v5774, %v5787
        %v5789 = vpop.f32.mrf.mxu0
        %v5790 = vadd.f32 %v5776, %v5789
        %5791 = vdwg.mxu0
        %5792 = vmatpush.bf16.msra.mxu0 %v4824
        %5793 = vmatpush.bf16.msra.mxu0 %v4818
        %5794 = vmatpush.bf16.msra.mxu0 %v4812
        %5795 = vmatpush.bf16.msra.mxu0 %v4806
        %5796 = vmatpush.bf16.msra.mxu0 %v4800
        %5797 = vmatpush.bf16.msra.mxu0 %v4794
        %5798 = vmatpush.bf16.msra.mxu0 %v4788
        %5799 = vmatpush.bf16.msra.mxu0 %v4782
        %5800 = vmatmul.bf16.gmra.mxu0 %v4979
        %v5801 = vpop.f32.mrf.mxu0
        %v5802 = vadd.f32 %v5788, %v5801
        %v5803 = vpop.f32.mrf.mxu0
        %v5804 = vadd.f32 %v5790, %v5803
        %5805 = vdwg.mxu0
        %5806 = vmatpush.bf16.msra.mxu0 %v4872
        %5807 = vmatpush.bf16.msra.mxu0 %v4866
        %5808 = vmatpush.bf16.msra.mxu0 %v4860
        %5809 = vmatpush.bf16.msra.mxu0 %v4854
        %5810 = vmatpush.bf16.msra.mxu0 %v4848
        %5811 = vmatpush.bf16.msra.mxu0 %v4842
        %5812 = vmatpush.bf16.msra.mxu0 %v4836
        %5813 = vmatpush.bf16.msra.mxu0 %v4830
        %5814 = vmatmul.bf16.gmra.mxu0 %v4980
        %v5815 = vpop.f32.mrf.mxu0
        %v5816 = vadd.f32 %v5802, %v5815
        %v5817 = vpop.f32.mrf.mxu0
        %v5818 = vadd.f32 %v5804, %v5817
        %5819 = vdwg.mxu0
        %5820 = vmatpush.bf16.msra.mxu0 %v4920
        %5821 = vmatpush.bf16.msra.mxu0 %v4914
        %5822 = vmatpush.bf16.msra.mxu0 %v4908
        %5823 = vmatpush.bf16.msra.mxu0 %v4902
        %5824 = vmatpush.bf16.msra.mxu0 %v4896
        %5825 = vmatpush.bf16.msra.mxu0 %v4890
        %5826 = vmatpush.bf16.msra.mxu0 %v4884
        %5827 = vmatpush.bf16.msra.mxu0 %v4878
        %5828 = vmatmul.bf16.gmra.mxu0 %v4981
        %v5829 = vpop.f32.mrf.mxu0
        %v5830 = vadd.f32 %v5816, %v5829
        %v5831 = vpop.f32.mrf.mxu0
        %v5832 = vadd.f32 %v5818, %v5831
        %5833 = vdwg.mxu0
        %5834 = vmatpush.bf16.msra.mxu0 %v4393
        %5835 = vmatpush.bf16.msra.mxu0 %v4387
        %5836 = vmatpush.bf16.msra.mxu0 %v4381
        %5837 = vmatpush.bf16.msra.mxu0 %v4375
        %5838 = vmatpush.bf16.msra.mxu0 %v4369
        %5839 = vmatpush.bf16.msra.mxu0 %v4363
        %5840 = vmatpush.bf16.msra.mxu0 %v4357
        %5841 = vmatpush.bf16.msra.mxu0 %v4351
        %5842 = vmatmul.bf16.gmra.mxu0 %v4970
        %v5843 = vpop.f32.mrf.mxu0
        %v5844 = vadd.f32 0.0, %v5843
        %v5845 = vpop.f32.mrf.mxu0
        %v5846 = vadd.f32 0.0, %v5845
        %5847 = vdwg.mxu0
        %5848 = vmatpush.bf16.msra.mxu0 %v4441
        %5849 = vmatpush.bf16.msra.mxu0 %v4435
        %5850 = vmatpush.bf16.msra.mxu0 %v4429
        %5851 = vmatpush.bf16.msra.mxu0 %v4423
        %5852 = vmatpush.bf16.msra.mxu0 %v4417
        %5853 = vmatpush.bf16.msra.mxu0 %v4411
        %5854 = vmatpush.bf16.msra.mxu0 %v4405
        %5855 = vmatpush.bf16.msra.mxu0 %v4399
        %5856 = vmatmul.bf16.gmra.mxu0 %v4971
        %v5857 = vpop.f32.mrf.mxu0
        %v5858 = vadd.f32 %v5844, %v5857
        %v5859 = vpop.f32.mrf.mxu0
        %v5860 = vadd.f32 %v5846, %v5859
        %5861 = vdwg.mxu0
        %5862 = vmatpush.bf16.msra.mxu0 %v4489
        %5863 = vmatpush.bf16.msra.mxu0 %v4483
        %5864 = vmatpush.bf16.msra.mxu0 %v4477
        %5865 = vmatpush.bf16.msra.mxu0 %v4471
        %5866 = vmatpush.bf16.msra.mxu0 %v4465
        %5867 = vmatpush.bf16.msra.mxu0 %v4459
        %5868 = vmatpush.bf16.msra.mxu0 %v4453
        %5869 = vmatpush.bf16.msra.mxu0 %v4447
        %5870 = vmatmul.bf16.gmra.mxu0 %v4972
        %v5871 = vpop.f32.mrf.mxu0
        %v5872 = vadd.f32 %v5858, %v5871
        %v5873 = vpop.f32.mrf.mxu0
        %v5874 = vadd.f32 %v5860, %v5873
        %5875 = vdwg.mxu0
        %5876 = vmatpush.bf16.msra.mxu0 %v4537
        %5877 = vmatpush.bf16.msra.mxu0 %v4531
        %5878 = vmatpush.bf16.msra.mxu0 %v4525
        %5879 = vmatpush.bf16.msra.mxu0 %v4519
        %5880 = vmatpush.bf16.msra.mxu0 %v4513
        %5881 = vmatpush.bf16.msra.mxu0 %v4507
        %5882 = vmatpush.bf16.msra.mxu0 %v4501
        %5883 = vmatpush.bf16.msra.mxu0 %v4495
        %5884 = vmatmul.bf16.gmra.mxu0 %v4973
        %v5885 = vpop.f32.mrf.mxu0
        %v5886 = vadd.f32 %v5872, %v5885
        %v5887 = vpop.f32.mrf.mxu0
        %v5888 = vadd.f32 %v5874, %v5887
        %5889 = vdwg.mxu0
        %5890 = vmatpush.bf16.msra.mxu0 %v4585
        %5891 = vmatpush.bf16.msra.mxu0 %v4579
        %5892 = vmatpush.bf16.msra.mxu0 %v4573
        %5893 = vmatpush.bf16.msra.mxu0 %v4567
        %5894 = vmatpush.bf16.msra.mxu0 %v4561
        %5895 = vmatpush.bf16.msra.mxu0 %v4555
        %5896 = vmatpush.bf16.msra.mxu0 %v4549
        %5897 = vmatpush.bf16.msra.mxu0 %v4543
        %5898 = vmatmul.bf16.gmra.mxu0 %v4974
        %v5899 = vpop.f32.mrf.mxu0
        %v5900 = vadd.f32 %v5886, %v5899
        %v5901 = vpop.f32.mrf.mxu0
        %v5902 = vadd.f32 %v5888, %v5901
        %5903 = vdwg.mxu0
        %5904 = vmatpush.bf16.msra.mxu0 %v4633
        %5905 = vmatpush.bf16.msra.mxu0 %v4627
        %5906 = vmatpush.bf16.msra.mxu0 %v4621
        %5907 = vmatpush.bf16.msra.mxu0 %v4615
        %5908 = vmatpush.bf16.msra.mxu0 %v4609
        %5909 = vmatpush.bf16.msra.mxu0 %v4603
        %5910 = vmatpush.bf16.msra.mxu0 %v4597
        %5911 = vmatpush.bf16.msra.mxu0 %v4591
        %5912 = vmatmul.bf16.gmra.mxu0 %v4975
        %v5913 = vpop.f32.mrf.mxu0
        %v5914 = vadd.f32 %v5900, %v5913
        %v5915 = vpop.f32.mrf.mxu0
        %v5916 = vadd.f32 %v5902, %v5915
        %5917 = vdwg.mxu0
        %5918 = vmatpush.bf16.msra.mxu0 %v4681
        %5919 = vmatpush.bf16.msra.mxu0 %v4675
        %5920 = vmatpush.bf16.msra.mxu0 %v4669
        %5921 = vmatpush.bf16.msra.mxu0 %v4663
        %5922 = vmatpush.bf16.msra.mxu0 %v4657
        %5923 = vmatpush.bf16.msra.mxu0 %v4651
        %5924 = vmatpush.bf16.msra.mxu0 %v4645
        %5925 = vmatpush.bf16.msra.mxu0 %v4639
        %5926 = vmatmul.bf16.gmra.mxu0 %v4976
        %v5927 = vpop.f32.mrf.mxu0
        %v5928 = vadd.f32 %v5914, %v5927
        %v5929 = vpop.f32.mrf.mxu0
        %v5930 = vadd.f32 %v5916, %v5929
        %5931 = vdwg.mxu0
        %5932 = vmatpush.bf16.msra.mxu0 %v4729
        %5933 = vmatpush.bf16.msra.mxu0 %v4723
        %5934 = vmatpush.bf16.msra.mxu0 %v4717
        %5935 = vmatpush.bf16.msra.mxu0 %v4711
        %5936 = vmatpush.bf16.msra.mxu0 %v4705
        %5937 = vmatpush.bf16.msra.mxu0 %v4699
        %5938 = vmatpush.bf16.msra.mxu0 %v4693
        %5939 = vmatpush.bf16.msra.mxu0 %v4687
        %5940 = vmatmul.bf16.gmra.mxu0 %v4977
        %v5941 = vpop.f32.mrf.mxu0
        %v5942 = vadd.f32 %v5928, %v5941
        %v5943 = vpop.f32.mrf.mxu0
        %v5944 = vadd.f32 %v5930, %v5943
        %5945 = vdwg.mxu0
        %5946 = vmatpush.bf16.msra.mxu0 %v4777
        %5947 = vmatpush.bf16.msra.mxu0 %v4771
        %5948 = vmatpush.bf16.msra.mxu0 %v4765
        %5949 = vmatpush.bf16.msra.mxu0 %v4759
        %5950 = vmatpush.bf16.msra.mxu0 %v4753
        %5951 = vmatpush.bf16.msra.mxu0 %v4747
        %5952 = vmatpush.bf16.msra.mxu0 %v4741
        %5953 = vmatpush.bf16.msra.mxu0 %v4735
        %5954 = vmatmul.bf16.gmra.mxu0 %v4978
        %v5955 = vpop.f32.mrf.mxu0
        %v5956 = vadd.f32 %v5942, %v5955
        %v5957 = vpop.f32.mrf.mxu0
        %v5958 = vadd.f32 %v5944, %v5957
        %5959 = vdwg.mxu0
        %5960 = vmatpush.bf16.msra.mxu0 %v4825
        %5961 = vmatpush.bf16.msra.mxu0 %v4819
        %5962 = vmatpush.bf16.msra.mxu0 %v4813
        %5963 = vmatpush.bf16.msra.mxu0 %v4807
        %5964 = vmatpush.bf16.msra.mxu0 %v4801
        %5965 = vmatpush.bf16.msra.mxu0 %v4795
        %5966 = vmatpush.bf16.msra.mxu0 %v4789
        %5967 = vmatpush.bf16.msra.mxu0 %v4783
        %5968 = vmatmul.bf16.gmra.mxu0 %v4979
        %v5969 = vpop.f32.mrf.mxu0
        %v5970 = vadd.f32 %v5956, %v5969
        %v5971 = vpop.f32.mrf.mxu0
        %v5972 = vadd.f32 %v5958, %v5971
        %5973 = vdwg.mxu0
        %5974 = vmatpush.bf16.msra.mxu0 %v4873
        %5975 = vmatpush.bf16.msra.mxu0 %v4867
        %5976 = vmatpush.bf16.msra.mxu0 %v4861
        %5977 = vmatpush.bf16.msra.mxu0 %v4855
        %5978 = vmatpush.bf16.msra.mxu0 %v4849
        %5979 = vmatpush.bf16.msra.mxu0 %v4843
        %5980 = vmatpush.bf16.msra.mxu0 %v4837
        %5981 = vmatpush.bf16.msra.mxu0 %v4831
        %5982 = vmatmul.bf16.gmra.mxu0 %v4980
        %v5983 = vpop.f32.mrf.mxu0
        %v5984 = vadd.f32 %v5970, %v5983
        %v5985 = vpop.f32.mrf.mxu0
        %v5986 = vadd.f32 %v5972, %v5985
        %5987 = vdwg.mxu0
        %5988 = vmatpush.bf16.msra.mxu0 %v4921
        %5989 = vmatpush.bf16.msra.mxu0 %v4915
        %5990 = vmatpush.bf16.msra.mxu0 %v4909
        %5991 = vmatpush.bf16.msra.mxu0 %v4903
        %5992 = vmatpush.bf16.msra.mxu0 %v4897
        %5993 = vmatpush.bf16.msra.mxu0 %v4891
        %5994 = vmatpush.bf16.msra.mxu0 %v4885
        %5995 = vmatpush.bf16.msra.mxu0 %v4879
        %5996 = vmatmul.bf16.gmra.mxu0 %v4981
        %v5997 = vpop.f32.mrf.mxu0
        %v5998 = vadd.f32 %v5984, %v5997
        %v5999 = vpop.f32.mrf.mxu0
        %v6000 = vadd.f32 %v5986, %v5999
        %6001 = vdwg.mxu0
        %v6002 = vld [vmem:[%s492] sm:$0x3f]
        %v6004 = vperm.slane %v6002, 0
        %v6005 = vperm.slane %v6002, 1
        %v6006 = vperm.slane %v6002, 2
        %v6007 = vperm.slane %v6002, 3
        %v6008 = vperm.slane %v6002, 4
        %v6009 = vperm.slane %v6002, 5
        %v6016 = vmul.f32 %v5158, %v6004
        %v6017 = vmul.f32 %v5326, %v6005
        %v6018 = vmul.f32 %v5494, %v6006
        %v6019 = vmul.f32 %v5662, %v6007
        %v6020 = vmul.f32 %v5830, %v6008
        %v6021 = vmul.f32 %v5998, %v6009
        %v6022 = vmul.f32 %v5160, %v6004
        %v6023 = vmul.f32 %v5328, %v6005
        %v6024 = vmul.f32 %v5496, %v6006
        %v6025 = vmul.f32 %v5664, %v6007
        %v6026 = vmul.f32 %v5832, %v6008
        %v6027 = vmul.f32 %v6000, %v6009
        %v6028 = vld [vmem:[%s502] sm:$0x3f]
        %v6030 = vperm.slane %v6028, 0
        %v6031 = vperm.slane %v6028, 1
        %v6032 = vperm.slane %v6028, 2
        %v6033 = vperm.slane %v6028, 3
        %v6034 = vperm.slane %v6028, 4
        %v6035 = vperm.slane %v6028, 5
        %v6042 = vadd.f32 %v6016, %v6030
        %v6043 = vadd.f32 %v6017, %v6031
        %v6044 = vadd.f32 %v6018, %v6032
        %v6045 = vadd.f32 %v6019, %v6033
        %v6046 = vadd.f32 %v6020, %v6034
        %v6047 = vadd.f32 %v6021, %v6035
        %v6048 = vadd.f32 %v6022, %v6030
        %v6049 = vadd.f32 %v6023, %v6031
        %v6050 = vadd.f32 %v6024, %v6032
        %v6051 = vadd.f32 %v6025, %v6033
        %v6052 = vadd.f32 %v6026, %v6034
        %v6053 = vadd.f32 %v6027, %v6035
        %v6054 = vxor.u32 %v6042, 2147483648
        %v6055 = vxor.u32 %v6043, 2147483648
        %v6056 = vxor.u32 %v6044, 2147483648
        %v6057 = vxor.u32 %v6045, 2147483648
        %v6058 = vxor.u32 %v6046, 2147483648
        %v6059 = vxor.u32 %v6047, 2147483648
        %v6060 = vxor.u32 %v6048, 2147483648
        %v6061 = vxor.u32 %v6049, 2147483648
        %v6062 = vxor.u32 %v6050, 2147483648
        %v6063 = vxor.u32 %v6051, 2147483648
        %v6064 = vxor.u32 %v6052, 2147483648
        %v6065 = vxor.u32 %v6053, 2147483648
        %v6066 = vmul.f32 %v6054, 1.442695
        %v6067 = vpow.pop %v6066
        %v6068 = vmul.f32 %v6055, 1.442695
        %v6069 = vpow.pop %v6068
        %v6070 = vmul.f32 %v6056, 1.442695
        %v6071 = vpow.pop %v6070
        %v6072 = vmul.f32 %v6057, 1.442695
        %v6073 = vpow.pop %v6072
        %v6074 = vmul.f32 %v6058, 1.442695
        %v6075 = vpow.pop %v6074
        %v6076 = vmul.f32 %v6059, 1.442695
        %v6077 = vpow.pop %v6076
        %v6078 = vmul.f32 %v6060, 1.442695
        %v6079 = vpow.pop %v6078
        %v6080 = vmul.f32 %v6061, 1.442695
        %v6081 = vpow.pop %v6080
        %v6082 = vmul.f32 %v6062, 1.442695
        %v6083 = vpow.pop %v6082
        %v6084 = vmul.f32 %v6063, 1.442695
        %v6085 = vpow.pop %v6084
        %v6086 = vmul.f32 %v6064, 1.442695
        %v6087 = vpow.pop %v6086
        %v6088 = vmul.f32 %v6065, 1.442695
        %v6089 = vpow.pop %v6088
        %v6090 = vadd.f32 %v6067, 1.0
        %v6091 = vadd.f32 %v6069, 1.0
        %v6092 = vadd.f32 %v6071, 1.0
        %v6093 = vadd.f32 %v6073, 1.0
        %v6094 = vadd.f32 %v6075, 1.0
        %v6095 = vadd.f32 %v6077, 1.0
        %v6096 = vadd.f32 %v6079, 1.0
        %v6097 = vadd.f32 %v6081, 1.0
        %v6098 = vadd.f32 %v6083, 1.0
        %v6099 = vadd.f32 %v6085, 1.0
        %v6100 = vadd.f32 %v6087, 1.0
        %v6101 = vadd.f32 %v6089, 1.0
        %v6102 = vrcp.pop %v6090
        %v6103 = vmul.f32 %v6090, %v6102
        %v6104 = vsub.f32 1.0, %v6103
        %v6105 = vmul.f32 %v6102, %v6104
        %v6106 = vadd.f32 %v6102, %v6105
        %vm6107 = vweird.f32 %v6090
        %vm6108 = vweird.f32 %v6102
        %vm6109 = vmor %vm6107, %vm6108
        %v6110 = vsel %vm6109, %v6102, %v6106
        %v6111 = vand.u32 2147483647, %v6090
        %vm6112 = vcmp.eq.f32.partialorder %v6111, 8.507059e+37
        %v6113 = vand.u32 %v6090, 2147483648
        %v6114 = vor.u32 1.1754944e-38, %v6113
        %v6115 = vsel %vm6112, %v6114, %v6110
        %v6116 = vmul.f32 1.0, %v6115
        %v6117 = vrcp.pop %v6091
        %v6118 = vmul.f32 %v6091, %v6117
        %v6119 = vsub.f32 1.0, %v6118
        %v6120 = vmul.f32 %v6117, %v6119
        %v6121 = vadd.f32 %v6117, %v6120
        %vm6122 = vweird.f32 %v6091
        %vm6123 = vweird.f32 %v6117
        %vm6124 = vmor %vm6122, %vm6123
        %v6125 = vsel %vm6124, %v6117, %v6121
        %v6126 = vand.u32 2147483647, %v6091
        %vm6127 = vcmp.eq.f32.partialorder %v6126, 8.507059e+37
        %v6128 = vand.u32 %v6091, 2147483648
        %v6129 = vor.u32 1.1754944e-38, %v6128
        %v6130 = vsel %vm6127, %v6129, %v6125
        %v6131 = vmul.f32 1.0, %v6130
        %v6132 = vrcp.pop %v6092
        %v6133 = vmul.f32 %v6092, %v6132
        %v6134 = vsub.f32 1.0, %v6133
        %v6135 = vmul.f32 %v6132, %v6134
        %v6136 = vadd.f32 %v6132, %v6135
        %vm6137 = vweird.f32 %v6092
        %vm6138 = vweird.f32 %v6132
        %vm6139 = vmor %vm6137, %vm6138
        %v6140 = vsel %vm6139, %v6132, %v6136
        %v6141 = vand.u32 2147483647, %v6092
        %vm6142 = vcmp.eq.f32.partialorder %v6141, 8.507059e+37
        %v6143 = vand.u32 %v6092, 2147483648
        %v6144 = vor.u32 1.1754944e-38, %v6143
        %v6145 = vsel %vm6142, %v6144, %v6140
        %v6146 = vmul.f32 1.0, %v6145
        %v6147 = vrcp.pop %v6093
        %v6148 = vmul.f32 %v6093, %v6147
        %v6149 = vsub.f32 1.0, %v6148
        %v6150 = vmul.f32 %v6147, %v6149
        %v6151 = vadd.f32 %v6147, %v6150
        %vm6152 = vweird.f32 %v6093
        %vm6153 = vweird.f32 %v6147
        %vm6154 = vmor %vm6152, %vm6153
        %v6155 = vsel %vm6154, %v6147, %v6151
        %v6156 = vand.u32 2147483647, %v6093
        %vm6157 = vcmp.eq.f32.partialorder %v6156, 8.507059e+37
        %v6158 = vand.u32 %v6093, 2147483648
        %v6159 = vor.u32 1.1754944e-38, %v6158
        %v6160 = vsel %vm6157, %v6159, %v6155
        %v6161 = vmul.f32 1.0, %v6160
        %v6162 = vrcp.pop %v6094
        %v6163 = vmul.f32 %v6094, %v6162
        %v6164 = vsub.f32 1.0, %v6163
        %v6165 = vmul.f32 %v6162, %v6164
        %v6166 = vadd.f32 %v6162, %v6165
        %vm6167 = vweird.f32 %v6094
        %vm6168 = vweird.f32 %v6162
        %vm6169 = vmor %vm6167, %vm6168
        %v6170 = vsel %vm6169, %v6162, %v6166
        %v6171 = vand.u32 2147483647, %v6094
        %vm6172 = vcmp.eq.f32.partialorder %v6171, 8.507059e+37
        %v6173 = vand.u32 %v6094, 2147483648
        %v6174 = vor.u32 1.1754944e-38, %v6173
        %v6175 = vsel %vm6172, %v6174, %v6170
        %v6176 = vmul.f32 1.0, %v6175
        %v6177 = vrcp.pop %v6095
        %v6178 = vmul.f32 %v6095, %v6177
        %v6179 = vsub.f32 1.0, %v6178
        %v6180 = vmul.f32 %v6177, %v6179
        %v6181 = vadd.f32 %v6177, %v6180
        %vm6182 = vweird.f32 %v6095
        %vm6183 = vweird.f32 %v6177
        %vm6184 = vmor %vm6182, %vm6183
        %v6185 = vsel %vm6184, %v6177, %v6181
        %v6186 = vand.u32 2147483647, %v6095
        %vm6187 = vcmp.eq.f32.partialorder %v6186, 8.507059e+37
        %v6188 = vand.u32 %v6095, 2147483648
        %v6189 = vor.u32 1.1754944e-38, %v6188
        %v6190 = vsel %vm6187, %v6189, %v6185
        %v6191 = vmul.f32 1.0, %v6190
        %v6192 = vrcp.pop %v6096
        %v6193 = vmul.f32 %v6096, %v6192
        %v6194 = vsub.f32 1.0, %v6193
        %v6195 = vmul.f32 %v6192, %v6194
        %v6196 = vadd.f32 %v6192, %v6195
        %vm6197 = vweird.f32 %v6096
        %vm6198 = vweird.f32 %v6192
        %vm6199 = vmor %vm6197, %vm6198
        %v6200 = vsel %vm6199, %v6192, %v6196
        %v6201 = vand.u32 2147483647, %v6096
        %vm6202 = vcmp.eq.f32.partialorder %v6201, 8.507059e+37
        %v6203 = vand.u32 %v6096, 2147483648
        %v6204 = vor.u32 1.1754944e-38, %v6203
        %v6205 = vsel %vm6202, %v6204, %v6200
        %v6206 = vmul.f32 1.0, %v6205
        %v6207 = vrcp.pop %v6097
        %v6208 = vmul.f32 %v6097, %v6207
        %v6209 = vsub.f32 1.0, %v6208
        %v6210 = vmul.f32 %v6207, %v6209
        %v6211 = vadd.f32 %v6207, %v6210
        %vm6212 = vweird.f32 %v6097
        %vm6213 = vweird.f32 %v6207
        %vm6214 = vmor %vm6212, %vm6213
        %v6215 = vsel %vm6214, %v6207, %v6211
        %v6216 = vand.u32 2147483647, %v6097
        %vm6217 = vcmp.eq.f32.partialorder %v6216, 8.507059e+37
        %v6218 = vand.u32 %v6097, 2147483648
        %v6219 = vor.u32 1.1754944e-38, %v6218
        %v6220 = vsel %vm6217, %v6219, %v6215
        %v6221 = vmul.f32 1.0, %v6220
        %v6222 = vrcp.pop %v6098
        %v6223 = vmul.f32 %v6098, %v6222
        %v6224 = vsub.f32 1.0, %v6223
        %v6225 = vmul.f32 %v6222, %v6224
        %v6226 = vadd.f32 %v6222, %v6225
        %vm6227 = vweird.f32 %v6098
        %vm6228 = vweird.f32 %v6222
        %vm6229 = vmor %vm6227, %vm6228
        %v6230 = vsel %vm6229, %v6222, %v6226
        %v6231 = vand.u32 2147483647, %v6098
        %vm6232 = vcmp.eq.f32.partialorder %v6231, 8.507059e+37
        %v6233 = vand.u32 %v6098, 2147483648
        %v6234 = vor.u32 1.1754944e-38, %v6233
        %v6235 = vsel %vm6232, %v6234, %v6230
        %v6236 = vmul.f32 1.0, %v6235
        %v6237 = vrcp.pop %v6099
        %v6238 = vmul.f32 %v6099, %v6237
        %v6239 = vsub.f32 1.0, %v6238
        %v6240 = vmul.f32 %v6237, %v6239
        %v6241 = vadd.f32 %v6237, %v6240
        %vm6242 = vweird.f32 %v6099
        %vm6243 = vweird.f32 %v6237
        %vm6244 = vmor %vm6242, %vm6243
        %v6245 = vsel %vm6244, %v6237, %v6241
        %v6246 = vand.u32 2147483647, %v6099
        %vm6247 = vcmp.eq.f32.partialorder %v6246, 8.507059e+37
        %v6248 = vand.u32 %v6099, 2147483648
        %v6249 = vor.u32 1.1754944e-38, %v6248
        %v6250 = vsel %vm6247, %v6249, %v6245
        %v6251 = vmul.f32 1.0, %v6250
        %v6252 = vrcp.pop %v6100
        %v6253 = vmul.f32 %v6100, %v6252
        %v6254 = vsub.f32 1.0, %v6253
        %v6255 = vmul.f32 %v6252, %v6254
        %v6256 = vadd.f32 %v6252, %v6255
        %vm6257 = vweird.f32 %v6100
        %vm6258 = vweird.f32 %v6252
        %vm6259 = vmor %vm6257, %vm6258
        %v6260 = vsel %vm6259, %v6252, %v6256
        %v6261 = vand.u32 2147483647, %v6100
        %vm6262 = vcmp.eq.f32.partialorder %v6261, 8.507059e+37
        %v6263 = vand.u32 %v6100, 2147483648
        %v6264 = vor.u32 1.1754944e-38, %v6263
        %v6265 = vsel %vm6262, %v6264, %v6260
        %v6266 = vmul.f32 1.0, %v6265
        %v6267 = vrcp.pop %v6101
        %v6268 = vmul.f32 %v6101, %v6267
        %v6269 = vsub.f32 1.0, %v6268
        %v6270 = vmul.f32 %v6267, %v6269
        %v6271 = vadd.f32 %v6267, %v6270
        %vm6272 = vweird.f32 %v6101
        %vm6273 = vweird.f32 %v6267
        %vm6274 = vmor %vm6272, %vm6273
        %v6275 = vsel %vm6274, %v6267, %v6271
        %v6276 = vand.u32 2147483647, %v6101
        %vm6277 = vcmp.eq.f32.partialorder %v6276, 8.507059e+37
        %v6278 = vand.u32 %v6101, 2147483648
        %v6279 = vor.u32 1.1754944e-38, %v6278
        %v6280 = vsel %vm6277, %v6279, %v6275
        %v6281 = vmul.f32 1.0, %v6280
        %s6282 = smul.u32 %s32, 768
        %v6283 = vlaneseq
        %v6284 = vand.u32 %v6283, 127
        %v6285 = vadd.s32 %v6284, 128
        %v6286 = vadd.s32 %v6284, 256
        %v6287 = vadd.s32 %v6284, 384
        %v6288 = vadd.s32 %v6284, 512
        %v6289 = vadd.s32 %v6284, 640
        %v6290 = vstv %s6282
        %v6291 = vadd.s32 %v6290, %v6284
        %v6292 = vadd.s32 %v6290, %v6285
        %v6293 = vadd.s32 %v6290, %v6286
        %v6294 = vadd.s32 %v6290, %v6287
        %v6295 = vadd.s32 %v6290, %v6288
        %v6296 = vadd.s32 %v6290, %v6289
        %vm6297 = vcmp.lt.s32.totalorder %v6291, 1500
        %vm6298 = vcmp.lt.s32.totalorder %v6292, 1500
        %vm6299 = vcmp.lt.s32.totalorder %v6293, 1500
        %vm6300 = vcmp.lt.s32.totalorder %v6294, 1500
        %vm6301 = vcmp.lt.s32.totalorder %v6295, 1500
        %vm6302 = vcmp.lt.s32.totalorder %v6296, 1500
        %v6303 = vsel %vm6297, 1, 0
        %v6304 = vsel %vm6298, 1, 0
        %v6305 = vsel %vm6299, 1, 0
        %v6306 = vsel %vm6300, 1, 0
        %v6307 = vsel %vm6301, 1, 0
        %v6308 = vsel %vm6302, 1, 0
        %vm6309 = vcmp.eq.s32.totalorder %v6303, 1
        %vm6310 = vcmp.eq.s32.totalorder %v6304, 1
        %vm6311 = vcmp.eq.s32.totalorder %v6305, 1
        %vm6312 = vcmp.eq.s32.totalorder %v6306, 1
        %vm6313 = vcmp.eq.s32.totalorder %v6307, 1
        %vm6314 = vcmp.eq.s32.totalorder %v6308, 1
        %v6315 = vsel %vm6309, %v6116, 0.0
        %v6316 = vsel %vm6310, %v6131, 0.0
        %v6317 = vsel %vm6311, %v6146, 0.0
        %v6318 = vsel %vm6312, %v6161, 0.0
        %v6319 = vsel %vm6313, %v6176, 0.0
        %v6320 = vsel %vm6314, %v6191, 0.0
        %v6321 = vsel %vm6309, %v6206, 0.0
        %v6322 = vsel %vm6310, %v6221, 0.0
        %v6323 = vsel %vm6311, %v6236, 0.0
        %v6324 = vsel %vm6312, %v6251, 0.0
        %v6325 = vsel %vm6313, %v6266, 0.0
        %v6326 = vsel %vm6314, %v6281, 0.0
        %v6327 = vld [vmem:[#allocation4] sm:$0xff]
        %v6328 = vld [vmem:[#allocation4 + $0x8] sm:$0xff]
        %v6329 = vadd.f32 %v6315, %v6316
        %v6330 = vadd.f32 %v6329, %v6317
        %v6331 = vadd.f32 %v6330, %v6318
        %v6332 = vadd.f32 %v6331, %v6319
        %v6333 = vadd.f32 %v6332, %v6320
        %6334 = vadd.xlane.f32.xlu0 %v6333
        %v6335 = vpop.xlane.xlu0 %6334
        %v6336 = vadd.f32 %v6321, %v6322
        %v6337 = vadd.f32 %v6336, %v6323
        %v6338 = vadd.f32 %v6337, %v6324
        %v6339 = vadd.f32 %v6338, %v6325
        %v6340 = vadd.f32 %v6339, %v6326
        %6341 = vadd.xlane.f32.xlu0 %v6340
        %v6342 = vpop.xlane.xlu0 %6341
        %v6343 = vadd.f32 %v6327, %v6335
        %v6344 = vadd.f32 %v6328, %v6342
        %vm6345 = vcmask 7168
        %6346 = vst.msk [vmem:[#allocation4] sm:$0xff] %vm6345, %v6343
        %6347 = vst.msk [vmem:[#allocation4 + $0x8] sm:$0xff] %vm6345, %v6344
        %v6348 = vld [vmem:[#allocation5] sm:$0xff]
        %v6349 = vld [vmem:[#allocation5 + $0x8] sm:$0xff]
        %v6350 = vmul.f32 %v6315, %v6315
        %v6351 = vmul.f32 %v6316, %v6316
        %v6352 = vmul.f32 %v6317, %v6317
        %v6353 = vmul.f32 %v6318, %v6318
        %v6354 = vmul.f32 %v6319, %v6319
        %v6355 = vmul.f32 %v6320, %v6320
        %v6356 = vmul.f32 %v6321, %v6321
        %v6357 = vmul.f32 %v6322, %v6322
        %v6358 = vmul.f32 %v6323, %v6323
        %v6359 = vmul.f32 %v6324, %v6324
        %v6360 = vmul.f32 %v6325, %v6325
        %v6361 = vmul.f32 %v6326, %v6326
        %v6362 = vadd.f32 %v6350, %v6351
        %v6363 = vadd.f32 %v6362, %v6352
        %v6364 = vadd.f32 %v6363, %v6353
        %v6365 = vadd.f32 %v6364, %v6354
        %v6366 = vadd.f32 %v6365, %v6355
        %6367 = vadd.xlane.f32.xlu0 %v6366
        %v6368 = vpop.xlane.xlu0 %6367
        %v6369 = vadd.f32 %v6356, %v6357
        %v6370 = vadd.f32 %v6369, %v6358
        %v6371 = vadd.f32 %v6370, %v6359
        %v6372 = vadd.f32 %v6371, %v6360
        %v6373 = vadd.f32 %v6372, %v6361
        %6374 = vadd.xlane.f32.xlu0 %v6373
        %v6375 = vpop.xlane.xlu0 %6374
        %v6376 = vadd.f32 %v6348, %v6368
        %v6377 = vadd.f32 %v6349, %v6375
        %6378 = vst.msk [vmem:[#allocation5] sm:$0xff] %vm6345, %v6376
        %6379 = vst.msk [vmem:[#allocation5 + $0x8] sm:$0xff] %vm6345, %v6377
        %v6380 = vld [vmem:[%s512] sm:$0xff]
        %v6381 = vld [vmem:[%s512 + $0x8] sm:$0xff]
        %v6382 = vld [vmem:[%s512 + $0x10] sm:$0xff]
        %v6383 = vld [vmem:[%s512 + $0x18] sm:$0xff]
        %v6384 = vld [vmem:[%s512 + $0x20] sm:$0xff]
        %v6385 = vld [vmem:[%s512 + $0x28] sm:$0xff]
        %v6386 = vld [vmem:[%s512 + $0x30] sm:$0xff]
        %v6387 = vld [vmem:[%s512 + $0x38] sm:$0xff]
        %v6388 = vld [vmem:[%s512 + $0x40] sm:$0xff]
        %v6389 = vld [vmem:[%s512 + $0x48] sm:$0xff]
        %v6390 = vld [vmem:[%s512 + $0x50] sm:$0xff]
        %v6391 = vld [vmem:[%s512 + $0x58] sm:$0xff]
        %v6392 = vld [vmem:[%s512 + $0x60] sm:$0xff]
        %v6393 = vld [vmem:[%s512 + $0x68] sm:$0xff]
        %v6394 = vld [vmem:[%s512 + $0x70] sm:$0xff]
        %v6395 = vld [vmem:[%s512 + $0x78] sm:$0xff]
        %v6396 = vld [vmem:[%s512 + $0x80] sm:$0xff]
        %v6397 = vld [vmem:[%s512 + $0x88] sm:$0xff]
        %v6398 = vld [vmem:[%s512 + $0x90] sm:$0xff]
        %v6399 = vld [vmem:[%s512 + $0x98] sm:$0xff]
        %v6400 = vld [vmem:[%s512 + $0xa0] sm:$0xff]
        %v6401 = vld [vmem:[%s512 + $0xa8] sm:$0xff]
        %v6402 = vld [vmem:[%s512 + $0xb0] sm:$0xff]
        %v6403 = vld [vmem:[%s512 + $0xb8] sm:$0xff]
        %v6404 = vld [vmem:[%s512 + $0xc0] sm:$0xff]
        %v6405 = vld [vmem:[%s512 + $0xc8] sm:$0xff]
        %v6406 = vld [vmem:[%s512 + $0xd0] sm:$0xff]
        %v6407 = vld [vmem:[%s512 + $0xd8] sm:$0xff]
        %v6408 = vld [vmem:[%s512 + $0xe0] sm:$0xff]
        %v6409 = vld [vmem:[%s512 + $0xe8] sm:$0xff]
        %v6410 = vld [vmem:[%s512 + $0xf0] sm:$0xff]
        %v6411 = vld [vmem:[%s512 + $0xf8] sm:$0xff]
        %v6412 = vld [vmem:[%s512 + $0x100] sm:$0xff]
        %v6413 = vld [vmem:[%s512 + $0x108] sm:$0xff]
        %v6414 = vld [vmem:[%s512 + $0x110] sm:$0xff]
        %v6415 = vld [vmem:[%s512 + $0x118] sm:$0xff]
        %v6416 = vld [vmem:[%s512 + $0x120] sm:$0xff]
        %v6417 = vld [vmem:[%s512 + $0x128] sm:$0xff]
        %v6418 = vld [vmem:[%s512 + $0x130] sm:$0xff]
        %v6419 = vld [vmem:[%s512 + $0x138] sm:$0xff]
        %v6420 = vld [vmem:[%s512 + $0x140] sm:$0xff]
        %v6421 = vld [vmem:[%s512 + $0x148] sm:$0xff]
        %v6422 = vld [vmem:[%s512 + $0x150] sm:$0xff]
        %v6423 = vld [vmem:[%s512 + $0x158] sm:$0xff]
        %v6424 = vld [vmem:[%s512 + $0x160] sm:$0xff]
        %v6425 = vld [vmem:[%s512 + $0x168] sm:$0xff]
        %v6426 = vld [vmem:[%s512 + $0x170] sm:$0xff]
        %v6427 = vld [vmem:[%s512 + $0x178] sm:$0xff]
        %v6428 = vld [vmem:[%s512 + $0x180] sm:$0xff]
        %v6429 = vld [vmem:[%s512 + $0x188] sm:$0xff]
        %v6430 = vld [vmem:[%s512 + $0x190] sm:$0xff]
        %v6431 = vld [vmem:[%s512 + $0x198] sm:$0xff]
        %v6432 = vld [vmem:[%s512 + $0x1a0] sm:$0xff]
        %v6433 = vld [vmem:[%s512 + $0x1a8] sm:$0xff]
        %v6434 = vld [vmem:[%s512 + $0x1b0] sm:$0xff]
        %v6435 = vld [vmem:[%s512 + $0x1b8] sm:$0xff]
        %v6436 = vld [vmem:[%s512 + $0x1c0] sm:$0xff]
        %v6437 = vld [vmem:[%s512 + $0x1c8] sm:$0xff]
        %v6438 = vld [vmem:[%s512 + $0x1d0] sm:$0xff]
        %v6439 = vld [vmem:[%s512 + $0x1d8] sm:$0xff]
        %v6440 = vld [vmem:[%s512 + $0x1e0] sm:$0xff]
        %v6441 = vld [vmem:[%s512 + $0x1e8] sm:$0xff]
        %v6442 = vld [vmem:[%s512 + $0x1f0] sm:$0xff]
        %v6443 = vld [vmem:[%s512 + $0x1f8] sm:$0xff]
        %v6444 = vld [vmem:[%s512 + $0x200] sm:$0xff]
        %v6445 = vld [vmem:[%s512 + $0x208] sm:$0xff]
        %v6446 = vld [vmem:[%s512 + $0x210] sm:$0xff]
        %v6447 = vld [vmem:[%s512 + $0x218] sm:$0xff]
        %v6448 = vld [vmem:[%s512 + $0x220] sm:$0xff]
        %v6449 = vld [vmem:[%s512 + $0x228] sm:$0xff]
        %v6450 = vld [vmem:[%s512 + $0x230] sm:$0xff]
        %v6451 = vld [vmem:[%s512 + $0x238] sm:$0xff]
        %v6452 = vld [vmem:[%s512 + $0x240] sm:$0xff]
        %v6453 = vld [vmem:[%s512 + $0x248] sm:$0xff]
        %v6454 = vld [vmem:[%s512 + $0x250] sm:$0xff]
        %v6455 = vld [vmem:[%s512 + $0x258] sm:$0xff]
        %v6456 = vld [vmem:[%s512 + $0x260] sm:$0xff]
        %v6457 = vld [vmem:[%s512 + $0x268] sm:$0xff]
        %v6458 = vld [vmem:[%s512 + $0x270] sm:$0xff]
        %v6459 = vld [vmem:[%s512 + $0x278] sm:$0xff]
        %v6460 = vld [vmem:[%s512 + $0x280] sm:$0xff]
        %v6461 = vld [vmem:[%s512 + $0x288] sm:$0xff]
        %v6462 = vld [vmem:[%s512 + $0x290] sm:$0xff]
        %v6463 = vld [vmem:[%s512 + $0x298] sm:$0xff]
        %v6464 = vld [vmem:[%s512 + $0x2a0] sm:$0xff]
        %v6465 = vld [vmem:[%s512 + $0x2a8] sm:$0xff]
        %v6466 = vld [vmem:[%s512 + $0x2b0] sm:$0xff]
        %v6467 = vld [vmem:[%s512 + $0x2b8] sm:$0xff]
        %v6468 = vld [vmem:[%s512 + $0x2c0] sm:$0xff]
        %v6469 = vld [vmem:[%s512 + $0x2c8] sm:$0xff]
        %v6470 = vld [vmem:[%s512 + $0x2d0] sm:$0xff]
        %v6471 = vld [vmem:[%s512 + $0x2d8] sm:$0xff]
        %v6472 = vld [vmem:[%s512 + $0x2e0] sm:$0xff]
        %v6473 = vld [vmem:[%s512 + $0x2e8] sm:$0xff]
        %v6474 = vld [vmem:[%s512 + $0x2f0] sm:$0xff]
        %v6475 = vld [vmem:[%s512 + $0x2f8] sm:$0xff]
        %v6476 = vld [vmem:[%s512 + $0x300] sm:$0xff]
        %v6477 = vld [vmem:[%s512 + $0x308] sm:$0xff]
        %v6478 = vld [vmem:[%s512 + $0x310] sm:$0xff]
        %v6479 = vld [vmem:[%s512 + $0x318] sm:$0xff]
        %v6480 = vld [vmem:[%s512 + $0x320] sm:$0xff]
        %v6481 = vld [vmem:[%s512 + $0x328] sm:$0xff]
        %v6482 = vld [vmem:[%s512 + $0x330] sm:$0xff]
        %v6483 = vld [vmem:[%s512 + $0x338] sm:$0xff]
        %v6484 = vld [vmem:[%s512 + $0x340] sm:$0xff]
        %v6485 = vld [vmem:[%s512 + $0x348] sm:$0xff]
        %v6486 = vld [vmem:[%s512 + $0x350] sm:$0xff]
        %v6487 = vld [vmem:[%s512 + $0x358] sm:$0xff]
        %v6488 = vld [vmem:[%s512 + $0x360] sm:$0xff]
        %v6489 = vld [vmem:[%s512 + $0x368] sm:$0xff]
        %v6490 = vld [vmem:[%s512 + $0x370] sm:$0xff]
        %v6491 = vld [vmem:[%s512 + $0x378] sm:$0xff]
        %v6492 = vld [vmem:[%s512 + $0x380] sm:$0xff]
        %v6493 = vld [vmem:[%s512 + $0x388] sm:$0xff]
        %v6494 = vld [vmem:[%s512 + $0x390] sm:$0xff]
        %v6495 = vld [vmem:[%s512 + $0x398] sm:$0xff]
        %v6496 = vld [vmem:[%s512 + $0x3a0] sm:$0xff]
        %v6497 = vld [vmem:[%s512 + $0x3a8] sm:$0xff]
        %v6498 = vld [vmem:[%s512 + $0x3b0] sm:$0xff]
        %v6499 = vld [vmem:[%s512 + $0x3b8] sm:$0xff]
        %v6500 = vld [vmem:[%s512 + $0x3c0] sm:$0xff]
        %v6501 = vld [vmem:[%s512 + $0x3c8] sm:$0xff]
        %v6502 = vld [vmem:[%s512 + $0x3d0] sm:$0xff]
        %v6503 = vld [vmem:[%s512 + $0x3d8] sm:$0xff]
        %v6504 = vld [vmem:[%s512 + $0x3e0] sm:$0xff]
        %v6505 = vld [vmem:[%s512 + $0x3e8] sm:$0xff]
        %v6506 = vld [vmem:[%s512 + $0x3f0] sm:$0xff]
        %v6507 = vld [vmem:[%s512 + $0x3f8] sm:$0xff]
        %v6508 = vld [vmem:[%s512 + $0x400] sm:$0xff]
        %v6509 = vld [vmem:[%s512 + $0x408] sm:$0xff]
        %v6510 = vld [vmem:[%s512 + $0x410] sm:$0xff]
        %v6511 = vld [vmem:[%s512 + $0x418] sm:$0xff]
        %v6512 = vld [vmem:[%s512 + $0x420] sm:$0xff]
        %v6513 = vld [vmem:[%s512 + $0x428] sm:$0xff]
        %v6514 = vld [vmem:[%s512 + $0x430] sm:$0xff]
        %v6515 = vld [vmem:[%s512 + $0x438] sm:$0xff]
        %v6516 = vld [vmem:[%s512 + $0x440] sm:$0xff]
        %v6517 = vld [vmem:[%s512 + $0x448] sm:$0xff]
        %v6518 = vld [vmem:[%s512 + $0x450] sm:$0xff]
        %v6519 = vld [vmem:[%s512 + $0x458] sm:$0xff]
        %v6520 = vld [vmem:[%s512 + $0x460] sm:$0xff]
        %v6521 = vld [vmem:[%s512 + $0x468] sm:$0xff]
        %v6522 = vld [vmem:[%s512 + $0x470] sm:$0xff]
        %v6523 = vld [vmem:[%s512 + $0x478] sm:$0xff]
        %v6524 = vld [vmem:[%s512 + $0x480] sm:$0xff]
        %v6525 = vld [vmem:[%s512 + $0x488] sm:$0xff]
        %v6526 = vld [vmem:[%s512 + $0x490] sm:$0xff]
        %v6527 = vld [vmem:[%s512 + $0x498] sm:$0xff]
        %v6528 = vld [vmem:[%s512 + $0x4a0] sm:$0xff]
        %v6529 = vld [vmem:[%s512 + $0x4a8] sm:$0xff]
        %v6530 = vld [vmem:[%s512 + $0x4b0] sm:$0xff]
        %v6531 = vld [vmem:[%s512 + $0x4b8] sm:$0xff]
        %v6532 = vld [vmem:[%s512 + $0x4c0] sm:$0xff]
        %v6533 = vld [vmem:[%s512 + $0x4c8] sm:$0xff]
        %v6534 = vld [vmem:[%s512 + $0x4d0] sm:$0xff]
        %v6535 = vld [vmem:[%s512 + $0x4d8] sm:$0xff]
        %v6536 = vld [vmem:[%s512 + $0x4e0] sm:$0xff]
        %v6537 = vld [vmem:[%s512 + $0x4e8] sm:$0xff]
        %v6538 = vld [vmem:[%s512 + $0x4f0] sm:$0xff]
        %v6539 = vld [vmem:[%s512 + $0x4f8] sm:$0xff]
        %v6540 = vld [vmem:[%s512 + $0x500] sm:$0xff]
        %v6541 = vld [vmem:[%s512 + $0x508] sm:$0xff]
        %v6542 = vld [vmem:[%s512 + $0x510] sm:$0xff]
        %v6543 = vld [vmem:[%s512 + $0x518] sm:$0xff]
        %v6544 = vld [vmem:[%s512 + $0x520] sm:$0xff]
        %v6545 = vld [vmem:[%s512 + $0x528] sm:$0xff]
        %v6546 = vld [vmem:[%s512 + $0x530] sm:$0xff]
        %v6547 = vld [vmem:[%s512 + $0x538] sm:$0xff]
        %v6548 = vunpack.c.0.s8 %v6380
        %v6549 = vunpack.c.0.s8 %v6381
        %v6550 = vunpack.c.0.s8 %v6382
        %v6551 = vunpack.c.0.s8 %v6383
        %v6552 = vunpack.c.0.s8 %v6384
        %v6553 = vunpack.c.0.s8 %v6385
        %v6554 = vunpack.c.0.s8 %v6386
        %v6555 = vunpack.c.1.s8 %v6380
        %v6556 = vunpack.c.1.s8 %v6381
        %v6557 = vunpack.c.1.s8 %v6382
        %v6558 = vunpack.c.1.s8 %v6383
        %v6559 = vunpack.c.1.s8 %v6384
        %v6560 = vunpack.c.1.s8 %v6385
        %v6561 = vunpack.c.1.s8 %v6386
        %v6562 = vunpack.c.2.s8 %v6380
        %v6563 = vunpack.c.2.s8 %v6381
        %v6564 = vunpack.c.2.s8 %v6382
        %v6565 = vunpack.c.2.s8 %v6383
        %v6566 = vunpack.c.2.s8 %v6384
        %v6567 = vunpack.c.2.s8 %v6385
        %v6568 = vunpack.c.2.s8 %v6386
        %v6569 = vunpack.c.3.s8 %v6380
        %v6570 = vunpack.c.3.s8 %v6381
        %v6571 = vunpack.c.3.s8 %v6382
        %v6572 = vunpack.c.3.s8 %v6383
        %v6573 = vunpack.c.3.s8 %v6384
        %v6574 = vunpack.c.3.s8 %v6385
        %v6575 = vunpack.c.3.s8 %v6386
        %v6576 = vunpack.c.0.s8 %v6387
        %v6577 = vunpack.c.0.s8 %v6388
        %v6578 = vunpack.c.0.s8 %v6389
        %v6579 = vunpack.c.0.s8 %v6390
        %v6580 = vunpack.c.0.s8 %v6391
        %v6581 = vunpack.c.0.s8 %v6392
        %v6582 = vunpack.c.0.s8 %v6393
        %v6583 = vunpack.c.1.s8 %v6387
        %v6584 = vunpack.c.1.s8 %v6388
        %v6585 = vunpack.c.1.s8 %v6389
        %v6586 = vunpack.c.1.s8 %v6390
        %v6587 = vunpack.c.1.s8 %v6391
        %v6588 = vunpack.c.1.s8 %v6392
        %v6589 = vunpack.c.1.s8 %v6393
        %v6590 = vunpack.c.2.s8 %v6387
        %v6591 = vunpack.c.2.s8 %v6388
        %v6592 = vunpack.c.2.s8 %v6389
        %v6593 = vunpack.c.2.s8 %v6390
        %v6594 = vunpack.c.2.s8 %v6391
        %v6595 = vunpack.c.2.s8 %v6392
        %v6596 = vunpack.c.2.s8 %v6393
        %v6597 = vunpack.c.3.s8 %v6387
        %v6598 = vunpack.c.3.s8 %v6388
        %v6599 = vunpack.c.3.s8 %v6389
        %v6600 = vunpack.c.3.s8 %v6390
        %v6601 = vunpack.c.3.s8 %v6391
        %v6602 = vunpack.c.3.s8 %v6392
        %v6603 = vunpack.c.3.s8 %v6393
        %v6604 = vunpack.c.0.s8 %v6394
        %v6605 = vunpack.c.0.s8 %v6395
        %v6606 = vunpack.c.0.s8 %v6396
        %v6607 = vunpack.c.0.s8 %v6397
        %v6608 = vunpack.c.0.s8 %v6398
        %v6609 = vunpack.c.0.s8 %v6399
        %v6610 = vunpack.c.0.s8 %v6400
        %v6611 = vunpack.c.1.s8 %v6394
        %v6612 = vunpack.c.1.s8 %v6395
        %v6613 = vunpack.c.1.s8 %v6396
        %v6614 = vunpack.c.1.s8 %v6397
        %v6615 = vunpack.c.1.s8 %v6398
        %v6616 = vunpack.c.1.s8 %v6399
        %v6617 = vunpack.c.1.s8 %v6400
        %v6618 = vunpack.c.2.s8 %v6394
        %v6619 = vunpack.c.2.s8 %v6395
        %v6620 = vunpack.c.2.s8 %v6396
        %v6621 = vunpack.c.2.s8 %v6397
        %v6622 = vunpack.c.2.s8 %v6398
        %v6623 = vunpack.c.2.s8 %v6399
        %v6624 = vunpack.c.2.s8 %v6400
        %v6625 = vunpack.c.3.s8 %v6394
        %v6626 = vunpack.c.3.s8 %v6395
        %v6627 = vunpack.c.3.s8 %v6396
        %v6628 = vunpack.c.3.s8 %v6397
        %v6629 = vunpack.c.3.s8 %v6398
        %v6630 = vunpack.c.3.s8 %v6399
        %v6631 = vunpack.c.3.s8 %v6400
        %v6632 = vunpack.c.0.s8 %v6401
        %v6633 = vunpack.c.0.s8 %v6402
        %v6634 = vunpack.c.0.s8 %v6403
        %v6635 = vunpack.c.0.s8 %v6404
        %v6636 = vunpack.c.0.s8 %v6405
        %v6637 = vunpack.c.0.s8 %v6406
        %v6638 = vunpack.c.0.s8 %v6407
        %v6639 = vunpack.c.1.s8 %v6401
        %v6640 = vunpack.c.1.s8 %v6402
        %v6641 = vunpack.c.1.s8 %v6403
        %v6642 = vunpack.c.1.s8 %v6404
        %v6643 = vunpack.c.1.s8 %v6405
        %v6644 = vunpack.c.1.s8 %v6406
        %v6645 = vunpack.c.1.s8 %v6407
        %v6646 = vunpack.c.2.s8 %v6401
        %v6647 = vunpack.c.2.s8 %v6402
        %v6648 = vunpack.c.2.s8 %v6403
        %v6649 = vunpack.c.2.s8 %v6404
        %v6650 = vunpack.c.2.s8 %v6405
        %v6651 = vunpack.c.2.s8 %v6406
        %v6652 = vunpack.c.2.s8 %v6407
        %v6653 = vunpack.c.3.s8 %v6401
        %v6654 = vunpack.c.3.s8 %v6402
        %v6655 = vunpack.c.3.s8 %v6403
        %v6656 = vunpack.c.3.s8 %v6404
        %v6657 = vunpack.c.3.s8 %v6405
        %v6658 = vunpack.c.3.s8 %v6406
        %v6659 = vunpack.c.3.s8 %v6407
        %v6660 = vunpack.c.0.s8 %v6408
        %v6661 = vunpack.c.0.s8 %v6409
        %v6662 = vunpack.c.0.s8 %v6410
        %v6663 = vunpack.c.0.s8 %v6411
        %v6664 = vunpack.c.0.s8 %v6412
        %v6665 = vunpack.c.0.s8 %v6413
        %v6666 = vunpack.c.0.s8 %v6414
        %v6667 = vunpack.c.1.s8 %v6408
        %v6668 = vunpack.c.1.s8 %v6409
        %v6669 = vunpack.c.1.s8 %v6410
        %v6670 = vunpack.c.1.s8 %v6411
        %v6671 = vunpack.c.1.s8 %v6412
        %v6672 = vunpack.c.1.s8 %v6413
        %v6673 = vunpack.c.1.s8 %v6414
        %v6674 = vunpack.c.2.s8 %v6408
        %v6675 = vunpack.c.2.s8 %v6409
        %v6676 = vunpack.c.2.s8 %v6410
        %v6677 = vunpack.c.2.s8 %v6411
        %v6678 = vunpack.c.2.s8 %v6412
        %v6679 = vunpack.c.2.s8 %v6413
        %v6680 = vunpack.c.2.s8 %v6414
        %v6681 = vunpack.c.3.s8 %v6408
        %v6682 = vunpack.c.3.s8 %v6409
        %v6683 = vunpack.c.3.s8 %v6410
        %v6684 = vunpack.c.3.s8 %v6411
        %v6685 = vunpack.c.3.s8 %v6412
        %v6686 = vunpack.c.3.s8 %v6413
        %v6687 = vunpack.c.3.s8 %v6414
        %v6688 = vunpack.c.0.s8 %v6415
        %v6689 = vunpack.c.0.s8 %v6416
        %v6690 = vunpack.c.0.s8 %v6417
        %v6691 = vunpack.c.0.s8 %v6418
        %v6692 = vunpack.c.0.s8 %v6419
        %v6693 = vunpack.c.0.s8 %v6420
        %v6694 = vunpack.c.0.s8 %v6421
        %v6695 = vunpack.c.1.s8 %v6415
        %v6696 = vunpack.c.1.s8 %v6416
        %v6697 = vunpack.c.1.s8 %v6417
        %v6698 = vunpack.c.1.s8 %v6418
        %v6699 = vunpack.c.1.s8 %v6419
        %v6700 = vunpack.c.1.s8 %v6420
        %v6701 = vunpack.c.1.s8 %v6421
        %v6702 = vunpack.c.2.s8 %v6415
        %v6703 = vunpack.c.2.s8 %v6416
        %v6704 = vunpack.c.2.s8 %v6417
        %v6705 = vunpack.c.2.s8 %v6418
        %v6706 = vunpack.c.2.s8 %v6419
        %v6707 = vunpack.c.2.s8 %v6420
        %v6708 = vunpack.c.2.s8 %v6421
        %v6709 = vunpack.c.3.s8 %v6415
        %v6710 = vunpack.c.3.s8 %v6416
        %v6711 = vunpack.c.3.s8 %v6417
        %v6712 = vunpack.c.3.s8 %v6418
        %v6713 = vunpack.c.3.s8 %v6419
        %v6714 = vunpack.c.3.s8 %v6420
        %v6715 = vunpack.c.3.s8 %v6421
        %v6716 = vunpack.c.0.s8 %v6422
        %v6717 = vunpack.c.0.s8 %v6423
        %v6718 = vunpack.c.0.s8 %v6424
        %v6719 = vunpack.c.0.s8 %v6425
        %v6720 = vunpack.c.0.s8 %v6426
        %v6721 = vunpack.c.0.s8 %v6427
        %v6722 = vunpack.c.0.s8 %v6428
        %v6723 = vunpack.c.1.s8 %v6422
        %v6724 = vunpack.c.1.s8 %v6423
        %v6725 = vunpack.c.1.s8 %v6424
        %v6726 = vunpack.c.1.s8 %v6425
        %v6727 = vunpack.c.1.s8 %v6426
        %v6728 = vunpack.c.1.s8 %v6427
        %v6729 = vunpack.c.1.s8 %v6428
        %v6730 = vunpack.c.2.s8 %v6422
        %v6731 = vunpack.c.2.s8 %v6423
        %v6732 = vunpack.c.2.s8 %v6424
        %v6733 = vunpack.c.2.s8 %v6425
        %v6734 = vunpack.c.2.s8 %v6426
        %v6735 = vunpack.c.2.s8 %v6427
        %v6736 = vunpack.c.2.s8 %v6428
        %v6737 = vunpack.c.3.s8 %v6422
        %v6738 = vunpack.c.3.s8 %v6423
        %v6739 = vunpack.c.3.s8 %v6424
        %v6740 = vunpack.c.3.s8 %v6425
        %v6741 = vunpack.c.3.s8 %v6426
        %v6742 = vunpack.c.3.s8 %v6427
        %v6743 = vunpack.c.3.s8 %v6428
        %v6744 = vunpack.c.0.s8 %v6429
        %v6745 = vunpack.c.0.s8 %v6430
        %v6746 = vunpack.c.0.s8 %v6431
        %v6747 = vunpack.c.0.s8 %v6432
        %v6748 = vunpack.c.0.s8 %v6433
        %v6749 = vunpack.c.0.s8 %v6434
        %v6750 = vunpack.c.0.s8 %v6435
        %v6751 = vunpack.c.1.s8 %v6429
        %v6752 = vunpack.c.1.s8 %v6430
        %v6753 = vunpack.c.1.s8 %v6431
        %v6754 = vunpack.c.1.s8 %v6432
        %v6755 = vunpack.c.1.s8 %v6433
        %v6756 = vunpack.c.1.s8 %v6434
        %v6757 = vunpack.c.1.s8 %v6435
        %v6758 = vunpack.c.2.s8 %v6429
        %v6759 = vunpack.c.2.s8 %v6430
        %v6760 = vunpack.c.2.s8 %v6431
        %v6761 = vunpack.c.2.s8 %v6432
        %v6762 = vunpack.c.2.s8 %v6433
        %v6763 = vunpack.c.2.s8 %v6434
        %v6764 = vunpack.c.2.s8 %v6435
        %v6765 = vunpack.c.3.s8 %v6429
        %v6766 = vunpack.c.3.s8 %v6430
        %v6767 = vunpack.c.3.s8 %v6431
        %v6768 = vunpack.c.3.s8 %v6432
        %v6769 = vunpack.c.3.s8 %v6433
        %v6770 = vunpack.c.3.s8 %v6434
        %v6771 = vunpack.c.3.s8 %v6435
        %v6772 = vunpack.c.0.s8 %v6436
        %v6773 = vunpack.c.0.s8 %v6437
        %v6774 = vunpack.c.0.s8 %v6438
        %v6775 = vunpack.c.0.s8 %v6439
        %v6776 = vunpack.c.0.s8 %v6440
        %v6777 = vunpack.c.0.s8 %v6441
        %v6778 = vunpack.c.0.s8 %v6442
        %v6779 = vunpack.c.1.s8 %v6436
        %v6780 = vunpack.c.1.s8 %v6437
        %v6781 = vunpack.c.1.s8 %v6438
        %v6782 = vunpack.c.1.s8 %v6439
        %v6783 = vunpack.c.1.s8 %v6440
        %v6784 = vunpack.c.1.s8 %v6441
        %v6785 = vunpack.c.1.s8 %v6442
        %v6786 = vunpack.c.2.s8 %v6436
        %v6787 = vunpack.c.2.s8 %v6437
        %v6788 = vunpack.c.2.s8 %v6438
        %v6789 = vunpack.c.2.s8 %v6439
        %v6790 = vunpack.c.2.s8 %v6440
        %v6791 = vunpack.c.2.s8 %v6441
        %v6792 = vunpack.c.2.s8 %v6442
        %v6793 = vunpack.c.3.s8 %v6436
        %v6794 = vunpack.c.3.s8 %v6437
        %v6795 = vunpack.c.3.s8 %v6438
        %v6796 = vunpack.c.3.s8 %v6439
        %v6797 = vunpack.c.3.s8 %v6440
        %v6798 = vunpack.c.3.s8 %v6441
        %v6799 = vunpack.c.3.s8 %v6442
        %v6800 = vunpack.c.0.s8 %v6443
        %v6801 = vunpack.c.0.s8 %v6444
        %v6802 = vunpack.c.0.s8 %v6445
        %v6803 = vunpack.c.0.s8 %v6446
        %v6804 = vunpack.c.0.s8 %v6447
        %v6805 = vunpack.c.0.s8 %v6448
        %v6806 = vunpack.c.0.s8 %v6449
        %v6807 = vunpack.c.1.s8 %v6443
        %v6808 = vunpack.c.1.s8 %v6444
        %v6809 = vunpack.c.1.s8 %v6445
        %v6810 = vunpack.c.1.s8 %v6446
        %v6811 = vunpack.c.1.s8 %v6447
        %v6812 = vunpack.c.1.s8 %v6448
        %v6813 = vunpack.c.1.s8 %v6449
        %v6814 = vunpack.c.2.s8 %v6443
        %v6815 = vunpack.c.2.s8 %v6444
        %v6816 = vunpack.c.2.s8 %v6445
        %v6817 = vunpack.c.2.s8 %v6446
        %v6818 = vunpack.c.2.s8 %v6447
        %v6819 = vunpack.c.2.s8 %v6448
        %v6820 = vunpack.c.2.s8 %v6449
        %v6821 = vunpack.c.3.s8 %v6443
        %v6822 = vunpack.c.3.s8 %v6444
        %v6823 = vunpack.c.3.s8 %v6445
        %v6824 = vunpack.c.3.s8 %v6446
        %v6825 = vunpack.c.3.s8 %v6447
        %v6826 = vunpack.c.3.s8 %v6448
        %v6827 = vunpack.c.3.s8 %v6449
        %v6828 = vunpack.c.0.s8 %v6450
        %v6829 = vunpack.c.0.s8 %v6451
        %v6830 = vunpack.c.0.s8 %v6452
        %v6831 = vunpack.c.0.s8 %v6453
        %v6832 = vunpack.c.0.s8 %v6454
        %v6833 = vunpack.c.0.s8 %v6455
        %v6834 = vunpack.c.0.s8 %v6456
        %v6835 = vunpack.c.1.s8 %v6450
        %v6836 = vunpack.c.1.s8 %v6451
        %v6837 = vunpack.c.1.s8 %v6452
        %v6838 = vunpack.c.1.s8 %v6453
        %v6839 = vunpack.c.1.s8 %v6454
        %v6840 = vunpack.c.1.s8 %v6455
        %v6841 = vunpack.c.1.s8 %v6456
        %v6842 = vunpack.c.2.s8 %v6450
        %v6843 = vunpack.c.2.s8 %v6451
        %v6844 = vunpack.c.2.s8 %v6452
        %v6845 = vunpack.c.2.s8 %v6453
        %v6846 = vunpack.c.2.s8 %v6454
        %v6847 = vunpack.c.2.s8 %v6455
        %v6848 = vunpack.c.2.s8 %v6456
        %v6849 = vunpack.c.3.s8 %v6450
        %v6850 = vunpack.c.3.s8 %v6451
        %v6851 = vunpack.c.3.s8 %v6452
        %v6852 = vunpack.c.3.s8 %v6453
        %v6853 = vunpack.c.3.s8 %v6454
        %v6854 = vunpack.c.3.s8 %v6455
        %v6855 = vunpack.c.3.s8 %v6456
        %v6856 = vunpack.c.0.s8 %v6457
        %v6857 = vunpack.c.0.s8 %v6458
        %v6858 = vunpack.c.0.s8 %v6459
        %v6859 = vunpack.c.0.s8 %v6460
        %v6860 = vunpack.c.0.s8 %v6461
        %v6861 = vunpack.c.0.s8 %v6462
        %v6862 = vunpack.c.0.s8 %v6463
        %v6863 = vunpack.c.1.s8 %v6457
        %v6864 = vunpack.c.1.s8 %v6458
        %v6865 = vunpack.c.1.s8 %v6459
        %v6866 = vunpack.c.1.s8 %v6460
        %v6867 = vunpack.c.1.s8 %v6461
        %v6868 = vunpack.c.1.s8 %v6462
        %v6869 = vunpack.c.1.s8 %v6463
        %v6870 = vunpack.c.2.s8 %v6457
        %v6871 = vunpack.c.2.s8 %v6458
        %v6872 = vunpack.c.2.s8 %v6459
        %v6873 = vunpack.c.2.s8 %v6460
        %v6874 = vunpack.c.2.s8 %v6461
        %v6875 = vunpack.c.2.s8 %v6462
        %v6876 = vunpack.c.2.s8 %v6463
        %v6877 = vunpack.c.3.s8 %v6457
        %v6878 = vunpack.c.3.s8 %v6458
        %v6879 = vunpack.c.3.s8 %v6459
        %v6880 = vunpack.c.3.s8 %v6460
        %v6881 = vunpack.c.3.s8 %v6461
        %v6882 = vunpack.c.3.s8 %v6462
        %v6883 = vunpack.c.3.s8 %v6463
        %v6884 = vunpack.c.0.s8 %v6464
        %v6885 = vunpack.c.0.s8 %v6465
        %v6886 = vunpack.c.0.s8 %v6466
        %v6887 = vunpack.c.0.s8 %v6467
        %v6888 = vunpack.c.0.s8 %v6468
        %v6889 = vunpack.c.0.s8 %v6469
        %v6890 = vunpack.c.0.s8 %v6470
        %v6891 = vunpack.c.1.s8 %v6464
        %v6892 = vunpack.c.1.s8 %v6465
        %v6893 = vunpack.c.1.s8 %v6466
        %v6894 = vunpack.c.1.s8 %v6467
        %v6895 = vunpack.c.1.s8 %v6468
        %v6896 = vunpack.c.1.s8 %v6469
        %v6897 = vunpack.c.1.s8 %v6470
        %v6898 = vunpack.c.2.s8 %v6464
        %v6899 = vunpack.c.2.s8 %v6465
        %v6900 = vunpack.c.2.s8 %v6466
        %v6901 = vunpack.c.2.s8 %v6467
        %v6902 = vunpack.c.2.s8 %v6468
        %v6903 = vunpack.c.2.s8 %v6469
        %v6904 = vunpack.c.2.s8 %v6470
        %v6905 = vunpack.c.3.s8 %v6464
        %v6906 = vunpack.c.3.s8 %v6465
        %v6907 = vunpack.c.3.s8 %v6466
        %v6908 = vunpack.c.3.s8 %v6467
        %v6909 = vunpack.c.3.s8 %v6468
        %v6910 = vunpack.c.3.s8 %v6469
        %v6911 = vunpack.c.3.s8 %v6470
        %v6912 = vunpack.c.0.s8 %v6471
        %v6913 = vunpack.c.0.s8 %v6472
        %v6914 = vunpack.c.0.s8 %v6473
        %v6915 = vunpack.c.0.s8 %v6474
        %v6916 = vunpack.c.0.s8 %v6475
        %v6917 = vunpack.c.0.s8 %v6476
        %v6918 = vunpack.c.0.s8 %v6477
        %v6919 = vunpack.c.1.s8 %v6471
        %v6920 = vunpack.c.1.s8 %v6472
        %v6921 = vunpack.c.1.s8 %v6473
        %v6922 = vunpack.c.1.s8 %v6474
        %v6923 = vunpack.c.1.s8 %v6475
        %v6924 = vunpack.c.1.s8 %v6476
        %v6925 = vunpack.c.1.s8 %v6477
        %v6926 = vunpack.c.2.s8 %v6471
        %v6927 = vunpack.c.2.s8 %v6472
        %v6928 = vunpack.c.2.s8 %v6473
        %v6929 = vunpack.c.2.s8 %v6474
        %v6930 = vunpack.c.2.s8 %v6475
        %v6931 = vunpack.c.2.s8 %v6476
        %v6932 = vunpack.c.2.s8 %v6477
        %v6933 = vunpack.c.3.s8 %v6471
        %v6934 = vunpack.c.3.s8 %v6472
        %v6935 = vunpack.c.3.s8 %v6473
        %v6936 = vunpack.c.3.s8 %v6474
        %v6937 = vunpack.c.3.s8 %v6475
        %v6938 = vunpack.c.3.s8 %v6476
        %v6939 = vunpack.c.3.s8 %v6477
        %v6940 = vunpack.c.0.s8 %v6478
        %v6941 = vunpack.c.0.s8 %v6479
        %v6942 = vunpack.c.0.s8 %v6480
        %v6943 = vunpack.c.0.s8 %v6481
        %v6944 = vunpack.c.0.s8 %v6482
        %v6945 = vunpack.c.0.s8 %v6483
        %v6946 = vunpack.c.0.s8 %v6484
        %v6947 = vunpack.c.1.s8 %v6478
        %v6948 = vunpack.c.1.s8 %v6479
        %v6949 = vunpack.c.1.s8 %v6480
        %v6950 = vunpack.c.1.s8 %v6481
        %v6951 = vunpack.c.1.s8 %v6482
        %v6952 = vunpack.c.1.s8 %v6483
        %v6953 = vunpack.c.1.s8 %v6484
        %v6954 = vunpack.c.2.s8 %v6478
        %v6955 = vunpack.c.2.s8 %v6479
        %v6956 = vunpack.c.2.s8 %v6480
        %v6957 = vunpack.c.2.s8 %v6481
        %v6958 = vunpack.c.2.s8 %v6482
        %v6959 = vunpack.c.2.s8 %v6483
        %v6960 = vunpack.c.2.s8 %v6484
        %v6961 = vunpack.c.3.s8 %v6478
        %v6962 = vunpack.c.3.s8 %v6479
        %v6963 = vunpack.c.3.s8 %v6480
        %v6964 = vunpack.c.3.s8 %v6481
        %v6965 = vunpack.c.3.s8 %v6482
        %v6966 = vunpack.c.3.s8 %v6483
        %v6967 = vunpack.c.3.s8 %v6484
        %v6968 = vunpack.c.0.s8 %v6485
        %v6969 = vunpack.c.0.s8 %v6486
        %v6970 = vunpack.c.0.s8 %v6487
        %v6971 = vunpack.c.0.s8 %v6488
        %v6972 = vunpack.c.0.s8 %v6489
        %v6973 = vunpack.c.0.s8 %v6490
        %v6974 = vunpack.c.0.s8 %v6491
        %v6975 = vunpack.c.1.s8 %v6485
        %v6976 = vunpack.c.1.s8 %v6486
        %v6977 = vunpack.c.1.s8 %v6487
        %v6978 = vunpack.c.1.s8 %v6488
        %v6979 = vunpack.c.1.s8 %v6489
        %v6980 = vunpack.c.1.s8 %v6490
        %v6981 = vunpack.c.1.s8 %v6491
        %v6982 = vunpack.c.2.s8 %v6485
        %v6983 = vunpack.c.2.s8 %v6486
        %v6984 = vunpack.c.2.s8 %v6487
        %v6985 = vunpack.c.2.s8 %v6488
        %v6986 = vunpack.c.2.s8 %v6489
        %v6987 = vunpack.c.2.s8 %v6490
        %v6988 = vunpack.c.2.s8 %v6491
        %v6989 = vunpack.c.3.s8 %v6485
        %v6990 = vunpack.c.3.s8 %v6486
        %v6991 = vunpack.c.3.s8 %v6487
        %v6992 = vunpack.c.3.s8 %v6488
        %v6993 = vunpack.c.3.s8 %v6489
        %v6994 = vunpack.c.3.s8 %v6490
        %v6995 = vunpack.c.3.s8 %v6491
        %v6996 = vunpack.c.0.s8 %v6492
        %v6997 = vunpack.c.0.s8 %v6493
        %v6998 = vunpack.c.0.s8 %v6494
        %v6999 = vunpack.c.0.s8 %v6495
        %v7000 = vunpack.c.0.s8 %v6496
        %v7001 = vunpack.c.0.s8 %v6497
        %v7002 = vunpack.c.0.s8 %v6498
        %v7003 = vunpack.c.1.s8 %v6492
        %v7004 = vunpack.c.1.s8 %v6493
        %v7005 = vunpack.c.1.s8 %v6494
        %v7006 = vunpack.c.1.s8 %v6495
        %v7007 = vunpack.c.1.s8 %v6496
        %v7008 = vunpack.c.1.s8 %v6497
        %v7009 = vunpack.c.1.s8 %v6498
        %v7010 = vunpack.c.2.s8 %v6492
        %v7011 = vunpack.c.2.s8 %v6493
        %v7012 = vunpack.c.2.s8 %v6494
        %v7013 = vunpack.c.2.s8 %v6495
        %v7014 = vunpack.c.2.s8 %v6496
        %v7015 = vunpack.c.2.s8 %v6497
        %v7016 = vunpack.c.2.s8 %v6498
        %v7017 = vunpack.c.3.s8 %v6492
        %v7018 = vunpack.c.3.s8 %v6493
        %v7019 = vunpack.c.3.s8 %v6494
        %v7020 = vunpack.c.3.s8 %v6495
        %v7021 = vunpack.c.3.s8 %v6496
        %v7022 = vunpack.c.3.s8 %v6497
        %v7023 = vunpack.c.3.s8 %v6498
        %v7024 = vunpack.c.0.s8 %v6499
        %v7025 = vunpack.c.0.s8 %v6500
        %v7026 = vunpack.c.0.s8 %v6501
        %v7027 = vunpack.c.0.s8 %v6502
        %v7028 = vunpack.c.0.s8 %v6503
        %v7029 = vunpack.c.0.s8 %v6504
        %v7030 = vunpack.c.0.s8 %v6505
        %v7031 = vunpack.c.1.s8 %v6499
        %v7032 = vunpack.c.1.s8 %v6500
        %v7033 = vunpack.c.1.s8 %v6501
        %v7034 = vunpack.c.1.s8 %v6502
        %v7035 = vunpack.c.1.s8 %v6503
        %v7036 = vunpack.c.1.s8 %v6504
        %v7037 = vunpack.c.1.s8 %v6505
        %v7038 = vunpack.c.2.s8 %v6499
        %v7039 = vunpack.c.2.s8 %v6500
        %v7040 = vunpack.c.2.s8 %v6501
        %v7041 = vunpack.c.2.s8 %v6502
        %v7042 = vunpack.c.2.s8 %v6503
        %v7043 = vunpack.c.2.s8 %v6504
        %v7044 = vunpack.c.2.s8 %v6505
        %v7045 = vunpack.c.3.s8 %v6499
        %v7046 = vunpack.c.3.s8 %v6500
        %v7047 = vunpack.c.3.s8 %v6501
        %v7048 = vunpack.c.3.s8 %v6502
        %v7049 = vunpack.c.3.s8 %v6503
        %v7050 = vunpack.c.3.s8 %v6504
        %v7051 = vunpack.c.3.s8 %v6505
        %v7052 = vunpack.c.0.s8 %v6506
        %v7053 = vunpack.c.0.s8 %v6507
        %v7054 = vunpack.c.0.s8 %v6508
        %v7055 = vunpack.c.0.s8 %v6509
        %v7056 = vunpack.c.0.s8 %v6510
        %v7057 = vunpack.c.0.s8 %v6511
        %v7058 = vunpack.c.0.s8 %v6512
        %v7059 = vunpack.c.1.s8 %v6506
        %v7060 = vunpack.c.1.s8 %v6507
        %v7061 = vunpack.c.1.s8 %v6508
        %v7062 = vunpack.c.1.s8 %v6509
        %v7063 = vunpack.c.1.s8 %v6510
        %v7064 = vunpack.c.1.s8 %v6511
        %v7065 = vunpack.c.1.s8 %v6512
        %v7066 = vunpack.c.2.s8 %v6506
        %v7067 = vunpack.c.2.s8 %v6507
        %v7068 = vunpack.c.2.s8 %v6508
        %v7069 = vunpack.c.2.s8 %v6509
        %v7070 = vunpack.c.2.s8 %v6510
        %v7071 = vunpack.c.2.s8 %v6511
        %v7072 = vunpack.c.2.s8 %v6512
        %v7073 = vunpack.c.3.s8 %v6506
        %v7074 = vunpack.c.3.s8 %v6507
        %v7075 = vunpack.c.3.s8 %v6508
        %v7076 = vunpack.c.3.s8 %v6509
        %v7077 = vunpack.c.3.s8 %v6510
        %v7078 = vunpack.c.3.s8 %v6511
        %v7079 = vunpack.c.3.s8 %v6512
        %v7080 = vunpack.c.0.s8 %v6513
        %v7081 = vunpack.c.0.s8 %v6514
        %v7082 = vunpack.c.0.s8 %v6515
        %v7083 = vunpack.c.0.s8 %v6516
        %v7084 = vunpack.c.0.s8 %v6517
        %v7085 = vunpack.c.0.s8 %v6518
        %v7086 = vunpack.c.0.s8 %v6519
        %v7087 = vunpack.c.1.s8 %v6513
        %v7088 = vunpack.c.1.s8 %v6514
        %v7089 = vunpack.c.1.s8 %v6515
        %v7090 = vunpack.c.1.s8 %v6516
        %v7091 = vunpack.c.1.s8 %v6517
        %v7092 = vunpack.c.1.s8 %v6518
        %v7093 = vunpack.c.1.s8 %v6519
        %v7094 = vunpack.c.2.s8 %v6513
        %v7095 = vunpack.c.2.s8 %v6514
        %v7096 = vunpack.c.2.s8 %v6515
        %v7097 = vunpack.c.2.s8 %v6516
        %v7098 = vunpack.c.2.s8 %v6517
        %v7099 = vunpack.c.2.s8 %v6518
        %v7100 = vunpack.c.2.s8 %v6519
        %v7101 = vunpack.c.3.s8 %v6513
        %v7102 = vunpack.c.3.s8 %v6514
        %v7103 = vunpack.c.3.s8 %v6515
        %v7104 = vunpack.c.3.s8 %v6516
        %v7105 = vunpack.c.3.s8 %v6517
        %v7106 = vunpack.c.3.s8 %v6518
        %v7107 = vunpack.c.3.s8 %v6519
        %v7108 = vunpack.c.0.s8 %v6520
        %v7109 = vunpack.c.0.s8 %v6521
        %v7110 = vunpack.c.0.s8 %v6522
        %v7111 = vunpack.c.0.s8 %v6523
        %v7112 = vunpack.c.0.s8 %v6524
        %v7113 = vunpack.c.0.s8 %v6525
        %v7114 = vunpack.c.0.s8 %v6526
        %v7115 = vunpack.c.1.s8 %v6520
        %v7116 = vunpack.c.1.s8 %v6521
        %v7117 = vunpack.c.1.s8 %v6522
        %v7118 = vunpack.c.1.s8 %v6523
        %v7119 = vunpack.c.1.s8 %v6524
        %v7120 = vunpack.c.1.s8 %v6525
        %v7121 = vunpack.c.1.s8 %v6526
        %v7122 = vunpack.c.2.s8 %v6520
        %v7123 = vunpack.c.2.s8 %v6521
        %v7124 = vunpack.c.2.s8 %v6522
        %v7125 = vunpack.c.2.s8 %v6523
        %v7126 = vunpack.c.2.s8 %v6524
        %v7127 = vunpack.c.2.s8 %v6525
        %v7128 = vunpack.c.2.s8 %v6526
        %v7129 = vunpack.c.3.s8 %v6520
        %v7130 = vunpack.c.3.s8 %v6521
        %v7131 = vunpack.c.3.s8 %v6522
        %v7132 = vunpack.c.3.s8 %v6523
        %v7133 = vunpack.c.3.s8 %v6524
        %v7134 = vunpack.c.3.s8 %v6525
        %v7135 = vunpack.c.3.s8 %v6526
        %v7136 = vunpack.c.0.s8 %v6527
        %v7137 = vunpack.c.0.s8 %v6528
        %v7138 = vunpack.c.0.s8 %v6529
        %v7139 = vunpack.c.0.s8 %v6530
        %v7140 = vunpack.c.0.s8 %v6531
        %v7141 = vunpack.c.0.s8 %v6532
        %v7142 = vunpack.c.0.s8 %v6533
        %v7143 = vunpack.c.1.s8 %v6527
        %v7144 = vunpack.c.1.s8 %v6528
        %v7145 = vunpack.c.1.s8 %v6529
        %v7146 = vunpack.c.1.s8 %v6530
        %v7147 = vunpack.c.1.s8 %v6531
        %v7148 = vunpack.c.1.s8 %v6532
        %v7149 = vunpack.c.1.s8 %v6533
        %v7150 = vunpack.c.2.s8 %v6527
        %v7151 = vunpack.c.2.s8 %v6528
        %v7152 = vunpack.c.2.s8 %v6529
        %v7153 = vunpack.c.2.s8 %v6530
        %v7154 = vunpack.c.2.s8 %v6531
        %v7155 = vunpack.c.2.s8 %v6532
        %v7156 = vunpack.c.2.s8 %v6533
        %v7157 = vunpack.c.3.s8 %v6527
        %v7158 = vunpack.c.3.s8 %v6528
        %v7159 = vunpack.c.3.s8 %v6529
        %v7160 = vunpack.c.3.s8 %v6530
        %v7161 = vunpack.c.3.s8 %v6531
        %v7162 = vunpack.c.3.s8 %v6532
        %v7163 = vunpack.c.3.s8 %v6533
        %v7164 = vunpack.c.0.s8 %v6534
        %v7165 = vunpack.c.0.s8 %v6535
        %v7166 = vunpack.c.0.s8 %v6536
        %v7167 = vunpack.c.0.s8 %v6537
        %v7168 = vunpack.c.0.s8 %v6538
        %v7169 = vunpack.c.0.s8 %v6539
        %v7170 = vunpack.c.0.s8 %v6540
        %v7171 = vunpack.c.1.s8 %v6534
        %v7172 = vunpack.c.1.s8 %v6535
        %v7173 = vunpack.c.1.s8 %v6536
        %v7174 = vunpack.c.1.s8 %v6537
        %v7175 = vunpack.c.1.s8 %v6538
        %v7176 = vunpack.c.1.s8 %v6539
        %v7177 = vunpack.c.1.s8 %v6540
        %v7178 = vunpack.c.2.s8 %v6534
        %v7179 = vunpack.c.2.s8 %v6535
        %v7180 = vunpack.c.2.s8 %v6536
        %v7181 = vunpack.c.2.s8 %v6537
        %v7182 = vunpack.c.2.s8 %v6538
        %v7183 = vunpack.c.2.s8 %v6539
        %v7184 = vunpack.c.2.s8 %v6540
        %v7185 = vunpack.c.3.s8 %v6534
        %v7186 = vunpack.c.3.s8 %v6535
        %v7187 = vunpack.c.3.s8 %v6536
        %v7188 = vunpack.c.3.s8 %v6537
        %v7189 = vunpack.c.3.s8 %v6538
        %v7190 = vunpack.c.3.s8 %v6539
        %v7191 = vunpack.c.3.s8 %v6540
        %v7192 = vunpack.c.0.s8 %v6541
        %v7193 = vunpack.c.0.s8 %v6542
        %v7194 = vunpack.c.0.s8 %v6543
        %v7195 = vunpack.c.0.s8 %v6544
        %v7196 = vunpack.c.0.s8 %v6545
        %v7197 = vunpack.c.0.s8 %v6546
        %v7198 = vunpack.c.0.s8 %v6547
        %v7199 = vunpack.c.1.s8 %v6541
        %v7200 = vunpack.c.1.s8 %v6542
        %v7201 = vunpack.c.1.s8 %v6543
        %v7202 = vunpack.c.1.s8 %v6544
        %v7203 = vunpack.c.1.s8 %v6545
        %v7204 = vunpack.c.1.s8 %v6546
        %v7205 = vunpack.c.1.s8 %v6547
        %v7206 = vunpack.c.2.s8 %v6541
        %v7207 = vunpack.c.2.s8 %v6542
        %v7208 = vunpack.c.2.s8 %v6543
        %v7209 = vunpack.c.2.s8 %v6544
        %v7210 = vunpack.c.2.s8 %v6545
        %v7211 = vunpack.c.2.s8 %v6546
        %v7212 = vunpack.c.2.s8 %v6547
        %v7213 = vunpack.c.3.s8 %v6541
        %v7214 = vunpack.c.3.s8 %v6542
        %v7215 = vunpack.c.3.s8 %v6543
        %v7216 = vunpack.c.3.s8 %v6544
        %v7217 = vunpack.c.3.s8 %v6545
        %v7218 = vunpack.c.3.s8 %v6546
        %v7219 = vunpack.c.3.s8 %v6547
        %v7220 = vcvt.s32.f32 %v6548
        %v7221 = vcvt.s32.f32 %v6549
        %v7222 = vcvt.s32.f32 %v6550
        %v7223 = vcvt.s32.f32 %v6551
        %v7224 = vcvt.s32.f32 %v6552
        %v7225 = vcvt.s32.f32 %v6553
        %v7226 = vcvt.s32.f32 %v6554
        %v7227 = vcvt.s32.f32 %v6555
        %v7228 = vcvt.s32.f32 %v6556
        %v7229 = vcvt.s32.f32 %v6557
        %v7230 = vcvt.s32.f32 %v6558
        %v7231 = vcvt.s32.f32 %v6559
        %v7232 = vcvt.s32.f32 %v6560
        %v7233 = vcvt.s32.f32 %v6561
        %v7234 = vcvt.s32.f32 %v6562
        %v7235 = vcvt.s32.f32 %v6563
        %v7236 = vcvt.s32.f32 %v6564
        %v7237 = vcvt.s32.f32 %v6565
        %v7238 = vcvt.s32.f32 %v6566
        %v7239 = vcvt.s32.f32 %v6567
        %v7240 = vcvt.s32.f32 %v6568
        %v7241 = vcvt.s32.f32 %v6569
        %v7242 = vcvt.s32.f32 %v6570
        %v7243 = vcvt.s32.f32 %v6571
        %v7244 = vcvt.s32.f32 %v6572
        %v7245 = vcvt.s32.f32 %v6573
        %v7246 = vcvt.s32.f32 %v6574
        %v7247 = vcvt.s32.f32 %v6575
        %v7248 = vcvt.s32.f32 %v6576
        %v7249 = vcvt.s32.f32 %v6577
        %v7250 = vcvt.s32.f32 %v6578
        %v7251 = vcvt.s32.f32 %v6579
        %v7252 = vcvt.s32.f32 %v6580
        %v7253 = vcvt.s32.f32 %v6581
        %v7254 = vcvt.s32.f32 %v6582
        %v7255 = vcvt.s32.f32 %v6583
        %v7256 = vcvt.s32.f32 %v6584
        %v7257 = vcvt.s32.f32 %v6585
        %v7258 = vcvt.s32.f32 %v6586
        %v7259 = vcvt.s32.f32 %v6587
        %v7260 = vcvt.s32.f32 %v6588
        %v7261 = vcvt.s32.f32 %v6589
        %v7262 = vcvt.s32.f32 %v6590
        %v7263 = vcvt.s32.f32 %v6591
        %v7264 = vcvt.s32.f32 %v6592
        %v7265 = vcvt.s32.f32 %v6593
        %v7266 = vcvt.s32.f32 %v6594
        %v7267 = vcvt.s32.f32 %v6595
        %v7268 = vcvt.s32.f32 %v6596
        %v7269 = vcvt.s32.f32 %v6597
        %v7270 = vcvt.s32.f32 %v6598
        %v7271 = vcvt.s32.f32 %v6599
        %v7272 = vcvt.s32.f32 %v6600
        %v7273 = vcvt.s32.f32 %v6601
        %v7274 = vcvt.s32.f32 %v6602
        %v7275 = vcvt.s32.f32 %v6603
        %v7276 = vcvt.s32.f32 %v6604
        %v7277 = vcvt.s32.f32 %v6605
        %v7278 = vcvt.s32.f32 %v6606
        %v7279 = vcvt.s32.f32 %v6607
        %v7280 = vcvt.s32.f32 %v6608
        %v7281 = vcvt.s32.f32 %v6609
        %v7282 = vcvt.s32.f32 %v6610
        %v7283 = vcvt.s32.f32 %v6611
        %v7284 = vcvt.s32.f32 %v6612
        %v7285 = vcvt.s32.f32 %v6613
        %v7286 = vcvt.s32.f32 %v6614
        %v7287 = vcvt.s32.f32 %v6615
        %v7288 = vcvt.s32.f32 %v6616
        %v7289 = vcvt.s32.f32 %v6617
        %v7290 = vcvt.s32.f32 %v6618
        %v7291 = vcvt.s32.f32 %v6619
        %v7292 = vcvt.s32.f32 %v6620
        %v7293 = vcvt.s32.f32 %v6621
        %v7294 = vcvt.s32.f32 %v6622
        %v7295 = vcvt.s32.f32 %v6623
        %v7296 = vcvt.s32.f32 %v6624
        %v7297 = vcvt.s32.f32 %v6625
        %v7298 = vcvt.s32.f32 %v6626
        %v7299 = vcvt.s32.f32 %v6627
        %v7300 = vcvt.s32.f32 %v6628
        %v7301 = vcvt.s32.f32 %v6629
        %v7302 = vcvt.s32.f32 %v6630
        %v7303 = vcvt.s32.f32 %v6631
        %v7304 = vcvt.s32.f32 %v6632
        %v7305 = vcvt.s32.f32 %v6633
        %v7306 = vcvt.s32.f32 %v6634
        %v7307 = vcvt.s32.f32 %v6635
        %v7308 = vcvt.s32.f32 %v6636
        %v7309 = vcvt.s32.f32 %v6637
        %v7310 = vcvt.s32.f32 %v6638
        %v7311 = vcvt.s32.f32 %v6639
        %v7312 = vcvt.s32.f32 %v6640
        %v7313 = vcvt.s32.f32 %v6641
        %v7314 = vcvt.s32.f32 %v6642
        %v7315 = vcvt.s32.f32 %v6643
        %v7316 = vcvt.s32.f32 %v6644
        %v7317 = vcvt.s32.f32 %v6645
        %v7318 = vcvt.s32.f32 %v6646
        %v7319 = vcvt.s32.f32 %v6647
        %v7320 = vcvt.s32.f32 %v6648
        %v7321 = vcvt.s32.f32 %v6649
        %v7322 = vcvt.s32.f32 %v6650
        %v7323 = vcvt.s32.f32 %v6651
        %v7324 = vcvt.s32.f32 %v6652
        %v7325 = vcvt.s32.f32 %v6653
        %v7326 = vcvt.s32.f32 %v6654
        %v7327 = vcvt.s32.f32 %v6655
        %v7328 = vcvt.s32.f32 %v6656
        %v7329 = vcvt.s32.f32 %v6657
        %v7330 = vcvt.s32.f32 %v6658
        %v7331 = vcvt.s32.f32 %v6659
        %v7332 = vcvt.s32.f32 %v6660
        %v7333 = vcvt.s32.f32 %v6661
        %v7334 = vcvt.s32.f32 %v6662
        %v7335 = vcvt.s32.f32 %v6663
        %v7336 = vcvt.s32.f32 %v6664
        %v7337 = vcvt.s32.f32 %v6665
        %v7338 = vcvt.s32.f32 %v6666
        %v7339 = vcvt.s32.f32 %v6667
        %v7340 = vcvt.s32.f32 %v6668
        %v7341 = vcvt.s32.f32 %v6669
        %v7342 = vcvt.s32.f32 %v6670
        %v7343 = vcvt.s32.f32 %v6671
        %v7344 = vcvt.s32.f32 %v6672
        %v7345 = vcvt.s32.f32 %v6673
        %v7346 = vcvt.s32.f32 %v6674
        %v7347 = vcvt.s32.f32 %v6675
        %v7348 = vcvt.s32.f32 %v6676
        %v7349 = vcvt.s32.f32 %v6677
        %v7350 = vcvt.s32.f32 %v6678
        %v7351 = vcvt.s32.f32 %v6679
        %v7352 = vcvt.s32.f32 %v6680
        %v7353 = vcvt.s32.f32 %v6681
        %v7354 = vcvt.s32.f32 %v6682
        %v7355 = vcvt.s32.f32 %v6683
        %v7356 = vcvt.s32.f32 %v6684
        %v7357 = vcvt.s32.f32 %v6685
        %v7358 = vcvt.s32.f32 %v6686
        %v7359 = vcvt.s32.f32 %v6687
        %v7360 = vcvt.s32.f32 %v6688
        %v7361 = vcvt.s32.f32 %v6689
        %v7362 = vcvt.s32.f32 %v6690
        %v7363 = vcvt.s32.f32 %v6691
        %v7364 = vcvt.s32.f32 %v6692
        %v7365 = vcvt.s32.f32 %v6693
        %v7366 = vcvt.s32.f32 %v6694
        %v7367 = vcvt.s32.f32 %v6695
        %v7368 = vcvt.s32.f32 %v6696
        %v7369 = vcvt.s32.f32 %v6697
        %v7370 = vcvt.s32.f32 %v6698
        %v7371 = vcvt.s32.f32 %v6699
        %v7372 = vcvt.s32.f32 %v6700
        %v7373 = vcvt.s32.f32 %v6701
        %v7374 = vcvt.s32.f32 %v6702
        %v7375 = vcvt.s32.f32 %v6703
        %v7376 = vcvt.s32.f32 %v6704
        %v7377 = vcvt.s32.f32 %v6705
        %v7378 = vcvt.s32.f32 %v6706
        %v7379 = vcvt.s32.f32 %v6707
        %v7380 = vcvt.s32.f32 %v6708
        %v7381 = vcvt.s32.f32 %v6709
        %v7382 = vcvt.s32.f32 %v6710
        %v7383 = vcvt.s32.f32 %v6711
        %v7384 = vcvt.s32.f32 %v6712
        %v7385 = vcvt.s32.f32 %v6713
        %v7386 = vcvt.s32.f32 %v6714
        %v7387 = vcvt.s32.f32 %v6715
        %v7388 = vcvt.s32.f32 %v6716
        %v7389 = vcvt.s32.f32 %v6717
        %v7390 = vcvt.s32.f32 %v6718
        %v7391 = vcvt.s32.f32 %v6719
        %v7392 = vcvt.s32.f32 %v6720
        %v7393 = vcvt.s32.f32 %v6721
        %v7394 = vcvt.s32.f32 %v6722
        %v7395 = vcvt.s32.f32 %v6723
        %v7396 = vcvt.s32.f32 %v6724
        %v7397 = vcvt.s32.f32 %v6725
        %v7398 = vcvt.s32.f32 %v6726
        %v7399 = vcvt.s32.f32 %v6727
        %v7400 = vcvt.s32.f32 %v6728
        %v7401 = vcvt.s32.f32 %v6729
        %v7402 = vcvt.s32.f32 %v6730
        %v7403 = vcvt.s32.f32 %v6731
        %v7404 = vcvt.s32.f32 %v6732
        %v7405 = vcvt.s32.f32 %v6733
        %v7406 = vcvt.s32.f32 %v6734
        %v7407 = vcvt.s32.f32 %v6735
        %v7408 = vcvt.s32.f32 %v6736
        %v7409 = vcvt.s32.f32 %v6737
        %v7410 = vcvt.s32.f32 %v6738
        %v7411 = vcvt.s32.f32 %v6739
        %v7412 = vcvt.s32.f32 %v6740
        %v7413 = vcvt.s32.f32 %v6741
        %v7414 = vcvt.s32.f32 %v6742
        %v7415 = vcvt.s32.f32 %v6743
        %v7416 = vcvt.s32.f32 %v6744
        %v7417 = vcvt.s32.f32 %v6745
        %v7418 = vcvt.s32.f32 %v6746
        %v7419 = vcvt.s32.f32 %v6747
        %v7420 = vcvt.s32.f32 %v6748
        %v7421 = vcvt.s32.f32 %v6749
        %v7422 = vcvt.s32.f32 %v6750
        %v7423 = vcvt.s32.f32 %v6751
        %v7424 = vcvt.s32.f32 %v6752
        %v7425 = vcvt.s32.f32 %v6753
        %v7426 = vcvt.s32.f32 %v6754
        %v7427 = vcvt.s32.f32 %v6755
        %v7428 = vcvt.s32.f32 %v6756
        %v7429 = vcvt.s32.f32 %v6757
        %v7430 = vcvt.s32.f32 %v6758
        %v7431 = vcvt.s32.f32 %v6759
        %v7432 = vcvt.s32.f32 %v6760
        %v7433 = vcvt.s32.f32 %v6761
        %v7434 = vcvt.s32.f32 %v6762
        %v7435 = vcvt.s32.f32 %v6763
        %v7436 = vcvt.s32.f32 %v6764
        %v7437 = vcvt.s32.f32 %v6765
        %v7438 = vcvt.s32.f32 %v6766
        %v7439 = vcvt.s32.f32 %v6767
        %v7440 = vcvt.s32.f32 %v6768
        %v7441 = vcvt.s32.f32 %v6769
        %v7442 = vcvt.s32.f32 %v6770
        %v7443 = vcvt.s32.f32 %v6771
        %v7444 = vcvt.s32.f32 %v6772
        %v7445 = vcvt.s32.f32 %v6773
        %v7446 = vcvt.s32.f32 %v6774
        %v7447 = vcvt.s32.f32 %v6775
        %v7448 = vcvt.s32.f32 %v6776
        %v7449 = vcvt.s32.f32 %v6777
        %v7450 = vcvt.s32.f32 %v6778
        %v7451 = vcvt.s32.f32 %v6779
        %v7452 = vcvt.s32.f32 %v6780
        %v7453 = vcvt.s32.f32 %v6781
        %v7454 = vcvt.s32.f32 %v6782
        %v7455 = vcvt.s32.f32 %v6783
        %v7456 = vcvt.s32.f32 %v6784
        %v7457 = vcvt.s32.f32 %v6785
        %v7458 = vcvt.s32.f32 %v6786
        %v7459 = vcvt.s32.f32 %v6787
        %v7460 = vcvt.s32.f32 %v6788
        %v7461 = vcvt.s32.f32 %v6789
        %v7462 = vcvt.s32.f32 %v6790
        %v7463 = vcvt.s32.f32 %v6791
        %v7464 = vcvt.s32.f32 %v6792
        %v7465 = vcvt.s32.f32 %v6793
        %v7466 = vcvt.s32.f32 %v6794
        %v7467 = vcvt.s32.f32 %v6795
        %v7468 = vcvt.s32.f32 %v6796
        %v7469 = vcvt.s32.f32 %v6797
        %v7470 = vcvt.s32.f32 %v6798
        %v7471 = vcvt.s32.f32 %v6799
        %v7472 = vcvt.s32.f32 %v6800
        %v7473 = vcvt.s32.f32 %v6801
        %v7474 = vcvt.s32.f32 %v6802
        %v7475 = vcvt.s32.f32 %v6803
        %v7476 = vcvt.s32.f32 %v6804
        %v7477 = vcvt.s32.f32 %v6805
        %v7478 = vcvt.s32.f32 %v6806
        %v7479 = vcvt.s32.f32 %v6807
        %v7480 = vcvt.s32.f32 %v6808
        %v7481 = vcvt.s32.f32 %v6809
        %v7482 = vcvt.s32.f32 %v6810
        %v7483 = vcvt.s32.f32 %v6811
        %v7484 = vcvt.s32.f32 %v6812
        %v7485 = vcvt.s32.f32 %v6813
        %v7486 = vcvt.s32.f32 %v6814
        %v7487 = vcvt.s32.f32 %v6815
        %v7488 = vcvt.s32.f32 %v6816
        %v7489 = vcvt.s32.f32 %v6817
        %v7490 = vcvt.s32.f32 %v6818
        %v7491 = vcvt.s32.f32 %v6819
        %v7492 = vcvt.s32.f32 %v6820
        %v7493 = vcvt.s32.f32 %v6821
        %v7494 = vcvt.s32.f32 %v6822
        %v7495 = vcvt.s32.f32 %v6823
        %v7496 = vcvt.s32.f32 %v6824
        %v7497 = vcvt.s32.f32 %v6825
        %v7498 = vcvt.s32.f32 %v6826
        %v7499 = vcvt.s32.f32 %v6827
        %v7500 = vcvt.s32.f32 %v6828
        %v7501 = vcvt.s32.f32 %v6829
        %v7502 = vcvt.s32.f32 %v6830
        %v7503 = vcvt.s32.f32 %v6831
        %v7504 = vcvt.s32.f32 %v6832
        %v7505 = vcvt.s32.f32 %v6833
        %v7506 = vcvt.s32.f32 %v6834
        %v7507 = vcvt.s32.f32 %v6835
        %v7508 = vcvt.s32.f32 %v6836
        %v7509 = vcvt.s32.f32 %v6837
        %v7510 = vcvt.s32.f32 %v6838
        %v7511 = vcvt.s32.f32 %v6839
        %v7512 = vcvt.s32.f32 %v6840
        %v7513 = vcvt.s32.f32 %v6841
        %v7514 = vcvt.s32.f32 %v6842
        %v7515 = vcvt.s32.f32 %v6843
        %v7516 = vcvt.s32.f32 %v6844
        %v7517 = vcvt.s32.f32 %v6845
        %v7518 = vcvt.s32.f32 %v6846
        %v7519 = vcvt.s32.f32 %v6847
        %v7520 = vcvt.s32.f32 %v6848
        %v7521 = vcvt.s32.f32 %v6849
        %v7522 = vcvt.s32.f32 %v6850
        %v7523 = vcvt.s32.f32 %v6851
        %v7524 = vcvt.s32.f32 %v6852
        %v7525 = vcvt.s32.f32 %v6853
        %v7526 = vcvt.s32.f32 %v6854
        %v7527 = vcvt.s32.f32 %v6855
        %v7528 = vcvt.s32.f32 %v6856
        %v7529 = vcvt.s32.f32 %v6857
        %v7530 = vcvt.s32.f32 %v6858
        %v7531 = vcvt.s32.f32 %v6859
        %v7532 = vcvt.s32.f32 %v6860
        %v7533 = vcvt.s32.f32 %v6861
        %v7534 = vcvt.s32.f32 %v6862
        %v7535 = vcvt.s32.f32 %v6863
        %v7536 = vcvt.s32.f32 %v6864
        %v7537 = vcvt.s32.f32 %v6865
        %v7538 = vcvt.s32.f32 %v6866
        %v7539 = vcvt.s32.f32 %v6867
        %v7540 = vcvt.s32.f32 %v6868
        %v7541 = vcvt.s32.f32 %v6869
        %v7542 = vcvt.s32.f32 %v6870
        %v7543 = vcvt.s32.f32 %v6871
        %v7544 = vcvt.s32.f32 %v6872
        %v7545 = vcvt.s32.f32 %v6873
        %v7546 = vcvt.s32.f32 %v6874
        %v7547 = vcvt.s32.f32 %v6875
        %v7548 = vcvt.s32.f32 %v6876
        %v7549 = vcvt.s32.f32 %v6877
        %v7550 = vcvt.s32.f32 %v6878
        %v7551 = vcvt.s32.f32 %v6879
        %v7552 = vcvt.s32.f32 %v6880
        %v7553 = vcvt.s32.f32 %v6881
        %v7554 = vcvt.s32.f32 %v6882
        %v7555 = vcvt.s32.f32 %v6883
        %v7556 = vcvt.s32.f32 %v6884
        %v7557 = vcvt.s32.f32 %v6885
        %v7558 = vcvt.s32.f32 %v6886
        %v7559 = vcvt.s32.f32 %v6887
        %v7560 = vcvt.s32.f32 %v6888
        %v7561 = vcvt.s32.f32 %v6889
        %v7562 = vcvt.s32.f32 %v6890
        %v7563 = vcvt.s32.f32 %v6891
        %v7564 = vcvt.s32.f32 %v6892
        %v7565 = vcvt.s32.f32 %v6893
        %v7566 = vcvt.s32.f32 %v6894
        %v7567 = vcvt.s32.f32 %v6895
        %v7568 = vcvt.s32.f32 %v6896
        %v7569 = vcvt.s32.f32 %v6897
        %v7570 = vcvt.s32.f32 %v6898
        %v7571 = vcvt.s32.f32 %v6899
        %v7572 = vcvt.s32.f32 %v6900
        %v7573 = vcvt.s32.f32 %v6901
        %v7574 = vcvt.s32.f32 %v6902
        %v7575 = vcvt.s32.f32 %v6903
        %v7576 = vcvt.s32.f32 %v6904
        %v7577 = vcvt.s32.f32 %v6905
        %v7578 = vcvt.s32.f32 %v6906
        %v7579 = vcvt.s32.f32 %v6907
        %v7580 = vcvt.s32.f32 %v6908
        %v7581 = vcvt.s32.f32 %v6909
        %v7582 = vcvt.s32.f32 %v6910
        %v7583 = vcvt.s32.f32 %v6911
        %v7584 = vcvt.s32.f32 %v6912
        %v7585 = vcvt.s32.f32 %v6913
        %v7586 = vcvt.s32.f32 %v6914
        %v7587 = vcvt.s32.f32 %v6915
        %v7588 = vcvt.s32.f32 %v6916
        %v7589 = vcvt.s32.f32 %v6917
        %v7590 = vcvt.s32.f32 %v6918
        %v7591 = vcvt.s32.f32 %v6919
        %v7592 = vcvt.s32.f32 %v6920
        %v7593 = vcvt.s32.f32 %v6921
        %v7594 = vcvt.s32.f32 %v6922
        %v7595 = vcvt.s32.f32 %v6923
        %v7596 = vcvt.s32.f32 %v6924
        %v7597 = vcvt.s32.f32 %v6925
        %v7598 = vcvt.s32.f32 %v6926
        %v7599 = vcvt.s32.f32 %v6927
        %v7600 = vcvt.s32.f32 %v6928
        %v7601 = vcvt.s32.f32 %v6929
        %v7602 = vcvt.s32.f32 %v6930
        %v7603 = vcvt.s32.f32 %v6931
        %v7604 = vcvt.s32.f32 %v6932
        %v7605 = vcvt.s32.f32 %v6933
        %v7606 = vcvt.s32.f32 %v6934
        %v7607 = vcvt.s32.f32 %v6935
        %v7608 = vcvt.s32.f32 %v6936
        %v7609 = vcvt.s32.f32 %v6937
        %v7610 = vcvt.s32.f32 %v6938
        %v7611 = vcvt.s32.f32 %v6939
        %v7612 = vcvt.s32.f32 %v6940
        %v7613 = vcvt.s32.f32 %v6941
        %v7614 = vcvt.s32.f32 %v6942
        %v7615 = vcvt.s32.f32 %v6943
        %v7616 = vcvt.s32.f32 %v6944
        %v7617 = vcvt.s32.f32 %v6945
        %v7618 = vcvt.s32.f32 %v6946
        %v7619 = vcvt.s32.f32 %v6947
        %v7620 = vcvt.s32.f32 %v6948
        %v7621 = vcvt.s32.f32 %v6949
        %v7622 = vcvt.s32.f32 %v6950
        %v7623 = vcvt.s32.f32 %v6951
        %v7624 = vcvt.s32.f32 %v6952
        %v7625 = vcvt.s32.f32 %v6953
        %v7626 = vcvt.s32.f32 %v6954
        %v7627 = vcvt.s32.f32 %v6955
        %v7628 = vcvt.s32.f32 %v6956
        %v7629 = vcvt.s32.f32 %v6957
        %v7630 = vcvt.s32.f32 %v6958
        %v7631 = vcvt.s32.f32 %v6959
        %v7632 = vcvt.s32.f32 %v6960
        %v7633 = vcvt.s32.f32 %v6961
        %v7634 = vcvt.s32.f32 %v6962
        %v7635 = vcvt.s32.f32 %v6963
        %v7636 = vcvt.s32.f32 %v6964
        %v7637 = vcvt.s32.f32 %v6965
        %v7638 = vcvt.s32.f32 %v6966
        %v7639 = vcvt.s32.f32 %v6967
        %v7640 = vcvt.s32.f32 %v6968
        %v7641 = vcvt.s32.f32 %v6969
        %v7642 = vcvt.s32.f32 %v6970
        %v7643 = vcvt.s32.f32 %v6971
        %v7644 = vcvt.s32.f32 %v6972
        %v7645 = vcvt.s32.f32 %v6973
        %v7646 = vcvt.s32.f32 %v6974
        %v7647 = vcvt.s32.f32 %v6975
        %v7648 = vcvt.s32.f32 %v6976
        %v7649 = vcvt.s32.f32 %v6977
        %v7650 = vcvt.s32.f32 %v6978
        %v7651 = vcvt.s32.f32 %v6979
        %v7652 = vcvt.s32.f32 %v6980
        %v7653 = vcvt.s32.f32 %v6981
        %v7654 = vcvt.s32.f32 %v6982
        %v7655 = vcvt.s32.f32 %v6983
        %v7656 = vcvt.s32.f32 %v6984
        %v7657 = vcvt.s32.f32 %v6985
        %v7658 = vcvt.s32.f32 %v6986
        %v7659 = vcvt.s32.f32 %v6987
        %v7660 = vcvt.s32.f32 %v6988
        %v7661 = vcvt.s32.f32 %v6989
        %v7662 = vcvt.s32.f32 %v6990
        %v7663 = vcvt.s32.f32 %v6991
        %v7664 = vcvt.s32.f32 %v6992
        %v7665 = vcvt.s32.f32 %v6993
        %v7666 = vcvt.s32.f32 %v6994
        %v7667 = vcvt.s32.f32 %v6995
        %v7668 = vcvt.s32.f32 %v6996
        %v7669 = vcvt.s32.f32 %v6997
        %v7670 = vcvt.s32.f32 %v6998
        %v7671 = vcvt.s32.f32 %v6999
        %v7672 = vcvt.s32.f32 %v7000
        %v7673 = vcvt.s32.f32 %v7001
        %v7674 = vcvt.s32.f32 %v7002
        %v7675 = vcvt.s32.f32 %v7003
        %v7676 = vcvt.s32.f32 %v7004
        %v7677 = vcvt.s32.f32 %v7005
        %v7678 = vcvt.s32.f32 %v7006
        %v7679 = vcvt.s32.f32 %v7007
        %v7680 = vcvt.s32.f32 %v7008
        %v7681 = vcvt.s32.f32 %v7009
        %v7682 = vcvt.s32.f32 %v7010
        %v7683 = vcvt.s32.f32 %v7011
        %v7684 = vcvt.s32.f32 %v7012
        %v7685 = vcvt.s32.f32 %v7013
        %v7686 = vcvt.s32.f32 %v7014
        %v7687 = vcvt.s32.f32 %v7015
        %v7688 = vcvt.s32.f32 %v7016
        %v7689 = vcvt.s32.f32 %v7017
        %v7690 = vcvt.s32.f32 %v7018
        %v7691 = vcvt.s32.f32 %v7019
        %v7692 = vcvt.s32.f32 %v7020
        %v7693 = vcvt.s32.f32 %v7021
        %v7694 = vcvt.s32.f32 %v7022
        %v7695 = vcvt.s32.f32 %v7023
        %v7696 = vcvt.s32.f32 %v7024
        %v7697 = vcvt.s32.f32 %v7025
        %v7698 = vcvt.s32.f32 %v7026
        %v7699 = vcvt.s32.f32 %v7027
        %v7700 = vcvt.s32.f32 %v7028
        %v7701 = vcvt.s32.f32 %v7029
        %v7702 = vcvt.s32.f32 %v7030
        %v7703 = vcvt.s32.f32 %v7031
        %v7704 = vcvt.s32.f32 %v7032
        %v7705 = vcvt.s32.f32 %v7033
        %v7706 = vcvt.s32.f32 %v7034
        %v7707 = vcvt.s32.f32 %v7035
        %v7708 = vcvt.s32.f32 %v7036
        %v7709 = vcvt.s32.f32 %v7037
        %v7710 = vcvt.s32.f32 %v7038
        %v7711 = vcvt.s32.f32 %v7039
        %v7712 = vcvt.s32.f32 %v7040
        %v7713 = vcvt.s32.f32 %v7041
        %v7714 = vcvt.s32.f32 %v7042
        %v7715 = vcvt.s32.f32 %v7043
        %v7716 = vcvt.s32.f32 %v7044
        %v7717 = vcvt.s32.f32 %v7045
        %v7718 = vcvt.s32.f32 %v7046
        %v7719 = vcvt.s32.f32 %v7047
        %v7720 = vcvt.s32.f32 %v7048
        %v7721 = vcvt.s32.f32 %v7049
        %v7722 = vcvt.s32.f32 %v7050
        %v7723 = vcvt.s32.f32 %v7051
        %v7724 = vcvt.s32.f32 %v7052
        %v7725 = vcvt.s32.f32 %v7053
        %v7726 = vcvt.s32.f32 %v7054
        %v7727 = vcvt.s32.f32 %v7055
        %v7728 = vcvt.s32.f32 %v7056
        %v7729 = vcvt.s32.f32 %v7057
        %v7730 = vcvt.s32.f32 %v7058
        %v7731 = vcvt.s32.f32 %v7059
        %v7732 = vcvt.s32.f32 %v7060
        %v7733 = vcvt.s32.f32 %v7061
        %v7734 = vcvt.s32.f32 %v7062
        %v7735 = vcvt.s32.f32 %v7063
        %v7736 = vcvt.s32.f32 %v7064
        %v7737 = vcvt.s32.f32 %v7065
        %v7738 = vcvt.s32.f32 %v7066
        %v7739 = vcvt.s32.f32 %v7067
        %v7740 = vcvt.s32.f32 %v7068
        %v7741 = vcvt.s32.f32 %v7069
        %v7742 = vcvt.s32.f32 %v7070
        %v7743 = vcvt.s32.f32 %v7071
        %v7744 = vcvt.s32.f32 %v7072
        %v7745 = vcvt.s32.f32 %v7073
        %v7746 = vcvt.s32.f32 %v7074
        %v7747 = vcvt.s32.f32 %v7075
        %v7748 = vcvt.s32.f32 %v7076
        %v7749 = vcvt.s32.f32 %v7077
        %v7750 = vcvt.s32.f32 %v7078
        %v7751 = vcvt.s32.f32 %v7079
        %v7752 = vcvt.s32.f32 %v7080
        %v7753 = vcvt.s32.f32 %v7081
        %v7754 = vcvt.s32.f32 %v7082
        %v7755 = vcvt.s32.f32 %v7083
        %v7756 = vcvt.s32.f32 %v7084
        %v7757 = vcvt.s32.f32 %v7085
        %v7758 = vcvt.s32.f32 %v7086
        %v7759 = vcvt.s32.f32 %v7087
        %v7760 = vcvt.s32.f32 %v7088
        %v7761 = vcvt.s32.f32 %v7089
        %v7762 = vcvt.s32.f32 %v7090
        %v7763 = vcvt.s32.f32 %v7091
        %v7764 = vcvt.s32.f32 %v7092
        %v7765 = vcvt.s32.f32 %v7093
        %v7766 = vcvt.s32.f32 %v7094
        %v7767 = vcvt.s32.f32 %v7095
        %v7768 = vcvt.s32.f32 %v7096
        %v7769 = vcvt.s32.f32 %v7097
        %v7770 = vcvt.s32.f32 %v7098
        %v7771 = vcvt.s32.f32 %v7099
        %v7772 = vcvt.s32.f32 %v7100
        %v7773 = vcvt.s32.f32 %v7101
        %v7774 = vcvt.s32.f32 %v7102
        %v7775 = vcvt.s32.f32 %v7103
        %v7776 = vcvt.s32.f32 %v7104
        %v7777 = vcvt.s32.f32 %v7105
        %v7778 = vcvt.s32.f32 %v7106
        %v7779 = vcvt.s32.f32 %v7107
        %v7780 = vcvt.s32.f32 %v7108
        %v7781 = vcvt.s32.f32 %v7109
        %v7782 = vcvt.s32.f32 %v7110
        %v7783 = vcvt.s32.f32 %v7111
        %v7784 = vcvt.s32.f32 %v7112
        %v7785 = vcvt.s32.f32 %v7113
        %v7786 = vcvt.s32.f32 %v7114
        %v7787 = vcvt.s32.f32 %v7115
        %v7788 = vcvt.s32.f32 %v7116
        %v7789 = vcvt.s32.f32 %v7117
        %v7790 = vcvt.s32.f32 %v7118
        %v7791 = vcvt.s32.f32 %v7119
        %v7792 = vcvt.s32.f32 %v7120
        %v7793 = vcvt.s32.f32 %v7121
        %v7794 = vcvt.s32.f32 %v7122
        %v7795 = vcvt.s32.f32 %v7123
        %v7796 = vcvt.s32.f32 %v7124
        %v7797 = vcvt.s32.f32 %v7125
        %v7798 = vcvt.s32.f32 %v7126
        %v7799 = vcvt.s32.f32 %v7127
        %v7800 = vcvt.s32.f32 %v7128
        %v7801 = vcvt.s32.f32 %v7129
        %v7802 = vcvt.s32.f32 %v7130
        %v7803 = vcvt.s32.f32 %v7131
        %v7804 = vcvt.s32.f32 %v7132
        %v7805 = vcvt.s32.f32 %v7133
        %v7806 = vcvt.s32.f32 %v7134
        %v7807 = vcvt.s32.f32 %v7135
        %v7808 = vcvt.s32.f32 %v7136
        %v7809 = vcvt.s32.f32 %v7137
        %v7810 = vcvt.s32.f32 %v7138
        %v7811 = vcvt.s32.f32 %v7139
        %v7812 = vcvt.s32.f32 %v7140
        %v7813 = vcvt.s32.f32 %v7141
        %v7814 = vcvt.s32.f32 %v7142
        %v7815 = vcvt.s32.f32 %v7143
        %v7816 = vcvt.s32.f32 %v7144
        %v7817 = vcvt.s32.f32 %v7145
        %v7818 = vcvt.s32.f32 %v7146
        %v7819 = vcvt.s32.f32 %v7147
        %v7820 = vcvt.s32.f32 %v7148
        %v7821 = vcvt.s32.f32 %v7149
        %v7822 = vcvt.s32.f32 %v7150
        %v7823 = vcvt.s32.f32 %v7151
        %v7824 = vcvt.s32.f32 %v7152
        %v7825 = vcvt.s32.f32 %v7153
        %v7826 = vcvt.s32.f32 %v7154
        %v7827 = vcvt.s32.f32 %v7155
        %v7828 = vcvt.s32.f32 %v7156
        %v7829 = vcvt.s32.f32 %v7157
        %v7830 = vcvt.s32.f32 %v7158
        %v7831 = vcvt.s32.f32 %v7159
        %v7832 = vcvt.s32.f32 %v7160
        %v7833 = vcvt.s32.f32 %v7161
        %v7834 = vcvt.s32.f32 %v7162
        %v7835 = vcvt.s32.f32 %v7163
        %v7836 = vcvt.s32.f32 %v7164
        %v7837 = vcvt.s32.f32 %v7165
        %v7838 = vcvt.s32.f32 %v7166
        %v7839 = vcvt.s32.f32 %v7167
        %v7840 = vcvt.s32.f32 %v7168
        %v7841 = vcvt.s32.f32 %v7169
        %v7842 = vcvt.s32.f32 %v7170
        %v7843 = vcvt.s32.f32 %v7171
        %v7844 = vcvt.s32.f32 %v7172
        %v7845 = vcvt.s32.f32 %v7173
        %v7846 = vcvt.s32.f32 %v7174
        %v7847 = vcvt.s32.f32 %v7175
        %v7848 = vcvt.s32.f32 %v7176
        %v7849 = vcvt.s32.f32 %v7177
        %v7850 = vcvt.s32.f32 %v7178
        %v7851 = vcvt.s32.f32 %v7179
        %v7852 = vcvt.s32.f32 %v7180
        %v7853 = vcvt.s32.f32 %v7181
        %v7854 = vcvt.s32.f32 %v7182
        %v7855 = vcvt.s32.f32 %v7183
        %v7856 = vcvt.s32.f32 %v7184
        %v7857 = vcvt.s32.f32 %v7185
        %v7858 = vcvt.s32.f32 %v7186
        %v7859 = vcvt.s32.f32 %v7187
        %v7860 = vcvt.s32.f32 %v7188
        %v7861 = vcvt.s32.f32 %v7189
        %v7862 = vcvt.s32.f32 %v7190
        %v7863 = vcvt.s32.f32 %v7191
        %v7864 = vcvt.s32.f32 %v7192
        %v7865 = vcvt.s32.f32 %v7193
        %v7866 = vcvt.s32.f32 %v7194
        %v7867 = vcvt.s32.f32 %v7195
        %v7868 = vcvt.s32.f32 %v7196
        %v7869 = vcvt.s32.f32 %v7197
        %v7870 = vcvt.s32.f32 %v7198
        %v7871 = vcvt.s32.f32 %v7199
        %v7872 = vcvt.s32.f32 %v7200
        %v7873 = vcvt.s32.f32 %v7201
        %v7874 = vcvt.s32.f32 %v7202
        %v7875 = vcvt.s32.f32 %v7203
        %v7876 = vcvt.s32.f32 %v7204
        %v7877 = vcvt.s32.f32 %v7205
        %v7878 = vcvt.s32.f32 %v7206
        %v7879 = vcvt.s32.f32 %v7207
        %v7880 = vcvt.s32.f32 %v7208
        %v7881 = vcvt.s32.f32 %v7209
        %v7882 = vcvt.s32.f32 %v7210
        %v7883 = vcvt.s32.f32 %v7211
        %v7884 = vcvt.s32.f32 %v7212
        %v7885 = vcvt.s32.f32 %v7213
        %v7886 = vcvt.s32.f32 %v7214
        %v7887 = vcvt.s32.f32 %v7215
        %v7888 = vcvt.s32.f32 %v7216
        %v7889 = vcvt.s32.f32 %v7217
        %v7890 = vcvt.s32.f32 %v7218
        %v7891 = vcvt.s32.f32 %v7219
        %v7892 = vpack.c.bf16 %v7227, %v7220
        %v7893 = vpack.c.bf16 %v7228, %v7221
        %v7894 = vpack.c.bf16 %v7229, %v7222
        %v7895 = vpack.c.bf16 %v7230, %v7223
        %v7896 = vpack.c.bf16 %v7231, %v7224
        %v7897 = vpack.c.bf16 %v7232, %v7225
        %v7898 = vpack.c.bf16 %v7233, %v7226
        %v7899 = vpack.c.bf16 %v7241, %v7234
        %v7900 = vpack.c.bf16 %v7242, %v7235
        %v7901 = vpack.c.bf16 %v7243, %v7236
        %v7902 = vpack.c.bf16 %v7244, %v7237
        %v7903 = vpack.c.bf16 %v7245, %v7238
        %v7904 = vpack.c.bf16 %v7246, %v7239
        %v7905 = vpack.c.bf16 %v7247, %v7240
        %v7906 = vpack.c.bf16 %v7255, %v7248
        %v7907 = vpack.c.bf16 %v7256, %v7249
        %v7908 = vpack.c.bf16 %v7257, %v7250
        %v7909 = vpack.c.bf16 %v7258, %v7251
        %v7910 = vpack.c.bf16 %v7259, %v7252
        %v7911 = vpack.c.bf16 %v7260, %v7253
        %v7912 = vpack.c.bf16 %v7261, %v7254
        %v7913 = vpack.c.bf16 %v7269, %v7262
        %v7914 = vpack.c.bf16 %v7270, %v7263
        %v7915 = vpack.c.bf16 %v7271, %v7264
        %v7916 = vpack.c.bf16 %v7272, %v7265
        %v7917 = vpack.c.bf16 %v7273, %v7266
        %v7918 = vpack.c.bf16 %v7274, %v7267
        %v7919 = vpack.c.bf16 %v7275, %v7268
        %v7920 = vpack.c.bf16 %v7283, %v7276
        %v7921 = vpack.c.bf16 %v7284, %v7277
        %v7922 = vpack.c.bf16 %v7285, %v7278
        %v7923 = vpack.c.bf16 %v7286, %v7279
        %v7924 = vpack.c.bf16 %v7287, %v7280
        %v7925 = vpack.c.bf16 %v7288, %v7281
        %v7926 = vpack.c.bf16 %v7289, %v7282
        %v7927 = vpack.c.bf16 %v7297, %v7290
        %v7928 = vpack.c.bf16 %v7298, %v7291
        %v7929 = vpack.c.bf16 %v7299, %v7292
        %v7930 = vpack.c.bf16 %v7300, %v7293
        %v7931 = vpack.c.bf16 %v7301, %v7294
        %v7932 = vpack.c.bf16 %v7302, %v7295
        %v7933 = vpack.c.bf16 %v7303, %v7296
        %v7934 = vpack.c.bf16 %v7311, %v7304
        %v7935 = vpack.c.bf16 %v7312, %v7305
        %v7936 = vpack.c.bf16 %v7313, %v7306
        %v7937 = vpack.c.bf16 %v7314, %v7307
        %v7938 = vpack.c.bf16 %v7315, %v7308
        %v7939 = vpack.c.bf16 %v7316, %v7309
        %v7940 = vpack.c.bf16 %v7317, %v7310
        %v7941 = vpack.c.bf16 %v7325, %v7318
        %v7942 = vpack.c.bf16 %v7326, %v7319
        %v7943 = vpack.c.bf16 %v7327, %v7320
        %v7944 = vpack.c.bf16 %v7328, %v7321
        %v7945 = vpack.c.bf16 %v7329, %v7322
        %v7946 = vpack.c.bf16 %v7330, %v7323
        %v7947 = vpack.c.bf16 %v7331, %v7324
        %v7948 = vpack.c.bf16 %v7339, %v7332
        %v7949 = vpack.c.bf16 %v7340, %v7333
        %v7950 = vpack.c.bf16 %v7341, %v7334
        %v7951 = vpack.c.bf16 %v7342, %v7335
        %v7952 = vpack.c.bf16 %v7343, %v7336
        %v7953 = vpack.c.bf16 %v7344, %v7337
        %v7954 = vpack.c.bf16 %v7345, %v7338
        %v7955 = vpack.c.bf16 %v7353, %v7346
        %v7956 = vpack.c.bf16 %v7354, %v7347
        %v7957 = vpack.c.bf16 %v7355, %v7348
        %v7958 = vpack.c.bf16 %v7356, %v7349
        %v7959 = vpack.c.bf16 %v7357, %v7350
        %v7960 = vpack.c.bf16 %v7358, %v7351
        %v7961 = vpack.c.bf16 %v7359, %v7352
        %v7962 = vpack.c.bf16 %v7367, %v7360
        %v7963 = vpack.c.bf16 %v7368, %v7361
        %v7964 = vpack.c.bf16 %v7369, %v7362
        %v7965 = vpack.c.bf16 %v7370, %v7363
        %v7966 = vpack.c.bf16 %v7371, %v7364
        %v7967 = vpack.c.bf16 %v7372, %v7365
        %v7968 = vpack.c.bf16 %v7373, %v7366
        %v7969 = vpack.c.bf16 %v7381, %v7374
        %v7970 = vpack.c.bf16 %v7382, %v7375
        %v7971 = vpack.c.bf16 %v7383, %v7376
        %v7972 = vpack.c.bf16 %v7384, %v7377
        %v7973 = vpack.c.bf16 %v7385, %v7378
        %v7974 = vpack.c.bf16 %v7386, %v7379
        %v7975 = vpack.c.bf16 %v7387, %v7380
        %v7976 = vpack.c.bf16 %v7395, %v7388
        %v7977 = vpack.c.bf16 %v7396, %v7389
        %v7978 = vpack.c.bf16 %v7397, %v7390
        %v7979 = vpack.c.bf16 %v7398, %v7391
        %v7980 = vpack.c.bf16 %v7399, %v7392
        %v7981 = vpack.c.bf16 %v7400, %v7393
        %v7982 = vpack.c.bf16 %v7401, %v7394
        %v7983 = vpack.c.bf16 %v7409, %v7402
        %v7984 = vpack.c.bf16 %v7410, %v7403
        %v7985 = vpack.c.bf16 %v7411, %v7404
        %v7986 = vpack.c.bf16 %v7412, %v7405
        %v7987 = vpack.c.bf16 %v7413, %v7406
        %v7988 = vpack.c.bf16 %v7414, %v7407
        %v7989 = vpack.c.bf16 %v7415, %v7408
        %v7990 = vpack.c.bf16 %v7423, %v7416
        %v7991 = vpack.c.bf16 %v7424, %v7417
        %v7992 = vpack.c.bf16 %v7425, %v7418
        %v7993 = vpack.c.bf16 %v7426, %v7419
        %v7994 = vpack.c.bf16 %v7427, %v7420
        %v7995 = vpack.c.bf16 %v7428, %v7421
        %v7996 = vpack.c.bf16 %v7429, %v7422
        %v7997 = vpack.c.bf16 %v7437, %v7430
        %v7998 = vpack.c.bf16 %v7438, %v7431
        %v7999 = vpack.c.bf16 %v7439, %v7432
        %v8000 = vpack.c.bf16 %v7440, %v7433
        %v8001 = vpack.c.bf16 %v7441, %v7434
        %v8002 = vpack.c.bf16 %v7442, %v7435
        %v8003 = vpack.c.bf16 %v7443, %v7436
        %v8004 = vpack.c.bf16 %v7451, %v7444
        %v8005 = vpack.c.bf16 %v7452, %v7445
        %v8006 = vpack.c.bf16 %v7453, %v7446
        %v8007 = vpack.c.bf16 %v7454, %v7447
        %v8008 = vpack.c.bf16 %v7455, %v7448
        %v8009 = vpack.c.bf16 %v7456, %v7449
        %v8010 = vpack.c.bf16 %v7457, %v7450
        %v8011 = vpack.c.bf16 %v7465, %v7458
        %v8012 = vpack.c.bf16 %v7466, %v7459
        %v8013 = vpack.c.bf16 %v7467, %v7460
        %v8014 = vpack.c.bf16 %v7468, %v7461
        %v8015 = vpack.c.bf16 %v7469, %v7462
        %v8016 = vpack.c.bf16 %v7470, %v7463
        %v8017 = vpack.c.bf16 %v7471, %v7464
        %v8018 = vpack.c.bf16 %v7479, %v7472
        %v8019 = vpack.c.bf16 %v7480, %v7473
        %v8020 = vpack.c.bf16 %v7481, %v7474
        %v8021 = vpack.c.bf16 %v7482, %v7475
        %v8022 = vpack.c.bf16 %v7483, %v7476
        %v8023 = vpack.c.bf16 %v7484, %v7477
        %v8024 = vpack.c.bf16 %v7485, %v7478
        %v8025 = vpack.c.bf16 %v7493, %v7486
        %v8026 = vpack.c.bf16 %v7494, %v7487
        %v8027 = vpack.c.bf16 %v7495, %v7488
        %v8028 = vpack.c.bf16 %v7496, %v7489
        %v8029 = vpack.c.bf16 %v7497, %v7490
        %v8030 = vpack.c.bf16 %v7498, %v7491
        %v8031 = vpack.c.bf16 %v7499, %v7492
        %v8032 = vpack.c.bf16 %v7507, %v7500
        %v8033 = vpack.c.bf16 %v7508, %v7501
        %v8034 = vpack.c.bf16 %v7509, %v7502
        %v8035 = vpack.c.bf16 %v7510, %v7503
        %v8036 = vpack.c.bf16 %v7511, %v7504
        %v8037 = vpack.c.bf16 %v7512, %v7505
        %v8038 = vpack.c.bf16 %v7513, %v7506
        %v8039 = vpack.c.bf16 %v7521, %v7514
        %v8040 = vpack.c.bf16 %v7522, %v7515
        %v8041 = vpack.c.bf16 %v7523, %v7516
        %v8042 = vpack.c.bf16 %v7524, %v7517
        %v8043 = vpack.c.bf16 %v7525, %v7518
        %v8044 = vpack.c.bf16 %v7526, %v7519
        %v8045 = vpack.c.bf16 %v7527, %v7520
        %v8046 = vpack.c.bf16 %v7535, %v7528
        %v8047 = vpack.c.bf16 %v7536, %v7529
        %v8048 = vpack.c.bf16 %v7537, %v7530
        %v8049 = vpack.c.bf16 %v7538, %v7531
        %v8050 = vpack.c.bf16 %v7539, %v7532
        %v8051 = vpack.c.bf16 %v7540, %v7533
        %v8052 = vpack.c.bf16 %v7541, %v7534
        %v8053 = vpack.c.bf16 %v7549, %v7542
        %v8054 = vpack.c.bf16 %v7550, %v7543
        %v8055 = vpack.c.bf16 %v7551, %v7544
        %v8056 = vpack.c.bf16 %v7552, %v7545
        %v8057 = vpack.c.bf16 %v7553, %v7546
        %v8058 = vpack.c.bf16 %v7554, %v7547
        %v8059 = vpack.c.bf16 %v7555, %v7548
        %v8060 = vpack.c.bf16 %v7563, %v7556
        %v8061 = vpack.c.bf16 %v7564, %v7557
        %v8062 = vpack.c.bf16 %v7565, %v7558
        %v8063 = vpack.c.bf16 %v7566, %v7559
        %v8064 = vpack.c.bf16 %v7567, %v7560
        %v8065 = vpack.c.bf16 %v7568, %v7561
        %v8066 = vpack.c.bf16 %v7569, %v7562
        %v8067 = vpack.c.bf16 %v7577, %v7570
        %v8068 = vpack.c.bf16 %v7578, %v7571
        %v8069 = vpack.c.bf16 %v7579, %v7572
        %v8070 = vpack.c.bf16 %v7580, %v7573
        %v8071 = vpack.c.bf16 %v7581, %v7574
        %v8072 = vpack.c.bf16 %v7582, %v7575
        %v8073 = vpack.c.bf16 %v7583, %v7576
        %v8074 = vpack.c.bf16 %v7591, %v7584
        %v8075 = vpack.c.bf16 %v7592, %v7585
        %v8076 = vpack.c.bf16 %v7593, %v7586
        %v8077 = vpack.c.bf16 %v7594, %v7587
        %v8078 = vpack.c.bf16 %v7595, %v7588
        %v8079 = vpack.c.bf16 %v7596, %v7589
        %v8080 = vpack.c.bf16 %v7597, %v7590
        %v8081 = vpack.c.bf16 %v7605, %v7598
        %v8082 = vpack.c.bf16 %v7606, %v7599
        %v8083 = vpack.c.bf16 %v7607, %v7600
        %v8084 = vpack.c.bf16 %v7608, %v7601
        %v8085 = vpack.c.bf16 %v7609, %v7602
        %v8086 = vpack.c.bf16 %v7610, %v7603
        %v8087 = vpack.c.bf16 %v7611, %v7604
        %v8088 = vpack.c.bf16 %v7619, %v7612
        %v8089 = vpack.c.bf16 %v7620, %v7613
        %v8090 = vpack.c.bf16 %v7621, %v7614
        %v8091 = vpack.c.bf16 %v7622, %v7615
        %v8092 = vpack.c.bf16 %v7623, %v7616
        %v8093 = vpack.c.bf16 %v7624, %v7617
        %v8094 = vpack.c.bf16 %v7625, %v7618
        %v8095 = vpack.c.bf16 %v7633, %v7626
        %v8096 = vpack.c.bf16 %v7634, %v7627
        %v8097 = vpack.c.bf16 %v7635, %v7628
        %v8098 = vpack.c.bf16 %v7636, %v7629
        %v8099 = vpack.c.bf16 %v7637, %v7630
        %v8100 = vpack.c.bf16 %v7638, %v7631
        %v8101 = vpack.c.bf16 %v7639, %v7632
        %v8102 = vpack.c.bf16 %v7647, %v7640
        %v8103 = vpack.c.bf16 %v7648, %v7641
        %v8104 = vpack.c.bf16 %v7649, %v7642
        %v8105 = vpack.c.bf16 %v7650, %v7643
        %v8106 = vpack.c.bf16 %v7651, %v7644
        %v8107 = vpack.c.bf16 %v7652, %v7645
        %v8108 = vpack.c.bf16 %v7653, %v7646
        %v8109 = vpack.c.bf16 %v7661, %v7654
        %v8110 = vpack.c.bf16 %v7662, %v7655
        %v8111 = vpack.c.bf16 %v7663, %v7656
        %v8112 = vpack.c.bf16 %v7664, %v7657
        %v8113 = vpack.c.bf16 %v7665, %v7658
        %v8114 = vpack.c.bf16 %v7666, %v7659
        %v8115 = vpack.c.bf16 %v7667, %v7660
        %v8116 = vpack.c.bf16 %v7675, %v7668
        %v8117 = vpack.c.bf16 %v7676, %v7669
        %v8118 = vpack.c.bf16 %v7677, %v7670
        %v8119 = vpack.c.bf16 %v7678, %v7671
        %v8120 = vpack.c.bf16 %v7679, %v7672
        %v8121 = vpack.c.bf16 %v7680, %v7673
        %v8122 = vpack.c.bf16 %v7681, %v7674
        %v8123 = vpack.c.bf16 %v7689, %v7682
        %v8124 = vpack.c.bf16 %v7690, %v7683
        %v8125 = vpack.c.bf16 %v7691, %v7684
        %v8126 = vpack.c.bf16 %v7692, %v7685
        %v8127 = vpack.c.bf16 %v7693, %v7686
        %v8128 = vpack.c.bf16 %v7694, %v7687
        %v8129 = vpack.c.bf16 %v7695, %v7688
        %v8130 = vpack.c.bf16 %v7703, %v7696
        %v8131 = vpack.c.bf16 %v7704, %v7697
        %v8132 = vpack.c.bf16 %v7705, %v7698
        %v8133 = vpack.c.bf16 %v7706, %v7699
        %v8134 = vpack.c.bf16 %v7707, %v7700
        %v8135 = vpack.c.bf16 %v7708, %v7701
        %v8136 = vpack.c.bf16 %v7709, %v7702
        %v8137 = vpack.c.bf16 %v7717, %v7710
        %v8138 = vpack.c.bf16 %v7718, %v7711
        %v8139 = vpack.c.bf16 %v7719, %v7712
        %v8140 = vpack.c.bf16 %v7720, %v7713
        %v8141 = vpack.c.bf16 %v7721, %v7714
        %v8142 = vpack.c.bf16 %v7722, %v7715
        %v8143 = vpack.c.bf16 %v7723, %v7716
        %v8144 = vpack.c.bf16 %v7731, %v7724
        %v8145 = vpack.c.bf16 %v7732, %v7725
        %v8146 = vpack.c.bf16 %v7733, %v7726
        %v8147 = vpack.c.bf16 %v7734, %v7727
        %v8148 = vpack.c.bf16 %v7735, %v7728
        %v8149 = vpack.c.bf16 %v7736, %v7729
        %v8150 = vpack.c.bf16 %v7737, %v7730
        %v8151 = vpack.c.bf16 %v7745, %v7738
        %v8152 = vpack.c.bf16 %v7746, %v7739
        %v8153 = vpack.c.bf16 %v7747, %v7740
        %v8154 = vpack.c.bf16 %v7748, %v7741
        %v8155 = vpack.c.bf16 %v7749, %v7742
        %v8156 = vpack.c.bf16 %v7750, %v7743
        %v8157 = vpack.c.bf16 %v7751, %v7744
        %v8158 = vpack.c.bf16 %v7759, %v7752
        %v8159 = vpack.c.bf16 %v7760, %v7753
        %v8160 = vpack.c.bf16 %v7761, %v7754
        %v8161 = vpack.c.bf16 %v7762, %v7755
        %v8162 = vpack.c.bf16 %v7763, %v7756
        %v8163 = vpack.c.bf16 %v7764, %v7757
        %v8164 = vpack.c.bf16 %v7765, %v7758
        %v8165 = vpack.c.bf16 %v7773, %v7766
        %v8166 = vpack.c.bf16 %v7774, %v7767
        %v8167 = vpack.c.bf16 %v7775, %v7768
        %v8168 = vpack.c.bf16 %v7776, %v7769
        %v8169 = vpack.c.bf16 %v7777, %v7770
        %v8170 = vpack.c.bf16 %v7778, %v7771
        %v8171 = vpack.c.bf16 %v7779, %v7772
        %v8172 = vpack.c.bf16 %v7787, %v7780
        %v8173 = vpack.c.bf16 %v7788, %v7781
        %v8174 = vpack.c.bf16 %v7789, %v7782
        %v8175 = vpack.c.bf16 %v7790, %v7783
        %v8176 = vpack.c.bf16 %v7791, %v7784
        %v8177 = vpack.c.bf16 %v7792, %v7785
        %v8178 = vpack.c.bf16 %v7793, %v7786
        %v8179 = vpack.c.bf16 %v7801, %v7794
        %v8180 = vpack.c.bf16 %v7802, %v7795
        %v8181 = vpack.c.bf16 %v7803, %v7796
        %v8182 = vpack.c.bf16 %v7804, %v7797
        %v8183 = vpack.c.bf16 %v7805, %v7798
        %v8184 = vpack.c.bf16 %v7806, %v7799
        %v8185 = vpack.c.bf16 %v7807, %v7800
        %v8186 = vpack.c.bf16 %v7815, %v7808
        %v8187 = vpack.c.bf16 %v7816, %v7809
        %v8188 = vpack.c.bf16 %v7817, %v7810
        %v8189 = vpack.c.bf16 %v7818, %v7811
        %v8190 = vpack.c.bf16 %v7819, %v7812
        %v8191 = vpack.c.bf16 %v7820, %v7813
        %v8192 = vpack.c.bf16 %v7821, %v7814
        %v8193 = vpack.c.bf16 %v7829, %v7822
        %v8194 = vpack.c.bf16 %v7830, %v7823
        %v8195 = vpack.c.bf16 %v7831, %v7824
        %v8196 = vpack.c.bf16 %v7832, %v7825
        %v8197 = vpack.c.bf16 %v7833, %v7826
        %v8198 = vpack.c.bf16 %v7834, %v7827
        %v8199 = vpack.c.bf16 %v7835, %v7828
        %v8200 = vpack.c.bf16 %v7843, %v7836
        %v8201 = vpack.c.bf16 %v7844, %v7837
        %v8202 = vpack.c.bf16 %v7845, %v7838
        %v8203 = vpack.c.bf16 %v7846, %v7839
        %v8204 = vpack.c.bf16 %v7847, %v7840
        %v8205 = vpack.c.bf16 %v7848, %v7841
        %v8206 = vpack.c.bf16 %v7849, %v7842
        %v8207 = vpack.c.bf16 %v7857, %v7850
        %v8208 = vpack.c.bf16 %v7858, %v7851
        %v8209 = vpack.c.bf16 %v7859, %v7852
        %v8210 = vpack.c.bf16 %v7860, %v7853
        %v8211 = vpack.c.bf16 %v7861, %v7854
        %v8212 = vpack.c.bf16 %v7862, %v7855
        %v8213 = vpack.c.bf16 %v7863, %v7856
        %v8214 = vpack.c.bf16 %v7871, %v7864
        %v8215 = vpack.c.bf16 %v7872, %v7865
        %v8216 = vpack.c.bf16 %v7873, %v7866
        %v8217 = vpack.c.bf16 %v7874, %v7867
        %v8218 = vpack.c.bf16 %v7875, %v7868
        %v8219 = vpack.c.bf16 %v7876, %v7869
        %v8220 = vpack.c.bf16 %v7877, %v7870
        %v8221 = vpack.c.bf16 %v7885, %v7878
        %v8222 = vpack.c.bf16 %v7886, %v7879
        %v8223 = vpack.c.bf16 %v7887, %v7880
        %v8224 = vpack.c.bf16 %v7888, %v7881
        %v8225 = vpack.c.bf16 %v7889, %v7882
        %v8226 = vpack.c.bf16 %v7890, %v7883
        %v8227 = vpack.c.bf16 %v7891, %v7884
        %v8228 = vld [vmem:[#allocation3] sm:$0xff]
        %v8229 = vld [vmem:[#allocation3 + $0x8] sm:$0xff]
        %v8230 = vld [vmem:[#allocation3 + $0x10] sm:$0xff]
        %v8231 = vld [vmem:[#allocation3 + $0x18] sm:$0xff]
        %v8232 = vld [vmem:[#allocation3 + $0x20] sm:$0xff]
        %v8233 = vld [vmem:[#allocation3 + $0x28] sm:$0xff]
        %v8234 = vld [vmem:[#allocation3 + $0x30] sm:$0xff]
        %v8235 = vld [vmem:[#allocation3 + $0x38] sm:$0xff]
        %v8236 = vld [vmem:[#allocation3 + $0x40] sm:$0xff]
        %v8237 = vld [vmem:[#allocation3 + $0x48] sm:$0xff]
        %v8238 = vld [vmem:[#allocation3 + $0x50] sm:$0xff]
        %v8239 = vld [vmem:[#allocation3 + $0x58] sm:$0xff]
        %v8240 = vld [vmem:[#allocation3 + $0x60] sm:$0xff]
        %v8241 = vld [vmem:[#allocation3 + $0x68] sm:$0xff]
        %v8242 = vpack.c.bf16 %v6206, %v6116
        %v8243 = vpack.c.bf16 %v6221, %v6131
        %v8244 = vpack.c.bf16 %v6236, %v6146
        %v8245 = vpack.c.bf16 %v6251, %v6161
        %v8246 = vpack.c.bf16 %v6266, %v6176
        %v8247 = vpack.c.bf16 %v6281, %v6191
        %8248 = vmatpush.bf16.msra.mxu0 %v7941
        %8249 = vmatpush.bf16.msra.mxu0 %v7934
        %8250 = vmatpush.bf16.msra.mxu0 %v7927
        %8251 = vmatpush.bf16.msra.mxu0 %v7920
        %8252 = vmatpush.bf16.msra.mxu0 %v7913
        %8253 = vmatpush.bf16.msra.mxu0 %v7906
        %8254 = vmatpush.bf16.msra.mxu0 %v7899
        %8255 = vmatpush.bf16.msra.mxu0 %v7892
        %8256 = vmatmul.bf16.gmra.mxu0 %v8242
        %v8257 = vpop.f32.mrf.mxu0
        %v8258 = vadd.f32 0.0, %v8257
        %v8259 = vpop.f32.mrf.mxu0
        %v8260 = vadd.f32 0.0, %v8259
        %8261 = vdwg.mxu0
        %8262 = vmatpush.bf16.msra.mxu0 %v7997
        %8263 = vmatpush.bf16.msra.mxu0 %v7990
        %8264 = vmatpush.bf16.msra.mxu0 %v7983
        %8265 = vmatpush.bf16.msra.mxu0 %v7976
        %8266 = vmatpush.bf16.msra.mxu0 %v7969
        %8267 = vmatpush.bf16.msra.mxu0 %v7962
        %8268 = vmatpush.bf16.msra.mxu0 %v7955
        %8269 = vmatpush.bf16.msra.mxu0 %v7948
        %8270 = vmatmul.bf16.gmra.mxu0 %v8243
        %v8271 = vpop.f32.mrf.mxu0
        %v8272 = vadd.f32 %v8258, %v8271
        %v8273 = vpop.f32.mrf.mxu0
        %v8274 = vadd.f32 %v8260, %v8273
        %8275 = vdwg.mxu0
        %8276 = vmatpush.bf16.msra.mxu0 %v8053
        %8277 = vmatpush.bf16.msra.mxu0 %v8046
        %8278 = vmatpush.bf16.msra.mxu0 %v8039
        %8279 = vmatpush.bf16.msra.mxu0 %v8032
        %8280 = vmatpush.bf16.msra.mxu0 %v8025
        %8281 = vmatpush.bf16.msra.mxu0 %v8018
        %8282 = vmatpush.bf16.msra.mxu0 %v8011
        %8283 = vmatpush.bf16.msra.mxu0 %v8004
        %8284 = vmatmul.bf16.gmra.mxu0 %v8244
        %v8285 = vpop.f32.mrf.mxu0
        %v8286 = vadd.f32 %v8272, %v8285
        %v8287 = vpop.f32.mrf.mxu0
        %v8288 = vadd.f32 %v8274, %v8287
        %8289 = vdwg.mxu0
        %8290 = vmatpush.bf16.msra.mxu0 %v8109
        %8291 = vmatpush.bf16.msra.mxu0 %v8102
        %8292 = vmatpush.bf16.msra.mxu0 %v8095
        %8293 = vmatpush.bf16.msra.mxu0 %v8088
        %8294 = vmatpush.bf16.msra.mxu0 %v8081
        %8295 = vmatpush.bf16.msra.mxu0 %v8074
        %8296 = vmatpush.bf16.msra.mxu0 %v8067
        %8297 = vmatpush.bf16.msra.mxu0 %v8060
        %8298 = vmatmul.bf16.gmra.mxu0 %v8245
        %v8299 = vpop.f32.mrf.mxu0
        %v8300 = vadd.f32 %v8286, %v8299
        %v8301 = vpop.f32.mrf.mxu0
        %v8302 = vadd.f32 %v8288, %v8301
        %8303 = vdwg.mxu0
        %8304 = vmatpush.bf16.msra.mxu0 %v8165
        %8305 = vmatpush.bf16.msra.mxu0 %v8158
        %8306 = vmatpush.bf16.msra.mxu0 %v8151
        %8307 = vmatpush.bf16.msra.mxu0 %v8144
        %8308 = vmatpush.bf16.msra.mxu0 %v8137
        %8309 = vmatpush.bf16.msra.mxu0 %v8130
        %8310 = vmatpush.bf16.msra.mxu0 %v8123
        %8311 = vmatpush.bf16.msra.mxu0 %v8116
        %8312 = vmatmul.bf16.gmra.mxu0 %v8246
        %v8313 = vpop.f32.mrf.mxu0
        %v8314 = vadd.f32 %v8300, %v8313
        %v8315 = vpop.f32.mrf.mxu0
        %v8316 = vadd.f32 %v8302, %v8315
        %8317 = vdwg.mxu0
        %8318 = vmatpush.bf16.msra.mxu0 %v8221
        %8319 = vmatpush.bf16.msra.mxu0 %v8214
        %8320 = vmatpush.bf16.msra.mxu0 %v8207
        %8321 = vmatpush.bf16.msra.mxu0 %v8200
        %8322 = vmatpush.bf16.msra.mxu0 %v8193
        %8323 = vmatpush.bf16.msra.mxu0 %v8186
        %8324 = vmatpush.bf16.msra.mxu0 %v8179
        %8325 = vmatpush.bf16.msra.mxu0 %v8172
        %8326 = vmatmul.bf16.gmra.mxu0 %v8247
        %v8327 = vpop.f32.mrf.mxu0
        %v8328 = vadd.f32 %v8314, %v8327
        %v8329 = vpop.f32.mrf.mxu0
        %v8330 = vadd.f32 %v8316, %v8329
        %8331 = vdwg.mxu0
        %8332 = vmatpush.bf16.msra.mxu0 %v7942
        %8333 = vmatpush.bf16.msra.mxu0 %v7935
        %8334 = vmatpush.bf16.msra.mxu0 %v7928
        %8335 = vmatpush.bf16.msra.mxu0 %v7921
        %8336 = vmatpush.bf16.msra.mxu0 %v7914
        %8337 = vmatpush.bf16.msra.mxu0 %v7907
        %8338 = vmatpush.bf16.msra.mxu0 %v7900
        %8339 = vmatpush.bf16.msra.mxu0 %v7893
        %8340 = vmatmul.bf16.gmra.mxu0 %v8242
        %v8341 = vpop.f32.mrf.mxu0
        %v8342 = vadd.f32 0.0, %v8341
        %v8343 = vpop.f32.mrf.mxu0
        %v8344 = vadd.f32 0.0, %v8343
        %8345 = vdwg.mxu0
        %8346 = vmatpush.bf16.msra.mxu0 %v7998
        %8347 = vmatpush.bf16.msra.mxu0 %v7991
        %8348 = vmatpush.bf16.msra.mxu0 %v7984
        %8349 = vmatpush.bf16.msra.mxu0 %v7977
        %8350 = vmatpush.bf16.msra.mxu0 %v7970
        %8351 = vmatpush.bf16.msra.mxu0 %v7963
        %8352 = vmatpush.bf16.msra.mxu0 %v7956
        %8353 = vmatpush.bf16.msra.mxu0 %v7949
        %8354 = vmatmul.bf16.gmra.mxu0 %v8243
        %v8355 = vpop.f32.mrf.mxu0
        %v8356 = vadd.f32 %v8342, %v8355
        %v8357 = vpop.f32.mrf.mxu0
        %v8358 = vadd.f32 %v8344, %v8357
        %8359 = vdwg.mxu0
        %8360 = vmatpush.bf16.msra.mxu0 %v8054
        %8361 = vmatpush.bf16.msra.mxu0 %v8047
        %8362 = vmatpush.bf16.msra.mxu0 %v8040
        %8363 = vmatpush.bf16.msra.mxu0 %v8033
        %8364 = vmatpush.bf16.msra.mxu0 %v8026
        %8365 = vmatpush.bf16.msra.mxu0 %v8019
        %8366 = vmatpush.bf16.msra.mxu0 %v8012
        %8367 = vmatpush.bf16.msra.mxu0 %v8005
        %8368 = vmatmul.bf16.gmra.mxu0 %v8244
        %v8369 = vpop.f32.mrf.mxu0
        %v8370 = vadd.f32 %v8356, %v8369
        %v8371 = vpop.f32.mrf.mxu0
        %v8372 = vadd.f32 %v8358, %v8371
        %8373 = vdwg.mxu0
        %8374 = vmatpush.bf16.msra.mxu0 %v8110
        %8375 = vmatpush.bf16.msra.mxu0 %v8103
        %8376 = vmatpush.bf16.msra.mxu0 %v8096
        %8377 = vmatpush.bf16.msra.mxu0 %v8089
        %8378 = vmatpush.bf16.msra.mxu0 %v8082
        %8379 = vmatpush.bf16.msra.mxu0 %v8075
        %8380 = vmatpush.bf16.msra.mxu0 %v8068
        %8381 = vmatpush.bf16.msra.mxu0 %v8061
        %8382 = vmatmul.bf16.gmra.mxu0 %v8245
        %v8383 = vpop.f32.mrf.mxu0
        %v8384 = vadd.f32 %v8370, %v8383
        %v8385 = vpop.f32.mrf.mxu0
        %v8386 = vadd.f32 %v8372, %v8385
        %8387 = vdwg.mxu0
        %8388 = vmatpush.bf16.msra.mxu0 %v8166
        %8389 = vmatpush.bf16.msra.mxu0 %v8159
        %8390 = vmatpush.bf16.msra.mxu0 %v8152
        %8391 = vmatpush.bf16.msra.mxu0 %v8145
        %8392 = vmatpush.bf16.msra.mxu0 %v8138
        %8393 = vmatpush.bf16.msra.mxu0 %v8131
        %8394 = vmatpush.bf16.msra.mxu0 %v8124
        %8395 = vmatpush.bf16.msra.mxu0 %v8117
        %8396 = vmatmul.bf16.gmra.mxu0 %v8246
        %v8397 = vpop.f32.mrf.mxu0
        %v8398 = vadd.f32 %v8384, %v8397
        %v8399 = vpop.f32.mrf.mxu0
        %v8400 = vadd.f32 %v8386, %v8399
        %8401 = vdwg.mxu0
        %8402 = vmatpush.bf16.msra.mxu0 %v8222
        %8403 = vmatpush.bf16.msra.mxu0 %v8215
        %8404 = vmatpush.bf16.msra.mxu0 %v8208
        %8405 = vmatpush.bf16.msra.mxu0 %v8201
        %8406 = vmatpush.bf16.msra.mxu0 %v8194
        %8407 = vmatpush.bf16.msra.mxu0 %v8187
        %8408 = vmatpush.bf16.msra.mxu0 %v8180
        %8409 = vmatpush.bf16.msra.mxu0 %v8173
        %8410 = vmatmul.bf16.gmra.mxu0 %v8247
        %v8411 = vpop.f32.mrf.mxu0
        %v8412 = vadd.f32 %v8398, %v8411
        %v8413 = vpop.f32.mrf.mxu0
        %v8414 = vadd.f32 %v8400, %v8413
        %8415 = vdwg.mxu0
        %8416 = vmatpush.bf16.msra.mxu0 %v7943
        %8417 = vmatpush.bf16.msra.mxu0 %v7936
        %8418 = vmatpush.bf16.msra.mxu0 %v7929
        %8419 = vmatpush.bf16.msra.mxu0 %v7922
        %8420 = vmatpush.bf16.msra.mxu0 %v7915
        %8421 = vmatpush.bf16.msra.mxu0 %v7908
        %8422 = vmatpush.bf16.msra.mxu0 %v7901
        %8423 = vmatpush.bf16.msra.mxu0 %v7894
        %8424 = vmatmul.bf16.gmra.mxu0 %v8242
        %v8425 = vpop.f32.mrf.mxu0
        %v8426 = vadd.f32 0.0, %v8425
        %v8427 = vpop.f32.mrf.mxu0
        %v8428 = vadd.f32 0.0, %v8427
        %8429 = vdwg.mxu0
        %8430 = vmatpush.bf16.msra.mxu0 %v7999
        %8431 = vmatpush.bf16.msra.mxu0 %v7992
        %8432 = vmatpush.bf16.msra.mxu0 %v7985
        %8433 = vmatpush.bf16.msra.mxu0 %v7978
        %8434 = vmatpush.bf16.msra.mxu0 %v7971
        %8435 = vmatpush.bf16.msra.mxu0 %v7964
        %8436 = vmatpush.bf16.msra.mxu0 %v7957
        %8437 = vmatpush.bf16.msra.mxu0 %v7950
        %8438 = vmatmul.bf16.gmra.mxu0 %v8243
        %v8439 = vpop.f32.mrf.mxu0
        %v8440 = vadd.f32 %v8426, %v8439
        %v8441 = vpop.f32.mrf.mxu0
        %v8442 = vadd.f32 %v8428, %v8441
        %8443 = vdwg.mxu0
        %8444 = vmatpush.bf16.msra.mxu0 %v8055
        %8445 = vmatpush.bf16.msra.mxu0 %v8048
        %8446 = vmatpush.bf16.msra.mxu0 %v8041
        %8447 = vmatpush.bf16.msra.mxu0 %v8034
        %8448 = vmatpush.bf16.msra.mxu0 %v8027
        %8449 = vmatpush.bf16.msra.mxu0 %v8020
        %8450 = vmatpush.bf16.msra.mxu0 %v8013
        %8451 = vmatpush.bf16.msra.mxu0 %v8006
        %8452 = vmatmul.bf16.gmra.mxu0 %v8244
        %v8453 = vpop.f32.mrf.mxu0
        %v8454 = vadd.f32 %v8440, %v8453
        %v8455 = vpop.f32.mrf.mxu0
        %v8456 = vadd.f32 %v8442, %v8455
        %8457 = vdwg.mxu0
        %8458 = vmatpush.bf16.msra.mxu0 %v8111
        %8459 = vmatpush.bf16.msra.mxu0 %v8104
        %8460 = vmatpush.bf16.msra.mxu0 %v8097
        %8461 = vmatpush.bf16.msra.mxu0 %v8090
        %8462 = vmatpush.bf16.msra.mxu0 %v8083
        %8463 = vmatpush.bf16.msra.mxu0 %v8076
        %8464 = vmatpush.bf16.msra.mxu0 %v8069
        %8465 = vmatpush.bf16.msra.mxu0 %v8062
        %8466 = vmatmul.bf16.gmra.mxu0 %v8245
        %v8467 = vpop.f32.mrf.mxu0
        %v8468 = vadd.f32 %v8454, %v8467
        %v8469 = vpop.f32.mrf.mxu0
        %v8470 = vadd.f32 %v8456, %v8469
        %8471 = vdwg.mxu0
        %8472 = vmatpush.bf16.msra.mxu0 %v8167
        %8473 = vmatpush.bf16.msra.mxu0 %v8160
        %8474 = vmatpush.bf16.msra.mxu0 %v8153
        %8475 = vmatpush.bf16.msra.mxu0 %v8146
        %8476 = vmatpush.bf16.msra.mxu0 %v8139
        %8477 = vmatpush.bf16.msra.mxu0 %v8132
        %8478 = vmatpush.bf16.msra.mxu0 %v8125
        %8479 = vmatpush.bf16.msra.mxu0 %v8118
        %8480 = vmatmul.bf16.gmra.mxu0 %v8246
        %v8481 = vpop.f32.mrf.mxu0
        %v8482 = vadd.f32 %v8468, %v8481
        %v8483 = vpop.f32.mrf.mxu0
        %v8484 = vadd.f32 %v8470, %v8483
        %8485 = vdwg.mxu0
        %8486 = vmatpush.bf16.msra.mxu0 %v8223
        %8487 = vmatpush.bf16.msra.mxu0 %v8216
        %8488 = vmatpush.bf16.msra.mxu0 %v8209
        %8489 = vmatpush.bf16.msra.mxu0 %v8202
        %8490 = vmatpush.bf16.msra.mxu0 %v8195
        %8491 = vmatpush.bf16.msra.mxu0 %v8188
        %8492 = vmatpush.bf16.msra.mxu0 %v8181
        %8493 = vmatpush.bf16.msra.mxu0 %v8174
        %8494 = vmatmul.bf16.gmra.mxu0 %v8247
        %v8495 = vpop.f32.mrf.mxu0
        %v8496 = vadd.f32 %v8482, %v8495
        %v8497 = vpop.f32.mrf.mxu0
        %v8498 = vadd.f32 %v8484, %v8497
        %8499 = vdwg.mxu0
        %8500 = vmatpush.bf16.msra.mxu0 %v7944
        %8501 = vmatpush.bf16.msra.mxu0 %v7937
        %8502 = vmatpush.bf16.msra.mxu0 %v7930
        %8503 = vmatpush.bf16.msra.mxu0 %v7923
        %8504 = vmatpush.bf16.msra.mxu0 %v7916
        %8505 = vmatpush.bf16.msra.mxu0 %v7909
        %8506 = vmatpush.bf16.msra.mxu0 %v7902
        %8507 = vmatpush.bf16.msra.mxu0 %v7895
        %8508 = vmatmul.bf16.gmra.mxu0 %v8242
        %v8509 = vpop.f32.mrf.mxu0
        %v8510 = vadd.f32 0.0, %v8509
        %v8511 = vpop.f32.mrf.mxu0
        %v8512 = vadd.f32 0.0, %v8511
        %8513 = vdwg.mxu0
        %8514 = vmatpush.bf16.msra.mxu0 %v8000
        %8515 = vmatpush.bf16.msra.mxu0 %v7993
        %8516 = vmatpush.bf16.msra.mxu0 %v7986
        %8517 = vmatpush.bf16.msra.mxu0 %v7979
        %8518 = vmatpush.bf16.msra.mxu0 %v7972
        %8519 = vmatpush.bf16.msra.mxu0 %v7965
        %8520 = vmatpush.bf16.msra.mxu0 %v7958
        %8521 = vmatpush.bf16.msra.mxu0 %v7951
        %8522 = vmatmul.bf16.gmra.mxu0 %v8243
        %v8523 = vpop.f32.mrf.mxu0
        %v8524 = vadd.f32 %v8510, %v8523
        %v8525 = vpop.f32.mrf.mxu0
        %v8526 = vadd.f32 %v8512, %v8525
        %8527 = vdwg.mxu0
        %8528 = vmatpush.bf16.msra.mxu0 %v8056
        %8529 = vmatpush.bf16.msra.mxu0 %v8049
        %8530 = vmatpush.bf16.msra.mxu0 %v8042
        %8531 = vmatpush.bf16.msra.mxu0 %v8035
        %8532 = vmatpush.bf16.msra.mxu0 %v8028
        %8533 = vmatpush.bf16.msra.mxu0 %v8021
        %8534 = vmatpush.bf16.msra.mxu0 %v8014
        %8535 = vmatpush.bf16.msra.mxu0 %v8007
        %8536 = vmatmul.bf16.gmra.mxu0 %v8244
        %v8537 = vpop.f32.mrf.mxu0
        %v8538 = vadd.f32 %v8524, %v8537
        %v8539 = vpop.f32.mrf.mxu0
        %v8540 = vadd.f32 %v8526, %v8539
        %8541 = vdwg.mxu0
        %8542 = vmatpush.bf16.msra.mxu0 %v8112
        %8543 = vmatpush.bf16.msra.mxu0 %v8105
        %8544 = vmatpush.bf16.msra.mxu0 %v8098
        %8545 = vmatpush.bf16.msra.mxu0 %v8091
        %8546 = vmatpush.bf16.msra.mxu0 %v8084
        %8547 = vmatpush.bf16.msra.mxu0 %v8077
        %8548 = vmatpush.bf16.msra.mxu0 %v8070
        %8549 = vmatpush.bf16.msra.mxu0 %v8063
        %8550 = vmatmul.bf16.gmra.mxu0 %v8245
        %v8551 = vpop.f32.mrf.mxu0
        %v8552 = vadd.f32 %v8538, %v8551
        %v8553 = vpop.f32.mrf.mxu0
        %v8554 = vadd.f32 %v8540, %v8553
        %8555 = vdwg.mxu0
        %8556 = vmatpush.bf16.msra.mxu0 %v8168
        %8557 = vmatpush.bf16.msra.mxu0 %v8161
        %8558 = vmatpush.bf16.msra.mxu0 %v8154
        %8559 = vmatpush.bf16.msra.mxu0 %v8147
        %8560 = vmatpush.bf16.msra.mxu0 %v8140
        %8561 = vmatpush.bf16.msra.mxu0 %v8133
        %8562 = vmatpush.bf16.msra.mxu0 %v8126
        %8563 = vmatpush.bf16.msra.mxu0 %v8119
        %8564 = vmatmul.bf16.gmra.mxu0 %v8246
        %v8565 = vpop.f32.mrf.mxu0
        %v8566 = vadd.f32 %v8552, %v8565
        %v8567 = vpop.f32.mrf.mxu0
        %v8568 = vadd.f32 %v8554, %v8567
        %8569 = vdwg.mxu0
        %8570 = vmatpush.bf16.msra.mxu0 %v8224
        %8571 = vmatpush.bf16.msra.mxu0 %v8217
        %8572 = vmatpush.bf16.msra.mxu0 %v8210
        %8573 = vmatpush.bf16.msra.mxu0 %v8203
        %8574 = vmatpush.bf16.msra.mxu0 %v8196
        %8575 = vmatpush.bf16.msra.mxu0 %v8189
        %8576 = vmatpush.bf16.msra.mxu0 %v8182
        %8577 = vmatpush.bf16.msra.mxu0 %v8175
        %8578 = vmatmul.bf16.gmra.mxu0 %v8247
        %v8579 = vpop.f32.mrf.mxu0
        %v8580 = vadd.f32 %v8566, %v8579
        %v8581 = vpop.f32.mrf.mxu0
        %v8582 = vadd.f32 %v8568, %v8581
        %8583 = vdwg.mxu0
        %8584 = vmatpush.bf16.msra.mxu0 %v7945
        %8585 = vmatpush.bf16.msra.mxu0 %v7938
        %8586 = vmatpush.bf16.msra.mxu0 %v7931
        %8587 = vmatpush.bf16.msra.mxu0 %v7924
        %8588 = vmatpush.bf16.msra.mxu0 %v7917
        %8589 = vmatpush.bf16.msra.mxu0 %v7910
        %8590 = vmatpush.bf16.msra.mxu0 %v7903
        %8591 = vmatpush.bf16.msra.mxu0 %v7896
        %8592 = vmatmul.bf16.gmra.mxu0 %v8242
        %v8593 = vpop.f32.mrf.mxu0
        %v8594 = vadd.f32 0.0, %v8593
        %v8595 = vpop.f32.mrf.mxu0
        %v8596 = vadd.f32 0.0, %v8595
        %8597 = vdwg.mxu0
        %8598 = vmatpush.bf16.msra.mxu0 %v8001
        %8599 = vmatpush.bf16.msra.mxu0 %v7994
        %8600 = vmatpush.bf16.msra.mxu0 %v7987
        %8601 = vmatpush.bf16.msra.mxu0 %v7980
        %8602 = vmatpush.bf16.msra.mxu0 %v7973
        %8603 = vmatpush.bf16.msra.mxu0 %v7966
        %8604 = vmatpush.bf16.msra.mxu0 %v7959
        %8605 = vmatpush.bf16.msra.mxu0 %v7952
        %8606 = vmatmul.bf16.gmra.mxu0 %v8243
        %v8607 = vpop.f32.mrf.mxu0
        %v8608 = vadd.f32 %v8594, %v8607
        %v8609 = vpop.f32.mrf.mxu0
        %v8610 = vadd.f32 %v8596, %v8609
        %8611 = vdwg.mxu0
        %8612 = vmatpush.bf16.msra.mxu0 %v8057
        %8613 = vmatpush.bf16.msra.mxu0 %v8050
        %8614 = vmatpush.bf16.msra.mxu0 %v8043
        %8615 = vmatpush.bf16.msra.mxu0 %v8036
        %8616 = vmatpush.bf16.msra.mxu0 %v8029
        %8617 = vmatpush.bf16.msra.mxu0 %v8022
        %8618 = vmatpush.bf16.msra.mxu0 %v8015
        %8619 = vmatpush.bf16.msra.mxu0 %v8008
        %8620 = vmatmul.bf16.gmra.mxu0 %v8244
        %v8621 = vpop.f32.mrf.mxu0
        %v8622 = vadd.f32 %v8608, %v8621
        %v8623 = vpop.f32.mrf.mxu0
        %v8624 = vadd.f32 %v8610, %v8623
        %8625 = vdwg.mxu0
        %8626 = vmatpush.bf16.msra.mxu0 %v8113
        %8627 = vmatpush.bf16.msra.mxu0 %v8106
        %8628 = vmatpush.bf16.msra.mxu0 %v8099
        %8629 = vmatpush.bf16.msra.mxu0 %v8092
        %8630 = vmatpush.bf16.msra.mxu0 %v8085
        %8631 = vmatpush.bf16.msra.mxu0 %v8078
        %8632 = vmatpush.bf16.msra.mxu0 %v8071
        %8633 = vmatpush.bf16.msra.mxu0 %v8064
        %8634 = vmatmul.bf16.gmra.mxu0 %v8245
        %v8635 = vpop.f32.mrf.mxu0
        %v8636 = vadd.f32 %v8622, %v8635
        %v8637 = vpop.f32.mrf.mxu0
        %v8638 = vadd.f32 %v8624, %v8637
        %8639 = vdwg.mxu0
        %8640 = vmatpush.bf16.msra.mxu0 %v8169
        %8641 = vmatpush.bf16.msra.mxu0 %v8162
        %8642 = vmatpush.bf16.msra.mxu0 %v8155
        %8643 = vmatpush.bf16.msra.mxu0 %v8148
        %8644 = vmatpush.bf16.msra.mxu0 %v8141
        %8645 = vmatpush.bf16.msra.mxu0 %v8134
        %8646 = vmatpush.bf16.msra.mxu0 %v8127
        %8647 = vmatpush.bf16.msra.mxu0 %v8120
        %8648 = vmatmul.bf16.gmra.mxu0 %v8246
        %v8649 = vpop.f32.mrf.mxu0
        %v8650 = vadd.f32 %v8636, %v8649
        %v8651 = vpop.f32.mrf.mxu0
        %v8652 = vadd.f32 %v8638, %v8651
        %8653 = vdwg.mxu0
        %8654 = vmatpush.bf16.msra.mxu0 %v8225
        %8655 = vmatpush.bf16.msra.mxu0 %v8218
        %8656 = vmatpush.bf16.msra.mxu0 %v8211
        %8657 = vmatpush.bf16.msra.mxu0 %v8204
        %8658 = vmatpush.bf16.msra.mxu0 %v8197
        %8659 = vmatpush.bf16.msra.mxu0 %v8190
        %8660 = vmatpush.bf16.msra.mxu0 %v8183
        %8661 = vmatpush.bf16.msra.mxu0 %v8176
        %8662 = vmatmul.bf16.gmra.mxu0 %v8247
        %v8663 = vpop.f32.mrf.mxu0
        %v8664 = vadd.f32 %v8650, %v8663
        %v8665 = vpop.f32.mrf.mxu0
        %v8666 = vadd.f32 %v8652, %v8665
        %8667 = vdwg.mxu0
        %8668 = vmatpush.bf16.msra.mxu0 %v7946
        %8669 = vmatpush.bf16.msra.mxu0 %v7939
        %8670 = vmatpush.bf16.msra.mxu0 %v7932
        %8671 = vmatpush.bf16.msra.mxu0 %v7925
        %8672 = vmatpush.bf16.msra.mxu0 %v7918
        %8673 = vmatpush.bf16.msra.mxu0 %v7911
        %8674 = vmatpush.bf16.msra.mxu0 %v7904
        %8675 = vmatpush.bf16.msra.mxu0 %v7897
        %8676 = vmatmul.bf16.gmra.mxu0 %v8242
        %v8677 = vpop.f32.mrf.mxu0
        %v8678 = vadd.f32 0.0, %v8677
        %v8679 = vpop.f32.mrf.mxu0
        %v8680 = vadd.f32 0.0, %v8679
        %8681 = vdwg.mxu0
        %8682 = vmatpush.bf16.msra.mxu0 %v8002
        %8683 = vmatpush.bf16.msra.mxu0 %v7995
        %8684 = vmatpush.bf16.msra.mxu0 %v7988
        %8685 = vmatpush.bf16.msra.mxu0 %v7981
        %8686 = vmatpush.bf16.msra.mxu0 %v7974
        %8687 = vmatpush.bf16.msra.mxu0 %v7967
        %8688 = vmatpush.bf16.msra.mxu0 %v7960
        %8689 = vmatpush.bf16.msra.mxu0 %v7953
        %8690 = vmatmul.bf16.gmra.mxu0 %v8243
        %v8691 = vpop.f32.mrf.mxu0
        %v8692 = vadd.f32 %v8678, %v8691
        %v8693 = vpop.f32.mrf.mxu0
        %v8694 = vadd.f32 %v8680, %v8693
        %8695 = vdwg.mxu0
        %8696 = vmatpush.bf16.msra.mxu0 %v8058
        %8697 = vmatpush.bf16.msra.mxu0 %v8051
        %8698 = vmatpush.bf16.msra.mxu0 %v8044
        %8699 = vmatpush.bf16.msra.mxu0 %v8037
        %8700 = vmatpush.bf16.msra.mxu0 %v8030
        %8701 = vmatpush.bf16.msra.mxu0 %v8023
        %8702 = vmatpush.bf16.msra.mxu0 %v8016
        %8703 = vmatpush.bf16.msra.mxu0 %v8009
        %8704 = vmatmul.bf16.gmra.mxu0 %v8244
        %v8705 = vpop.f32.mrf.mxu0
        %v8706 = vadd.f32 %v8692, %v8705
        %v8707 = vpop.f32.mrf.mxu0
        %v8708 = vadd.f32 %v8694, %v8707
        %8709 = vdwg.mxu0
        %8710 = vmatpush.bf16.msra.mxu0 %v8114
        %8711 = vmatpush.bf16.msra.mxu0 %v8107
        %8712 = vmatpush.bf16.msra.mxu0 %v8100
        %8713 = vmatpush.bf16.msra.mxu0 %v8093
        %8714 = vmatpush.bf16.msra.mxu0 %v8086
        %8715 = vmatpush.bf16.msra.mxu0 %v8079
        %8716 = vmatpush.bf16.msra.mxu0 %v8072
        %8717 = vmatpush.bf16.msra.mxu0 %v8065
        %8718 = vmatmul.bf16.gmra.mxu0 %v8245
        %v8719 = vpop.f32.mrf.mxu0
        %v8720 = vadd.f32 %v8706, %v8719
        %v8721 = vpop.f32.mrf.mxu0
        %v8722 = vadd.f32 %v8708, %v8721
        %8723 = vdwg.mxu0
        %8724 = vmatpush.bf16.msra.mxu0 %v8170
        %8725 = vmatpush.bf16.msra.mxu0 %v8163
        %8726 = vmatpush.bf16.msra.mxu0 %v8156
        %8727 = vmatpush.bf16.msra.mxu0 %v8149
        %8728 = vmatpush.bf16.msra.mxu0 %v8142
        %8729 = vmatpush.bf16.msra.mxu0 %v8135
        %8730 = vmatpush.bf16.msra.mxu0 %v8128
        %8731 = vmatpush.bf16.msra.mxu0 %v8121
        %8732 = vmatmul.bf16.gmra.mxu0 %v8246
        %v8733 = vpop.f32.mrf.mxu0
        %v8734 = vadd.f32 %v8720, %v8733
        %v8735 = vpop.f32.mrf.mxu0
        %v8736 = vadd.f32 %v8722, %v8735
        %8737 = vdwg.mxu0
        %8738 = vmatpush.bf16.msra.mxu0 %v8226
        %8739 = vmatpush.bf16.msra.mxu0 %v8219
        %8740 = vmatpush.bf16.msra.mxu0 %v8212
        %8741 = vmatpush.bf16.msra.mxu0 %v8205
        %8742 = vmatpush.bf16.msra.mxu0 %v8198
        %8743 = vmatpush.bf16.msra.mxu0 %v8191
        %8744 = vmatpush.bf16.msra.mxu0 %v8184
        %8745 = vmatpush.bf16.msra.mxu0 %v8177
        %8746 = vmatmul.bf16.gmra.mxu0 %v8247
        %v8747 = vpop.f32.mrf.mxu0
        %v8748 = vadd.f32 %v8734, %v8747
        %v8749 = vpop.f32.mrf.mxu0
        %v8750 = vadd.f32 %v8736, %v8749
        %8751 = vdwg.mxu0
        %8752 = vmatpush.bf16.msra.mxu0 %v7947
        %8753 = vmatpush.bf16.msra.mxu0 %v7940
        %8754 = vmatpush.bf16.msra.mxu0 %v7933
        %8755 = vmatpush.bf16.msra.mxu0 %v7926
        %8756 = vmatpush.bf16.msra.mxu0 %v7919
        %8757 = vmatpush.bf16.msra.mxu0 %v7912
        %8758 = vmatpush.bf16.msra.mxu0 %v7905
        %8759 = vmatpush.bf16.msra.mxu0 %v7898
        %8760 = vmatmul.bf16.gmra.mxu0 %v8242
        %v8761 = vpop.f32.mrf.mxu0
        %v8762 = vadd.f32 0.0, %v8761
        %v8763 = vpop.f32.mrf.mxu0
        %v8764 = vadd.f32 0.0, %v8763
        %8765 = vdwg.mxu0
        %8766 = vmatpush.bf16.msra.mxu0 %v8003
        %8767 = vmatpush.bf16.msra.mxu0 %v7996
        %8768 = vmatpush.bf16.msra.mxu0 %v7989
        %8769 = vmatpush.bf16.msra.mxu0 %v7982
        %8770 = vmatpush.bf16.msra.mxu0 %v7975
        %8771 = vmatpush.bf16.msra.mxu0 %v7968
        %8772 = vmatpush.bf16.msra.mxu0 %v7961
        %8773 = vmatpush.bf16.msra.mxu0 %v7954
        %8774 = vmatmul.bf16.gmra.mxu0 %v8243
        %v8775 = vpop.f32.mrf.mxu0
        %v8776 = vadd.f32 %v8762, %v8775
        %v8777 = vpop.f32.mrf.mxu0
        %v8778 = vadd.f32 %v8764, %v8777
        %8779 = vdwg.mxu0
        %8780 = vmatpush.bf16.msra.mxu0 %v8059
        %8781 = vmatpush.bf16.msra.mxu0 %v8052
        %8782 = vmatpush.bf16.msra.mxu0 %v8045
        %8783 = vmatpush.bf16.msra.mxu0 %v8038
        %8784 = vmatpush.bf16.msra.mxu0 %v8031
        %8785 = vmatpush.bf16.msra.mxu0 %v8024
        %8786 = vmatpush.bf16.msra.mxu0 %v8017
        %8787 = vmatpush.bf16.msra.mxu0 %v8010
        %8788 = vmatmul.bf16.gmra.mxu0 %v8244
        %v8789 = vpop.f32.mrf.mxu0
        %v8790 = vadd.f32 %v8776, %v8789
        %v8791 = vpop.f32.mrf.mxu0
        %v8792 = vadd.f32 %v8778, %v8791
        %8793 = vdwg.mxu0
        %8794 = vmatpush.bf16.msra.mxu0 %v8115
        %8795 = vmatpush.bf16.msra.mxu0 %v8108
        %8796 = vmatpush.bf16.msra.mxu0 %v8101
        %8797 = vmatpush.bf16.msra.mxu0 %v8094
        %8798 = vmatpush.bf16.msra.mxu0 %v8087
        %8799 = vmatpush.bf16.msra.mxu0 %v8080
        %8800 = vmatpush.bf16.msra.mxu0 %v8073
        %8801 = vmatpush.bf16.msra.mxu0 %v8066
        %8802 = vmatmul.bf16.gmra.mxu0 %v8245
        %v8803 = vpop.f32.mrf.mxu0
        %v8804 = vadd.f32 %v8790, %v8803
        %v8805 = vpop.f32.mrf.mxu0
        %v8806 = vadd.f32 %v8792, %v8805
        %8807 = vdwg.mxu0
        %8808 = vmatpush.bf16.msra.mxu0 %v8171
        %8809 = vmatpush.bf16.msra.mxu0 %v8164
        %8810 = vmatpush.bf16.msra.mxu0 %v8157
        %8811 = vmatpush.bf16.msra.mxu0 %v8150
        %8812 = vmatpush.bf16.msra.mxu0 %v8143
        %8813 = vmatpush.bf16.msra.mxu0 %v8136
        %8814 = vmatpush.bf16.msra.mxu0 %v8129
        %8815 = vmatpush.bf16.msra.mxu0 %v8122
        %8816 = vmatmul.bf16.gmra.mxu0 %v8246
        %v8817 = vpop.f32.mrf.mxu0
        %v8818 = vadd.f32 %v8804, %v8817
        %v8819 = vpop.f32.mrf.mxu0
        %v8820 = vadd.f32 %v8806, %v8819
        %8821 = vdwg.mxu0
        %8822 = vmatpush.bf16.msra.mxu0 %v8227
        %8823 = vmatpush.bf16.msra.mxu0 %v8220
        %8824 = vmatpush.bf16.msra.mxu0 %v8213
        %8825 = vmatpush.bf16.msra.mxu0 %v8206
        %8826 = vmatpush.bf16.msra.mxu0 %v8199
        %8827 = vmatpush.bf16.msra.mxu0 %v8192
        %8828 = vmatpush.bf16.msra.mxu0 %v8185
        %8829 = vmatpush.bf16.msra.mxu0 %v8178
        %8830 = vmatmul.bf16.gmra.mxu0 %v8247
        %v8831 = vpop.f32.mrf.mxu0
        %v8832 = vadd.f32 %v8818, %v8831
        %v8833 = vpop.f32.mrf.mxu0
        %v8834 = vadd.f32 %v8820, %v8833
        %8835 = vdwg.mxu0
        %v8836 = vadd.f32 %v8228, %v8328
        %v8837 = vadd.f32 %v8229, %v8412
        %v8838 = vadd.f32 %v8230, %v8496
        %v8839 = vadd.f32 %v8231, %v8580
        %v8840 = vadd.f32 %v8232, %v8664
        %v8841 = vadd.f32 %v8233, %v8748
        %v8842 = vadd.f32 %v8234, %v8832
        %v8843 = vadd.f32 %v8235, %v8330
        %v8844 = vadd.f32 %v8236, %v8414
        %v8845 = vadd.f32 %v8237, %v8498
        %v8846 = vadd.f32 %v8238, %v8582
        %v8847 = vadd.f32 %v8239, %v8666
        %v8848 = vadd.f32 %v8240, %v8750
        %v8849 = vadd.f32 %v8241, %v8834
        %8850 = vst [vmem:[#allocation3] sm:$0xff] %v8836
        %8851 = vst [vmem:[#allocation3 + $0x8] sm:$0xff] %v8837
        %8852 = vst [vmem:[#allocation3 + $0x10] sm:$0xff] %v8838
        %8853 = vst [vmem:[#allocation3 + $0x18] sm:$0xff] %v8839
        %8854 = vst [vmem:[#allocation3 + $0x20] sm:$0xff] %v8840
        %8855 = vst [vmem:[#allocation3 + $0x28] sm:$0xff] %v8841
        %8856 = vst [vmem:[#allocation3 + $0x30] sm:$0xff] %v8842
        %8857 = vst [vmem:[#allocation3 + $0x38] sm:$0xff] %v8843
        %8858 = vst [vmem:[#allocation3 + $0x40] sm:$0xff] %v8844
        %8859 = vst [vmem:[#allocation3 + $0x48] sm:$0xff] %v8845
        %8860 = vst [vmem:[#allocation3 + $0x50] sm:$0xff] %v8846
        %8861 = vst [vmem:[#allocation3 + $0x58] sm:$0xff] %v8847
        %8862 = vst [vmem:[#allocation3 + $0x60] sm:$0xff] %v8848
        %8863 = vst [vmem:[#allocation3 + $0x68] sm:$0xff] %v8849
        %p8864 = scmp.eq.s32.totalorder %s32, 1
        // Predicated region
        $region105: #{tpu_custom_call.1} parent=59 // pred_check
          %p8865 = pneg %p8864
        $region106: #{tpu_custom_call.1} parent=59 // pred_check_branch
          %8867 = sbr.rel (%p8865) target = $region108
        $region107: #{tpu_custom_call.1} parent=59 // pred_region
          %v8868 = vld [vmem:[#allocation4] sm:$0xff]
          %v8869 = vld [vmem:[#allocation4 + $0x8] sm:$0xff]
          %v8870 = vmul.f32 %v8868, 0.00066666666
          %v8871 = vmul.f32 %v8869, 0.00066666666
          %v8872 = vld [vmem:[#allocation5] sm:$0xff]
          %v8873 = vld [vmem:[#allocation5 + $0x8] sm:$0xff]
          %v8874 = vmul.f32 %v8872, 0.00066666666
          %v8875 = vmul.f32 %v8873, 0.00066666666
          %v8876 = vmul.f32 %v8870, %v8870
          %v8877 = vmul.f32 %v8871, %v8871
          %v8878 = vsub.f32 %v8874, %v8876
          %v8879 = vsub.f32 %v8875, %v8877
          %v8880 = vadd.f32 %v8878, 1e-05
          %v8881 = vadd.f32 %v8879, 1e-05
          %v8882 = vrsqrt.pop %v8880
          %v8883 = vmul.f32 %v8882, %v8880
          %v8884 = vmul.f32 %v8883, %v8882
          %v8885 = vmul.f32 0.5, %v8884
          %v8886 = vsub.f32 1.5, %v8885
          %v8887 = vmul.f32 %v8882, %v8886
          %vm8888 = vweird.f32 %v8880
          %vm8889 = vweird.f32 %v8882
          %vm8890 = vmor %vm8888, %vm8889
          %v8891 = vsel %vm8890, %v8882, %v8887
          %v8892 = vrsqrt.pop %v8881
          %v8893 = vmul.f32 %v8892, %v8881
          %v8894 = vmul.f32 %v8893, %v8892
          %v8895 = vmul.f32 0.5, %v8894
          %v8896 = vsub.f32 1.5, %v8895
          %v8897 = vmul.f32 %v8892, %v8896
          %vm8898 = vweird.f32 %v8881
          %vm8899 = vweird.f32 %v8892
          %vm8900 = vmor %vm8898, %vm8899
          %v8901 = vsel %vm8900, %v8892, %v8897
          %v8902 = vld [vmem:[#allocation3] sm:$0xff]
          %v8903 = vld [vmem:[#allocation3 + $0x8] sm:$0xff]
          %v8904 = vld [vmem:[#allocation3 + $0x10] sm:$0xff]
          %v8905 = vld [vmem:[#allocation3 + $0x18] sm:$0xff]
          %v8906 = vld [vmem:[#allocation3 + $0x20] sm:$0xff]
          %v8907 = vld [vmem:[#allocation3 + $0x28] sm:$0xff]
          %v8908 = vld [vmem:[#allocation3 + $0x30] sm:$0xff]
          %v8909 = vld [vmem:[#allocation3 + $0x38] sm:$0xff]
          %v8910 = vld [vmem:[#allocation3 + $0x40] sm:$0xff]
          %v8911 = vld [vmem:[#allocation3 + $0x48] sm:$0xff]
          %v8912 = vld [vmem:[#allocation3 + $0x50] sm:$0xff]
          %v8913 = vld [vmem:[#allocation3 + $0x58] sm:$0xff]
          %v8914 = vld [vmem:[#allocation3 + $0x60] sm:$0xff]
          %v8915 = vld [vmem:[#allocation3 + $0x68] sm:$0xff]
          %v8916 = vld [vmem:[#allocation18] sm:$0xff]
          %v8918 = vperm.slane %v8916, 0
          %v8919 = vperm.slane %v8916, 1
          %v8920 = vperm.slane %v8916, 2
          %v8921 = vperm.slane %v8916, 3
          %v8922 = vperm.slane %v8916, 4
          %v8923 = vperm.slane %v8916, 5
          %v8924 = vperm.slane %v8916, 6
          %v8932 = vmul.f32 %v8902, %v8918
          %v8933 = vmul.f32 %v8903, %v8919
          %v8934 = vmul.f32 %v8904, %v8920
          %v8935 = vmul.f32 %v8905, %v8921
          %v8936 = vmul.f32 %v8906, %v8922
          %v8937 = vmul.f32 %v8907, %v8923
          %v8938 = vmul.f32 %v8908, %v8924
          %v8939 = vmul.f32 %v8909, %v8918
          %v8940 = vmul.f32 %v8910, %v8919
          %v8941 = vmul.f32 %v8911, %v8920
          %v8942 = vmul.f32 %v8912, %v8921
          %v8943 = vmul.f32 %v8913, %v8922
          %v8944 = vmul.f32 %v8914, %v8923
          %v8945 = vmul.f32 %v8915, %v8924
          %8947 = vset.pattern.permute.xlu0 0
          %8948 = vperm.xlu0 %8947, %v8891
          %v8949 = vpop.permute.xlu0 %8948
          %8952 = vset.pattern.permute.xlu0 0
          %8953 = vperm.xlu0 %8952, %v8901
          %v8954 = vpop.permute.xlu0 %8953
          %v8956 = vmul.f32 %v8949, %v8932
          %v8957 = vmul.f32 %v8949, %v8933
          %v8958 = vmul.f32 %v8949, %v8934
          %v8959 = vmul.f32 %v8949, %v8935
          %v8960 = vmul.f32 %v8949, %v8936
          %v8961 = vmul.f32 %v8949, %v8937
          %v8962 = vmul.f32 %v8949, %v8938
          %v8963 = vmul.f32 %v8954, %v8939
          %v8964 = vmul.f32 %v8954, %v8940
          %v8965 = vmul.f32 %v8954, %v8941
          %v8966 = vmul.f32 %v8954, %v8942
          %v8967 = vmul.f32 %v8954, %v8943
          %v8968 = vmul.f32 %v8954, %v8944
          %v8969 = vmul.f32 %v8954, %v8945
          %v8970 = vmul.f32 %v8891, %v8870
          %v8971 = vmul.f32 %v8901, %v8871
          %v8972 = vld [vmem:[#allocation21] sm:$0xff]
          %8974 = vset.pattern.permute.xlu0 0
          %8975 = vperm.xlu0 %8974, %v8970
          %v8976 = vpop.permute.xlu0 %8975
          %8979 = vset.pattern.permute.xlu0 0
          %8980 = vperm.xlu0 %8979, %v8971
          %v8981 = vpop.permute.xlu0 %8980
          %v8984 = vperm.slane %v8972, 0
          %v8985 = vperm.slane %v8972, 1
          %v8986 = vperm.slane %v8972, 2
          %v8987 = vperm.slane %v8972, 3
          %v8988 = vperm.slane %v8972, 4
          %v8989 = vperm.slane %v8972, 5
          %v8990 = vperm.slane %v8972, 6
          %v8998 = vmul.f32 %v8976, %v8984
          %v8999 = vmul.f32 %v8976, %v8985
          %v9000 = vmul.f32 %v8976, %v8986
          %v9001 = vmul.f32 %v8976, %v8987
          %v9002 = vmul.f32 %v8976, %v8988
          %v9003 = vmul.f32 %v8976, %v8989
          %v9004 = vmul.f32 %v8976, %v8990
          %v9005 = vmul.f32 %v8981, %v8984
          %v9006 = vmul.f32 %v8981, %v8985
          %v9007 = vmul.f32 %v8981, %v8986
          %v9008 = vmul.f32 %v8981, %v8987
          %v9009 = vmul.f32 %v8981, %v8988
          %v9010 = vmul.f32 %v8981, %v8989
          %v9011 = vmul.f32 %v8981, %v8990
          %v9012 = vsub.f32 %v8956, %v8998
          %v9013 = vsub.f32 %v8957, %v8999
          %v9014 = vsub.f32 %v8958, %v9000
          %v9015 = vsub.f32 %v8959, %v9001
          %v9016 = vsub.f32 %v8960, %v9002
          %v9017 = vsub.f32 %v8961, %v9003
          %v9018 = vsub.f32 %v8962, %v9004
          %v9019 = vsub.f32 %v8963, %v9005
          %v9020 = vsub.f32 %v8964, %v9006
          %v9021 = vsub.f32 %v8965, %v9007
          %v9022 = vsub.f32 %v8966, %v9008
          %v9023 = vsub.f32 %v8967, %v9009
          %v9024 = vsub.f32 %v8968, %v9010
          %v9025 = vsub.f32 %v8969, %v9011
          %v9026 = vld [vmem:[#allocation20] sm:$0xff]
          %v9028 = vperm.slane %v9026, 0
          %v9029 = vperm.slane %v9026, 1
          %v9030 = vperm.slane %v9026, 2
          %v9031 = vperm.slane %v9026, 3
          %v9032 = vperm.slane %v9026, 4
          %v9033 = vperm.slane %v9026, 5
          %v9034 = vperm.slane %v9026, 6
          %v9042 = vadd.f32 %v9012, %v9028
          %v9043 = vadd.f32 %v9013, %v9029
          %v9044 = vadd.f32 %v9014, %v9030
          %v9045 = vadd.f32 %v9015, %v9031
          %v9046 = vadd.f32 %v9016, %v9032
          %v9047 = vadd.f32 %v9017, %v9033
          %v9048 = vadd.f32 %v9018, %v9034
          %v9049 = vadd.f32 %v9019, %v9028
          %v9050 = vadd.f32 %v9020, %v9029
          %v9051 = vadd.f32 %v9021, %v9030
          %v9052 = vadd.f32 %v9022, %v9031
          %v9053 = vadd.f32 %v9023, %v9032
          %v9054 = vadd.f32 %v9024, %v9033
          %v9055 = vadd.f32 %v9025, %v9034
          %v9056 = vxor.u32 %v9042, 2147483648
          %v9057 = vxor.u32 %v9043, 2147483648
          %v9058 = vxor.u32 %v9044, 2147483648
          %v9059 = vxor.u32 %v9045, 2147483648
          %v9060 = vxor.u32 %v9046, 2147483648
          %v9061 = vxor.u32 %v9047, 2147483648
          %v9062 = vxor.u32 %v9048, 2147483648
          %v9063 = vxor.u32 %v9049, 2147483648
          %v9064 = vxor.u32 %v9050, 2147483648
          %v9065 = vxor.u32 %v9051, 2147483648
          %v9066 = vxor.u32 %v9052, 2147483648
          %v9067 = vxor.u32 %v9053, 2147483648
          %v9068 = vxor.u32 %v9054, 2147483648
          %v9069 = vxor.u32 %v9055, 2147483648
          %v9070 = vmul.f32 %v9056, 1.442695
          %v9071 = vpow.pop %v9070
          %v9072 = vmul.f32 %v9057, 1.442695
          %v9073 = vpow.pop %v9072
          %v9074 = vmul.f32 %v9058, 1.442695
          %v9075 = vpow.pop %v9074
          %v9076 = vmul.f32 %v9059, 1.442695
          %v9077 = vpow.pop %v9076
          %v9078 = vmul.f32 %v9060, 1.442695
          %v9079 = vpow.pop %v9078
          %v9080 = vmul.f32 %v9061, 1.442695
          %v9081 = vpow.pop %v9080
          %v9082 = vmul.f32 %v9062, 1.442695
          %v9083 = vpow.pop %v9082
          %v9084 = vmul.f32 %v9063, 1.442695
          %v9085 = vpow.pop %v9084
          %v9086 = vmul.f32 %v9064, 1.442695
          %v9087 = vpow.pop %v9086
          %v9088 = vmul.f32 %v9065, 1.442695
          %v9089 = vpow.pop %v9088
          %v9090 = vmul.f32 %v9066, 1.442695
          %v9091 = vpow.pop %v9090
          %v9092 = vmul.f32 %v9067, 1.442695
          %v9093 = vpow.pop %v9092
          %v9094 = vmul.f32 %v9068, 1.442695
          %v9095 = vpow.pop %v9094
          %v9096 = vmul.f32 %v9069, 1.442695
          %v9097 = vpow.pop %v9096
          %v9098 = vadd.f32 %v9071, 1.0
          %v9099 = vadd.f32 %v9073, 1.0
          %v9100 = vadd.f32 %v9075, 1.0
          %v9101 = vadd.f32 %v9077, 1.0
          %v9102 = vadd.f32 %v9079, 1.0
          %v9103 = vadd.f32 %v9081, 1.0
          %v9104 = vadd.f32 %v9083, 1.0
          %v9105 = vadd.f32 %v9085, 1.0
          %v9106 = vadd.f32 %v9087, 1.0
          %v9107 = vadd.f32 %v9089, 1.0
          %v9108 = vadd.f32 %v9091, 1.0
          %v9109 = vadd.f32 %v9093, 1.0
          %v9110 = vadd.f32 %v9095, 1.0
          %v9111 = vadd.f32 %v9097, 1.0
          %v9112 = vrcp.pop %v9098
          %v9113 = vmul.f32 %v9098, %v9112
          %v9114 = vsub.f32 1.0, %v9113
          %v9115 = vmul.f32 %v9112, %v9114
          %v9116 = vadd.f32 %v9112, %v9115
          %vm9117 = vweird.f32 %v9098
          %vm9118 = vweird.f32 %v9112
          %vm9119 = vmor %vm9117, %vm9118
          %v9120 = vsel %vm9119, %v9112, %v9116
          %v9121 = vand.u32 2147483647, %v9098
          %vm9122 = vcmp.eq.f32.partialorder %v9121, 8.507059e+37
          %v9123 = vand.u32 %v9098, 2147483648
          %v9124 = vor.u32 1.1754944e-38, %v9123
          %v9125 = vsel %vm9122, %v9124, %v9120
          %v9126 = vmul.f32 1.0, %v9125
          %v9127 = vrcp.pop %v9099
          %v9128 = vmul.f32 %v9099, %v9127
          %v9129 = vsub.f32 1.0, %v9128
          %v9130 = vmul.f32 %v9127, %v9129
          %v9131 = vadd.f32 %v9127, %v9130
          %vm9132 = vweird.f32 %v9099
          %vm9133 = vweird.f32 %v9127
          %vm9134 = vmor %vm9132, %vm9133
          %v9135 = vsel %vm9134, %v9127, %v9131
          %v9136 = vand.u32 2147483647, %v9099
          %vm9137 = vcmp.eq.f32.partialorder %v9136, 8.507059e+37
          %v9138 = vand.u32 %v9099, 2147483648
          %v9139 = vor.u32 1.1754944e-38, %v9138
          %v9140 = vsel %vm9137, %v9139, %v9135
          %v9141 = vmul.f32 1.0, %v9140
          %v9142 = vrcp.pop %v9100
          %v9143 = vmul.f32 %v9100, %v9142
          %v9144 = vsub.f32 1.0, %v9143
          %v9145 = vmul.f32 %v9142, %v9144
          %v9146 = vadd.f32 %v9142, %v9145
          %vm9147 = vweird.f32 %v9100
          %vm9148 = vweird.f32 %v9142
          %vm9149 = vmor %vm9147, %vm9148
          %v9150 = vsel %vm9149, %v9142, %v9146
          %v9151 = vand.u32 2147483647, %v9100
          %vm9152 = vcmp.eq.f32.partialorder %v9151, 8.507059e+37
          %v9153 = vand.u32 %v9100, 2147483648
          %v9154 = vor.u32 1.1754944e-38, %v9153
          %v9155 = vsel %vm9152, %v9154, %v9150
          %v9156 = vmul.f32 1.0, %v9155
          %v9157 = vrcp.pop %v9101
          %v9158 = vmul.f32 %v9101, %v9157
          %v9159 = vsub.f32 1.0, %v9158
          %v9160 = vmul.f32 %v9157, %v9159
          %v9161 = vadd.f32 %v9157, %v9160
          %vm9162 = vweird.f32 %v9101
          %vm9163 = vweird.f32 %v9157
          %vm9164 = vmor %vm9162, %vm9163
          %v9165 = vsel %vm9164, %v9157, %v9161
          %v9166 = vand.u32 2147483647, %v9101
          %vm9167 = vcmp.eq.f32.partialorder %v9166, 8.507059e+37
          %v9168 = vand.u32 %v9101, 2147483648
          %v9169 = vor.u32 1.1754944e-38, %v9168
          %v9170 = vsel %vm9167, %v9169, %v9165
          %v9171 = vmul.f32 1.0, %v9170
          %v9172 = vrcp.pop %v9102
          %v9173 = vmul.f32 %v9102, %v9172
          %v9174 = vsub.f32 1.0, %v9173
          %v9175 = vmul.f32 %v9172, %v9174
          %v9176 = vadd.f32 %v9172, %v9175
          %vm9177 = vweird.f32 %v9102
          %vm9178 = vweird.f32 %v9172
          %vm9179 = vmor %vm9177, %vm9178
          %v9180 = vsel %vm9179, %v9172, %v9176
          %v9181 = vand.u32 2147483647, %v9102
          %vm9182 = vcmp.eq.f32.partialorder %v9181, 8.507059e+37
          %v9183 = vand.u32 %v9102, 2147483648
          %v9184 = vor.u32 1.1754944e-38, %v9183
          %v9185 = vsel %vm9182, %v9184, %v9180
          %v9186 = vmul.f32 1.0, %v9185
          %v9187 = vrcp.pop %v9103
          %v9188 = vmul.f32 %v9103, %v9187
          %v9189 = vsub.f32 1.0, %v9188
          %v9190 = vmul.f32 %v9187, %v9189
          %v9191 = vadd.f32 %v9187, %v9190
          %vm9192 = vweird.f32 %v9103
          %vm9193 = vweird.f32 %v9187
          %vm9194 = vmor %vm9192, %vm9193
          %v9195 = vsel %vm9194, %v9187, %v9191
          %v9196 = vand.u32 2147483647, %v9103
          %vm9197 = vcmp.eq.f32.partialorder %v9196, 8.507059e+37
          %v9198 = vand.u32 %v9103, 2147483648
          %v9199 = vor.u32 1.1754944e-38, %v9198
          %v9200 = vsel %vm9197, %v9199, %v9195
          %v9201 = vmul.f32 1.0, %v9200
          %v9202 = vrcp.pop %v9104
          %v9203 = vmul.f32 %v9104, %v9202
          %v9204 = vsub.f32 1.0, %v9203
          %v9205 = vmul.f32 %v9202, %v9204
          %v9206 = vadd.f32 %v9202, %v9205
          %vm9207 = vweird.f32 %v9104
          %vm9208 = vweird.f32 %v9202
          %vm9209 = vmor %vm9207, %vm9208
          %v9210 = vsel %vm9209, %v9202, %v9206
          %v9211 = vand.u32 2147483647, %v9104
          %vm9212 = vcmp.eq.f32.partialorder %v9211, 8.507059e+37
          %v9213 = vand.u32 %v9104, 2147483648
          %v9214 = vor.u32 1.1754944e-38, %v9213
          %v9215 = vsel %vm9212, %v9214, %v9210
          %v9216 = vmul.f32 1.0, %v9215
          %v9217 = vrcp.pop %v9105
          %v9218 = vmul.f32 %v9105, %v9217
          %v9219 = vsub.f32 1.0, %v9218
          %v9220 = vmul.f32 %v9217, %v9219
          %v9221 = vadd.f32 %v9217, %v9220
          %vm9222 = vweird.f32 %v9105
          %vm9223 = vweird.f32 %v9217
          %vm9224 = vmor %vm9222, %vm9223
          %v9225 = vsel %vm9224, %v9217, %v9221
          %v9226 = vand.u32 2147483647, %v9105
          %vm9227 = vcmp.eq.f32.partialorder %v9226, 8.507059e+37
          %v9228 = vand.u32 %v9105, 2147483648
          %v9229 = vor.u32 1.1754944e-38, %v9228
          %v9230 = vsel %vm9227, %v9229, %v9225
          %v9231 = vmul.f32 1.0, %v9230
          %v9232 = vrcp.pop %v9106
          %v9233 = vmul.f32 %v9106, %v9232
          %v9234 = vsub.f32 1.0, %v9233
          %v9235 = vmul.f32 %v9232, %v9234
          %v9236 = vadd.f32 %v9232, %v9235
          %vm9237 = vweird.f32 %v9106
          %vm9238 = vweird.f32 %v9232
          %vm9239 = vmor %vm9237, %vm9238
          %v9240 = vsel %vm9239, %v9232, %v9236
          %v9241 = vand.u32 2147483647, %v9106
          %vm9242 = vcmp.eq.f32.partialorder %v9241, 8.507059e+37
          %v9243 = vand.u32 %v9106, 2147483648
          %v9244 = vor.u32 1.1754944e-38, %v9243
          %v9245 = vsel %vm9242, %v9244, %v9240
          %v9246 = vmul.f32 1.0, %v9245
          %v9247 = vrcp.pop %v9107
          %v9248 = vmul.f32 %v9107, %v9247
          %v9249 = vsub.f32 1.0, %v9248
          %v9250 = vmul.f32 %v9247, %v9249
          %v9251 = vadd.f32 %v9247, %v9250
          %vm9252 = vweird.f32 %v9107
          %vm9253 = vweird.f32 %v9247
          %vm9254 = vmor %vm9252, %vm9253
          %v9255 = vsel %vm9254, %v9247, %v9251
          %v9256 = vand.u32 2147483647, %v9107
          %vm9257 = vcmp.eq.f32.partialorder %v9256, 8.507059e+37
          %v9258 = vand.u32 %v9107, 2147483648
          %v9259 = vor.u32 1.1754944e-38, %v9258
          %v9260 = vsel %vm9257, %v9259, %v9255
          %v9261 = vmul.f32 1.0, %v9260
          %v9262 = vrcp.pop %v9108
          %v9263 = vmul.f32 %v9108, %v9262
          %v9264 = vsub.f32 1.0, %v9263
          %v9265 = vmul.f32 %v9262, %v9264
          %v9266 = vadd.f32 %v9262, %v9265
          %vm9267 = vweird.f32 %v9108
          %vm9268 = vweird.f32 %v9262
          %vm9269 = vmor %vm9267, %vm9268
          %v9270 = vsel %vm9269, %v9262, %v9266
          %v9271 = vand.u32 2147483647, %v9108
          %vm9272 = vcmp.eq.f32.partialorder %v9271, 8.507059e+37
          %v9273 = vand.u32 %v9108, 2147483648
          %v9274 = vor.u32 1.1754944e-38, %v9273
          %v9275 = vsel %vm9272, %v9274, %v9270
          %v9276 = vmul.f32 1.0, %v9275
          %v9277 = vrcp.pop %v9109
          %v9278 = vmul.f32 %v9109, %v9277
          %v9279 = vsub.f32 1.0, %v9278
          %v9280 = vmul.f32 %v9277, %v9279
          %v9281 = vadd.f32 %v9277, %v9280
          %vm9282 = vweird.f32 %v9109
          %vm9283 = vweird.f32 %v9277
          %vm9284 = vmor %vm9282, %vm9283
          %v9285 = vsel %vm9284, %v9277, %v9281
          %v9286 = vand.u32 2147483647, %v9109
          %vm9287 = vcmp.eq.f32.partialorder %v9286, 8.507059e+37
          %v9288 = vand.u32 %v9109, 2147483648
          %v9289 = vor.u32 1.1754944e-38, %v9288
          %v9290 = vsel %vm9287, %v9289, %v9285
          %v9291 = vmul.f32 1.0, %v9290
          %v9292 = vrcp.pop %v9110
          %v9293 = vmul.f32 %v9110, %v9292
          %v9294 = vsub.f32 1.0, %v9293
          %v9295 = vmul.f32 %v9292, %v9294
          %v9296 = vadd.f32 %v9292, %v9295
          %vm9297 = vweird.f32 %v9110
          %vm9298 = vweird.f32 %v9292
          %vm9299 = vmor %vm9297, %vm9298
          %v9300 = vsel %vm9299, %v9292, %v9296
          %v9301 = vand.u32 2147483647, %v9110
          %vm9302 = vcmp.eq.f32.partialorder %v9301, 8.507059e+37
          %v9303 = vand.u32 %v9110, 2147483648
          %v9304 = vor.u32 1.1754944e-38, %v9303
          %v9305 = vsel %vm9302, %v9304, %v9300
          %v9306 = vmul.f32 1.0, %v9305
          %v9307 = vrcp.pop %v9111
          %v9308 = vmul.f32 %v9111, %v9307
          %v9309 = vsub.f32 1.0, %v9308
          %v9310 = vmul.f32 %v9307, %v9309
          %v9311 = vadd.f32 %v9307, %v9310
          %vm9312 = vweird.f32 %v9111
          %vm9313 = vweird.f32 %v9307
          %vm9314 = vmor %vm9312, %vm9313
          %v9315 = vsel %vm9314, %v9307, %v9311
          %v9316 = vand.u32 2147483647, %v9111
          %vm9317 = vcmp.eq.f32.partialorder %v9316, 8.507059e+37
          %v9318 = vand.u32 %v9111, 2147483648
          %v9319 = vor.u32 1.1754944e-38, %v9318
          %v9320 = vsel %vm9317, %v9319, %v9315
          %v9321 = vmul.f32 1.0, %v9320
          %9322 = vst [vmem:[#allocation23] sm:$0xff] %v9126
          %9323 = vst [vmem:[#allocation23 + $0x8] sm:$0xff] %v9141
          %9324 = vst [vmem:[#allocation23 + $0x10] sm:$0xff] %v9156
          %9325 = vst [vmem:[#allocation23 + $0x18] sm:$0xff] %v9171
          %9326 = vst [vmem:[#allocation23 + $0x20] sm:$0xff] %v9186
          %9327 = vst [vmem:[#allocation23 + $0x28] sm:$0xff] %v9201
          %9328 = vst [vmem:[#allocation23 + $0x30] sm:$0xff] %v9216
          %9329 = vst [vmem:[#allocation23 + $0x38] sm:$0xff] %v9231
          %9330 = vst [vmem:[#allocation23 + $0x40] sm:$0xff] %v9246
          %9331 = vst [vmem:[#allocation23 + $0x48] sm:$0xff] %v9261
          %9332 = vst [vmem:[#allocation23 + $0x50] sm:$0xff] %v9276
          %9333 = vst [vmem:[#allocation23 + $0x58] sm:$0xff] %v9291
          %9334 = vst [vmem:[#allocation23 + $0x60] sm:$0xff] %v9306
          %9335 = vst [vmem:[#allocation23 + $0x68] sm:$0xff] %v9321
        $region108: #{tpu_custom_call.1} parent=59 // pred_fallthru
          _
        // Predicated region
        $region109: #{tpu_custom_call.1} parent=59 // pred_check
          %p9336 = pneg %p275
        $region110: #{tpu_custom_call.1} parent=59 // pred_check_branch
          %9338 = sbr.rel (%p9336) target = $region112
        $region111: #{tpu_custom_call.1} parent=59 // pred_region
          %9340 = vsyncadd [#allocation8], 0
          %s9341 = sshll.u32 [#allocation23], 4
          %s9342 = int_to_ptr.vmem [resolvable:$true] %s9341
          %s9343 = sshll.u32 %s10, 4
          %s9344 = int_to_ptr.hbm [resolvable:$true] %s9343
          %9349 = dma.vmem_to_hbm [thread:$0]  %s9342, 1792, %s9344, [#allocation8], 896, 896, 56
        $region112: #{tpu_custom_call.1} parent=59 // pred_fallthru
          _
        // Predicated region
        $region113: #{tpu_custom_call.1} parent=59 // pred_check
          %p9350 = pneg %p275
        $region114: #{tpu_custom_call.1} parent=59 // pred_check_branch
          %9352 = sbr.rel (%p9350) target = $region116
        $region115: #{tpu_custom_call.1} parent=59 // pred_region
          %9354 = dma.done [#allocation8], 1792
        $region116: #{tpu_custom_call.1} parent=59 // pred_fallthru
          _
      $region60: #{tpu_custom_call.1} parent=5 // pred_fallthru
        _
      %p9355 = scmp.le.s32.totalorder 2, %s27
      // Predicated region
      $region117: #{tpu_custom_call.1} parent=5 // pred_check
        %p9356 = pneg %p9355
      $region118: #{tpu_custom_call.1} parent=5 // pred_check_branch
        %9358 = sbr.rel (%p9356) target = $region120
      $region119: #{tpu_custom_call.1} parent=5 // pred_region
        %s9359 = ssub.s32 %s27, 2
      $region120: #{tpu_custom_call.1} parent=5 // pred_fallthru
        _
    $region6: #{tpu_custom_call.1} parent=1 // loop_footer
      %s31 = sadd.s32 1, %s27
    $region7: #{tpu_custom_call.1} parent=1 // loop_footer_branch
      %26 = sbr.rel target = $region3
    $region8: #{tpu_custom_call.1} parent=1 // loop_exit
      _
    %9360 = vsyncpa [#allocation7], 1
    %s9361 = scalar_lea.sflag [#allocation7], 1
    %9362 = vsyncpa %s9361, 1
    %9363 = vsyncpa [#allocation10], 1
    %9364 = vsyncpa [#allocation13], 1
    %s9365 = scalar_lea.sflag [#allocation13], 1
    %9366 = vsyncpa %s9365, 1
    %9367 = vsyncpa [#allocation16], 1
    %s9368 = scalar_lea.sflag [#allocation16], 1
    %9369 = vsyncpa %s9368, 1
    %9370 = vsyncpa [#allocation19], 1
    %9371 = vsyncpa [#allocation22], 1
    %9372 = vsyncpa [#allocation8], 1
    %s9373 = scalar_lea.sflag [#allocation8], 1
    %9374 = vsyncpa %s9373, 1

</llo_original>
